<compile_context>
chip_gen: v6e
topology: v6e:2x2x1
jax: 0.10.0
libtpu: 0.0.40
codegen_flags: <defaults>
</compile_context>

<pallas_src>
import functools

import jax
import jax.numpy as jnp
from jax.experimental import pallas as pl
from jax.experimental.pallas import tpu as pltpu


def _make_lstm_fc_kernel(num_layers, time_chunk, hidden_pad):
    """Chunked LSTM(+fc) kernel for static layer count / chunk size."""
    L = num_layers
    Tc = time_chunk
    Hp = hidden_pad

    def kernel(x_ref, *rest):
        # rest layout:
        #   [w_ih_l, w_hh_l, b_l] * L   (full-resident VMEM)
        #   wfc_ref, bfc_ref            (full-resident VMEM)
        #   out_ref                     (blocked output, (B, Cp))
        #   seq_ref                     (VMEM scratch, (B, Tc, Hp) bf16)
        #   proj_ref                    (VMEM scratch, (B, Tc, 4*Hp) f32)
        #   [h_l, c_l] * L              (VMEM scratch, persistent state)
        w_refs = rest[: 3 * L]
        wfc_ref = rest[3 * L]
        bfc_ref = rest[3 * L + 1]
        out_ref = rest[3 * L + 2]
        seq_ref = rest[3 * L + 3]
        proj_ref = rest[3 * L + 4]
        state = rest[3 * L + 5:]

        B = x_ref.shape[0]
        chunk = pl.program_id(0)

        @pl.when(chunk == 0)
        def _init():
            for s in state:
                s[...] = jnp.zeros_like(s)

        for l in range(L):
            w_ih_ref = w_refs[3 * l]       # (in_l, 4*Hp) bf16
            w_hh_ref = w_refs[3 * l + 1]   # (Hp, 4*Hp)   bf16
            b_ref = w_refs[3 * l + 2]      # (1, 4*Hp)    f32
            h_ref = state[2 * l]           # (B, Hp)      f32
            c_ref = state[2 * l + 1]       # (B, Hp)      f32

            # ---- Hoisted input projection (+ bias) for the whole chunk.
            # Off the serial recurrence path; one matmul per batch row.
            for bb in range(B):
                xin = x_ref[bb] if l == 0 else seq_ref[bb]   # (Tc, in_l) bf16
                proj_ref[bb] = (
                    jnp.dot(xin, w_ih_ref[...],
                            preferred_element_type=jnp.float32)
                    + b_ref[...]
                )                                            # (Tc, 4*Hp) f32

            # ---- Serial recurrence: only h @ W_hh + elementwise per step.
            for tt in range(Tc):
                h_b = h_ref[...].astype(jnp.bfloat16)        # (B, Hp)
                gates = (
                    jnp.dot(h_b, w_hh_ref[...],
                            preferred_element_type=jnp.float32)
                    + proj_ref[:, tt, :]
                )                                            # (B, 4*Hp) f32

                # PyTorch gate order: input, forget, cell(g), output.
                # Each slice is a lane-aligned 128-multiple (Hp % 128 == 0).
                i_g = jax.nn.sigmoid(gates[:, 0:Hp])
                f_g = jax.nn.sigmoid(gates[:, Hp:2 * Hp])
                g_g = jnp.tanh(gates[:, 2 * Hp:3 * Hp])
                o_g = jax.nn.sigmoid(gates[:, 3 * Hp:4 * Hp])

                c_new = f_g * c_ref[...] + i_g * g_g
                h_new = o_g * jnp.tanh(c_new)

                c_ref[...] = c_new
                h_ref[...] = h_new
                if l < L - 1:
                    # feed next layer's hoisted projection (read before it
                    # gets overwritten by that layer's own time loop)
                    seq_ref[:, tt, :] = h_new.astype(jnp.bfloat16)

        @pl.when(chunk == pl.num_programs(0) - 1)
        def _finalize():
            h_last = state[2 * (L - 1)][...].astype(jnp.bfloat16)   # (B, Hp)
            out_ref[...] = (
                jnp.dot(h_last, wfc_ref[...],
                        preferred_element_type=jnp.float32)
                + bfc_ref[...]
            )

    return kernel


def rnn_forward(x, params, *, hidden_size, num_layers, num_classes,
                time_chunk=None):
    """x: (B, T, input_size) float32, batch_first like the PyTorch module."""
    B, T, F = x.shape
    H = hidden_size
    C = num_classes
    Hp = ((H + 127) // 128) * 128   # hidden padded to lane width (exact, zeros)
    Cp = ((C + 127) // 128) * 128   # lane-dense FC output, sliced afterwards

    # Bounded time chunk: enough to amortize grid-step overhead, small unroll.
    if time_chunk is not None:
        Tc = time_chunk
    else:
        Tc = T
        for cand in (16, 8):
            if T % cand == 0:
                Tc = cand
                break
    assert T % Tc == 0, "sequence length must be divisible by the time chunk"
    assert Tc % 8 == 0 or Tc == T, "time chunk must be a multiple of 8 (or == T)"

    kernel = _make_lstm_fc_kernel(num_layers, Tc, Hp)
    vmem = pltpu.MemorySpace.VMEM

    # Pre-cast x to bf16 in the wrapper: halves the x DMA bytes.
    in_specs = [pl.BlockSpec((B, Tc, F), lambda c: (0, c, 0))]
    args = [x.astype(jnp.bfloat16)]

    def _pad_gate_cols(w_t):  # (rows, 4H) -> (rows, 4*Hp), zero pad per gate
        rows = w_t.shape[0]
        return jnp.pad(
            w_t.reshape(rows, 4, H), ((0, 0), (0, 0), (0, Hp - H))
        ).reshape(rows, 4 * Hp)

    for l in range(num_layers):
        w_ih = params[f"w_ih_l{l}"]        # (4H, in_l)
        w_hh = params[f"w_hh_l{l}"]        # (4H, H)
        in_l = w_ih.shape[1]

        wih_t = _pad_gate_cols(w_ih.T)     # (in_l, 4*Hp)
        if l > 0:
            # previous layer's h is padded to Hp -> pad input rows with zeros
            # (multiplied by zero h-pad entries, so exact)
            wih_t = jnp.pad(wih_t, ((0, Hp - in_l), (0, 0)))
        whh_t = _pad_gate_cols(w_hh.T)                       # (H, 4*Hp)
        whh_t = jnp.pad(whh_t, ((0, Hp - H), (0, 0)))        # (Hp, 4*Hp)

        b = params[f"b_ih_l{l}"] + params[f"b_hh_l{l}"]      # (4H,)
        b = jnp.pad(b.reshape(4, H), ((0, 0), (0, Hp - H))).reshape(1, 4 * Hp)

        args += [wih_t.astype(jnp.bfloat16),
                 whh_t.astype(jnp.bfloat16),
                 b.astype(jnp.float32)]
        in_specs += [pl.BlockSpec(memory_space=vmem)] * 3

    wfc = jnp.pad(params["fc_w"].T,
                  ((0, Hp - H), (0, Cp - C))).astype(jnp.bfloat16)   # (Hp, Cp)
    bfc = jnp.pad(params["fc_b"], (0, Cp - C)).reshape(1, Cp).astype(jnp.float32)
    args += [wfc, bfc]
    in_specs += [pl.BlockSpec(memory_space=vmem)] * 2

    scratch_shapes = [
        pltpu.VMEM((B, Tc, Hp), jnp.bfloat16),       # previous-layer output seq
        pltpu.VMEM((B, Tc, 4 * Hp), jnp.float32),    # hoisted x projection
    ]
    for _ in range(num_layers):
        scratch_shapes += [
            pltpu.VMEM((B, Hp), jnp.float32),        # h_l
            pltpu.VMEM((B, Hp), jnp.float32),        # c_l
        ]

    # Generation-aware VMEM budget (v7x has only 64 MiB per TensorCore).
    try:
        vmem_cap = int(getattr(pltpu.get_tpu_info(), "vmem_capacity_bytes",
                               64 << 20))
    except Exception:
        vmem_cap = 64 << 20
    weight_bytes = sum(int(a.size) * a.dtype.itemsize for a in args[1:])
    x_chunk_bytes = 2 * B * Tc * F * 2               # double-buffered, bf16
    scratch_bytes = (B * Tc * Hp * 2) + (B * Tc * 4 * Hp * 4) \
        + num_layers * 2 * B * Hp * 4
    needed = weight_bytes + x_chunk_bytes + scratch_bytes + (4 << 20)
    vmem_budget = int(max(min(needed, vmem_cap - (8 << 20)), 16 << 20))

    out = pl.pallas_call(
        kernel,
        out_shape=jax.ShapeDtypeStruct((B, Cp), jnp.float32),
        grid_spec=pltpu.PrefetchScalarGridSpec(
            num_scalar_prefetch=0,
            grid=(T // Tc,),
            in_specs=in_specs,
            out_specs=pl.BlockSpec((B, Cp), lambda c: (0, 0)),
            scratch_shapes=scratch_shapes,
        ),
        compiler_params=pltpu.CompilerParams(
            dimension_semantics=("arbitrary",),      # time recurrence: serial
            vmem_limit_bytes=vmem_budget,
        ),
    )(*args)
    return out[:, :C]


def rnn_reference(x, params, *, hidden_size, num_layers, num_classes,
                  weights_dtype=jnp.float32):
    """Pure-JAX reference matching torch.nn.LSTM(batch_first=True) + Linear."""
    B, T, _ = x.shape
    H = hidden_size

    def wd(w):
        return w.astype(weights_dtype).astype(jnp.float32)

    inp = x
    for l in range(num_layers):
        w_ih = wd(params[f"w_ih_l{l}"])
        w_hh = wd(params[f"w_hh_l{l}"])
        b = params[f"b_ih_l{l}"] + params[f"b_hh_l{l}"]
        h = jnp.zeros((B, H), jnp.float32)
        c = jnp.zeros((B, H), jnp.float32)
        outs = []
        for t in range(T):
            gates = inp[:, t, :] @ w_ih.T + h @ w_hh.T + b
            i_g = jax.nn.sigmoid(gates[:, 0:H])
            f_g = jax.nn.sigmoid(gates[:, H:2 * H])
            g_g = jnp.tanh(gates[:, 2 * H:3 * H])
            o_g = jax.nn.sigmoid(gates[:, 3 * H:4 * H])
            c = f_g * c + i_g * g_g
            h = o_g * jnp.tanh(c)
            outs.append(h)
        inp = jnp.stack(outs, axis=1)
    return inp[:, -1, :] @ wd(params["fc_w"]).T + params["fc_b"]


def init_params(key, *, input_size, hidden_size, num_layers, num_classes):
    """Deterministic uniform(-1/sqrt(H), 1/sqrt(H)) init, like PyTorch."""
    H = hidden_size
    bound = 1.0 / (H ** 0.5)
    params = {}
    for l in range(num_layers):
        in_l = input_size if l == 0 else H
        key, k1, k2, k3, k4 = jax.random.split(key, 5)
        params[f"w_ih_l{l}"] = jax.random.uniform(k1, (4 * H, in_l), jnp.float32, -bound, bound)
        params[f"w_hh_l{l}"] = jax.random.uniform(k2, (4 * H, H), jnp.float32, -bound, bound)
        params[f"b_ih_l{l}"] = jax.random.uniform(k3, (4 * H,), jnp.float32, -bound, bound)
        params[f"b_hh_l{l}"] = jax.random.uniform(k4, (4 * H,), jnp.float32, -bound, bound)
    key, k5, k6 = jax.random.split(key, 3)
    params["fc_w"] = jax.random.uniform(k5, (num_classes, H), jnp.float32, -bound, bound)
    params["fc_b"] = jax.random.uniform(k6, (num_classes,), jnp.float32, -bound, bound)
    return params


if __name__ == "__main__":
    B, T = 2, 8
    input_size, hidden_size, num_layers, num_classes = 16, 32, 2, 10

    key = jax.random.PRNGKey(0)
    key, kx = jax.random.split(key)
    x = jax.random.normal(kx, (B, T, input_size), jnp.float32)
    params = init_params(
        key,
        input_size=input_size,
        hidden_size=hidden_size,
        num_layers=num_layers,
        num_classes=num_classes,
    )

    fwd = functools.partial(
        rnn_forward,
        hidden_size=hidden_size,
        num_layers=num_layers,
        num_classes=num_classes,
    )
    out = jax.block_until_ready(fwd(x, params))

    # Reference with the same bf16-rounded weights (kernel also rounds matmul
    # activations to bf16, hence the slightly loosened tolerance).
    ref = rnn_reference(
        x, params,
        hidden_size=hidden_size,
        num_layers=num_layers,
        num_classes=num_classes,
        weights_dtype=jnp.bfloat16,
    )
    assert out.shape == (B, num_classes)
    assert jnp.allclose(out, ref, atol=2e-2, rtol=2e-2), "mismatch vs reference"
    print("KERNEL_OK")
</pallas_src>

<mosaic_0001>
module attributes {stable_mosaic.version = 11 : i64} {
  func.func @kernel(%arg0: i32, %arg1: memref<2x8x16xbf16, #tpu.memory_space<vmem>>, %arg2: memref<16x512xbf16, #tpu.memory_space<vmem>>, %arg3: memref<128x512xbf16, #tpu.memory_space<vmem>>, %arg4: memref<1x512xf32, #tpu.memory_space<vmem>>, %arg5: memref<128x512xbf16, #tpu.memory_space<vmem>>, %arg6: memref<128x512xbf16, #tpu.memory_space<vmem>>, %arg7: memref<1x512xf32, #tpu.memory_space<vmem>>, %arg8: memref<128x128xbf16, #tpu.memory_space<vmem>>, %arg9: memref<1x128xf32, #tpu.memory_space<vmem>>, %arg10: memref<2x128xf32, #tpu.memory_space<vmem>>, %arg11: memref<2x8x128xbf16, #tpu.memory_space<vmem>>, %arg12: memref<2x8x512xf32, #tpu.memory_space<vmem>>, %arg13: memref<2x128xf32, #tpu.memory_space<vmem>>, %arg14: memref<2x128xf32, #tpu.memory_space<vmem>>, %arg15: memref<2x128xf32, #tpu.memory_space<vmem>>, %arg16: memref<2x128xf32, #tpu.memory_space<vmem>>) attributes {dimension_semantics = [#tpu.dimension_semantics<arbitrary>], iteration_bounds = array<i64: 1>, scalar_prefetch = 0 : i64, scratch_operands = 6 : i64, tpu.core_type = #tpu.core_type<tc>, window_params = [{transform_indices = @transform_0, window_bounds = array<i64: 2, 8, 16>}, {pipeline_mode = #tpu.pipeline_mode<synchronous>, transform_indices = @transform_1, window_bounds = array<i64: 16, 512>}, {pipeline_mode = #tpu.pipeline_mode<synchronous>, transform_indices = @transform_2, window_bounds = array<i64: 128, 512>}, {pipeline_mode = #tpu.pipeline_mode<synchronous>, transform_indices = @transform_3, window_bounds = array<i64: 1, 512>}, {pipeline_mode = #tpu.pipeline_mode<synchronous>, transform_indices = @transform_4, window_bounds = array<i64: 128, 512>}, {pipeline_mode = #tpu.pipeline_mode<synchronous>, transform_indices = @transform_5, window_bounds = array<i64: 128, 512>}, {pipeline_mode = #tpu.pipeline_mode<synchronous>, transform_indices = @transform_6, window_bounds = array<i64: 1, 512>}, {pipeline_mode = #tpu.pipeline_mode<synchronous>, transform_indices = @transform_7, window_bounds = array<i64: 128, 128>}, {pipeline_mode = #tpu.pipeline_mode<synchronous>, transform_indices = @transform_8, window_bounds = array<i64: 1, 128>}, {pipeline_mode = #tpu.pipeline_mode<synchronous>, transform_indices = @transform_9, window_bounds = array<i64: 2, 128>}]} {
    %c0_i32 = arith.constant 0 : i32
    %0 = arith.cmpi eq, %arg0, %c0_i32 : i32
    %1 = arith.extui %0 : i1 to i32
    %c0_i32_0 = arith.constant 0 : i32
    %2 = arith.cmpi ne, %1, %c0_i32_0 : i32
    scf.if %2 {
      %cst_334 = arith.constant 0.000000e+00 : f32
      %638 = vector.broadcast %cst_334 : f32 to vector<2x128xf32>
      %c0_335 = arith.constant 0 : index
      %c0_336 = arith.constant 0 : index
      %639 = vector.load %arg13[%c0_335, %c0_336] : memref<2x128xf32, #tpu.memory_space<vmem>>, vector<2x128xf32>
      tpu.vector_store %arg13[%c0_335, %c0_336], %638 {strides = array<i32>} : memref<2x128xf32, #tpu.memory_space<vmem>>, vector<2x128xf32>,
      %cst_337 = arith.constant 0.000000e+00 : f32
      %640 = vector.broadcast %cst_337 : f32 to vector<2x128xf32>
      %c0_338 = arith.constant 0 : index
      %c0_339 = arith.constant 0 : index
      %641 = vector.load %arg14[%c0_338, %c0_339] : memref<2x128xf32, #tpu.memory_space<vmem>>, vector<2x128xf32>
      tpu.vector_store %arg14[%c0_338, %c0_339], %640 {strides = array<i32>} : memref<2x128xf32, #tpu.memory_space<vmem>>, vector<2x128xf32>,
      %cst_340 = arith.constant 0.000000e+00 : f32
      %642 = vector.broadcast %cst_340 : f32 to vector<2x128xf32>
      %c0_341 = arith.constant 0 : index
      %c0_342 = arith.constant 0 : index
      %643 = vector.load %arg15[%c0_341, %c0_342] : memref<2x128xf32, #tpu.memory_space<vmem>>, vector<2x128xf32>
      tpu.vector_store %arg15[%c0_341, %c0_342], %642 {strides = array<i32>} : memref<2x128xf32, #tpu.memory_space<vmem>>, vector<2x128xf32>,
      %cst_343 = arith.constant 0.000000e+00 : f32
      %644 = vector.broadcast %cst_343 : f32 to vector<2x128xf32>
      %c0_344 = arith.constant 0 : index
      %c0_345 = arith.constant 0 : index
      %645 = vector.load %arg16[%c0_344, %c0_345] : memref<2x128xf32, #tpu.memory_space<vmem>>, vector<2x128xf32>
      tpu.vector_store %arg16[%c0_344, %c0_345], %644 {strides = array<i32>} : memref<2x128xf32, #tpu.memory_space<vmem>>, vector<2x128xf32>,
    } else {
    }
    %c0 = arith.constant 0 : index
    %c0_1 = arith.constant 0 : index
    %c0_2 = arith.constant 0 : index
    %3 = vector.load %arg1[%c0, %c0_1, %c0_2] : memref<2x8x16xbf16, #tpu.memory_space<vmem>>, vector<1x8x16xbf16>
    %4 = vector.shape_cast %3 : vector<1x8x16xbf16> to vector<8x16xbf16>
    %c0_3 = arith.constant 0 : index
    %c0_4 = arith.constant 0 : index
    %5 = vector.load %arg2[%c0_3, %c0_4] : memref<16x512xbf16, #tpu.memory_space<vmem>>, vector<16x512xbf16>
    %cst = arith.constant dense<0.000000e+00> : vector<8x512xf32>
    %6 = tpu.matmul %4, %5, %cst {dimension_numbers = #tpu.dot_dimension_numbers<[1], [0], [0], [1], [0, 0, 1, 1], [], []>} : vector<8x16xbf16>, vector<16x512xbf16>, vector<8x512xf32> -> vector<8x512xf32>
    %c0_5 = arith.constant 0 : index
    %c0_6 = arith.constant 0 : index
    %7 = vector.load %arg4[%c0_5, %c0_6] : memref<1x512xf32, #tpu.memory_space<vmem>>, vector<1x512xf32>
    %8 = vector.broadcast %7 : vector<1x512xf32> to vector<8x512xf32>
    %9 = arith.addf %6, %8 : vector<8x512xf32>
    %c0_7 = arith.constant 0 : index
    %c0_8 = arith.constant 0 : index
    %c0_9 = arith.constant 0 : index
    %10 = vector.load %arg12[%c0_7, %c0_8, %c0_9] : memref<2x8x512xf32, #tpu.memory_space<vmem>>, vector<1x8x512xf32>
    %11 = vector.shape_cast %10 : vector<1x8x512xf32> to vector<8x512xf32>
    %12 = vector.shape_cast %9 : vector<8x512xf32> to vector<1x8x512xf32>
    tpu.vector_store %arg12[%c0_7, %c0_8, %c0_9], %12 {strides = array<i32>} : memref<2x8x512xf32, #tpu.memory_space<vmem>>, vector<1x8x512xf32>,
    %c1 = arith.constant 1 : index
    %c0_10 = arith.constant 0 : index
    %c0_11 = arith.constant 0 : index
    %13 = vector.load %arg1[%c1, %c0_10, %c0_11] : memref<2x8x16xbf16, #tpu.memory_space<vmem>>, vector<1x8x16xbf16>
    %14 = vector.shape_cast %13 : vector<1x8x16xbf16> to vector<8x16xbf16>
    %c0_12 = arith.constant 0 : index
    %c0_13 = arith.constant 0 : index
    %15 = vector.load %arg2[%c0_12, %c0_13] : memref<16x512xbf16, #tpu.memory_space<vmem>>, vector<16x512xbf16>
    %cst_14 = arith.constant dense<0.000000e+00> : vector<8x512xf32>
    %16 = tpu.matmul %14, %15, %cst_14 {dimension_numbers = #tpu.dot_dimension_numbers<[1], [0], [0], [1], [0, 0, 1, 1], [], []>} : vector<8x16xbf16>, vector<16x512xbf16>, vector<8x512xf32> -> vector<8x512xf32>
    %c0_15 = arith.constant 0 : index
    %c0_16 = arith.constant 0 : index
    %17 = vector.load %arg4[%c0_15, %c0_16] : memref<1x512xf32, #tpu.memory_space<vmem>>, vector<1x512xf32>
    %18 = vector.broadcast %17 : vector<1x512xf32> to vector<8x512xf32>
    %19 = arith.addf %16, %18 : vector<8x512xf32>
    %c1_17 = arith.constant 1 : index
    %c0_18 = arith.constant 0 : index
    %c0_19 = arith.constant 0 : index
    %20 = vector.load %arg12[%c1_17, %c0_18, %c0_19] : memref<2x8x512xf32, #tpu.memory_space<vmem>>, vector<1x8x512xf32>
    %21 = vector.shape_cast %20 : vector<1x8x512xf32> to vector<8x512xf32>
    %22 = vector.shape_cast %19 : vector<8x512xf32> to vector<1x8x512xf32>
    tpu.vector_store %arg12[%c1_17, %c0_18, %c0_19], %22 {strides = array<i32>} : memref<2x8x512xf32, #tpu.memory_space<vmem>>, vector<1x8x512xf32>,
    %c0_20 = arith.constant 0 : index
    %c0_21 = arith.constant 0 : index
    %23 = vector.load %arg13[%c0_20, %c0_21] : memref<2x128xf32, #tpu.memory_space<vmem>>, vector<2x128xf32>
    %24 = arith.truncf %23 : vector<2x128xf32> to vector<2x128xbf16>
    %c0_22 = arith.constant 0 : index
    %c0_23 = arith.constant 0 : index
    %25 = vector.load %arg3[%c0_22, %c0_23] : memref<128x512xbf16, #tpu.memory_space<vmem>>, vector<128x512xbf16>
    %cst_24 = arith.constant dense<0.000000e+00> : vector<2x512xf32>
    %26 = tpu.matmul %24, %25, %cst_24 {dimension_numbers = #tpu.dot_dimension_numbers<[1], [0], [0], [1], [0, 0, 1, 1], [], []>} : vector<2x128xbf16>, vector<128x512xbf16>, vector<2x512xf32> -> vector<2x512xf32>
    %c0_25 = arith.constant 0 : index
    %c0_26 = arith.constant 0 : index
    %c0_27 = arith.constant 0 : index
    %27 = vector.load %arg12[%c0_25, %c0_26, %c0_27] : memref<2x8x512xf32, #tpu.memory_space<vmem>>, vector<2x1x512xf32>
    %28 = vector.shape_cast %27 : vector<2x1x512xf32> to vector<2x512xf32>
    %29 = arith.addf %26, %28 : vector<2x512xf32>
    %30 = vector.extract_strided_slice %29 {offsets = [0, 0], sizes = [2, 128], strides = [1, 1]} : vector<2x512xf32> to vector<2x128xf32>
    %31 = arith.negf %30 : vector<2x128xf32>
    %32 = math.exp %31 : vector<2x128xf32>
    %cst_28 = arith.constant 1.000000e+00 : f32
    %33 = vector.broadcast %cst_28 : f32 to vector<2x128xf32>
    %34 = arith.addf %33, %32 : vector<2x128xf32>
    %35 = arith.divf %33, %34 : vector<2x128xf32>
    %36 = vector.extract_strided_slice %29 {offsets = [0, 128], sizes = [2, 128], strides = [1, 1]} : vector<2x512xf32> to vector<2x128xf32>
    %37 = arith.negf %36 : vector<2x128xf32>
    %38 = math.exp %37 : vector<2x128xf32>
    %cst_29 = arith.constant 1.000000e+00 : f32
    %39 = vector.broadcast %cst_29 : f32 to vector<2x128xf32>
    %40 = arith.addf %39, %38 : vector<2x128xf32>
    %41 = arith.divf %39, %40 : vector<2x128xf32>
    %42 = vector.extract_strided_slice %29 {offsets = [0, 256], sizes = [2, 128], strides = [1, 1]} : vector<2x512xf32> to vector<2x128xf32>
    %43 = math.tanh %42 : vector<2x128xf32>
    %44 = vector.extract_strided_slice %29 {offsets = [0, 384], sizes = [2, 128], strides = [1, 1]} : vector<2x512xf32> to vector<2x128xf32>
    %45 = arith.negf %44 : vector<2x128xf32>
    %46 = math.exp %45 : vector<2x128xf32>
    %cst_30 = arith.constant 1.000000e+00 : f32
    %47 = vector.broadcast %cst_30 : f32 to vector<2x128xf32>
    %48 = arith.addf %47, %46 : vector<2x128xf32>
    %49 = arith.divf %47, %48 : vector<2x128xf32>
    %c0_31 = arith.constant 0 : index
    %c0_32 = arith.constant 0 : index
    %50 = vector.load %arg14[%c0_31, %c0_32] : memref<2x128xf32, #tpu.memory_space<vmem>>, vector<2x128xf32>
    %51 = arith.mulf %41, %50 : vector<2x128xf32>
    %52 = arith.mulf %35, %43 : vector<2x128xf32>
    %53 = arith.addf %51, %52 : vector<2x128xf32>
    %54 = math.tanh %53 : vector<2x128xf32>
    %55 = arith.mulf %49, %54 : vector<2x128xf32>
    %c0_33 = arith.constant 0 : index
    %c0_34 = arith.constant 0 : index
    %56 = vector.load %arg14[%c0_33, %c0_34] : memref<2x128xf32, #tpu.memory_space<vmem>>, vector<2x128xf32>
    tpu.vector_store %arg14[%c0_33, %c0_34], %53 {strides = array<i32>} : memref<2x128xf32, #tpu.memory_space<vmem>>, vector<2x128xf32>,
    %c0_35 = arith.constant 0 : index
    %c0_36 = arith.constant 0 : index
    %57 = vector.load %arg13[%c0_35, %c0_36] : memref<2x128xf32, #tpu.memory_space<vmem>>, vector<2x128xf32>
    tpu.vector_store %arg13[%c0_35, %c0_36], %55 {strides = array<i32>} : memref<2x128xf32, #tpu.memory_space<vmem>>, vector<2x128xf32>,
    %58 = arith.truncf %55 : vector<2x128xf32> to vector<2x128xbf16>
    %c0_37 = arith.constant 0 : index
    %c0_38 = arith.constant 0 : index
    %c0_39 = arith.constant 0 : index
    %59 = vector.load %arg11[%c0_37, %c0_38, %c0_39] : memref<2x8x128xbf16, #tpu.memory_space<vmem>>, vector<2x1x128xbf16>
    %60 = vector.shape_cast %59 : vector<2x1x128xbf16> to vector<2x128xbf16>
    %61 = vector.shape_cast %58 : vector<2x128xbf16> to vector<2x1x128xbf16>
    tpu.vector_store %arg11[%c0_37, %c0_38, %c0_39], %61 {strides = array<i32>} : memref<2x8x128xbf16, #tpu.memory_space<vmem>>, vector<2x1x128xbf16>,
    %c0_40 = arith.constant 0 : index
    %c0_41 = arith.constant 0 : index
    %62 = vector.load %arg13[%c0_40, %c0_41] : memref<2x128xf32, #tpu.memory_space<vmem>>, vector<2x128xf32>
    %63 = arith.truncf %62 : vector<2x128xf32> to vector<2x128xbf16>
    %c0_42 = arith.constant 0 : index
    %c0_43 = arith.constant 0 : index
    %64 = vector.load %arg3[%c0_42, %c0_43] : memref<128x512xbf16, #tpu.memory_space<vmem>>, vector<128x512xbf16>
    %cst_44 = arith.constant dense<0.000000e+00> : vector<2x512xf32>
    %65 = tpu.matmul %63, %64, %cst_44 {dimension_numbers = #tpu.dot_dimension_numbers<[1], [0], [0], [1], [0, 0, 1, 1], [], []>} : vector<2x128xbf16>, vector<128x512xbf16>, vector<2x512xf32> -> vector<2x512xf32>
    %c0_45 = arith.constant 0 : index
    %c1_46 = arith.constant 1 : index
    %c0_47 = arith.constant 0 : index
    %66 = vector.load %arg12[%c0_45, %c1_46, %c0_47] : memref<2x8x512xf32, #tpu.memory_space<vmem>>, vector<2x1x512xf32>
    %67 = vector.shape_cast %66 : vector<2x1x512xf32> to vector<2x512xf32>
    %68 = arith.addf %65, %67 : vector<2x512xf32>
    %69 = vector.extract_strided_slice %68 {offsets = [0, 0], sizes = [2, 128], strides = [1, 1]} : vector<2x512xf32> to vector<2x128xf32>
    %70 = arith.negf %69 : vector<2x128xf32>
    %71 = math.exp %70 : vector<2x128xf32>
    %cst_48 = arith.constant 1.000000e+00 : f32
    %72 = vector.broadcast %cst_48 : f32 to vector<2x128xf32>
    %73 = arith.addf %72, %71 : vector<2x128xf32>
    %74 = arith.divf %72, %73 : vector<2x128xf32>
    %75 = vector.extract_strided_slice %68 {offsets = [0, 128], sizes = [2, 128], strides = [1, 1]} : vector<2x512xf32> to vector<2x128xf32>
    %76 = arith.negf %75 : vector<2x128xf32>
    %77 = math.exp %76 : vector<2x128xf32>
    %cst_49 = arith.constant 1.000000e+00 : f32
    %78 = vector.broadcast %cst_49 : f32 to vector<2x128xf32>
    %79 = arith.addf %78, %77 : vector<2x128xf32>
    %80 = arith.divf %78, %79 : vector<2x128xf32>
    %81 = vector.extract_strided_slice %68 {offsets = [0, 256], sizes = [2, 128], strides = [1, 1]} : vector<2x512xf32> to vector<2x128xf32>
    %82 = math.tanh %81 : vector<2x128xf32>
    %83 = vector.extract_strided_slice %68 {offsets = [0, 384], sizes = [2, 128], strides = [1, 1]} : vector<2x512xf32> to vector<2x128xf32>
    %84 = arith.negf %83 : vector<2x128xf32>
    %85 = math.exp %84 : vector<2x128xf32>
    %cst_50 = arith.constant 1.000000e+00 : f32
    %86 = vector.broadcast %cst_50 : f32 to vector<2x128xf32>
    %87 = arith.addf %86, %85 : vector<2x128xf32>
    %88 = arith.divf %86, %87 : vector<2x128xf32>
    %c0_51 = arith.constant 0 : index
    %c0_52 = arith.constant 0 : index
    %89 = vector.load %arg14[%c0_51, %c0_52] : memref<2x128xf32, #tpu.memory_space<vmem>>, vector<2x128xf32>
    %90 = arith.mulf %80, %89 : vector<2x128xf32>
    %91 = arith.mulf %74, %82 : vector<2x128xf32>
    %92 = arith.addf %90, %91 : vector<2x128xf32>
    %93 = math.tanh %92 : vector<2x128xf32>
    %94 = arith.mulf %88, %93 : vector<2x128xf32>
    %c0_53 = arith.constant 0 : index
    %c0_54 = arith.constant 0 : index
    %95 = vector.load %arg14[%c0_53, %c0_54] : memref<2x128xf32, #tpu.memory_space<vmem>>, vector<2x128xf32>
    tpu.vector_store %arg14[%c0_53, %c0_54], %92 {strides = array<i32>} : memref<2x128xf32, #tpu.memory_space<vmem>>, vector<2x128xf32>,
    %c0_55 = arith.constant 0 : index
    %c0_56 = arith.constant 0 : index
    %96 = vector.load %arg13[%c0_55, %c0_56] : memref<2x128xf32, #tpu.memory_space<vmem>>, vector<2x128xf32>
    tpu.vector_store %arg13[%c0_55, %c0_56], %94 {strides = array<i32>} : memref<2x128xf32, #tpu.memory_space<vmem>>, vector<2x128xf32>,
    %97 = arith.truncf %94 : vector<2x128xf32> to vector<2x128xbf16>
    %c0_57 = arith.constant 0 : index
    %c1_58 = arith.constant 1 : index
    %c0_59 = arith.constant 0 : index
    %98 = vector.load %arg11[%c0_57, %c1_58, %c0_59] : memref<2x8x128xbf16, #tpu.memory_space<vmem>>, vector<2x1x128xbf16>
    %99 = vector.shape_cast %98 : vector<2x1x128xbf16> to vector<2x128xbf16>
    %100 = vector.shape_cast %97 : vector<2x128xbf16> to vector<2x1x128xbf16>
    tpu.vector_store %arg11[%c0_57, %c1_58, %c0_59], %100 {strides = array<i32>} : memref<2x8x128xbf16, #tpu.memory_space<vmem>>, vector<2x1x128xbf16>,
    %c0_60 = arith.constant 0 : index
    %c0_61 = arith.constant 0 : index
    %101 = vector.load %arg13[%c0_60, %c0_61] : memref<2x128xf32, #tpu.memory_space<vmem>>, vector<2x128xf32>
    %102 = arith.truncf %101 : vector<2x128xf32> to vector<2x128xbf16>
    %c0_62 = arith.constant 0 : index
    %c0_63 = arith.constant 0 : index
    %103 = vector.load %arg3[%c0_62, %c0_63] : memref<128x512xbf16, #tpu.memory_space<vmem>>, vector<128x512xbf16>
    %cst_64 = arith.constant dense<0.000000e+00> : vector<2x512xf32>
    %104 = tpu.matmul %102, %103, %cst_64 {dimension_numbers = #tpu.dot_dimension_numbers<[1], [0], [0], [1], [0, 0, 1, 1], [], []>} : vector<2x128xbf16>, vector<128x512xbf16>, vector<2x512xf32> -> vector<2x512xf32>
    %c0_65 = arith.constant 0 : index
    %c2 = arith.constant 2 : index
    %c0_66 = arith.constant 0 : index
    %105 = vector.load %arg12[%c0_65, %c2, %c0_66] : memref<2x8x512xf32, #tpu.memory_space<vmem>>, vector<2x1x512xf32>
    %106 = vector.shape_cast %105 : vector<2x1x512xf32> to vector<2x512xf32>
    %107 = arith.addf %104, %106 : vector<2x512xf32>
    %108 = vector.extract_strided_slice %107 {offsets = [0, 0], sizes = [2, 128], strides = [1, 1]} : vector<2x512xf32> to vector<2x128xf32>
    %109 = arith.negf %108 : vector<2x128xf32>
    %110 = math.exp %109 : vector<2x128xf32>
    %cst_67 = arith.constant 1.000000e+00 : f32
    %111 = vector.broadcast %cst_67 : f32 to vector<2x128xf32>
    %112 = arith.addf %111, %110 : vector<2x128xf32>
    %113 = arith.divf %111, %112 : vector<2x128xf32>
    %114 = vector.extract_strided_slice %107 {offsets = [0, 128], sizes = [2, 128], strides = [1, 1]} : vector<2x512xf32> to vector<2x128xf32>
    %115 = arith.negf %114 : vector<2x128xf32>
    %116 = math.exp %115 : vector<2x128xf32>
    %cst_68 = arith.constant 1.000000e+00 : f32
    %117 = vector.broadcast %cst_68 : f32 to vector<2x128xf32>
    %118 = arith.addf %117, %116 : vector<2x128xf32>
    %119 = arith.divf %117, %118 : vector<2x128xf32>
    %120 = vector.extract_strided_slice %107 {offsets = [0, 256], sizes = [2, 128], strides = [1, 1]} : vector<2x512xf32> to vector<2x128xf32>
    %121 = math.tanh %120 : vector<2x128xf32>
    %122 = vector.extract_strided_slice %107 {offsets = [0, 384], sizes = [2, 128], strides = [1, 1]} : vector<2x512xf32> to vector<2x128xf32>
    %123 = arith.negf %122 : vector<2x128xf32>
    %124 = math.exp %123 : vector<2x128xf32>
    %cst_69 = arith.constant 1.000000e+00 : f32
    %125 = vector.broadcast %cst_69 : f32 to vector<2x128xf32>
    %126 = arith.addf %125, %124 : vector<2x128xf32>
    %127 = arith.divf %125, %126 : vector<2x128xf32>
    %c0_70 = arith.constant 0 : index
    %c0_71 = arith.constant 0 : index
    %128 = vector.load %arg14[%c0_70, %c0_71] : memref<2x128xf32, #tpu.memory_space<vmem>>, vector<2x128xf32>
    %129 = arith.mulf %119, %128 : vector<2x128xf32>
    %130 = arith.mulf %113, %121 : vector<2x128xf32>
    %131 = arith.addf %129, %130 : vector<2x128xf32>
    %132 = math.tanh %131 : vector<2x128xf32>
    %133 = arith.mulf %127, %132 : vector<2x128xf32>
    %c0_72 = arith.constant 0 : index
    %c0_73 = arith.constant 0 : index
    %134 = vector.load %arg14[%c0_72, %c0_73] : memref<2x128xf32, #tpu.memory_space<vmem>>, vector<2x128xf32>
    tpu.vector_store %arg14[%c0_72, %c0_73], %131 {strides = array<i32>} : memref<2x128xf32, #tpu.memory_space<vmem>>, vector<2x128xf32>,
    %c0_74 = arith.constant 0 : index
    %c0_75 = arith.constant 0 : index
    %135 = vector.load %arg13[%c0_74, %c0_75] : memref<2x128xf32, #tpu.memory_space<vmem>>, vector<2x128xf32>
    tpu.vector_store %arg13[%c0_74, %c0_75], %133 {strides = array<i32>} : memref<2x128xf32, #tpu.memory_space<vmem>>, vector<2x128xf32>,
    %136 = arith.truncf %133 : vector<2x128xf32> to vector<2x128xbf16>
    %c0_76 = arith.constant 0 : index
    %c2_77 = arith.constant 2 : index
    %c0_78 = arith.constant 0 : index
    %137 = vector.load %arg11[%c0_76, %c2_77, %c0_78] : memref<2x8x128xbf16, #tpu.memory_space<vmem>>, vector<2x1x128xbf16>
    %138 = vector.shape_cast %137 : vector<2x1x128xbf16> to vector<2x128xbf16>
    %139 = vector.shape_cast %136 : vector<2x128xbf16> to vector<2x1x128xbf16>
    tpu.vector_store %arg11[%c0_76, %c2_77, %c0_78], %139 {strides = array<i32>} : memref<2x8x128xbf16, #tpu.memory_space<vmem>>, vector<2x1x128xbf16>,
    %c0_79 = arith.constant 0 : index
    %c0_80 = arith.constant 0 : index
    %140 = vector.load %arg13[%c0_79, %c0_80] : memref<2x128xf32, #tpu.memory_space<vmem>>, vector<2x128xf32>
    %141 = arith.truncf %140 : vector<2x128xf32> to vector<2x128xbf16>
    %c0_81 = arith.constant 0 : index
    %c0_82 = arith.constant 0 : index
    %142 = vector.load %arg3[%c0_81, %c0_82] : memref<128x512xbf16, #tpu.memory_space<vmem>>, vector<128x512xbf16>
    %cst_83 = arith.constant dense<0.000000e+00> : vector<2x512xf32>
    %143 = tpu.matmul %141, %142, %cst_83 {dimension_numbers = #tpu.dot_dimension_numbers<[1], [0], [0], [1], [0, 0, 1, 1], [], []>} : vector<2x128xbf16>, vector<128x512xbf16>, vector<2x512xf32> -> vector<2x512xf32>
    %c0_84 = arith.constant 0 : index
    %c3 = arith.constant 3 : index
    %c0_85 = arith.constant 0 : index
    %144 = vector.load %arg12[%c0_84, %c3, %c0_85] : memref<2x8x512xf32, #tpu.memory_space<vmem>>, vector<2x1x512xf32>
    %145 = vector.shape_cast %144 : vector<2x1x512xf32> to vector<2x512xf32>
    %146 = arith.addf %143, %145 : vector<2x512xf32>
    %147 = vector.extract_strided_slice %146 {offsets = [0, 0], sizes = [2, 128], strides = [1, 1]} : vector<2x512xf32> to vector<2x128xf32>
    %148 = arith.negf %147 : vector<2x128xf32>
    %149 = math.exp %148 : vector<2x128xf32>
    %cst_86 = arith.constant 1.000000e+00 : f32
    %150 = vector.broadcast %cst_86 : f32 to vector<2x128xf32>
    %151 = arith.addf %150, %149 : vector<2x128xf32>
    %152 = arith.divf %150, %151 : vector<2x128xf32>
    %153 = vector.extract_strided_slice %146 {offsets = [0, 128], sizes = [2, 128], strides = [1, 1]} : vector<2x512xf32> to vector<2x128xf32>
    %154 = arith.negf %153 : vector<2x128xf32>
    %155 = math.exp %154 : vector<2x128xf32>
    %cst_87 = arith.constant 1.000000e+00 : f32
    %156 = vector.broadcast %cst_87 : f32 to vector<2x128xf32>
    %157 = arith.addf %156, %155 : vector<2x128xf32>
    %158 = arith.divf %156, %157 : vector<2x128xf32>
    %159 = vector.extract_strided_slice %146 {offsets = [0, 256], sizes = [2, 128], strides = [1, 1]} : vector<2x512xf32> to vector<2x128xf32>
    %160 = math.tanh %159 : vector<2x128xf32>
    %161 = vector.extract_strided_slice %146 {offsets = [0, 384], sizes = [2, 128], strides = [1, 1]} : vector<2x512xf32> to vector<2x128xf32>
    %162 = arith.negf %161 : vector<2x128xf32>
    %163 = math.exp %162 : vector<2x128xf32>
    %cst_88 = arith.constant 1.000000e+00 : f32
    %164 = vector.broadcast %cst_88 : f32 to vector<2x128xf32>
    %165 = arith.addf %164, %163 : vector<2x128xf32>
    %166 = arith.divf %164, %165 : vector<2x128xf32>
    %c0_89 = arith.constant 0 : index
    %c0_90 = arith.constant 0 : index
    %167 = vector.load %arg14[%c0_89, %c0_90] : memref<2x128xf32, #tpu.memory_space<vmem>>, vector<2x128xf32>
    %168 = arith.mulf %158, %167 : vector<2x128xf32>
    %169 = arith.mulf %152, %160 : vector<2x128xf32>
    %170 = arith.addf %168, %169 : vector<2x128xf32>
    %171 = math.tanh %170 : vector<2x128xf32>
    %172 = arith.mulf %166, %171 : vector<2x128xf32>
    %c0_91 = arith.constant 0 : index
    %c0_92 = arith.constant 0 : index
    %173 = vector.load %arg14[%c0_91, %c0_92] : memref<2x128xf32, #tpu.memory_space<vmem>>, vector<2x128xf32>
    tpu.vector_store %arg14[%c0_91, %c0_92], %170 {strides = array<i32>} : memref<2x128xf32, #tpu.memory_space<vmem>>, vector<2x128xf32>,
    %c0_93 = arith.constant 0 : index
    %c0_94 = arith.constant 0 : index
    %174 = vector.load %arg13[%c0_93, %c0_94] : memref<2x128xf32, #tpu.memory_space<vmem>>, vector<2x128xf32>
    tpu.vector_store %arg13[%c0_93, %c0_94], %172 {strides = array<i32>} : memref<2x128xf32, #tpu.memory_space<vmem>>, vector<2x128xf32>,
    %175 = arith.truncf %172 : vector<2x128xf32> to vector<2x128xbf16>
    %c0_95 = arith.constant 0 : index
    %c3_96 = arith.constant 3 : index
    %c0_97 = arith.constant 0 : index
    %176 = vector.load %arg11[%c0_95, %c3_96, %c0_97] : memref<2x8x128xbf16, #tpu.memory_space<vmem>>, vector<2x1x128xbf16>
    %177 = vector.shape_cast %176 : vector<2x1x128xbf16> to vector<2x128xbf16>
    %178 = vector.shape_cast %175 : vector<2x128xbf16> to vector<2x1x128xbf16>
    tpu.vector_store %arg11[%c0_95, %c3_96, %c0_97], %178 {strides = array<i32>} : memref<2x8x128xbf16, #tpu.memory_space<vmem>>, vector<2x1x128xbf16>,
    %c0_98 = arith.constant 0 : index
    %c0_99 = arith.constant 0 : index
    %179 = vector.load %arg13[%c0_98, %c0_99] : memref<2x128xf32, #tpu.memory_space<vmem>>, vector<2x128xf32>
    %180 = arith.truncf %179 : vector<2x128xf32> to vector<2x128xbf16>
    %c0_100 = arith.constant 0 : index
    %c0_101 = arith.constant 0 : index
    %181 = vector.load %arg3[%c0_100, %c0_101] : memref<128x512xbf16, #tpu.memory_space<vmem>>, vector<128x512xbf16>
    %cst_102 = arith.constant dense<0.000000e+00> : vector<2x512xf32>
    %182 = tpu.matmul %180, %181, %cst_102 {dimension_numbers = #tpu.dot_dimension_numbers<[1], [0], [0], [1], [0, 0, 1, 1], [], []>} : vector<2x128xbf16>, vector<128x512xbf16>, vector<2x512xf32> -> vector<2x512xf32>
    %c0_103 = arith.constant 0 : index
    %c4 = arith.constant 4 : index
    %c0_104 = arith.constant 0 : index
    %183 = vector.load %arg12[%c0_103, %c4, %c0_104] : memref<2x8x512xf32, #tpu.memory_space<vmem>>, vector<2x1x512xf32>
    %184 = vector.shape_cast %183 : vector<2x1x512xf32> to vector<2x512xf32>
    %185 = arith.addf %182, %184 : vector<2x512xf32>
    %186 = vector.extract_strided_slice %185 {offsets = [0, 0], sizes = [2, 128], strides = [1, 1]} : vector<2x512xf32> to vector<2x128xf32>
    %187 = arith.negf %186 : vector<2x128xf32>
    %188 = math.exp %187 : vector<2x128xf32>
    %cst_105 = arith.constant 1.000000e+00 : f32
    %189 = vector.broadcast %cst_105 : f32 to vector<2x128xf32>
    %190 = arith.addf %189, %188 : vector<2x128xf32>
    %191 = arith.divf %189, %190 : vector<2x128xf32>
    %192 = vector.extract_strided_slice %185 {offsets = [0, 128], sizes = [2, 128], strides = [1, 1]} : vector<2x512xf32> to vector<2x128xf32>
    %193 = arith.negf %192 : vector<2x128xf32>
    %194 = math.exp %193 : vector<2x128xf32>
    %cst_106 = arith.constant 1.000000e+00 : f32
    %195 = vector.broadcast %cst_106 : f32 to vector<2x128xf32>
    %196 = arith.addf %195, %194 : vector<2x128xf32>
    %197 = arith.divf %195, %196 : vector<2x128xf32>
    %198 = vector.extract_strided_slice %185 {offsets = [0, 256], sizes = [2, 128], strides = [1, 1]} : vector<2x512xf32> to vector<2x128xf32>
    %199 = math.tanh %198 : vector<2x128xf32>
    %200 = vector.extract_strided_slice %185 {offsets = [0, 384], sizes = [2, 128], strides = [1, 1]} : vector<2x512xf32> to vector<2x128xf32>
    %201 = arith.negf %200 : vector<2x128xf32>
    %202 = math.exp %201 : vector<2x128xf32>
    %cst_107 = arith.constant 1.000000e+00 : f32
    %203 = vector.broadcast %cst_107 : f32 to vector<2x128xf32>
    %204 = arith.addf %203, %202 : vector<2x128xf32>
    %205 = arith.divf %203, %204 : vector<2x128xf32>
    %c0_108 = arith.constant 0 : index
    %c0_109 = arith.constant 0 : index
    %206 = vector.load %arg14[%c0_108, %c0_109] : memref<2x128xf32, #tpu.memory_space<vmem>>, vector<2x128xf32>
    %207 = arith.mulf %197, %206 : vector<2x128xf32>
    %208 = arith.mulf %191, %199 : vector<2x128xf32>
    %209 = arith.addf %207, %208 : vector<2x128xf32>
    %210 = math.tanh %209 : vector<2x128xf32>
    %211 = arith.mulf %205, %210 : vector<2x128xf32>
    %c0_110 = arith.constant 0 : index
    %c0_111 = arith.constant 0 : index
    %212 = vector.load %arg14[%c0_110, %c0_111] : memref<2x128xf32, #tpu.memory_space<vmem>>, vector<2x128xf32>
    tpu.vector_store %arg14[%c0_110, %c0_111], %209 {strides = array<i32>} : memref<2x128xf32, #tpu.memory_space<vmem>>, vector<2x128xf32>,
    %c0_112 = arith.constant 0 : index
    %c0_113 = arith.constant 0 : index
    %213 = vector.load %arg13[%c0_112, %c0_113] : memref<2x128xf32, #tpu.memory_space<vmem>>, vector<2x128xf32>
    tpu.vector_store %arg13[%c0_112, %c0_113], %211 {strides = array<i32>} : memref<2x128xf32, #tpu.memory_space<vmem>>, vector<2x128xf32>,
    %214 = arith.truncf %211 : vector<2x128xf32> to vector<2x128xbf16>
    %c0_114 = arith.constant 0 : index
    %c4_115 = arith.constant 4 : index
    %c0_116 = arith.constant 0 : index
    %215 = vector.load %arg11[%c0_114, %c4_115, %c0_116] : memref<2x8x128xbf16, #tpu.memory_space<vmem>>, vector<2x1x128xbf16>
    %216 = vector.shape_cast %215 : vector<2x1x128xbf16> to vector<2x128xbf16>
    %217 = vector.shape_cast %214 : vector<2x128xbf16> to vector<2x1x128xbf16>
    tpu.vector_store %arg11[%c0_114, %c4_115, %c0_116], %217 {strides = array<i32>} : memref<2x8x128xbf16, #tpu.memory_space<vmem>>, vector<2x1x128xbf16>,
    %c0_117 = arith.constant 0 : index
    %c0_118 = arith.constant 0 : index
    %218 = vector.load %arg13[%c0_117, %c0_118] : memref<2x128xf32, #tpu.memory_space<vmem>>, vector<2x128xf32>
    %219 = arith.truncf %218 : vector<2x128xf32> to vector<2x128xbf16>
    %c0_119 = arith.constant 0 : index
    %c0_120 = arith.constant 0 : index
    %220 = vector.load %arg3[%c0_119, %c0_120] : memref<128x512xbf16, #tpu.memory_space<vmem>>, vector<128x512xbf16>
    %cst_121 = arith.constant dense<0.000000e+00> : vector<2x512xf32>
    %221 = tpu.matmul %219, %220, %cst_121 {dimension_numbers = #tpu.dot_dimension_numbers<[1], [0], [0], [1], [0, 0, 1, 1], [], []>} : vector<2x128xbf16>, vector<128x512xbf16>, vector<2x512xf32> -> vector<2x512xf32>
    %c0_122 = arith.constant 0 : index
    %c5 = arith.constant 5 : index
    %c0_123 = arith.constant 0 : index
    %222 = vector.load %arg12[%c0_122, %c5, %c0_123] : memref<2x8x512xf32, #tpu.memory_space<vmem>>, vector<2x1x512xf32>
    %223 = vector.shape_cast %222 : vector<2x1x512xf32> to vector<2x512xf32>
    %224 = arith.addf %221, %223 : vector<2x512xf32>
    %225 = vector.extract_strided_slice %224 {offsets = [0, 0], sizes = [2, 128], strides = [1, 1]} : vector<2x512xf32> to vector<2x128xf32>
    %226 = arith.negf %225 : vector<2x128xf32>
    %227 = math.exp %226 : vector<2x128xf32>
    %cst_124 = arith.constant 1.000000e+00 : f32
    %228 = vector.broadcast %cst_124 : f32 to vector<2x128xf32>
    %229 = arith.addf %228, %227 : vector<2x128xf32>
    %230 = arith.divf %228, %229 : vector<2x128xf32>
    %231 = vector.extract_strided_slice %224 {offsets = [0, 128], sizes = [2, 128], strides = [1, 1]} : vector<2x512xf32> to vector<2x128xf32>
    %232 = arith.negf %231 : vector<2x128xf32>
    %233 = math.exp %232 : vector<2x128xf32>
    %cst_125 = arith.constant 1.000000e+00 : f32
    %234 = vector.broadcast %cst_125 : f32 to vector<2x128xf32>
    %235 = arith.addf %234, %233 : vector<2x128xf32>
    %236 = arith.divf %234, %235 : vector<2x128xf32>
    %237 = vector.extract_strided_slice %224 {offsets = [0, 256], sizes = [2, 128], strides = [1, 1]} : vector<2x512xf32> to vector<2x128xf32>
    %238 = math.tanh %237 : vector<2x128xf32>
    %239 = vector.extract_strided_slice %224 {offsets = [0, 384], sizes = [2, 128], strides = [1, 1]} : vector<2x512xf32> to vector<2x128xf32>
    %240 = arith.negf %239 : vector<2x128xf32>
    %241 = math.exp %240 : vector<2x128xf32>
    %cst_126 = arith.constant 1.000000e+00 : f32
    %242 = vector.broadcast %cst_126 : f32 to vector<2x128xf32>
    %243 = arith.addf %242, %241 : vector<2x128xf32>
    %244 = arith.divf %242, %243 : vector<2x128xf32>
    %c0_127 = arith.constant 0 : index
    %c0_128 = arith.constant 0 : index
    %245 = vector.load %arg14[%c0_127, %c0_128] : memref<2x128xf32, #tpu.memory_space<vmem>>, vector<2x128xf32>
    %246 = arith.mulf %236, %245 : vector<2x128xf32>
    %247 = arith.mulf %230, %238 : vector<2x128xf32>
    %248 = arith.addf %246, %247 : vector<2x128xf32>
    %249 = math.tanh %248 : vector<2x128xf32>
    %250 = arith.mulf %244, %249 : vector<2x128xf32>
    %c0_129 = arith.constant 0 : index
    %c0_130 = arith.constant 0 : index
    %251 = vector.load %arg14[%c0_129, %c0_130] : memref<2x128xf32, #tpu.memory_space<vmem>>, vector<2x128xf32>
    tpu.vector_store %arg14[%c0_129, %c0_130], %248 {strides = array<i32>} : memref<2x128xf32, #tpu.memory_space<vmem>>, vector<2x128xf32>,
    %c0_131 = arith.constant 0 : index
    %c0_132 = arith.constant 0 : index
    %252 = vector.load %arg13[%c0_131, %c0_132] : memref<2x128xf32, #tpu.memory_space<vmem>>, vector<2x128xf32>
    tpu.vector_store %arg13[%c0_131, %c0_132], %250 {strides = array<i32>} : memref<2x128xf32, #tpu.memory_space<vmem>>, vector<2x128xf32>,
    %253 = arith.truncf %250 : vector<2x128xf32> to vector<2x128xbf16>
    %c0_133 = arith.constant 0 : index
    %c5_134 = arith.constant 5 : index
    %c0_135 = arith.constant 0 : index
    %254 = vector.load %arg11[%c0_133, %c5_134, %c0_135] : memref<2x8x128xbf16, #tpu.memory_space<vmem>>, vector<2x1x128xbf16>
    %255 = vector.shape_cast %254 : vector<2x1x128xbf16> to vector<2x128xbf16>
    %256 = vector.shape_cast %253 : vector<2x128xbf16> to vector<2x1x128xbf16>
    tpu.vector_store %arg11[%c0_133, %c5_134, %c0_135], %256 {strides = array<i32>} : memref<2x8x128xbf16, #tpu.memory_space<vmem>>, vector<2x1x128xbf16>,
    %c0_136 = arith.constant 0 : index
    %c0_137 = arith.constant 0 : index
    %257 = vector.load %arg13[%c0_136, %c0_137] : memref<2x128xf32, #tpu.memory_space<vmem>>, vector<2x128xf32>
    %258 = arith.truncf %257 : vector<2x128xf32> to vector<2x128xbf16>
    %c0_138 = arith.constant 0 : index
    %c0_139 = arith.constant 0 : index
    %259 = vector.load %arg3[%c0_138, %c0_139] : memref<128x512xbf16, #tpu.memory_space<vmem>>, vector<128x512xbf16>
    %cst_140 = arith.constant dense<0.000000e+00> : vector<2x512xf32>
    %260 = tpu.matmul %258, %259, %cst_140 {dimension_numbers = #tpu.dot_dimension_numbers<[1], [0], [0], [1], [0, 0, 1, 1], [], []>} : vector<2x128xbf16>, vector<128x512xbf16>, vector<2x512xf32> -> vector<2x512xf32>
    %c0_141 = arith.constant 0 : index
    %c6 = arith.constant 6 : index
    %c0_142 = arith.constant 0 : index
    %261 = vector.load %arg12[%c0_141, %c6, %c0_142] : memref<2x8x512xf32, #tpu.memory_space<vmem>>, vector<2x1x512xf32>
    %262 = vector.shape_cast %261 : vector<2x1x512xf32> to vector<2x512xf32>
    %263 = arith.addf %260, %262 : vector<2x512xf32>
    %264 = vector.extract_strided_slice %263 {offsets = [0, 0], sizes = [2, 128], strides = [1, 1]} : vector<2x512xf32> to vector<2x128xf32>
    %265 = arith.negf %264 : vector<2x128xf32>
    %266 = math.exp %265 : vector<2x128xf32>
    %cst_143 = arith.constant 1.000000e+00 : f32
    %267 = vector.broadcast %cst_143 : f32 to vector<2x128xf32>
    %268 = arith.addf %267, %266 : vector<2x128xf32>
    %269 = arith.divf %267, %268 : vector<2x128xf32>
    %270 = vector.extract_strided_slice %263 {offsets = [0, 128], sizes = [2, 128], strides = [1, 1]} : vector<2x512xf32> to vector<2x128xf32>
    %271 = arith.negf %270 : vector<2x128xf32>
    %272 = math.exp %271 : vector<2x128xf32>
    %cst_144 = arith.constant 1.000000e+00 : f32
    %273 = vector.broadcast %cst_144 : f32 to vector<2x128xf32>
    %274 = arith.addf %273, %272 : vector<2x128xf32>
    %275 = arith.divf %273, %274 : vector<2x128xf32>
    %276 = vector.extract_strided_slice %263 {offsets = [0, 256], sizes = [2, 128], strides = [1, 1]} : vector<2x512xf32> to vector<2x128xf32>
    %277 = math.tanh %276 : vector<2x128xf32>
    %278 = vector.extract_strided_slice %263 {offsets = [0, 384], sizes = [2, 128], strides = [1, 1]} : vector<2x512xf32> to vector<2x128xf32>
    %279 = arith.negf %278 : vector<2x128xf32>
    %280 = math.exp %279 : vector<2x128xf32>
    %cst_145 = arith.constant 1.000000e+00 : f32
    %281 = vector.broadcast %cst_145 : f32 to vector<2x128xf32>
    %282 = arith.addf %281, %280 : vector<2x128xf32>
    %283 = arith.divf %281, %282 : vector<2x128xf32>
    %c0_146 = arith.constant 0 : index
    %c0_147 = arith.constant 0 : index
    %284 = vector.load %arg14[%c0_146, %c0_147] : memref<2x128xf32, #tpu.memory_space<vmem>>, vector<2x128xf32>
    %285 = arith.mulf %275, %284 : vector<2x128xf32>
    %286 = arith.mulf %269, %277 : vector<2x128xf32>
    %287 = arith.addf %285, %286 : vector<2x128xf32>
    %288 = math.tanh %287 : vector<2x128xf32>
    %289 = arith.mulf %283, %288 : vector<2x128xf32>
    %c0_148 = arith.constant 0 : index
    %c0_149 = arith.constant 0 : index
    %290 = vector.load %arg14[%c0_148, %c0_149] : memref<2x128xf32, #tpu.memory_space<vmem>>, vector<2x128xf32>
    tpu.vector_store %arg14[%c0_148, %c0_149], %287 {strides = array<i32>} : memref<2x128xf32, #tpu.memory_space<vmem>>, vector<2x128xf32>,
    %c0_150 = arith.constant 0 : index
    %c0_151 = arith.constant 0 : index
    %291 = vector.load %arg13[%c0_150, %c0_151] : memref<2x128xf32, #tpu.memory_space<vmem>>, vector<2x128xf32>
    tpu.vector_store %arg13[%c0_150, %c0_151], %289 {strides = array<i32>} : memref<2x128xf32, #tpu.memory_space<vmem>>, vector<2x128xf32>,
    %292 = arith.truncf %289 : vector<2x128xf32> to vector<2x128xbf16>
    %c0_152 = arith.constant 0 : index
    %c6_153 = arith.constant 6 : index
    %c0_154 = arith.constant 0 : index
    %293 = vector.load %arg11[%c0_152, %c6_153, %c0_154] : memref<2x8x128xbf16, #tpu.memory_space<vmem>>, vector<2x1x128xbf16>
    %294 = vector.shape_cast %293 : vector<2x1x128xbf16> to vector<2x128xbf16>
    %295 = vector.shape_cast %292 : vector<2x128xbf16> to vector<2x1x128xbf16>
    tpu.vector_store %arg11[%c0_152, %c6_153, %c0_154], %295 {strides = array<i32>} : memref<2x8x128xbf16, #tpu.memory_space<vmem>>, vector<2x1x128xbf16>,
    %c0_155 = arith.constant 0 : index
    %c0_156 = arith.constant 0 : index
    %296 = vector.load %arg13[%c0_155, %c0_156] : memref<2x128xf32, #tpu.memory_space<vmem>>, vector<2x128xf32>
    %297 = arith.truncf %296 : vector<2x128xf32> to vector<2x128xbf16>
    %c0_157 = arith.constant 0 : index
    %c0_158 = arith.constant 0 : index
    %298 = vector.load %arg3[%c0_157, %c0_158] : memref<128x512xbf16, #tpu.memory_space<vmem>>, vector<128x512xbf16>
    %cst_159 = arith.constant dense<0.000000e+00> : vector<2x512xf32>
    %299 = tpu.matmul %297, %298, %cst_159 {dimension_numbers = #tpu.dot_dimension_numbers<[1], [0], [0], [1], [0, 0, 1, 1], [], []>} : vector<2x128xbf16>, vector<128x512xbf16>, vector<2x512xf32> -> vector<2x512xf32>
    %c0_160 = arith.constant 0 : index
    %c7 = arith.constant 7 : index
    %c0_161 = arith.constant 0 : index
    %300 = vector.load %arg12[%c0_160, %c7, %c0_161] : memref<2x8x512xf32, #tpu.memory_space<vmem>>, vector<2x1x512xf32>
    %301 = vector.shape_cast %300 : vector<2x1x512xf32> to vector<2x512xf32>
    %302 = arith.addf %299, %301 : vector<2x512xf32>
    %303 = vector.extract_strided_slice %302 {offsets = [0, 0], sizes = [2, 128], strides = [1, 1]} : vector<2x512xf32> to vector<2x128xf32>
    %304 = arith.negf %303 : vector<2x128xf32>
    %305 = math.exp %304 : vector<2x128xf32>
    %cst_162 = arith.constant 1.000000e+00 : f32
    %306 = vector.broadcast %cst_162 : f32 to vector<2x128xf32>
    %307 = arith.addf %306, %305 : vector<2x128xf32>
    %308 = arith.divf %306, %307 : vector<2x128xf32>
    %309 = vector.extract_strided_slice %302 {offsets = [0, 128], sizes = [2, 128], strides = [1, 1]} : vector<2x512xf32> to vector<2x128xf32>
    %310 = arith.negf %309 : vector<2x128xf32>
    %311 = math.exp %310 : vector<2x128xf32>
    %cst_163 = arith.constant 1.000000e+00 : f32
    %312 = vector.broadcast %cst_163 : f32 to vector<2x128xf32>
    %313 = arith.addf %312, %311 : vector<2x128xf32>
    %314 = arith.divf %312, %313 : vector<2x128xf32>
    %315 = vector.extract_strided_slice %302 {offsets = [0, 256], sizes = [2, 128], strides = [1, 1]} : vector<2x512xf32> to vector<2x128xf32>
    %316 = math.tanh %315 : vector<2x128xf32>
    %317 = vector.extract_strided_slice %302 {offsets = [0, 384], sizes = [2, 128], strides = [1, 1]} : vector<2x512xf32> to vector<2x128xf32>
    %318 = arith.negf %317 : vector<2x128xf32>
    %319 = math.exp %318 : vector<2x128xf32>
    %cst_164 = arith.constant 1.000000e+00 : f32
    %320 = vector.broadcast %cst_164 : f32 to vector<2x128xf32>
    %321 = arith.addf %320, %319 : vector<2x128xf32>
    %322 = arith.divf %320, %321 : vector<2x128xf32>
    %c0_165 = arith.constant 0 : index
    %c0_166 = arith.constant 0 : index
    %323 = vector.load %arg14[%c0_165, %c0_166] : memref<2x128xf32, #tpu.memory_space<vmem>>, vector<2x128xf32>
    %324 = arith.mulf %314, %323 : vector<2x128xf32>
    %325 = arith.mulf %308, %316 : vector<2x128xf32>
    %326 = arith.addf %324, %325 : vector<2x128xf32>
    %327 = math.tanh %326 : vector<2x128xf32>
    %328 = arith.mulf %322, %327 : vector<2x128xf32>
    %c0_167 = arith.constant 0 : index
    %c0_168 = arith.constant 0 : index
    %329 = vector.load %arg14[%c0_167, %c0_168] : memref<2x128xf32, #tpu.memory_space<vmem>>, vector<2x128xf32>
    tpu.vector_store %arg14[%c0_167, %c0_168], %326 {strides = array<i32>} : memref<2x128xf32, #tpu.memory_space<vmem>>, vector<2x128xf32>,
    %c0_169 = arith.constant 0 : index
    %c0_170 = arith.constant 0 : index
    %330 = vector.load %arg13[%c0_169, %c0_170] : memref<2x128xf32, #tpu.memory_space<vmem>>, vector<2x128xf32>
    tpu.vector_store %arg13[%c0_169, %c0_170], %328 {strides = array<i32>} : memref<2x128xf32, #tpu.memory_space<vmem>>, vector<2x128xf32>,
    %331 = arith.truncf %328 : vector<2x128xf32> to vector<2x128xbf16>
    %c0_171 = arith.constant 0 : index
    %c7_172 = arith.constant 7 : index
    %c0_173 = arith.constant 0 : index
    %332 = vector.load %arg11[%c0_171, %c7_172, %c0_173] : memref<2x8x128xbf16, #tpu.memory_space<vmem>>, vector<2x1x128xbf16>
    %333 = vector.shape_cast %332 : vector<2x1x128xbf16> to vector<2x128xbf16>
    %334 = vector.shape_cast %331 : vector<2x128xbf16> to vector<2x1x128xbf16>
    tpu.vector_store %arg11[%c0_171, %c7_172, %c0_173], %334 {strides = array<i32>} : memref<2x8x128xbf16, #tpu.memory_space<vmem>>, vector<2x1x128xbf16>,
    %c0_174 = arith.constant 0 : index
    %c0_175 = arith.constant 0 : index
    %c0_176 = arith.constant 0 : index
    %335 = vector.load %arg11[%c0_174, %c0_175, %c0_176] : memref<2x8x128xbf16, #tpu.memory_space<vmem>>, vector<1x8x128xbf16>
    %336 = vector.shape_cast %335 : vector<1x8x128xbf16> to vector<8x128xbf16>
    %c0_177 = arith.constant 0 : index
    %c0_178 = arith.constant 0 : index
    %337 = vector.load %arg5[%c0_177, %c0_178] : memref<128x512xbf16, #tpu.memory_space<vmem>>, vector<128x512xbf16>
    %cst_179 = arith.constant dense<0.000000e+00> : vector<8x512xf32>
    %338 = tpu.matmul %336, %337, %cst_179 {dimension_numbers = #tpu.dot_dimension_numbers<[1], [0], [0], [1], [0, 0, 1, 1], [], []>} : vector<8x128xbf16>, vector<128x512xbf16>, vector<8x512xf32> -> vector<8x512xf32>
    %c0_180 = arith.constant 0 : index
    %c0_181 = arith.constant 0 : index
    %339 = vector.load %arg7[%c0_180, %c0_181] : memref<1x512xf32, #tpu.memory_space<vmem>>, vector<1x512xf32>
    %340 = vector.broadcast %339 : vector<1x512xf32> to vector<8x512xf32>
    %341 = arith.addf %338, %340 : vector<8x512xf32>
    %c0_182 = arith.constant 0 : index
    %c0_183 = arith.constant 0 : index
    %c0_184 = arith.constant 0 : index
    %342 = vector.load %arg12[%c0_182, %c0_183, %c0_184] : memref<2x8x512xf32, #tpu.memory_space<vmem>>, vector<1x8x512xf32>
    %343 = vector.shape_cast %342 : vector<1x8x512xf32> to vector<8x512xf32>
    %344 = vector.shape_cast %341 : vector<8x512xf32> to vector<1x8x512xf32>
    tpu.vector_store %arg12[%c0_182, %c0_183, %c0_184], %344 {strides = array<i32>} : memref<2x8x512xf32, #tpu.memory_space<vmem>>, vector<1x8x512xf32>,
    %c1_185 = arith.constant 1 : index
    %c0_186 = arith.constant 0 : index
    %c0_187 = arith.constant 0 : index
    %345 = vector.load %arg11[%c1_185, %c0_186, %c0_187] : memref<2x8x128xbf16, #tpu.memory_space<vmem>>, vector<1x8x128xbf16>
    %346 = vector.shape_cast %345 : vector<1x8x128xbf16> to vector<8x128xbf16>
    %c0_188 = arith.constant 0 : index
    %c0_189 = arith.constant 0 : index
    %347 = vector.load %arg5[%c0_188, %c0_189] : memref<128x512xbf16, #tpu.memory_space<vmem>>, vector<128x512xbf16>
    %cst_190 = arith.constant dense<0.000000e+00> : vector<8x512xf32>
    %348 = tpu.matmul %346, %347, %cst_190 {dimension_numbers = #tpu.dot_dimension_numbers<[1], [0], [0], [1], [0, 0, 1, 1], [], []>} : vector<8x128xbf16>, vector<128x512xbf16>, vector<8x512xf32> -> vector<8x512xf32>
    %c0_191 = arith.constant 0 : index
    %c0_192 = arith.constant 0 : index
    %349 = vector.load %arg7[%c0_191, %c0_192] : memref<1x512xf32, #tpu.memory_space<vmem>>, vector<1x512xf32>
    %350 = vector.broadcast %349 : vector<1x512xf32> to vector<8x512xf32>
    %351 = arith.addf %348, %350 : vector<8x512xf32>
    %c1_193 = arith.constant 1 : index
    %c0_194 = arith.constant 0 : index
    %c0_195 = arith.constant 0 : index
    %352 = vector.load %arg12[%c1_193, %c0_194, %c0_195] : memref<2x8x512xf32, #tpu.memory_space<vmem>>, vector<1x8x512xf32>
    %353 = vector.shape_cast %352 : vector<1x8x512xf32> to vector<8x512xf32>
    %354 = vector.shape_cast %351 : vector<8x512xf32> to vector<1x8x512xf32>
    tpu.vector_store %arg12[%c1_193, %c0_194, %c0_195], %354 {strides = array<i32>} : memref<2x8x512xf32, #tpu.memory_space<vmem>>, vector<1x8x512xf32>,
    %c0_196 = arith.constant 0 : index
    %c0_197 = arith.constant 0 : index
    %355 = vector.load %arg15[%c0_196, %c0_197] : memref<2x128xf32, #tpu.memory_space<vmem>>, vector<2x128xf32>
    %356 = arith.truncf %355 : vector<2x128xf32> to vector<2x128xbf16>
    %c0_198 = arith.constant 0 : index
    %c0_199 = arith.constant 0 : index
    %357 = vector.load %arg6[%c0_198, %c0_199] : memref<128x512xbf16, #tpu.memory_space<vmem>>, vector<128x512xbf16>
    %cst_200 = arith.constant dense<0.000000e+00> : vector<2x512xf32>
    %358 = tpu.matmul %356, %357, %cst_200 {dimension_numbers = #tpu.dot_dimension_numbers<[1], [0], [0], [1], [0, 0, 1, 1], [], []>} : vector<2x128xbf16>, vector<128x512xbf16>, vector<2x512xf32> -> vector<2x512xf32>
    %c0_201 = arith.constant 0 : index
    %c0_202 = arith.constant 0 : index
    %c0_203 = arith.constant 0 : index
    %359 = vector.load %arg12[%c0_201, %c0_202, %c0_203] : memref<2x8x512xf32, #tpu.memory_space<vmem>>, vector<2x1x512xf32>
    %360 = vector.shape_cast %359 : vector<2x1x512xf32> to vector<2x512xf32>
    %361 = arith.addf %358, %360 : vector<2x512xf32>
    %362 = vector.extract_strided_slice %361 {offsets = [0, 0], sizes = [2, 128], strides = [1, 1]} : vector<2x512xf32> to vector<2x128xf32>
    %363 = arith.negf %362 : vector<2x128xf32>
    %364 = math.exp %363 : vector<2x128xf32>
    %cst_204 = arith.constant 1.000000e+00 : f32
    %365 = vector.broadcast %cst_204 : f32 to vector<2x128xf32>
    %366 = arith.addf %365, %364 : vector<2x128xf32>
    %367 = arith.divf %365, %366 : vector<2x128xf32>
    %368 = vector.extract_strided_slice %361 {offsets = [0, 128], sizes = [2, 128], strides = [1, 1]} : vector<2x512xf32> to vector<2x128xf32>
    %369 = arith.negf %368 : vector<2x128xf32>
    %370 = math.exp %369 : vector<2x128xf32>
    %cst_205 = arith.constant 1.000000e+00 : f32
    %371 = vector.broadcast %cst_205 : f32 to vector<2x128xf32>
    %372 = arith.addf %371, %370 : vector<2x128xf32>
    %373 = arith.divf %371, %372 : vector<2x128xf32>
    %374 = vector.extract_strided_slice %361 {offsets = [0, 256], sizes = [2, 128], strides = [1, 1]} : vector<2x512xf32> to vector<2x128xf32>
    %375 = math.tanh %374 : vector<2x128xf32>
    %376 = vector.extract_strided_slice %361 {offsets = [0, 384], sizes = [2, 128], strides = [1, 1]} : vector<2x512xf32> to vector<2x128xf32>
    %377 = arith.negf %376 : vector<2x128xf32>
    %378 = math.exp %377 : vector<2x128xf32>
    %cst_206 = arith.constant 1.000000e+00 : f32
    %379 = vector.broadcast %cst_206 : f32 to vector<2x128xf32>
    %380 = arith.addf %379, %378 : vector<2x128xf32>
    %381 = arith.divf %379, %380 : vector<2x128xf32>
    %c0_207 = arith.constant 0 : index
    %c0_208 = arith.constant 0 : index
    %382 = vector.load %arg16[%c0_207, %c0_208] : memref<2x128xf32, #tpu.memory_space<vmem>>, vector<2x128xf32>
    %383 = arith.mulf %373, %382 : vector<2x128xf32>
    %384 = arith.mulf %367, %375 : vector<2x128xf32>
    %385 = arith.addf %383, %384 : vector<2x128xf32>
    %386 = math.tanh %385 : vector<2x128xf32>
    %387 = arith.mulf %381, %386 : vector<2x128xf32>
    %c0_209 = arith.constant 0 : index
    %c0_210 = arith.constant 0 : index
    %388 = vector.load %arg16[%c0_209, %c0_210] : memref<2x128xf32, #tpu.memory_space<vmem>>, vector<2x128xf32>
    tpu.vector_store %arg16[%c0_209, %c0_210], %385 {strides = array<i32>} : memref<2x128xf32, #tpu.memory_space<vmem>>, vector<2x128xf32>,
    %c0_211 = arith.constant 0 : index
    %c0_212 = arith.constant 0 : index
    %389 = vector.load %arg15[%c0_211, %c0_212] : memref<2x128xf32, #tpu.memory_space<vmem>>, vector<2x128xf32>
    tpu.vector_store %arg15[%c0_211, %c0_212], %387 {strides = array<i32>} : memref<2x128xf32, #tpu.memory_space<vmem>>, vector<2x128xf32>,
    %c0_213 = arith.constant 0 : index
    %c0_214 = arith.constant 0 : index
    %390 = vector.load %arg15[%c0_213, %c0_214] : memref<2x128xf32, #tpu.memory_space<vmem>>, vector<2x128xf32>
    %391 = arith.truncf %390 : vector<2x128xf32> to vector<2x128xbf16>
    %c0_215 = arith.constant 0 : index
    %c0_216 = arith.constant 0 : index
    %392 = vector.load %arg6[%c0_215, %c0_216] : memref<128x512xbf16, #tpu.memory_space<vmem>>, vector<128x512xbf16>
    %cst_217 = arith.constant dense<0.000000e+00> : vector<2x512xf32>
    %393 = tpu.matmul %391, %392, %cst_217 {dimension_numbers = #tpu.dot_dimension_numbers<[1], [0], [0], [1], [0, 0, 1, 1], [], []>} : vector<2x128xbf16>, vector<128x512xbf16>, vector<2x512xf32> -> vector<2x512xf32>
    %c0_218 = arith.constant 0 : index
    %c1_219 = arith.constant 1 : index
    %c0_220 = arith.constant 0 : index
    %394 = vector.load %arg12[%c0_218, %c1_219, %c0_220] : memref<2x8x512xf32, #tpu.memory_space<vmem>>, vector<2x1x512xf32>
    %395 = vector.shape_cast %394 : vector<2x1x512xf32> to vector<2x512xf32>
    %396 = arith.addf %393, %395 : vector<2x512xf32>
    %397 = vector.extract_strided_slice %396 {offsets = [0, 0], sizes = [2, 128], strides = [1, 1]} : vector<2x512xf32> to vector<2x128xf32>
    %398 = arith.negf %397 : vector<2x128xf32>
    %399 = math.exp %398 : vector<2x128xf32>
    %cst_221 = arith.constant 1.000000e+00 : f32
    %400 = vector.broadcast %cst_221 : f32 to vector<2x128xf32>
    %401 = arith.addf %400, %399 : vector<2x128xf32>
    %402 = arith.divf %400, %401 : vector<2x128xf32>
    %403 = vector.extract_strided_slice %396 {offsets = [0, 128], sizes = [2, 128], strides = [1, 1]} : vector<2x512xf32> to vector<2x128xf32>
    %404 = arith.negf %403 : vector<2x128xf32>
    %405 = math.exp %404 : vector<2x128xf32>
    %cst_222 = arith.constant 1.000000e+00 : f32
    %406 = vector.broadcast %cst_222 : f32 to vector<2x128xf32>
    %407 = arith.addf %406, %405 : vector<2x128xf32>
    %408 = arith.divf %406, %407 : vector<2x128xf32>
    %409 = vector.extract_strided_slice %396 {offsets = [0, 256], sizes = [2, 128], strides = [1, 1]} : vector<2x512xf32> to vector<2x128xf32>
    %410 = math.tanh %409 : vector<2x128xf32>
    %411 = vector.extract_strided_slice %396 {offsets = [0, 384], sizes = [2, 128], strides = [1, 1]} : vector<2x512xf32> to vector<2x128xf32>
    %412 = arith.negf %411 : vector<2x128xf32>
    %413 = math.exp %412 : vector<2x128xf32>
    %cst_223 = arith.constant 1.000000e+00 : f32
    %414 = vector.broadcast %cst_223 : f32 to vector<2x128xf32>
    %415 = arith.addf %414, %413 : vector<2x128xf32>
    %416 = arith.divf %414, %415 : vector<2x128xf32>
    %c0_224 = arith.constant 0 : index
    %c0_225 = arith.constant 0 : index
    %417 = vector.load %arg16[%c0_224, %c0_225] : memref<2x128xf32, #tpu.memory_space<vmem>>, vector<2x128xf32>
    %418 = arith.mulf %408, %417 : vector<2x128xf32>
    %419 = arith.mulf %402, %410 : vector<2x128xf32>
    %420 = arith.addf %418, %419 : vector<2x128xf32>
    %421 = math.tanh %420 : vector<2x128xf32>
    %422 = arith.mulf %416, %421 : vector<2x128xf32>
    %c0_226 = arith.constant 0 : index
    %c0_227 = arith.constant 0 : index
    %423 = vector.load %arg16[%c0_226, %c0_227] : memref<2x128xf32, #tpu.memory_space<vmem>>, vector<2x128xf32>
    tpu.vector_store %arg16[%c0_226, %c0_227], %420 {strides = array<i32>} : memref<2x128xf32, #tpu.memory_space<vmem>>, vector<2x128xf32>,
    %c0_228 = arith.constant 0 : index
    %c0_229 = arith.constant 0 : index
    %424 = vector.load %arg15[%c0_228, %c0_229] : memref<2x128xf32, #tpu.memory_space<vmem>>, vector<2x128xf32>
    tpu.vector_store %arg15[%c0_228, %c0_229], %422 {strides = array<i32>} : memref<2x128xf32, #tpu.memory_space<vmem>>, vector<2x128xf32>,
    %c0_230 = arith.constant 0 : index
    %c0_231 = arith.constant 0 : index
    %425 = vector.load %arg15[%c0_230, %c0_231] : memref<2x128xf32, #tpu.memory_space<vmem>>, vector<2x128xf32>
    %426 = arith.truncf %425 : vector<2x128xf32> to vector<2x128xbf16>
    %c0_232 = arith.constant 0 : index
    %c0_233 = arith.constant 0 : index
    %427 = vector.load %arg6[%c0_232, %c0_233] : memref<128x512xbf16, #tpu.memory_space<vmem>>, vector<128x512xbf16>
    %cst_234 = arith.constant dense<0.000000e+00> : vector<2x512xf32>
    %428 = tpu.matmul %426, %427, %cst_234 {dimension_numbers = #tpu.dot_dimension_numbers<[1], [0], [0], [1], [0, 0, 1, 1], [], []>} : vector<2x128xbf16>, vector<128x512xbf16>, vector<2x512xf32> -> vector<2x512xf32>
    %c0_235 = arith.constant 0 : index
    %c2_236 = arith.constant 2 : index
    %c0_237 = arith.constant 0 : index
    %429 = vector.load %arg12[%c0_235, %c2_236, %c0_237] : memref<2x8x512xf32, #tpu.memory_space<vmem>>, vector<2x1x512xf32>
    %430 = vector.shape_cast %429 : vector<2x1x512xf32> to vector<2x512xf32>
    %431 = arith.addf %428, %430 : vector<2x512xf32>
    %432 = vector.extract_strided_slice %431 {offsets = [0, 0], sizes = [2, 128], strides = [1, 1]} : vector<2x512xf32> to vector<2x128xf32>
    %433 = arith.negf %432 : vector<2x128xf32>
    %434 = math.exp %433 : vector<2x128xf32>
    %cst_238 = arith.constant 1.000000e+00 : f32
    %435 = vector.broadcast %cst_238 : f32 to vector<2x128xf32>
    %436 = arith.addf %435, %434 : vector<2x128xf32>
    %437 = arith.divf %435, %436 : vector<2x128xf32>
    %438 = vector.extract_strided_slice %431 {offsets = [0, 128], sizes = [2, 128], strides = [1, 1]} : vector<2x512xf32> to vector<2x128xf32>
    %439 = arith.negf %438 : vector<2x128xf32>
    %440 = math.exp %439 : vector<2x128xf32>
    %cst_239 = arith.constant 1.000000e+00 : f32
    %441 = vector.broadcast %cst_239 : f32 to vector<2x128xf32>
    %442 = arith.addf %441, %440 : vector<2x128xf32>
    %443 = arith.divf %441, %442 : vector<2x128xf32>
    %444 = vector.extract_strided_slice %431 {offsets = [0, 256], sizes = [2, 128], strides = [1, 1]} : vector<2x512xf32> to vector<2x128xf32>
    %445 = math.tanh %444 : vector<2x128xf32>
    %446 = vector.extract_strided_slice %431 {offsets = [0, 384], sizes = [2, 128], strides = [1, 1]} : vector<2x512xf32> to vector<2x128xf32>
    %447 = arith.negf %446 : vector<2x128xf32>
    %448 = math.exp %447 : vector<2x128xf32>
    %cst_240 = arith.constant 1.000000e+00 : f32
    %449 = vector.broadcast %cst_240 : f32 to vector<2x128xf32>
    %450 = arith.addf %449, %448 : vector<2x128xf32>
    %451 = arith.divf %449, %450 : vector<2x128xf32>
    %c0_241 = arith.constant 0 : index
    %c0_242 = arith.constant 0 : index
    %452 = vector.load %arg16[%c0_241, %c0_242] : memref<2x128xf32, #tpu.memory_space<vmem>>, vector<2x128xf32>
    %453 = arith.mulf %443, %452 : vector<2x128xf32>
    %454 = arith.mulf %437, %445 : vector<2x128xf32>
    %455 = arith.addf %453, %454 : vector<2x128xf32>
    %456 = math.tanh %455 : vector<2x128xf32>
    %457 = arith.mulf %451, %456 : vector<2x128xf32>
    %c0_243 = arith.constant 0 : index
    %c0_244 = arith.constant 0 : index
    %458 = vector.load %arg16[%c0_243, %c0_244] : memref<2x128xf32, #tpu.memory_space<vmem>>, vector<2x128xf32>
    tpu.vector_store %arg16[%c0_243, %c0_244], %455 {strides = array<i32>} : memref<2x128xf32, #tpu.memory_space<vmem>>, vector<2x128xf32>,
    %c0_245 = arith.constant 0 : index
    %c0_246 = arith.constant 0 : index
    %459 = vector.load %arg15[%c0_245, %c0_246] : memref<2x128xf32, #tpu.memory_space<vmem>>, vector<2x128xf32>
    tpu.vector_store %arg15[%c0_245, %c0_246], %457 {strides = array<i32>} : memref<2x128xf32, #tpu.memory_space<vmem>>, vector<2x128xf32>,
    %c0_247 = arith.constant 0 : index
    %c0_248 = arith.constant 0 : index
    %460 = vector.load %arg15[%c0_247, %c0_248] : memref<2x128xf32, #tpu.memory_space<vmem>>, vector<2x128xf32>
    %461 = arith.truncf %460 : vector<2x128xf32> to vector<2x128xbf16>
    %c0_249 = arith.constant 0 : index
    %c0_250 = arith.constant 0 : index
    %462 = vector.load %arg6[%c0_249, %c0_250] : memref<128x512xbf16, #tpu.memory_space<vmem>>, vector<128x512xbf16>
    %cst_251 = arith.constant dense<0.000000e+00> : vector<2x512xf32>
    %463 = tpu.matmul %461, %462, %cst_251 {dimension_numbers = #tpu.dot_dimension_numbers<[1], [0], [0], [1], [0, 0, 1, 1], [], []>} : vector<2x128xbf16>, vector<128x512xbf16>, vector<2x512xf32> -> vector<2x512xf32>
    %c0_252 = arith.constant 0 : index
    %c3_253 = arith.constant 3 : index
    %c0_254 = arith.constant 0 : index
    %464 = vector.load %arg12[%c0_252, %c3_253, %c0_254] : memref<2x8x512xf32, #tpu.memory_space<vmem>>, vector<2x1x512xf32>
    %465 = vector.shape_cast %464 : vector<2x1x512xf32> to vector<2x512xf32>
    %466 = arith.addf %463, %465 : vector<2x512xf32>
    %467 = vector.extract_strided_slice %466 {offsets = [0, 0], sizes = [2, 128], strides = [1, 1]} : vector<2x512xf32> to vector<2x128xf32>
    %468 = arith.negf %467 : vector<2x128xf32>
    %469 = math.exp %468 : vector<2x128xf32>
    %cst_255 = arith.constant 1.000000e+00 : f32
    %470 = vector.broadcast %cst_255 : f32 to vector<2x128xf32>
    %471 = arith.addf %470, %469 : vector<2x128xf32>
    %472 = arith.divf %470, %471 : vector<2x128xf32>
    %473 = vector.extract_strided_slice %466 {offsets = [0, 128], sizes = [2, 128], strides = [1, 1]} : vector<2x512xf32> to vector<2x128xf32>
    %474 = arith.negf %473 : vector<2x128xf32>
    %475 = math.exp %474 : vector<2x128xf32>
    %cst_256 = arith.constant 1.000000e+00 : f32
    %476 = vector.broadcast %cst_256 : f32 to vector<2x128xf32>
    %477 = arith.addf %476, %475 : vector<2x128xf32>
    %478 = arith.divf %476, %477 : vector<2x128xf32>
    %479 = vector.extract_strided_slice %466 {offsets = [0, 256], sizes = [2, 128], strides = [1, 1]} : vector<2x512xf32> to vector<2x128xf32>
    %480 = math.tanh %479 : vector<2x128xf32>
    %481 = vector.extract_strided_slice %466 {offsets = [0, 384], sizes = [2, 128], strides = [1, 1]} : vector<2x512xf32> to vector<2x128xf32>
    %482 = arith.negf %481 : vector<2x128xf32>
    %483 = math.exp %482 : vector<2x128xf32>
    %cst_257 = arith.constant 1.000000e+00 : f32
    %484 = vector.broadcast %cst_257 : f32 to vector<2x128xf32>
    %485 = arith.addf %484, %483 : vector<2x128xf32>
    %486 = arith.divf %484, %485 : vector<2x128xf32>
    %c0_258 = arith.constant 0 : index
    %c0_259 = arith.constant 0 : index
    %487 = vector.load %arg16[%c0_258, %c0_259] : memref<2x128xf32, #tpu.memory_space<vmem>>, vector<2x128xf32>
    %488 = arith.mulf %478, %487 : vector<2x128xf32>
    %489 = arith.mulf %472, %480 : vector<2x128xf32>
    %490 = arith.addf %488, %489 : vector<2x128xf32>
    %491 = math.tanh %490 : vector<2x128xf32>
    %492 = arith.mulf %486, %491 : vector<2x128xf32>
    %c0_260 = arith.constant 0 : index
    %c0_261 = arith.constant 0 : index
    %493 = vector.load %arg16[%c0_260, %c0_261] : memref<2x128xf32, #tpu.memory_space<vmem>>, vector<2x128xf32>
    tpu.vector_store %arg16[%c0_260, %c0_261], %490 {strides = array<i32>} : memref<2x128xf32, #tpu.memory_space<vmem>>, vector<2x128xf32>,
    %c0_262 = arith.constant 0 : index
    %c0_263 = arith.constant 0 : index
    %494 = vector.load %arg15[%c0_262, %c0_263] : memref<2x128xf32, #tpu.memory_space<vmem>>, vector<2x128xf32>
    tpu.vector_store %arg15[%c0_262, %c0_263], %492 {strides = array<i32>} : memref<2x128xf32, #tpu.memory_space<vmem>>, vector<2x128xf32>,
    %c0_264 = arith.constant 0 : index
    %c0_265 = arith.constant 0 : index
    %495 = vector.load %arg15[%c0_264, %c0_265] : memref<2x128xf32, #tpu.memory_space<vmem>>, vector<2x128xf32>
    %496 = arith.truncf %495 : vector<2x128xf32> to vector<2x128xbf16>
    %c0_266 = arith.constant 0 : index
    %c0_267 = arith.constant 0 : index
    %497 = vector.load %arg6[%c0_266, %c0_267] : memref<128x512xbf16, #tpu.memory_space<vmem>>, vector<128x512xbf16>
    %cst_268 = arith.constant dense<0.000000e+00> : vector<2x512xf32>
    %498 = tpu.matmul %496, %497, %cst_268 {dimension_numbers = #tpu.dot_dimension_numbers<[1], [0], [0], [1], [0, 0, 1, 1], [], []>} : vector<2x128xbf16>, vector<128x512xbf16>, vector<2x512xf32> -> vector<2x512xf32>
    %c0_269 = arith.constant 0 : index
    %c4_270 = arith.constant 4 : index
    %c0_271 = arith.constant 0 : index
    %499 = vector.load %arg12[%c0_269, %c4_270, %c0_271] : memref<2x8x512xf32, #tpu.memory_space<vmem>>, vector<2x1x512xf32>
    %500 = vector.shape_cast %499 : vector<2x1x512xf32> to vector<2x512xf32>
    %501 = arith.addf %498, %500 : vector<2x512xf32>
    %502 = vector.extract_strided_slice %501 {offsets = [0, 0], sizes = [2, 128], strides = [1, 1]} : vector<2x512xf32> to vector<2x128xf32>
    %503 = arith.negf %502 : vector<2x128xf32>
    %504 = math.exp %503 : vector<2x128xf32>
    %cst_272 = arith.constant 1.000000e+00 : f32
    %505 = vector.broadcast %cst_272 : f32 to vector<2x128xf32>
    %506 = arith.addf %505, %504 : vector<2x128xf32>
    %507 = arith.divf %505, %506 : vector<2x128xf32>
    %508 = vector.extract_strided_slice %501 {offsets = [0, 128], sizes = [2, 128], strides = [1, 1]} : vector<2x512xf32> to vector<2x128xf32>
    %509 = arith.negf %508 : vector<2x128xf32>
    %510 = math.exp %509 : vector<2x128xf32>
    %cst_273 = arith.constant 1.000000e+00 : f32
    %511 = vector.broadcast %cst_273 : f32 to vector<2x128xf32>
    %512 = arith.addf %511, %510 : vector<2x128xf32>
    %513 = arith.divf %511, %512 : vector<2x128xf32>
    %514 = vector.extract_strided_slice %501 {offsets = [0, 256], sizes = [2, 128], strides = [1, 1]} : vector<2x512xf32> to vector<2x128xf32>
    %515 = math.tanh %514 : vector<2x128xf32>
    %516 = vector.extract_strided_slice %501 {offsets = [0, 384], sizes = [2, 128], strides = [1, 1]} : vector<2x512xf32> to vector<2x128xf32>
    %517 = arith.negf %516 : vector<2x128xf32>
    %518 = math.exp %517 : vector<2x128xf32>
    %cst_274 = arith.constant 1.000000e+00 : f32
    %519 = vector.broadcast %cst_274 : f32 to vector<2x128xf32>
    %520 = arith.addf %519, %518 : vector<2x128xf32>
    %521 = arith.divf %519, %520 : vector<2x128xf32>
    %c0_275 = arith.constant 0 : index
    %c0_276 = arith.constant 0 : index
    %522 = vector.load %arg16[%c0_275, %c0_276] : memref<2x128xf32, #tpu.memory_space<vmem>>, vector<2x128xf32>
    %523 = arith.mulf %513, %522 : vector<2x128xf32>
    %524 = arith.mulf %507, %515 : vector<2x128xf32>
    %525 = arith.addf %523, %524 : vector<2x128xf32>
    %526 = math.tanh %525 : vector<2x128xf32>
    %527 = arith.mulf %521, %526 : vector<2x128xf32>
    %c0_277 = arith.constant 0 : index
    %c0_278 = arith.constant 0 : index
    %528 = vector.load %arg16[%c0_277, %c0_278] : memref<2x128xf32, #tpu.memory_space<vmem>>, vector<2x128xf32>
    tpu.vector_store %arg16[%c0_277, %c0_278], %525 {strides = array<i32>} : memref<2x128xf32, #tpu.memory_space<vmem>>, vector<2x128xf32>,
    %c0_279 = arith.constant 0 : index
    %c0_280 = arith.constant 0 : index
    %529 = vector.load %arg15[%c0_279, %c0_280] : memref<2x128xf32, #tpu.memory_space<vmem>>, vector<2x128xf32>
    tpu.vector_store %arg15[%c0_279, %c0_280], %527 {strides = array<i32>} : memref<2x128xf32, #tpu.memory_space<vmem>>, vector<2x128xf32>,
    %c0_281 = arith.constant 0 : index
    %c0_282 = arith.constant 0 : index
    %530 = vector.load %arg15[%c0_281, %c0_282] : memref<2x128xf32, #tpu.memory_space<vmem>>, vector<2x128xf32>
    %531 = arith.truncf %530 : vector<2x128xf32> to vector<2x128xbf16>
    %c0_283 = arith.constant 0 : index
    %c0_284 = arith.constant 0 : index
    %532 = vector.load %arg6[%c0_283, %c0_284] : memref<128x512xbf16, #tpu.memory_space<vmem>>, vector<128x512xbf16>
    %cst_285 = arith.constant dense<0.000000e+00> : vector<2x512xf32>
    %533 = tpu.matmul %531, %532, %cst_285 {dimension_numbers = #tpu.dot_dimension_numbers<[1], [0], [0], [1], [0, 0, 1, 1], [], []>} : vector<2x128xbf16>, vector<128x512xbf16>, vector<2x512xf32> -> vector<2x512xf32>
    %c0_286 = arith.constant 0 : index
    %c5_287 = arith.constant 5 : index
    %c0_288 = arith.constant 0 : index
    %534 = vector.load %arg12[%c0_286, %c5_287, %c0_288] : memref<2x8x512xf32, #tpu.memory_space<vmem>>, vector<2x1x512xf32>
    %535 = vector.shape_cast %534 : vector<2x1x512xf32> to vector<2x512xf32>
    %536 = arith.addf %533, %535 : vector<2x512xf32>
    %537 = vector.extract_strided_slice %536 {offsets = [0, 0], sizes = [2, 128], strides = [1, 1]} : vector<2x512xf32> to vector<2x128xf32>
    %538 = arith.negf %537 : vector<2x128xf32>
    %539 = math.exp %538 : vector<2x128xf32>
    %cst_289 = arith.constant 1.000000e+00 : f32
    %540 = vector.broadcast %cst_289 : f32 to vector<2x128xf32>
    %541 = arith.addf %540, %539 : vector<2x128xf32>
    %542 = arith.divf %540, %541 : vector<2x128xf32>
    %543 = vector.extract_strided_slice %536 {offsets = [0, 128], sizes = [2, 128], strides = [1, 1]} : vector<2x512xf32> to vector<2x128xf32>
    %544 = arith.negf %543 : vector<2x128xf32>
    %545 = math.exp %544 : vector<2x128xf32>
    %cst_290 = arith.constant 1.000000e+00 : f32
    %546 = vector.broadcast %cst_290 : f32 to vector<2x128xf32>
    %547 = arith.addf %546, %545 : vector<2x128xf32>
    %548 = arith.divf %546, %547 : vector<2x128xf32>
    %549 = vector.extract_strided_slice %536 {offsets = [0, 256], sizes = [2, 128], strides = [1, 1]} : vector<2x512xf32> to vector<2x128xf32>
    %550 = math.tanh %549 : vector<2x128xf32>
    %551 = vector.extract_strided_slice %536 {offsets = [0, 384], sizes = [2, 128], strides = [1, 1]} : vector<2x512xf32> to vector<2x128xf32>
    %552 = arith.negf %551 : vector<2x128xf32>
    %553 = math.exp %552 : vector<2x128xf32>
    %cst_291 = arith.constant 1.000000e+00 : f32
    %554 = vector.broadcast %cst_291 : f32 to vector<2x128xf32>
    %555 = arith.addf %554, %553 : vector<2x128xf32>
    %556 = arith.divf %554, %555 : vector<2x128xf32>
    %c0_292 = arith.constant 0 : index
    %c0_293 = arith.constant 0 : index
    %557 = vector.load %arg16[%c0_292, %c0_293] : memref<2x128xf32, #tpu.memory_space<vmem>>, vector<2x128xf32>
    %558 = arith.mulf %548, %557 : vector<2x128xf32>
    %559 = arith.mulf %542, %550 : vector<2x128xf32>
    %560 = arith.addf %558, %559 : vector<2x128xf32>
    %561 = math.tanh %560 : vector<2x128xf32>
    %562 = arith.mulf %556, %561 : vector<2x128xf32>
    %c0_294 = arith.constant 0 : index
    %c0_295 = arith.constant 0 : index
    %563 = vector.load %arg16[%c0_294, %c0_295] : memref<2x128xf32, #tpu.memory_space<vmem>>, vector<2x128xf32>
    tpu.vector_store %arg16[%c0_294, %c0_295], %560 {strides = array<i32>} : memref<2x128xf32, #tpu.memory_space<vmem>>, vector<2x128xf32>,
    %c0_296 = arith.constant 0 : index
    %c0_297 = arith.constant 0 : index
    %564 = vector.load %arg15[%c0_296, %c0_297] : memref<2x128xf32, #tpu.memory_space<vmem>>, vector<2x128xf32>
    tpu.vector_store %arg15[%c0_296, %c0_297], %562 {strides = array<i32>} : memref<2x128xf32, #tpu.memory_space<vmem>>, vector<2x128xf32>,
    %c0_298 = arith.constant 0 : index
    %c0_299 = arith.constant 0 : index
    %565 = vector.load %arg15[%c0_298, %c0_299] : memref<2x128xf32, #tpu.memory_space<vmem>>, vector<2x128xf32>
    %566 = arith.truncf %565 : vector<2x128xf32> to vector<2x128xbf16>
    %c0_300 = arith.constant 0 : index
    %c0_301 = arith.constant 0 : index
    %567 = vector.load %arg6[%c0_300, %c0_301] : memref<128x512xbf16, #tpu.memory_space<vmem>>, vector<128x512xbf16>
    %cst_302 = arith.constant dense<0.000000e+00> : vector<2x512xf32>
    %568 = tpu.matmul %566, %567, %cst_302 {dimension_numbers = #tpu.dot_dimension_numbers<[1], [0], [0], [1], [0, 0, 1, 1], [], []>} : vector<2x128xbf16>, vector<128x512xbf16>, vector<2x512xf32> -> vector<2x512xf32>
    %c0_303 = arith.constant 0 : index
    %c6_304 = arith.constant 6 : index
    %c0_305 = arith.constant 0 : index
    %569 = vector.load %arg12[%c0_303, %c6_304, %c0_305] : memref<2x8x512xf32, #tpu.memory_space<vmem>>, vector<2x1x512xf32>
    %570 = vector.shape_cast %569 : vector<2x1x512xf32> to vector<2x512xf32>
    %571 = arith.addf %568, %570 : vector<2x512xf32>
    %572 = vector.extract_strided_slice %571 {offsets = [0, 0], sizes = [2, 128], strides = [1, 1]} : vector<2x512xf32> to vector<2x128xf32>
    %573 = arith.negf %572 : vector<2x128xf32>
    %574 = math.exp %573 : vector<2x128xf32>
    %cst_306 = arith.constant 1.000000e+00 : f32
    %575 = vector.broadcast %cst_306 : f32 to vector<2x128xf32>
    %576 = arith.addf %575, %574 : vector<2x128xf32>
    %577 = arith.divf %575, %576 : vector<2x128xf32>
    %578 = vector.extract_strided_slice %571 {offsets = [0, 128], sizes = [2, 128], strides = [1, 1]} : vector<2x512xf32> to vector<2x128xf32>
    %579 = arith.negf %578 : vector<2x128xf32>
    %580 = math.exp %579 : vector<2x128xf32>
    %cst_307 = arith.constant 1.000000e+00 : f32
    %581 = vector.broadcast %cst_307 : f32 to vector<2x128xf32>
    %582 = arith.addf %581, %580 : vector<2x128xf32>
    %583 = arith.divf %581, %582 : vector<2x128xf32>
    %584 = vector.extract_strided_slice %571 {offsets = [0, 256], sizes = [2, 128], strides = [1, 1]} : vector<2x512xf32> to vector<2x128xf32>
    %585 = math.tanh %584 : vector<2x128xf32>
    %586 = vector.extract_strided_slice %571 {offsets = [0, 384], sizes = [2, 128], strides = [1, 1]} : vector<2x512xf32> to vector<2x128xf32>
    %587 = arith.negf %586 : vector<2x128xf32>
    %588 = math.exp %587 : vector<2x128xf32>
    %cst_308 = arith.constant 1.000000e+00 : f32
    %589 = vector.broadcast %cst_308 : f32 to vector<2x128xf32>
    %590 = arith.addf %589, %588 : vector<2x128xf32>
    %591 = arith.divf %589, %590 : vector<2x128xf32>
    %c0_309 = arith.constant 0 : index
    %c0_310 = arith.constant 0 : index
    %592 = vector.load %arg16[%c0_309, %c0_310] : memref<2x128xf32, #tpu.memory_space<vmem>>, vector<2x128xf32>
    %593 = arith.mulf %583, %592 : vector<2x128xf32>
    %594 = arith.mulf %577, %585 : vector<2x128xf32>
    %595 = arith.addf %593, %594 : vector<2x128xf32>
    %596 = math.tanh %595 : vector<2x128xf32>
    %597 = arith.mulf %591, %596 : vector<2x128xf32>
    %c0_311 = arith.constant 0 : index
    %c0_312 = arith.constant 0 : index
    %598 = vector.load %arg16[%c0_311, %c0_312] : memref<2x128xf32, #tpu.memory_space<vmem>>, vector<2x128xf32>
    tpu.vector_store %arg16[%c0_311, %c0_312], %595 {strides = array<i32>} : memref<2x128xf32, #tpu.memory_space<vmem>>, vector<2x128xf32>,
    %c0_313 = arith.constant 0 : index
    %c0_314 = arith.constant 0 : index
    %599 = vector.load %arg15[%c0_313, %c0_314] : memref<2x128xf32, #tpu.memory_space<vmem>>, vector<2x128xf32>
    tpu.vector_store %arg15[%c0_313, %c0_314], %597 {strides = array<i32>} : memref<2x128xf32, #tpu.memory_space<vmem>>, vector<2x128xf32>,
    %c0_315 = arith.constant 0 : index
    %c0_316 = arith.constant 0 : index
    %600 = vector.load %arg15[%c0_315, %c0_316] : memref<2x128xf32, #tpu.memory_space<vmem>>, vector<2x128xf32>
    %601 = arith.truncf %600 : vector<2x128xf32> to vector<2x128xbf16>
    %c0_317 = arith.constant 0 : index
    %c0_318 = arith.constant 0 : index
    %602 = vector.load %arg6[%c0_317, %c0_318] : memref<128x512xbf16, #tpu.memory_space<vmem>>, vector<128x512xbf16>
    %cst_319 = arith.constant dense<0.000000e+00> : vector<2x512xf32>
    %603 = tpu.matmul %601, %602, %cst_319 {dimension_numbers = #tpu.dot_dimension_numbers<[1], [0], [0], [1], [0, 0, 1, 1], [], []>} : vector<2x128xbf16>, vector<128x512xbf16>, vector<2x512xf32> -> vector<2x512xf32>
    %c0_320 = arith.constant 0 : index
    %c7_321 = arith.constant 7 : index
    %c0_322 = arith.constant 0 : index
    %604 = vector.load %arg12[%c0_320, %c7_321, %c0_322] : memref<2x8x512xf32, #tpu.memory_space<vmem>>, vector<2x1x512xf32>
    %605 = vector.shape_cast %604 : vector<2x1x512xf32> to vector<2x512xf32>
    %606 = arith.addf %603, %605 : vector<2x512xf32>
    %607 = vector.extract_strided_slice %606 {offsets = [0, 0], sizes = [2, 128], strides = [1, 1]} : vector<2x512xf32> to vector<2x128xf32>
    %608 = arith.negf %607 : vector<2x128xf32>
    %609 = math.exp %608 : vector<2x128xf32>
    %cst_323 = arith.constant 1.000000e+00 : f32
    %610 = vector.broadcast %cst_323 : f32 to vector<2x128xf32>
    %611 = arith.addf %610, %609 : vector<2x128xf32>
    %612 = arith.divf %610, %611 : vector<2x128xf32>
    %613 = vector.extract_strided_slice %606 {offsets = [0, 128], sizes = [2, 128], strides = [1, 1]} : vector<2x512xf32> to vector<2x128xf32>
    %614 = arith.negf %613 : vector<2x128xf32>
    %615 = math.exp %614 : vector<2x128xf32>
    %cst_324 = arith.constant 1.000000e+00 : f32
    %616 = vector.broadcast %cst_324 : f32 to vector<2x128xf32>
    %617 = arith.addf %616, %615 : vector<2x128xf32>
    %618 = arith.divf %616, %617 : vector<2x128xf32>
    %619 = vector.extract_strided_slice %606 {offsets = [0, 256], sizes = [2, 128], strides = [1, 1]} : vector<2x512xf32> to vector<2x128xf32>
    %620 = math.tanh %619 : vector<2x128xf32>
    %621 = vector.extract_strided_slice %606 {offsets = [0, 384], sizes = [2, 128], strides = [1, 1]} : vector<2x512xf32> to vector<2x128xf32>
    %622 = arith.negf %621 : vector<2x128xf32>
    %623 = math.exp %622 : vector<2x128xf32>
    %cst_325 = arith.constant 1.000000e+00 : f32
    %624 = vector.broadcast %cst_325 : f32 to vector<2x128xf32>
    %625 = arith.addf %624, %623 : vector<2x128xf32>
    %626 = arith.divf %624, %625 : vector<2x128xf32>
    %c0_326 = arith.constant 0 : index
    %c0_327 = arith.constant 0 : index
    %627 = vector.load %arg16[%c0_326, %c0_327] : memref<2x128xf32, #tpu.memory_space<vmem>>, vector<2x128xf32>
    %628 = arith.mulf %618, %627 : vector<2x128xf32>
    %629 = arith.mulf %612, %620 : vector<2x128xf32>
    %630 = arith.addf %628, %629 : vector<2x128xf32>
    %631 = math.tanh %630 : vector<2x128xf32>
    %632 = arith.mulf %626, %631 : vector<2x128xf32>
    %c0_328 = arith.constant 0 : index
    %c0_329 = arith.constant 0 : index
    %633 = vector.load %arg16[%c0_328, %c0_329] : memref<2x128xf32, #tpu.memory_space<vmem>>, vector<2x128xf32>
    tpu.vector_store %arg16[%c0_328, %c0_329], %630 {strides = array<i32>} : memref<2x128xf32, #tpu.memory_space<vmem>>, vector<2x128xf32>,
    %c0_330 = arith.constant 0 : index
    %c0_331 = arith.constant 0 : index
    %634 = vector.load %arg15[%c0_330, %c0_331] : memref<2x128xf32, #tpu.memory_space<vmem>>, vector<2x128xf32>
    tpu.vector_store %arg15[%c0_330, %c0_331], %632 {strides = array<i32>} : memref<2x128xf32, #tpu.memory_space<vmem>>, vector<2x128xf32>,
    %c0_i32_332 = arith.constant 0 : i32
    %635 = arith.cmpi eq, %arg0, %c0_i32_332 : i32
    %636 = arith.extui %635 : i1 to i32
    %c0_i32_333 = arith.constant 0 : i32
    %637 = arith.cmpi ne, %636, %c0_i32_333 : i32
    scf.if %637 {
      %c0_334 = arith.constant 0 : index
      %c0_335 = arith.constant 0 : index
      %638 = vector.load %arg15[%c0_334, %c0_335] : memref<2x128xf32, #tpu.memory_space<vmem>>, vector<2x128xf32>
      %639 = arith.truncf %638 : vector<2x128xf32> to vector<2x128xbf16>
      %c0_336 = arith.constant 0 : index
      %c0_337 = arith.constant 0 : index
      %640 = vector.load %arg8[%c0_336, %c0_337] : memref<128x128xbf16, #tpu.memory_space<vmem>>, vector<128x128xbf16>
      %cst_338 = arith.constant dense<0.000000e+00> : vector<2x128xf32>
      %641 = tpu.matmul %639, %640, %cst_338 {dimension_numbers = #tpu.dot_dimension_numbers<[1], [0], [0], [1], [0, 0, 1, 1], [], []>} : vector<2x128xbf16>, vector<128x128xbf16>, vector<2x128xf32> -> vector<2x128xf32>
      %c0_339 = arith.constant 0 : index
      %c0_340 = arith.constant 0 : index
      %642 = vector.load %arg9[%c0_339, %c0_340] : memref<1x128xf32, #tpu.memory_space<vmem>>, vector<1x128xf32>
      %643 = vector.broadcast %642 : vector<1x128xf32> to vector<2x128xf32>
      %644 = arith.addf %641, %643 : vector<2x128xf32>
      %c0_341 = arith.constant 0 : index
      %c0_342 = arith.constant 0 : index
      %645 = vector.load %arg10[%c0_341, %c0_342] : memref<2x128xf32, #tpu.memory_space<vmem>>, vector<2x128xf32>
      tpu.vector_store %arg10[%c0_341, %c0_342], %644 {strides = array<i32>} : memref<2x128xf32, #tpu.memory_space<vmem>>, vector<2x128xf32>,
    } else {
    }
    return
  }
  func.func @transform_0(%arg0: i32) -> (i32, i32, i32) {
    %c0_i32 = arith.constant 0 : i32
    %c0_i32_0 = arith.constant 0 : i32
    %c0_i32_1 = arith.constant 0 : i32
    return %c0_i32, %arg0, %c0_i32_0 : i32, i32, i32
  }
  func.func @transform_1(%arg0: i32) -> (i32, i32) {
    %c0_i32 = arith.constant 0 : i32
    %c0_i32_0 = arith.constant 0 : i32
    %c0_i32_1 = arith.constant 0 : i32
    return %c0_i32, %c0_i32_0 : i32, i32
  }
  func.func @transform_2(%arg0: i32) -> (i32, i32) {
    %c0_i32 = arith.constant 0 : i32
    %c0_i32_0 = arith.constant 0 : i32
    %c0_i32_1 = arith.constant 0 : i32
    return %c0_i32, %c0_i32_0 : i32, i32
  }
  func.func @transform_3(%arg0: i32) -> (i32, i32) {
    %c0_i32 = arith.constant 0 : i32
    %c0_i32_0 = arith.constant 0 : i32
    %c0_i32_1 = arith.constant 0 : i32
    return %c0_i32, %c0_i32_0 : i32, i32
  }
  func.func @transform_4(%arg0: i32) -> (i32, i32) {
    %c0_i32 = arith.constant 0 : i32
    %c0_i32_0 = arith.constant 0 : i32
    %c0_i32_1 = arith.constant 0 : i32
    return %c0_i32, %c0_i32_0 : i32, i32
  }
  func.func @transform_5(%arg0: i32) -> (i32, i32) {
    %c0_i32 = arith.constant 0 : i32
    %c0_i32_0 = arith.constant 0 : i32
    %c0_i32_1 = arith.constant 0 : i32
    return %c0_i32, %c0_i32_0 : i32, i32
  }
  func.func @transform_6(%arg0: i32) -> (i32, i32) {
    %c0_i32 = arith.constant 0 : i32
    %c0_i32_0 = arith.constant 0 : i32
    %c0_i32_1 = arith.constant 0 : i32
    return %c0_i32, %c0_i32_0 : i32, i32
  }
  func.func @transform_7(%arg0: i32) -> (i32, i32) {
    %c0_i32 = arith.constant 0 : i32
    %c0_i32_0 = arith.constant 0 : i32
    %c0_i32_1 = arith.constant 0 : i32
    return %c0_i32, %c0_i32_0 : i32, i32
  }
  func.func @transform_8(%arg0: i32) -> (i32, i32) {
    %c0_i32 = arith.constant 0 : i32
    %c0_i32_0 = arith.constant 0 : i32
    %c0_i32_1 = arith.constant 0 : i32
    return %c0_i32, %c0_i32_0 : i32, i32
  }
  func.func @transform_9(%arg0: i32) -> (i32, i32) {
    %c0_i32 = arith.constant 0 : i32
    %c0_i32_0 = arith.constant 0 : i32
    %c0_i32_1 = arith.constant 0 : i32
    return %c0_i32, %c0_i32_0 : i32, i32
  }
}

</mosaic_0001>

<llo_original>
// kernel: tpu_custom_call.1
$region0: #{tpu_custom_call.1}
  #allocation0 [shape = 'u32[]', space=smem, size = 0x4, offset = 0x4, fixed_abs, tag = 'smem constant byte address 0x4 - core index']
  #allocation1 [shape = 'u32[144,128]{1,0:T(1,128)}', space=vmem, size = 0x12000, scoped, tag = 'internal scratch']
  #allocation2 [shape = 'bf16[2,8,128]{2,1,0:T(8,128)(2,1)}', space=vmem, size = 0x1000, scoped, tag = 'scratch operand']
  #allocation3 [shape = 'f32[2,8,512]{2,1,0:T(8,128)}', space=vmem, size = 0x8000, scoped, tag = 'scratch operand']
  #allocation4 [shape = 'f32[2,128]{1,0:T(2,128)}', space=vmem, size = 0x400, scoped, tag = 'scratch operand']
  #allocation5 [shape = 'f32[2,128]{1,0:T(2,128)}', space=vmem, size = 0x400, scoped, tag = 'scratch operand']
  #allocation6 [shape = 'f32[2,128]{1,0:T(2,128)}', space=vmem, size = 0x400, scoped, tag = 'scratch operand']
  #allocation7 [shape = 'f32[2,128]{1,0:T(2,128)}', space=vmem, size = 0x400, scoped, tag = 'scratch operand']
  %s0 = inlined_call_operand.hbm [shape: bf16[2,8,16], index: 0, kind: input, shape index: {}]
  %s1 = inlined_call_operand.hbm [shape: bf16[16,512], index: 1, kind: input, shape index: {}]
  %s2 = inlined_call_operand.hbm [shape: bf16[128,512], index: 2, kind: input, shape index: {}]
  %s3 = inlined_call_operand.vmem [shape: f32[1,512], index: 3, kind: input, shape index: {}]
  %s4 = inlined_call_operand.hbm [shape: bf16[128,512], index: 4, kind: input, shape index: {}]
  %s5 = inlined_call_operand.hbm [shape: bf16[128,512], index: 5, kind: input, shape index: {}]
  %s6 = inlined_call_operand.vmem [shape: f32[1,512], index: 6, kind: input, shape index: {}]
  %s7 = inlined_call_operand.hbm [shape: bf16[128,128], index: 7, kind: input, shape index: {}]
  %s8 = inlined_call_operand.vmem [shape: f32[1,128], index: 8, kind: input, shape index: {}]
  %s9 = inlined_call_operand.hbm [shape: f32[2,128], index: 9, kind: output, shape index: {}]
  %s10 = sld [smem:[#allocation0]]
  $region78: #{tpu_custom_call.1} parent=0
    _
  %s12 = ssub.s32 1, %s10
  %s13 = scalar_select 0, %s12, %s10
  $region1: #{tpu_custom_call.1} parent=0
    #allocation8 [shape = 'u8[4096]{0}', space=vmem, size = 0x1000, scoped, tag = 'input window, operand 0, single buffered']
    #allocation9 [shape = 's32[1]{0}', space=sflag, size = 0x4, scoped, tag = 'scoped memory for tpu_custom_call.1']
    #allocation10 [shape = 's32[1]{0}', space=sflag, size = 0x4, scoped, tag = 'scoped memory for tpu_custom_call.1']
    #allocation11 [shape = 'u8[16384]{0}', space=vmem, size = 0x4000, scoped, tag = 'input window, operand 1, single buffered']
    #allocation12 [shape = 's32[1]{0}', space=sflag, size = 0x4, scoped, tag = 'scoped memory for tpu_custom_call.1']
    #allocation13 [shape = 'u8[131072]{0}', space=vmem, size = 0x20000, scoped, tag = 'input window, operand 2, single buffered']
    #allocation14 [shape = 'u8[131072]{0}', space=vmem, size = 0x20000, scoped, tag = 'input window, operand 4, single buffered']
    #allocation15 [shape = 's32[1]{0}', space=sflag, size = 0x4, scoped, tag = 'scoped memory for tpu_custom_call.1']
    #allocation16 [shape = 'u8[131072]{0}', space=vmem, size = 0x20000, scoped, tag = 'input window, operand 5, single buffered']
    #allocation17 [shape = 'u8[32768]{0}', space=vmem, size = 0x8000, scoped, tag = 'input window, operand 7, single buffered']
    #allocation18 [shape = 's32[1]{0}', space=sflag, size = 0x4, scoped, tag = 'scoped memory for tpu_custom_call.1']
    #allocation19 [shape = 'u8[1024]{0}', space=vmem, size = 0x400, scoped, tag = 'output window, operand 0, single buffered']
    %14 = vsyncpa [#allocation9], 0
    %15 = vsyncpa [#allocation12], 0
    %16 = vsyncpa [#allocation15], 0
    %17 = vsyncpa [#allocation18], 0
    %18 = vsyncpa [#allocation10], 0
    // Predicated region
    $region2: #{tpu_custom_call.1} parent=1 // pred_check
      _
    $region3: #{tpu_custom_call.1} parent=1 // pred_check_branch
      %20 = sbr.rel (0) target = $region5
    $region4: #{tpu_custom_call.1} parent=1 // pred_region
      %s22 = ssub.s32 128, 128
      %23 = vsyncadd [#allocation9], %s22
      %s24 = sshll.u32 [#allocation8], 4
      %s25 = int_to_ptr.vmem [resolvable:$true] %s24
      %30 = dma.hbm_to_vmem [thread:$0]  %s0, 128, %s25, [#allocation9], 64, 64, 4
    $region5: #{tpu_custom_call.1} parent=1 // pred_fallthru
      _
    // Predicated region
    $region6: #{tpu_custom_call.1} parent=1 // pred_check
      _
    $region7: #{tpu_custom_call.1} parent=1 // pred_check_branch
      %32 = sbr.rel (0) target = $region9
    $region8: #{tpu_custom_call.1} parent=1 // pred_region
      %s34 = ssub.s32 512, 512
      %35 = vsyncadd [#allocation12], %s34
      %s36 = sshll.u32 [#allocation11], 4
      %s37 = int_to_ptr.vmem [resolvable:$true] %s36
      %42 = dma.hbm_to_vmem [thread:$0]  %s1, 512, %s37, [#allocation12], 256, 256, 16
    $region9: #{tpu_custom_call.1} parent=1 // pred_fallthru
      _
    // Predicated region
    $region10: #{tpu_custom_call.1} parent=1 // pred_check
      _
    $region11: #{tpu_custom_call.1} parent=1 // pred_check_branch
      %44 = sbr.rel (0) target = $region13
    $region12: #{tpu_custom_call.1} parent=1 // pred_region
      %s46 = ssub.s32 4096, 4096
      %47 = vsyncadd [#allocation12], %s46
      %s48 = sshll.u32 [#allocation13], 4
      %s49 = int_to_ptr.vmem [resolvable:$true] %s48
      %54 = dma.hbm_to_vmem [thread:$0]  %s2, 4096, %s49, [#allocation12], 256, 256, 16
    $region13: #{tpu_custom_call.1} parent=1 // pred_fallthru
      _
    // Predicated region
    $region14: #{tpu_custom_call.1} parent=1 // pred_check
      _
    $region15: #{tpu_custom_call.1} parent=1 // pred_check_branch
      %56 = sbr.rel (0) target = $region17
    $region16: #{tpu_custom_call.1} parent=1 // pred_region
      _
    $region17: #{tpu_custom_call.1} parent=1 // pred_fallthru
      _
    // Predicated region
    $region18: #{tpu_custom_call.1} parent=1 // pred_check
      _
    $region19: #{tpu_custom_call.1} parent=1 // pred_check_branch
      %58 = sbr.rel (0) target = $region21
    $region20: #{tpu_custom_call.1} parent=1 // pred_region
      %s60 = ssub.s32 4096, 4096
      %61 = vsyncadd [#allocation15], %s60
      %s62 = sshll.u32 [#allocation14], 4
      %s63 = int_to_ptr.vmem [resolvable:$true] %s62
      %68 = dma.hbm_to_vmem [thread:$0]  %s4, 4096, %s63, [#allocation15], 256, 256, 16
    $region21: #{tpu_custom_call.1} parent=1 // pred_fallthru
      _
    // Predicated region
    $region22: #{tpu_custom_call.1} parent=1 // pred_check
      _
    $region23: #{tpu_custom_call.1} parent=1 // pred_check_branch
      %70 = sbr.rel (0) target = $region25
    $region24: #{tpu_custom_call.1} parent=1 // pred_region
      %s72 = ssub.s32 4096, 4096
      %73 = vsyncadd [#allocation15], %s72
      %s74 = sshll.u32 [#allocation16], 4
      %s75 = int_to_ptr.vmem [resolvable:$true] %s74
      %80 = dma.hbm_to_vmem [thread:$0]  %s5, 4096, %s75, [#allocation15], 256, 256, 16
    $region25: #{tpu_custom_call.1} parent=1 // pred_fallthru
      _
    // Predicated region
    $region26: #{tpu_custom_call.1} parent=1 // pred_check
      _
    $region27: #{tpu_custom_call.1} parent=1 // pred_check_branch
      %82 = sbr.rel (0) target = $region29
    $region28: #{tpu_custom_call.1} parent=1 // pred_region
      _
    $region29: #{tpu_custom_call.1} parent=1 // pred_fallthru
      _
    // Predicated region
    $region30: #{tpu_custom_call.1} parent=1 // pred_check
      _
    $region31: #{tpu_custom_call.1} parent=1 // pred_check_branch
      %84 = sbr.rel (0) target = $region33
    $region32: #{tpu_custom_call.1} parent=1 // pred_region
      %s86 = ssub.s32 1024, 1024
      %87 = vsyncadd [#allocation18], %s86
      %s88 = sshll.u32 [#allocation17], 4
      %s89 = int_to_ptr.vmem [resolvable:$true] %s88
      %94 = dma.hbm_to_vmem [thread:$0]  %s7, 1024, %s89, [#allocation18], 64, 64, 4
    $region33: #{tpu_custom_call.1} parent=1 // pred_fallthru
      _
    // Predicated region
    $region34: #{tpu_custom_call.1} parent=1 // pred_check
      _
    $region35: #{tpu_custom_call.1} parent=1 // pred_check_branch
      %96 = sbr.rel (0) target = $region37
    $region36: #{tpu_custom_call.1} parent=1 // pred_region
      _
    $region37: #{tpu_custom_call.1} parent=1 // pred_fallthru
      _
    // Predicated region
    $region38: #{tpu_custom_call.1} parent=1 // pred_check
      _
    $region39: #{tpu_custom_call.1} parent=1 // pred_check_branch
      %98 = sbr.rel (0) target = $region41
    $region40: #{tpu_custom_call.1} parent=1 // pred_region
      %99 = dma.done [#allocation9], 128
    $region41: #{tpu_custom_call.1} parent=1 // pred_fallthru
      _
    // Predicated region
    $region42: #{tpu_custom_call.1} parent=1 // pred_check
      _
    $region43: #{tpu_custom_call.1} parent=1 // pred_check_branch
      %101 = sbr.rel (0) target = $region45
    $region44: #{tpu_custom_call.1} parent=1 // pred_region
      %102 = dma.done [#allocation12], 512
    $region45: #{tpu_custom_call.1} parent=1 // pred_fallthru
      _
    // Predicated region
    $region46: #{tpu_custom_call.1} parent=1 // pred_check
      _
    $region47: #{tpu_custom_call.1} parent=1 // pred_check_branch
      %104 = sbr.rel (0) target = $region49
    $region48: #{tpu_custom_call.1} parent=1 // pred_region
      %105 = dma.done [#allocation12], 4096
    $region49: #{tpu_custom_call.1} parent=1 // pred_fallthru
      _
    // Predicated region
    $region50: #{tpu_custom_call.1} parent=1 // pred_check
      _
    $region51: #{tpu_custom_call.1} parent=1 // pred_check_branch
      %107 = sbr.rel (0) target = $region53
    $region52: #{tpu_custom_call.1} parent=1 // pred_region
      %108 = dma.done [#allocation15], 4096
    $region53: #{tpu_custom_call.1} parent=1 // pred_fallthru
      _
    // Predicated region
    $region54: #{tpu_custom_call.1} parent=1 // pred_check
      _
    $region55: #{tpu_custom_call.1} parent=1 // pred_check_branch
      %110 = sbr.rel (0) target = $region57
    $region56: #{tpu_custom_call.1} parent=1 // pred_region
      %111 = dma.done [#allocation15], 4096
    $region57: #{tpu_custom_call.1} parent=1 // pred_fallthru
      _
    // Predicated region
    $region58: #{tpu_custom_call.1} parent=1 // pred_check
      _
    $region59: #{tpu_custom_call.1} parent=1 // pred_check_branch
      %113 = sbr.rel (0) target = $region61
    $region60: #{tpu_custom_call.1} parent=1 // pred_region
      %114 = dma.done [#allocation18], 1024
    $region61: #{tpu_custom_call.1} parent=1 // pred_fallthru
      _
    %p116 = scmp.eq.s32.totalorder 0, 0
    // Predicated region
    $region62: #{tpu_custom_call.1} parent=1 // pred_check
      %p117 = pneg %p116
    $region63: #{tpu_custom_call.1} parent=1 // pred_check_branch
      %119 = sbr.rel (%p117) target = $region65
    $region64: #{tpu_custom_call.1} parent=1 // pred_region
      %120 = vst [vmem:[#allocation4] sm:$0x3] 0.0
      %121 = vst [vmem:[#allocation5] sm:$0x3] 0.0
      %122 = vst [vmem:[#allocation6] sm:$0x3] 0.0
      %123 = vst [vmem:[#allocation7] sm:$0x3] 0.0
    $region65: #{tpu_custom_call.1} parent=1 // pred_fallthru
      _
    %v124 = vld [vmem:[#allocation8] sm:$0xf]
    %v125 = vld [vmem:[#allocation11] sm:$0xff]
    %v126 = vld [vmem:[#allocation11 + $0x8] sm:$0xff]
    %v127 = vld [vmem:[#allocation11 + $0x10] sm:$0xff]
    %v128 = vld [vmem:[#allocation11 + $0x18] sm:$0xff]
    %v129 = vld [vmem:[%s3] sm:$0xf]
    %v131 = vlaneseq
    %v132 = vshrl.u32 %v131, 7
    %v133 = vsub.s32 0, %v132
    %v134 = vrot.slane %v129, %v133
    %v135 = vlaneseq
    %v136 = vshrl.u32 %v135, 7
    %v137 = vsub.s32 1, %v136
    %v138 = vrot.slane %v129, %v137
    %v139 = vlaneseq
    %v140 = vshrl.u32 %v139, 7
    %v141 = vsub.s32 2, %v140
    %v142 = vrot.slane %v129, %v141
    %v143 = vlaneseq
    %v144 = vshrl.u32 %v143, 7
    %v145 = vsub.s32 3, %v144
    %v146 = vrot.slane %v129, %v145
    %v155 = vunpack.c.l.b16 %v125
    %v156 = vunpack.c.h.b16 %v125
    %v157 = vunpack.c.l.b16 %v126
    %v158 = vunpack.c.h.b16 %v126
    %v159 = vunpack.c.l.b16 %v127
    %v160 = vunpack.c.h.b16 %v127
    %v161 = vunpack.c.l.b16 %v128
    %v162 = vunpack.c.h.b16 %v128
    %v163 = vpack.c.b16 %v159, %v155
    %v164 = vpack.c.b16 %v160, %v156
    %v165 = vpack.c.b16 %v161, %v157
    %v166 = vpack.c.b16 %v162, %v158
    %vm171 = vcmask 130048
    %v173 = vsel %vm171, %v124, 0
    %175 = vmatprep.subr.bf16.mxu0 0
    %176 = vmatpush1.bf16.msra.mxu0 0
    %177 = vmatprep.subr.bf16.mxu0 0
    %178 = vmatpush1.bf16.msra.mxu0 0
    %179 = vmatprep.subr.bf16.mxu0 0
    %180 = vmatpush1.bf16.msra.mxu0 0
    %181 = vmatprep.subr.bf16.mxu0 0
    %182 = vmatpush1.bf16.msra.mxu0 0
    %183 = vmatprep.subr.bf16.mxu0 0
    %184 = vmatpush1.bf16.msra.mxu0 0
    %185 = vmatprep.subr.bf16.mxu0 0
    %186 = vmatpush1.bf16.msra.mxu0 0
    %187 = vmatprep.subr.bf16.mxu0 0
    %188 = vmatpush1.bf16.msra.mxu0 0
    %189 = vmatprep.subr.bf16.mxu0 %v164
    %190 = vmatpush1.bf16.msra.mxu0 %v163
    %191 = vmatprep.subr.bf16.mxu0 0
    %192 = vmatpush2.bf16.msra.mxu0 0
    %193 = vmatprep.subr.bf16.mxu0 0
    %194 = vmatpush2.bf16.msra.mxu0 0
    %195 = vmatprep.subr.bf16.mxu0 0
    %196 = vmatpush2.bf16.msra.mxu0 0
    %197 = vmatprep.subr.bf16.mxu0 0
    %198 = vmatpush2.bf16.msra.mxu0 0
    %199 = vmatprep.subr.bf16.mxu0 0
    %200 = vmatpush2.bf16.msra.mxu0 0
    %201 = vmatprep.subr.bf16.mxu0 0
    %202 = vmatpush2.bf16.msra.mxu0 0
    %203 = vmatprep.subr.bf16.mxu0 0
    %204 = vmatpush2.bf16.msra.mxu0 0
    %205 = vmatprep.subr.bf16.mxu0 0
    %206 = vmatpush2.bf16.msra.mxu0 0
    %207 = vmatprep.mubr.bf16.mxu0 0
    %208 = vmatmul.mubr.bf16.gmra.mxu0 %v173
    %v209 = vpop.f32.mrf.mxu0
    %v210 = vadd.f32 %v134, %v209
    %v211 = vpop.f32.mrf.mxu0
    %v212 = vadd.f32 %v138, %v211
    %v213 = vpop.f32.mrf.mxu0
    %v214 = vpop.f32.mrf.mxu0
    %215 = vdwg.mxu0
    %216 = vmatprep.subr.bf16.mxu0 0
    %217 = vmatpush1.bf16.msra.mxu0 0
    %218 = vmatprep.subr.bf16.mxu0 0
    %219 = vmatpush1.bf16.msra.mxu0 0
    %220 = vmatprep.subr.bf16.mxu0 0
    %221 = vmatpush1.bf16.msra.mxu0 0
    %222 = vmatprep.subr.bf16.mxu0 0
    %223 = vmatpush1.bf16.msra.mxu0 0
    %224 = vmatprep.subr.bf16.mxu0 0
    %225 = vmatpush1.bf16.msra.mxu0 0
    %226 = vmatprep.subr.bf16.mxu0 0
    %227 = vmatpush1.bf16.msra.mxu0 0
    %228 = vmatprep.subr.bf16.mxu0 0
    %229 = vmatpush1.bf16.msra.mxu0 0
    %230 = vmatprep.subr.bf16.mxu0 %v166
    %231 = vmatpush1.bf16.msra.mxu0 %v165
    %232 = vmatprep.subr.bf16.mxu0 0
    %233 = vmatpush2.bf16.msra.mxu0 0
    %234 = vmatprep.subr.bf16.mxu0 0
    %235 = vmatpush2.bf16.msra.mxu0 0
    %236 = vmatprep.subr.bf16.mxu0 0
    %237 = vmatpush2.bf16.msra.mxu0 0
    %238 = vmatprep.subr.bf16.mxu0 0
    %239 = vmatpush2.bf16.msra.mxu0 0
    %240 = vmatprep.subr.bf16.mxu0 0
    %241 = vmatpush2.bf16.msra.mxu0 0
    %242 = vmatprep.subr.bf16.mxu0 0
    %243 = vmatpush2.bf16.msra.mxu0 0
    %244 = vmatprep.subr.bf16.mxu0 0
    %245 = vmatpush2.bf16.msra.mxu0 0
    %246 = vmatprep.subr.bf16.mxu0 0
    %247 = vmatpush2.bf16.msra.mxu0 0
    %248 = vmatprep.mubr.bf16.mxu0 0
    %249 = vmatmul.mubr.bf16.gmra.mxu0 %v173
    %v250 = vpop.f32.mrf.mxu0
    %v251 = vadd.f32 %v142, %v250
    %v252 = vpop.f32.mrf.mxu0
    %v253 = vadd.f32 %v146, %v252
    %v254 = vpop.f32.mrf.mxu0
    %v255 = vpop.f32.mrf.mxu0
    %256 = vdwg.mxu0
    %257 = vst [vmem:[#allocation3] sm:$0xff] %v210
    %258 = vst [vmem:[#allocation3 + $0x8] sm:$0xff] %v212
    %259 = vst [vmem:[#allocation3 + $0x10] sm:$0xff] %v251
    %260 = vst [vmem:[#allocation3 + $0x18] sm:$0xff] %v253
    %s261 = scalar_lea.vmem [#allocation8], 4
    %v262 = vld [vmem:[%s261] sm:$0xf]
    %v263 = vld [vmem:[#allocation11] sm:$0xff]
    %v264 = vld [vmem:[#allocation11 + $0x8] sm:$0xff]
    %v265 = vld [vmem:[#allocation11 + $0x10] sm:$0xff]
    %v266 = vld [vmem:[#allocation11 + $0x18] sm:$0xff]
    %v267 = vld [vmem:[%s3] sm:$0xf]
    %v269 = vlaneseq
    %v270 = vshrl.u32 %v269, 7
    %v271 = vsub.s32 0, %v270
    %v272 = vrot.slane %v267, %v271
    %v273 = vlaneseq
    %v274 = vshrl.u32 %v273, 7
    %v275 = vsub.s32 1, %v274
    %v276 = vrot.slane %v267, %v275
    %v277 = vlaneseq
    %v278 = vshrl.u32 %v277, 7
    %v279 = vsub.s32 2, %v278
    %v280 = vrot.slane %v267, %v279
    %v281 = vlaneseq
    %v282 = vshrl.u32 %v281, 7
    %v283 = vsub.s32 3, %v282
    %v284 = vrot.slane %v267, %v283
    %v293 = vunpack.c.l.b16 %v263
    %v294 = vunpack.c.h.b16 %v263
    %v295 = vunpack.c.l.b16 %v264
    %v296 = vunpack.c.h.b16 %v264
    %v297 = vunpack.c.l.b16 %v265
    %v298 = vunpack.c.h.b16 %v265
    %v299 = vunpack.c.l.b16 %v266
    %v300 = vunpack.c.h.b16 %v266
    %v301 = vpack.c.b16 %v297, %v293
    %v302 = vpack.c.b16 %v298, %v294
    %v303 = vpack.c.b16 %v299, %v295
    %v304 = vpack.c.b16 %v300, %v296
    %v310 = vsel %vm171, %v262, 0
    %312 = vmatprep.subr.bf16.mxu0 0
    %313 = vmatpush1.bf16.msra.mxu0 0
    %314 = vmatprep.subr.bf16.mxu0 0
    %315 = vmatpush1.bf16.msra.mxu0 0
    %316 = vmatprep.subr.bf16.mxu0 0
    %317 = vmatpush1.bf16.msra.mxu0 0
    %318 = vmatprep.subr.bf16.mxu0 0
    %319 = vmatpush1.bf16.msra.mxu0 0
    %320 = vmatprep.subr.bf16.mxu0 0
    %321 = vmatpush1.bf16.msra.mxu0 0
    %322 = vmatprep.subr.bf16.mxu0 0
    %323 = vmatpush1.bf16.msra.mxu0 0
    %324 = vmatprep.subr.bf16.mxu0 0
    %325 = vmatpush1.bf16.msra.mxu0 0
    %326 = vmatprep.subr.bf16.mxu0 %v302
    %327 = vmatpush1.bf16.msra.mxu0 %v301
    %328 = vmatprep.subr.bf16.mxu0 0
    %329 = vmatpush2.bf16.msra.mxu0 0
    %330 = vmatprep.subr.bf16.mxu0 0
    %331 = vmatpush2.bf16.msra.mxu0 0
    %332 = vmatprep.subr.bf16.mxu0 0
    %333 = vmatpush2.bf16.msra.mxu0 0
    %334 = vmatprep.subr.bf16.mxu0 0
    %335 = vmatpush2.bf16.msra.mxu0 0
    %336 = vmatprep.subr.bf16.mxu0 0
    %337 = vmatpush2.bf16.msra.mxu0 0
    %338 = vmatprep.subr.bf16.mxu0 0
    %339 = vmatpush2.bf16.msra.mxu0 0
    %340 = vmatprep.subr.bf16.mxu0 0
    %341 = vmatpush2.bf16.msra.mxu0 0
    %342 = vmatprep.subr.bf16.mxu0 0
    %343 = vmatpush2.bf16.msra.mxu0 0
    %344 = vmatprep.mubr.bf16.mxu0 0
    %345 = vmatmul.mubr.bf16.gmra.mxu0 %v310
    %v346 = vpop.f32.mrf.mxu0
    %v347 = vadd.f32 %v272, %v346
    %v348 = vpop.f32.mrf.mxu0
    %v349 = vadd.f32 %v276, %v348
    %v350 = vpop.f32.mrf.mxu0
    %v351 = vpop.f32.mrf.mxu0
    %352 = vdwg.mxu0
    %353 = vmatprep.subr.bf16.mxu0 0
    %354 = vmatpush1.bf16.msra.mxu0 0
    %355 = vmatprep.subr.bf16.mxu0 0
    %356 = vmatpush1.bf16.msra.mxu0 0
    %357 = vmatprep.subr.bf16.mxu0 0
    %358 = vmatpush1.bf16.msra.mxu0 0
    %359 = vmatprep.subr.bf16.mxu0 0
    %360 = vmatpush1.bf16.msra.mxu0 0
    %361 = vmatprep.subr.bf16.mxu0 0
    %362 = vmatpush1.bf16.msra.mxu0 0
    %363 = vmatprep.subr.bf16.mxu0 0
    %364 = vmatpush1.bf16.msra.mxu0 0
    %365 = vmatprep.subr.bf16.mxu0 0
    %366 = vmatpush1.bf16.msra.mxu0 0
    %367 = vmatprep.subr.bf16.mxu0 %v304
    %368 = vmatpush1.bf16.msra.mxu0 %v303
    %369 = vmatprep.subr.bf16.mxu0 0
    %370 = vmatpush2.bf16.msra.mxu0 0
    %371 = vmatprep.subr.bf16.mxu0 0
    %372 = vmatpush2.bf16.msra.mxu0 0
    %373 = vmatprep.subr.bf16.mxu0 0
    %374 = vmatpush2.bf16.msra.mxu0 0
    %375 = vmatprep.subr.bf16.mxu0 0
    %376 = vmatpush2.bf16.msra.mxu0 0
    %377 = vmatprep.subr.bf16.mxu0 0
    %378 = vmatpush2.bf16.msra.mxu0 0
    %379 = vmatprep.subr.bf16.mxu0 0
    %380 = vmatpush2.bf16.msra.mxu0 0
    %381 = vmatprep.subr.bf16.mxu0 0
    %382 = vmatpush2.bf16.msra.mxu0 0
    %383 = vmatprep.subr.bf16.mxu0 0
    %384 = vmatpush2.bf16.msra.mxu0 0
    %385 = vmatprep.mubr.bf16.mxu0 0
    %386 = vmatmul.mubr.bf16.gmra.mxu0 %v310
    %v387 = vpop.f32.mrf.mxu0
    %v388 = vadd.f32 %v280, %v387
    %v389 = vpop.f32.mrf.mxu0
    %v390 = vadd.f32 %v284, %v389
    %v391 = vpop.f32.mrf.mxu0
    %v392 = vpop.f32.mrf.mxu0
    %393 = vdwg.mxu0
    %s394 = scalar_lea.vmem [#allocation3], 32
    %395 = vst [vmem:[%s394] sm:$0xff] %v347
    %396 = vst [vmem:[%s394 + $0x8] sm:$0xff] %v349
    %397 = vst [vmem:[%s394 + $0x10] sm:$0xff] %v388
    %398 = vst [vmem:[%s394 + $0x18] sm:$0xff] %v390
    %v399 = vld [vmem:[#allocation4] sm:$0x3]
    %v400 = vpack.c.bf16 %v399, %v399
    %v401 = vld [vmem:[#allocation13] sm:$0xff]
    %v402 = vld [vmem:[#allocation13 + $0x8] sm:$0xff]
    %v403 = vld [vmem:[#allocation13 + $0x10] sm:$0xff]
    %v404 = vld [vmem:[#allocation13 + $0x18] sm:$0xff]
    %v405 = vld [vmem:[#allocation13 + $0x20] sm:$0xff]
    %v406 = vld [vmem:[#allocation13 + $0x28] sm:$0xff]
    %v407 = vld [vmem:[#allocation13 + $0x30] sm:$0xff]
    %v408 = vld [vmem:[#allocation13 + $0x38] sm:$0xff]
    %v409 = vld [vmem:[#allocation13 + $0x40] sm:$0xff]
    %v410 = vld [vmem:[#allocation13 + $0x48] sm:$0xff]
    %v411 = vld [vmem:[#allocation13 + $0x50] sm:$0xff]
    %v412 = vld [vmem:[#allocation13 + $0x58] sm:$0xff]
    %v413 = vld [vmem:[#allocation13 + $0x60] sm:$0xff]
    %v414 = vld [vmem:[#allocation13 + $0x68] sm:$0xff]
    %v415 = vld [vmem:[#allocation13 + $0x70] sm:$0xff]
    %v416 = vld [vmem:[#allocation13 + $0x78] sm:$0xff]
    %v417 = vld [vmem:[#allocation13 + $0x80] sm:$0xff]
    %v418 = vld [vmem:[#allocation13 + $0x88] sm:$0xff]
    %v419 = vld [vmem:[#allocation13 + $0x90] sm:$0xff]
    %v420 = vld [vmem:[#allocation13 + $0x98] sm:$0xff]
    %v421 = vld [vmem:[#allocation13 + $0xa0] sm:$0xff]
    %v422 = vld [vmem:[#allocation13 + $0xa8] sm:$0xff]
    %v423 = vld [vmem:[#allocation13 + $0xb0] sm:$0xff]
    %v424 = vld [vmem:[#allocation13 + $0xb8] sm:$0xff]
    %v425 = vld [vmem:[#allocation13 + $0xc0] sm:$0xff]
    %v426 = vld [vmem:[#allocation13 + $0xc8] sm:$0xff]
    %v427 = vld [vmem:[#allocation13 + $0xd0] sm:$0xff]
    %v428 = vld [vmem:[#allocation13 + $0xd8] sm:$0xff]
    %v429 = vld [vmem:[#allocation13 + $0xe0] sm:$0xff]
    %v430 = vld [vmem:[#allocation13 + $0xe8] sm:$0xff]
    %v431 = vld [vmem:[#allocation13 + $0xf0] sm:$0xff]
    %v432 = vld [vmem:[#allocation13 + $0xf8] sm:$0xff]
    %v433 = vld [vmem:[#allocation3] ss:$8 sm:$0xf]
    %s434 = scalar_lea.vmem [#allocation3], 32
    %v435 = vld [vmem:[%s434] ss:$8 sm:$0xf]
    %v468 = vunpack.c.l.b16 %v401
    %v469 = vunpack.c.h.b16 %v401
    %v470 = vunpack.c.l.b16 %v402
    %v471 = vunpack.c.h.b16 %v402
    %v472 = vunpack.c.l.b16 %v403
    %v473 = vunpack.c.h.b16 %v403
    %v474 = vunpack.c.l.b16 %v404
    %v475 = vunpack.c.h.b16 %v404
    %v476 = vunpack.c.l.b16 %v405
    %v477 = vunpack.c.h.b16 %v405
    %v478 = vunpack.c.l.b16 %v406
    %v479 = vunpack.c.h.b16 %v406
    %v480 = vunpack.c.l.b16 %v407
    %v481 = vunpack.c.h.b16 %v407
    %v482 = vunpack.c.l.b16 %v408
    %v483 = vunpack.c.h.b16 %v408
    %v484 = vunpack.c.l.b16 %v409
    %v485 = vunpack.c.h.b16 %v409
    %v486 = vunpack.c.l.b16 %v410
    %v487 = vunpack.c.h.b16 %v410
    %v488 = vunpack.c.l.b16 %v411
    %v489 = vunpack.c.h.b16 %v411
    %v490 = vunpack.c.l.b16 %v412
    %v491 = vunpack.c.h.b16 %v412
    %v492 = vunpack.c.l.b16 %v413
    %v493 = vunpack.c.h.b16 %v413
    %v494 = vunpack.c.l.b16 %v414
    %v495 = vunpack.c.h.b16 %v414
    %v496 = vunpack.c.l.b16 %v415
    %v497 = vunpack.c.h.b16 %v415
    %v498 = vunpack.c.l.b16 %v416
    %v499 = vunpack.c.h.b16 %v416
    %v500 = vunpack.c.l.b16 %v417
    %v501 = vunpack.c.h.b16 %v417
    %v502 = vunpack.c.l.b16 %v418
    %v503 = vunpack.c.h.b16 %v418
    %v504 = vunpack.c.l.b16 %v419
    %v505 = vunpack.c.h.b16 %v419
    %v506 = vunpack.c.l.b16 %v420
    %v507 = vunpack.c.h.b16 %v420
    %v508 = vunpack.c.l.b16 %v421
    %v509 = vunpack.c.h.b16 %v421
    %v510 = vunpack.c.l.b16 %v422
    %v511 = vunpack.c.h.b16 %v422
    %v512 = vunpack.c.l.b16 %v423
    %v513 = vunpack.c.h.b16 %v423
    %v514 = vunpack.c.l.b16 %v424
    %v515 = vunpack.c.h.b16 %v424
    %v516 = vunpack.c.l.b16 %v425
    %v517 = vunpack.c.h.b16 %v425
    %v518 = vunpack.c.l.b16 %v426
    %v519 = vunpack.c.h.b16 %v426
    %v520 = vunpack.c.l.b16 %v427
    %v521 = vunpack.c.h.b16 %v427
    %v522 = vunpack.c.l.b16 %v428
    %v523 = vunpack.c.h.b16 %v428
    %v524 = vunpack.c.l.b16 %v429
    %v525 = vunpack.c.h.b16 %v429
    %v526 = vunpack.c.l.b16 %v430
    %v527 = vunpack.c.h.b16 %v430
    %v528 = vunpack.c.l.b16 %v431
    %v529 = vunpack.c.h.b16 %v431
    %v530 = vunpack.c.l.b16 %v432
    %v531 = vunpack.c.h.b16 %v432
    %v532 = vpack.c.b16 %v472, %v468
    %v533 = vpack.c.b16 %v473, %v469
    %v534 = vpack.c.b16 %v474, %v470
    %v535 = vpack.c.b16 %v475, %v471
    %v536 = vpack.c.b16 %v480, %v476
    %v537 = vpack.c.b16 %v481, %v477
    %v538 = vpack.c.b16 %v482, %v478
    %v539 = vpack.c.b16 %v483, %v479
    %v540 = vpack.c.b16 %v488, %v484
    %v541 = vpack.c.b16 %v489, %v485
    %v542 = vpack.c.b16 %v490, %v486
    %v543 = vpack.c.b16 %v491, %v487
    %v544 = vpack.c.b16 %v496, %v492
    %v545 = vpack.c.b16 %v497, %v493
    %v546 = vpack.c.b16 %v498, %v494
    %v547 = vpack.c.b16 %v499, %v495
    %v548 = vpack.c.b16 %v504, %v500
    %v549 = vpack.c.b16 %v505, %v501
    %v550 = vpack.c.b16 %v506, %v502
    %v551 = vpack.c.b16 %v507, %v503
    %v552 = vpack.c.b16 %v512, %v508
    %v553 = vpack.c.b16 %v513, %v509
    %v554 = vpack.c.b16 %v514, %v510
    %v555 = vpack.c.b16 %v515, %v511
    %v556 = vpack.c.b16 %v520, %v516
    %v557 = vpack.c.b16 %v521, %v517
    %v558 = vpack.c.b16 %v522, %v518
    %v559 = vpack.c.b16 %v523, %v519
    %v560 = vpack.c.b16 %v528, %v524
    %v561 = vpack.c.b16 %v529, %v525
    %v562 = vpack.c.b16 %v530, %v526
    %v563 = vpack.c.b16 %v531, %v527
    %v598 = vcombine.low %v433, %v435
    %v600 = vunpack.c.l.s4 1966171168
    %v601 = vunpack.c.0.s8 %v600
    %v602 = vlaneseq
    %v603 = vshrl.u32 %v602, 7
    %v604 = vsub.s32 %v601, %v603
    %v605 = vrot.slane %v598, %v604
    %v606 = vcombine.high %v605, %v605
    %v608 = vunpack.c.l.s4 1966171168
    %v609 = vunpack.c.0.s8 %v608
    %v610 = vlaneseq
    %v611 = vshrl.u32 %v610, 7
    %v612 = vsub.s32 %v609, %v611
    %v613 = vrot.slane %v605, %v612
    %v615 = vunpack.c.l.s4 1966171168
    %v616 = vunpack.c.0.s8 %v615
    %v617 = vlaneseq
    %v618 = vshrl.u32 %v617, 7
    %v619 = vsub.s32 %v616, %v618
    %v620 = vrot.slane %v606, %v619
    %v621 = vcombine.high %v613, %v613
    %v622 = vcombine.high %v620, %v620
    %627 = vmatprep.subr.bf16.mxu0 %v561
    %628 = vmatpush1.bf16.msra.mxu0 %v560
    %629 = vmatprep.subr.bf16.mxu0 %v557
    %630 = vmatpush1.bf16.msra.mxu0 %v556
    %631 = vmatprep.subr.bf16.mxu0 %v553
    %632 = vmatpush1.bf16.msra.mxu0 %v552
    %633 = vmatprep.subr.bf16.mxu0 %v549
    %634 = vmatpush1.bf16.msra.mxu0 %v548
    %635 = vmatprep.subr.bf16.mxu0 %v545
    %636 = vmatpush1.bf16.msra.mxu0 %v544
    %637 = vmatprep.subr.bf16.mxu0 %v541
    %638 = vmatpush1.bf16.msra.mxu0 %v540
    %639 = vmatprep.subr.bf16.mxu0 %v537
    %640 = vmatpush1.bf16.msra.mxu0 %v536
    %641 = vmatprep.subr.bf16.mxu0 %v533
    %642 = vmatpush1.bf16.msra.mxu0 %v532
    %643 = vmatprep.subr.bf16.mxu0 0
    %644 = vmatpush2.bf16.msra.mxu0 0
    %645 = vmatprep.subr.bf16.mxu0 0
    %646 = vmatpush2.bf16.msra.mxu0 0
    %647 = vmatprep.subr.bf16.mxu0 0
    %648 = vmatpush2.bf16.msra.mxu0 0
    %649 = vmatprep.subr.bf16.mxu0 0
    %650 = vmatpush2.bf16.msra.mxu0 0
    %651 = vmatprep.subr.bf16.mxu0 0
    %652 = vmatpush2.bf16.msra.mxu0 0
    %653 = vmatprep.subr.bf16.mxu0 0
    %654 = vmatpush2.bf16.msra.mxu0 0
    %655 = vmatprep.subr.bf16.mxu0 0
    %656 = vmatpush2.bf16.msra.mxu0 0
    %657 = vmatprep.subr.bf16.mxu0 0
    %658 = vmatpush2.bf16.msra.mxu0 0
    %659 = vmatprep.mubr.bf16.mxu0 0
    %660 = vmatmul.mubr.bf16.gmra.mxu0 %v400
    %v661 = vpop.f32.mrf.mxu0
    %v662 = vadd.f32 %v613, %v661
    %v663 = vpop.f32.mrf.mxu0
    %v664 = vadd.f32 %v620, %v663
    %v665 = vpop.f32.mrf.mxu0
    %v666 = vpop.f32.mrf.mxu0
    %667 = vdwg.mxu0
    %668 = vmatprep.subr.bf16.mxu0 %v563
    %669 = vmatpush1.bf16.msra.mxu0 %v562
    %670 = vmatprep.subr.bf16.mxu0 %v559
    %671 = vmatpush1.bf16.msra.mxu0 %v558
    %672 = vmatprep.subr.bf16.mxu0 %v555
    %673 = vmatpush1.bf16.msra.mxu0 %v554
    %674 = vmatprep.subr.bf16.mxu0 %v551
    %675 = vmatpush1.bf16.msra.mxu0 %v550
    %676 = vmatprep.subr.bf16.mxu0 %v547
    %677 = vmatpush1.bf16.msra.mxu0 %v546
    %678 = vmatprep.subr.bf16.mxu0 %v543
    %679 = vmatpush1.bf16.msra.mxu0 %v542
    %680 = vmatprep.subr.bf16.mxu0 %v539
    %681 = vmatpush1.bf16.msra.mxu0 %v538
    %682 = vmatprep.subr.bf16.mxu0 %v535
    %683 = vmatpush1.bf16.msra.mxu0 %v534
    %684 = vmatprep.subr.bf16.mxu0 0
    %685 = vmatpush2.bf16.msra.mxu0 0
    %686 = vmatprep.subr.bf16.mxu0 0
    %687 = vmatpush2.bf16.msra.mxu0 0
    %688 = vmatprep.subr.bf16.mxu0 0
    %689 = vmatpush2.bf16.msra.mxu0 0
    %690 = vmatprep.subr.bf16.mxu0 0
    %691 = vmatpush2.bf16.msra.mxu0 0
    %692 = vmatprep.subr.bf16.mxu0 0
    %693 = vmatpush2.bf16.msra.mxu0 0
    %694 = vmatprep.subr.bf16.mxu0 0
    %695 = vmatpush2.bf16.msra.mxu0 0
    %696 = vmatprep.subr.bf16.mxu0 0
    %697 = vmatpush2.bf16.msra.mxu0 0
    %698 = vmatprep.subr.bf16.mxu0 0
    %699 = vmatpush2.bf16.msra.mxu0 0
    %700 = vmatprep.mubr.bf16.mxu0 0
    %701 = vmatmul.mubr.bf16.gmra.mxu0 %v400
    %v702 = vpop.f32.mrf.mxu0
    %v703 = vadd.f32 %v621, %v702
    %v704 = vpop.f32.mrf.mxu0
    %v705 = vadd.f32 %v622, %v704
    %v706 = vpop.f32.mrf.mxu0
    %v707 = vpop.f32.mrf.mxu0
    %708 = vdwg.mxu0
    %v709 = vxor.u32 %v662, 2147483648
    %v710 = vmul.f32 %v709, 1.442695
    %v711 = vpow.pop %v710
    %v712 = vadd.f32 %v711, 1.0
    %v713 = vrcp.pop %v712
    %v714 = vmul.f32 1.0, %v713
    %v715 = vxor.u32 %v664, 2147483648
    %v716 = vmul.f32 %v715, 1.442695
    %v717 = vpow.pop %v716
    %v718 = vadd.f32 %v717, 1.0
    %v719 = vrcp.pop %v718
    %v720 = vmul.f32 1.0, %v719
    %v721 = vtanh.pop %v703
    %v722 = vxor.u32 %v705, 2147483648
    %v723 = vmul.f32 %v722, 1.442695
    %v724 = vpow.pop %v723
    %v725 = vadd.f32 %v724, 1.0
    %v726 = vrcp.pop %v725
    %v727 = vmul.f32 1.0, %v726
    %v728 = vld [vmem:[#allocation5] sm:$0x3]
    %v729 = vmul.f32 %v720, %v728
    %v730 = vmul.f32 %v714, %v721
    %v731 = vadd.f32 %v729, %v730
    %v732 = vtanh.pop %v731
    %v733 = vmul.f32 %v727, %v732
    %734 = vst [vmem:[#allocation5] sm:$0x3] %v731
    %735 = vst [vmem:[#allocation4] sm:$0x3] %v733
    %v736 = vpack.c.bf16 %v733, %v733
    %v739 = vunpack.c.l.s4 1966171168
    %v740 = vunpack.c.0.s8 %v739
    %v741 = vlaneseq
    %v742 = vshrl.u32 %v741, 7
    %v743 = vsub.s32 %v740, %v742
    %v744 = vrot.slane %v736, %v743
    %v746 = vunpack.c.l.s4 1966171168
    %v747 = vunpack.c.0.s8 %v746
    %v748 = vlaneseq
    %v749 = vshrl.u32 %v748, 7
    %v750 = vsub.s32 %v747, %v749
    %v751 = vrot.slane %v744, %v750
    %v752 = vunpack.i.l.s16 %v751
    %v753 = vunpack.i.h.s16 %v751
    %v754 = vpack.i.b16 %v752, %v752
    %v755 = vpack.i.b16 %v753, %v753
    %v757 = vunpack.c.l.s4 286326784
    %v758 = vunpack.c.0.s8 %v757
    %v759 = vlaneseq
    %v760 = vshrl.u32 %v759, 7
    %v761 = vsub.s32 %v758, %v760
    %v762 = vrot.slane %v754, %v761
    %v764 = vunpack.c.l.s4 286326784
    %v765 = vunpack.c.0.s8 %v764
    %v766 = vlaneseq
    %v767 = vshrl.u32 %v766, 7
    %v768 = vsub.s32 %v765, %v767
    %v769 = vrot.slane %v755, %v768
    %vm772 = vcmask 1040384
    %vm773 = vsmask.f32 256
    %vm774 = vmand %vm772, %vm773
    %v775 = vld [vmem:[#allocation2] sm:$0x1]
    %v776 = vsel %vm774, %v762, %v775
    %777 = vst [vmem:[#allocation2] sm:$0x1] %v776
    %v778 = vld [vmem:[#allocation2 + $0x4] sm:$0x1]
    %v779 = vsel %vm774, %v769, %v778
    %780 = vst [vmem:[#allocation2 + $0x4] sm:$0x1] %v779
    %v781 = vld [vmem:[#allocation4] sm:$0x3]
    %v782 = vpack.c.bf16 %v781, %v781
    %v783 = vld [vmem:[#allocation13] sm:$0xff]
    %v784 = vld [vmem:[#allocation13 + $0x8] sm:$0xff]
    %v785 = vld [vmem:[#allocation13 + $0x10] sm:$0xff]
    %v786 = vld [vmem:[#allocation13 + $0x18] sm:$0xff]
    %v787 = vld [vmem:[#allocation13 + $0x20] sm:$0xff]
    %v788 = vld [vmem:[#allocation13 + $0x28] sm:$0xff]
    %v789 = vld [vmem:[#allocation13 + $0x30] sm:$0xff]
    %v790 = vld [vmem:[#allocation13 + $0x38] sm:$0xff]
    %v791 = vld [vmem:[#allocation13 + $0x40] sm:$0xff]
    %v792 = vld [vmem:[#allocation13 + $0x48] sm:$0xff]
    %v793 = vld [vmem:[#allocation13 + $0x50] sm:$0xff]
    %v794 = vld [vmem:[#allocation13 + $0x58] sm:$0xff]
    %v795 = vld [vmem:[#allocation13 + $0x60] sm:$0xff]
    %v796 = vld [vmem:[#allocation13 + $0x68] sm:$0xff]
    %v797 = vld [vmem:[#allocation13 + $0x70] sm:$0xff]
    %v798 = vld [vmem:[#allocation13 + $0x78] sm:$0xff]
    %v799 = vld [vmem:[#allocation13 + $0x80] sm:$0xff]
    %v800 = vld [vmem:[#allocation13 + $0x88] sm:$0xff]
    %v801 = vld [vmem:[#allocation13 + $0x90] sm:$0xff]
    %v802 = vld [vmem:[#allocation13 + $0x98] sm:$0xff]
    %v803 = vld [vmem:[#allocation13 + $0xa0] sm:$0xff]
    %v804 = vld [vmem:[#allocation13 + $0xa8] sm:$0xff]
    %v805 = vld [vmem:[#allocation13 + $0xb0] sm:$0xff]
    %v806 = vld [vmem:[#allocation13 + $0xb8] sm:$0xff]
    %v807 = vld [vmem:[#allocation13 + $0xc0] sm:$0xff]
    %v808 = vld [vmem:[#allocation13 + $0xc8] sm:$0xff]
    %v809 = vld [vmem:[#allocation13 + $0xd0] sm:$0xff]
    %v810 = vld [vmem:[#allocation13 + $0xd8] sm:$0xff]
    %v811 = vld [vmem:[#allocation13 + $0xe0] sm:$0xff]
    %v812 = vld [vmem:[#allocation13 + $0xe8] sm:$0xff]
    %v813 = vld [vmem:[#allocation13 + $0xf0] sm:$0xff]
    %v814 = vld [vmem:[#allocation13 + $0xf8] sm:$0xff]
    %s815 = scalar_lea.vmem [#allocation3], 1
    %v816 = vld [vmem:[%s815] ss:$8 sm:$0xf]
    %s817 = scalar_lea.vmem [#allocation3], 33
    %v818 = vld [vmem:[%s817] ss:$8 sm:$0xf]
    %v851 = vunpack.c.l.b16 %v783
    %v852 = vunpack.c.h.b16 %v783
    %v853 = vunpack.c.l.b16 %v784
    %v854 = vunpack.c.h.b16 %v784
    %v855 = vunpack.c.l.b16 %v785
    %v856 = vunpack.c.h.b16 %v785
    %v857 = vunpack.c.l.b16 %v786
    %v858 = vunpack.c.h.b16 %v786
    %v859 = vunpack.c.l.b16 %v787
    %v860 = vunpack.c.h.b16 %v787
    %v861 = vunpack.c.l.b16 %v788
    %v862 = vunpack.c.h.b16 %v788
    %v863 = vunpack.c.l.b16 %v789
    %v864 = vunpack.c.h.b16 %v789
    %v865 = vunpack.c.l.b16 %v790
    %v866 = vunpack.c.h.b16 %v790
    %v867 = vunpack.c.l.b16 %v791
    %v868 = vunpack.c.h.b16 %v791
    %v869 = vunpack.c.l.b16 %v792
    %v870 = vunpack.c.h.b16 %v792
    %v871 = vunpack.c.l.b16 %v793
    %v872 = vunpack.c.h.b16 %v793
    %v873 = vunpack.c.l.b16 %v794
    %v874 = vunpack.c.h.b16 %v794
    %v875 = vunpack.c.l.b16 %v795
    %v876 = vunpack.c.h.b16 %v795
    %v877 = vunpack.c.l.b16 %v796
    %v878 = vunpack.c.h.b16 %v796
    %v879 = vunpack.c.l.b16 %v797
    %v880 = vunpack.c.h.b16 %v797
    %v881 = vunpack.c.l.b16 %v798
    %v882 = vunpack.c.h.b16 %v798
    %v883 = vunpack.c.l.b16 %v799
    %v884 = vunpack.c.h.b16 %v799
    %v885 = vunpack.c.l.b16 %v800
    %v886 = vunpack.c.h.b16 %v800
    %v887 = vunpack.c.l.b16 %v801
    %v888 = vunpack.c.h.b16 %v801
    %v889 = vunpack.c.l.b16 %v802
    %v890 = vunpack.c.h.b16 %v802
    %v891 = vunpack.c.l.b16 %v803
    %v892 = vunpack.c.h.b16 %v803
    %v893 = vunpack.c.l.b16 %v804
    %v894 = vunpack.c.h.b16 %v804
    %v895 = vunpack.c.l.b16 %v805
    %v896 = vunpack.c.h.b16 %v805
    %v897 = vunpack.c.l.b16 %v806
    %v898 = vunpack.c.h.b16 %v806
    %v899 = vunpack.c.l.b16 %v807
    %v900 = vunpack.c.h.b16 %v807
    %v901 = vunpack.c.l.b16 %v808
    %v902 = vunpack.c.h.b16 %v808
    %v903 = vunpack.c.l.b16 %v809
    %v904 = vunpack.c.h.b16 %v809
    %v905 = vunpack.c.l.b16 %v810
    %v906 = vunpack.c.h.b16 %v810
    %v907 = vunpack.c.l.b16 %v811
    %v908 = vunpack.c.h.b16 %v811
    %v909 = vunpack.c.l.b16 %v812
    %v910 = vunpack.c.h.b16 %v812
    %v911 = vunpack.c.l.b16 %v813
    %v912 = vunpack.c.h.b16 %v813
    %v913 = vunpack.c.l.b16 %v814
    %v914 = vunpack.c.h.b16 %v814
    %v915 = vpack.c.b16 %v855, %v851
    %v916 = vpack.c.b16 %v856, %v852
    %v917 = vpack.c.b16 %v857, %v853
    %v918 = vpack.c.b16 %v858, %v854
    %v919 = vpack.c.b16 %v863, %v859
    %v920 = vpack.c.b16 %v864, %v860
    %v921 = vpack.c.b16 %v865, %v861
    %v922 = vpack.c.b16 %v866, %v862
    %v923 = vpack.c.b16 %v871, %v867
    %v924 = vpack.c.b16 %v872, %v868
    %v925 = vpack.c.b16 %v873, %v869
    %v926 = vpack.c.b16 %v874, %v870
    %v927 = vpack.c.b16 %v879, %v875
    %v928 = vpack.c.b16 %v880, %v876
    %v929 = vpack.c.b16 %v881, %v877
    %v930 = vpack.c.b16 %v882, %v878
    %v931 = vpack.c.b16 %v887, %v883
    %v932 = vpack.c.b16 %v888, %v884
    %v933 = vpack.c.b16 %v889, %v885
    %v934 = vpack.c.b16 %v890, %v886
    %v935 = vpack.c.b16 %v895, %v891
    %v936 = vpack.c.b16 %v896, %v892
    %v937 = vpack.c.b16 %v897, %v893
    %v938 = vpack.c.b16 %v898, %v894
    %v939 = vpack.c.b16 %v903, %v899
    %v940 = vpack.c.b16 %v904, %v900
    %v941 = vpack.c.b16 %v905, %v901
    %v942 = vpack.c.b16 %v906, %v902
    %v943 = vpack.c.b16 %v911, %v907
    %v944 = vpack.c.b16 %v912, %v908
    %v945 = vpack.c.b16 %v913, %v909
    %v946 = vpack.c.b16 %v914, %v910
    %v981 = vcombine.low %v816, %v818
    %v983 = vunpack.c.l.s4 1966171168
    %v984 = vunpack.c.0.s8 %v983
    %v985 = vlaneseq
    %v986 = vshrl.u32 %v985, 7
    %v987 = vsub.s32 %v984, %v986
    %v988 = vrot.slane %v981, %v987
    %v989 = vcombine.high %v988, %v988
    %v991 = vunpack.c.l.s4 1966171168
    %v992 = vunpack.c.0.s8 %v991
    %v993 = vlaneseq
    %v994 = vshrl.u32 %v993, 7
    %v995 = vsub.s32 %v992, %v994
    %v996 = vrot.slane %v988, %v995
    %v998 = vunpack.c.l.s4 1966171168
    %v999 = vunpack.c.0.s8 %v998
    %v1000 = vlaneseq
    %v1001 = vshrl.u32 %v1000, 7
    %v1002 = vsub.s32 %v999, %v1001
    %v1003 = vrot.slane %v989, %v1002
    %v1004 = vcombine.high %v996, %v996
    %v1005 = vcombine.high %v1003, %v1003
    %1010 = vmatprep.subr.bf16.mxu0 %v944
    %1011 = vmatpush1.bf16.msra.mxu0 %v943
    %1012 = vmatprep.subr.bf16.mxu0 %v940
    %1013 = vmatpush1.bf16.msra.mxu0 %v939
    %1014 = vmatprep.subr.bf16.mxu0 %v936
    %1015 = vmatpush1.bf16.msra.mxu0 %v935
    %1016 = vmatprep.subr.bf16.mxu0 %v932
    %1017 = vmatpush1.bf16.msra.mxu0 %v931
    %1018 = vmatprep.subr.bf16.mxu0 %v928
    %1019 = vmatpush1.bf16.msra.mxu0 %v927
    %1020 = vmatprep.subr.bf16.mxu0 %v924
    %1021 = vmatpush1.bf16.msra.mxu0 %v923
    %1022 = vmatprep.subr.bf16.mxu0 %v920
    %1023 = vmatpush1.bf16.msra.mxu0 %v919
    %1024 = vmatprep.subr.bf16.mxu0 %v916
    %1025 = vmatpush1.bf16.msra.mxu0 %v915
    %1026 = vmatprep.subr.bf16.mxu0 0
    %1027 = vmatpush2.bf16.msra.mxu0 0
    %1028 = vmatprep.subr.bf16.mxu0 0
    %1029 = vmatpush2.bf16.msra.mxu0 0
    %1030 = vmatprep.subr.bf16.mxu0 0
    %1031 = vmatpush2.bf16.msra.mxu0 0
    %1032 = vmatprep.subr.bf16.mxu0 0
    %1033 = vmatpush2.bf16.msra.mxu0 0
    %1034 = vmatprep.subr.bf16.mxu0 0
    %1035 = vmatpush2.bf16.msra.mxu0 0
    %1036 = vmatprep.subr.bf16.mxu0 0
    %1037 = vmatpush2.bf16.msra.mxu0 0
    %1038 = vmatprep.subr.bf16.mxu0 0
    %1039 = vmatpush2.bf16.msra.mxu0 0
    %1040 = vmatprep.subr.bf16.mxu0 0
    %1041 = vmatpush2.bf16.msra.mxu0 0
    %1042 = vmatprep.mubr.bf16.mxu0 0
    %1043 = vmatmul.mubr.bf16.gmra.mxu0 %v782
    %v1044 = vpop.f32.mrf.mxu0
    %v1045 = vadd.f32 %v996, %v1044
    %v1046 = vpop.f32.mrf.mxu0
    %v1047 = vadd.f32 %v1003, %v1046
    %v1048 = vpop.f32.mrf.mxu0
    %v1049 = vpop.f32.mrf.mxu0
    %1050 = vdwg.mxu0
    %1051 = vmatprep.subr.bf16.mxu0 %v946
    %1052 = vmatpush1.bf16.msra.mxu0 %v945
    %1053 = vmatprep.subr.bf16.mxu0 %v942
    %1054 = vmatpush1.bf16.msra.mxu0 %v941
    %1055 = vmatprep.subr.bf16.mxu0 %v938
    %1056 = vmatpush1.bf16.msra.mxu0 %v937
    %1057 = vmatprep.subr.bf16.mxu0 %v934
    %1058 = vmatpush1.bf16.msra.mxu0 %v933
    %1059 = vmatprep.subr.bf16.mxu0 %v930
    %1060 = vmatpush1.bf16.msra.mxu0 %v929
    %1061 = vmatprep.subr.bf16.mxu0 %v926
    %1062 = vmatpush1.bf16.msra.mxu0 %v925
    %1063 = vmatprep.subr.bf16.mxu0 %v922
    %1064 = vmatpush1.bf16.msra.mxu0 %v921
    %1065 = vmatprep.subr.bf16.mxu0 %v918
    %1066 = vmatpush1.bf16.msra.mxu0 %v917
    %1067 = vmatprep.subr.bf16.mxu0 0
    %1068 = vmatpush2.bf16.msra.mxu0 0
    %1069 = vmatprep.subr.bf16.mxu0 0
    %1070 = vmatpush2.bf16.msra.mxu0 0
    %1071 = vmatprep.subr.bf16.mxu0 0
    %1072 = vmatpush2.bf16.msra.mxu0 0
    %1073 = vmatprep.subr.bf16.mxu0 0
    %1074 = vmatpush2.bf16.msra.mxu0 0
    %1075 = vmatprep.subr.bf16.mxu0 0
    %1076 = vmatpush2.bf16.msra.mxu0 0
    %1077 = vmatprep.subr.bf16.mxu0 0
    %1078 = vmatpush2.bf16.msra.mxu0 0
    %1079 = vmatprep.subr.bf16.mxu0 0
    %1080 = vmatpush2.bf16.msra.mxu0 0
    %1081 = vmatprep.subr.bf16.mxu0 0
    %1082 = vmatpush2.bf16.msra.mxu0 0
    %1083 = vmatprep.mubr.bf16.mxu0 0
    %1084 = vmatmul.mubr.bf16.gmra.mxu0 %v782
    %v1085 = vpop.f32.mrf.mxu0
    %v1086 = vadd.f32 %v1004, %v1085
    %v1087 = vpop.f32.mrf.mxu0
    %v1088 = vadd.f32 %v1005, %v1087
    %v1089 = vpop.f32.mrf.mxu0
    %v1090 = vpop.f32.mrf.mxu0
    %1091 = vdwg.mxu0
    %v1092 = vxor.u32 %v1045, 2147483648
    %v1093 = vmul.f32 %v1092, 1.442695
    %v1094 = vpow.pop %v1093
    %v1095 = vadd.f32 %v1094, 1.0
    %v1096 = vrcp.pop %v1095
    %v1097 = vmul.f32 1.0, %v1096
    %v1098 = vxor.u32 %v1047, 2147483648
    %v1099 = vmul.f32 %v1098, 1.442695
    %v1100 = vpow.pop %v1099
    %v1101 = vadd.f32 %v1100, 1.0
    %v1102 = vrcp.pop %v1101
    %v1103 = vmul.f32 1.0, %v1102
    %v1104 = vtanh.pop %v1086
    %v1105 = vxor.u32 %v1088, 2147483648
    %v1106 = vmul.f32 %v1105, 1.442695
    %v1107 = vpow.pop %v1106
    %v1108 = vadd.f32 %v1107, 1.0
    %v1109 = vrcp.pop %v1108
    %v1110 = vmul.f32 1.0, %v1109
    %v1111 = vld [vmem:[#allocation5] sm:$0x3]
    %v1112 = vmul.f32 %v1103, %v1111
    %v1113 = vmul.f32 %v1097, %v1104
    %v1114 = vadd.f32 %v1112, %v1113
    %v1115 = vtanh.pop %v1114
    %v1116 = vmul.f32 %v1110, %v1115
    %1117 = vst [vmem:[#allocation5] sm:$0x3] %v1114
    %1118 = vst [vmem:[#allocation4] sm:$0x3] %v1116
    %v1119 = vpack.c.bf16 %v1116, %v1116
    %v1122 = vunpack.c.l.s4 1966171168
    %v1123 = vunpack.c.0.s8 %v1122
    %v1124 = vlaneseq
    %v1125 = vshrl.u32 %v1124, 7
    %v1126 = vsub.s32 %v1123, %v1125
    %v1127 = vrot.slane %v1119, %v1126
    %v1129 = vunpack.c.l.s4 1966171168
    %v1130 = vunpack.c.0.s8 %v1129
    %v1131 = vlaneseq
    %v1132 = vshrl.u32 %v1131, 7
    %v1133 = vsub.s32 %v1130, %v1132
    %v1134 = vrot.slane %v1127, %v1133
    %v1135 = vunpack.i.l.s16 %v1134
    %v1136 = vunpack.i.h.s16 %v1134
    %v1137 = vpack.i.b16 %v1135, %v1135
    %v1138 = vpack.i.b16 %v1136, %v1136
    %v1140 = vunpack.c.l.s4 286326784
    %v1141 = vunpack.c.0.s8 %v1140
    %v1142 = vlaneseq
    %v1143 = vshrl.u32 %v1142, 7
    %v1144 = vsub.s32 %v1141, %v1143
    %v1145 = vrot.slane %v1137, %v1144
    %v1147 = vunpack.c.l.s4 286326784
    %v1148 = vunpack.c.0.s8 %v1147
    %v1149 = vlaneseq
    %v1150 = vshrl.u32 %v1149, 7
    %v1151 = vsub.s32 %v1148, %v1150
    %v1152 = vrot.slane %v1138, %v1151
    %vm1155 = vsmask.f32 7938
    %vm1156 = vmand %vm772, %vm1155
    %v1157 = vld [vmem:[#allocation2] sm:$0x1]
    %v1158 = vsel %vm1156, %v1145, %v1157
    %1159 = vst [vmem:[#allocation2] sm:$0x1] %v1158
    %v1160 = vld [vmem:[#allocation2 + $0x4] sm:$0x1]
    %v1161 = vsel %vm1156, %v1152, %v1160
    %1162 = vst [vmem:[#allocation2 + $0x4] sm:$0x1] %v1161
    %v1163 = vld [vmem:[#allocation4] sm:$0x3]
    %v1164 = vpack.c.bf16 %v1163, %v1163
    %v1165 = vld [vmem:[#allocation13] sm:$0xff]
    %v1166 = vld [vmem:[#allocation13 + $0x8] sm:$0xff]
    %v1167 = vld [vmem:[#allocation13 + $0x10] sm:$0xff]
    %v1168 = vld [vmem:[#allocation13 + $0x18] sm:$0xff]
    %v1169 = vld [vmem:[#allocation13 + $0x20] sm:$0xff]
    %v1170 = vld [vmem:[#allocation13 + $0x28] sm:$0xff]
    %v1171 = vld [vmem:[#allocation13 + $0x30] sm:$0xff]
    %v1172 = vld [vmem:[#allocation13 + $0x38] sm:$0xff]
    %v1173 = vld [vmem:[#allocation13 + $0x40] sm:$0xff]
    %v1174 = vld [vmem:[#allocation13 + $0x48] sm:$0xff]
    %v1175 = vld [vmem:[#allocation13 + $0x50] sm:$0xff]
    %v1176 = vld [vmem:[#allocation13 + $0x58] sm:$0xff]
    %v1177 = vld [vmem:[#allocation13 + $0x60] sm:$0xff]
    %v1178 = vld [vmem:[#allocation13 + $0x68] sm:$0xff]
    %v1179 = vld [vmem:[#allocation13 + $0x70] sm:$0xff]
    %v1180 = vld [vmem:[#allocation13 + $0x78] sm:$0xff]
    %v1181 = vld [vmem:[#allocation13 + $0x80] sm:$0xff]
    %v1182 = vld [vmem:[#allocation13 + $0x88] sm:$0xff]
    %v1183 = vld [vmem:[#allocation13 + $0x90] sm:$0xff]
    %v1184 = vld [vmem:[#allocation13 + $0x98] sm:$0xff]
    %v1185 = vld [vmem:[#allocation13 + $0xa0] sm:$0xff]
    %v1186 = vld [vmem:[#allocation13 + $0xa8] sm:$0xff]
    %v1187 = vld [vmem:[#allocation13 + $0xb0] sm:$0xff]
    %v1188 = vld [vmem:[#allocation13 + $0xb8] sm:$0xff]
    %v1189 = vld [vmem:[#allocation13 + $0xc0] sm:$0xff]
    %v1190 = vld [vmem:[#allocation13 + $0xc8] sm:$0xff]
    %v1191 = vld [vmem:[#allocation13 + $0xd0] sm:$0xff]
    %v1192 = vld [vmem:[#allocation13 + $0xd8] sm:$0xff]
    %v1193 = vld [vmem:[#allocation13 + $0xe0] sm:$0xff]
    %v1194 = vld [vmem:[#allocation13 + $0xe8] sm:$0xff]
    %v1195 = vld [vmem:[#allocation13 + $0xf0] sm:$0xff]
    %v1196 = vld [vmem:[#allocation13 + $0xf8] sm:$0xff]
    %s1197 = scalar_lea.vmem [#allocation3], 2
    %v1198 = vld [vmem:[%s1197] ss:$8 sm:$0xf]
    %s1199 = scalar_lea.vmem [#allocation3], 34
    %v1200 = vld [vmem:[%s1199] ss:$8 sm:$0xf]
    %v1233 = vunpack.c.l.b16 %v1165
    %v1234 = vunpack.c.h.b16 %v1165
    %v1235 = vunpack.c.l.b16 %v1166
    %v1236 = vunpack.c.h.b16 %v1166
    %v1237 = vunpack.c.l.b16 %v1167
    %v1238 = vunpack.c.h.b16 %v1167
    %v1239 = vunpack.c.l.b16 %v1168
    %v1240 = vunpack.c.h.b16 %v1168
    %v1241 = vunpack.c.l.b16 %v1169
    %v1242 = vunpack.c.h.b16 %v1169
    %v1243 = vunpack.c.l.b16 %v1170
    %v1244 = vunpack.c.h.b16 %v1170
    %v1245 = vunpack.c.l.b16 %v1171
    %v1246 = vunpack.c.h.b16 %v1171
    %v1247 = vunpack.c.l.b16 %v1172
    %v1248 = vunpack.c.h.b16 %v1172
    %v1249 = vunpack.c.l.b16 %v1173
    %v1250 = vunpack.c.h.b16 %v1173
    %v1251 = vunpack.c.l.b16 %v1174
    %v1252 = vunpack.c.h.b16 %v1174
    %v1253 = vunpack.c.l.b16 %v1175
    %v1254 = vunpack.c.h.b16 %v1175
    %v1255 = vunpack.c.l.b16 %v1176
    %v1256 = vunpack.c.h.b16 %v1176
    %v1257 = vunpack.c.l.b16 %v1177
    %v1258 = vunpack.c.h.b16 %v1177
    %v1259 = vunpack.c.l.b16 %v1178
    %v1260 = vunpack.c.h.b16 %v1178
    %v1261 = vunpack.c.l.b16 %v1179
    %v1262 = vunpack.c.h.b16 %v1179
    %v1263 = vunpack.c.l.b16 %v1180
    %v1264 = vunpack.c.h.b16 %v1180
    %v1265 = vunpack.c.l.b16 %v1181
    %v1266 = vunpack.c.h.b16 %v1181
    %v1267 = vunpack.c.l.b16 %v1182
    %v1268 = vunpack.c.h.b16 %v1182
    %v1269 = vunpack.c.l.b16 %v1183
    %v1270 = vunpack.c.h.b16 %v1183
    %v1271 = vunpack.c.l.b16 %v1184
    %v1272 = vunpack.c.h.b16 %v1184
    %v1273 = vunpack.c.l.b16 %v1185
    %v1274 = vunpack.c.h.b16 %v1185
    %v1275 = vunpack.c.l.b16 %v1186
    %v1276 = vunpack.c.h.b16 %v1186
    %v1277 = vunpack.c.l.b16 %v1187
    %v1278 = vunpack.c.h.b16 %v1187
    %v1279 = vunpack.c.l.b16 %v1188
    %v1280 = vunpack.c.h.b16 %v1188
    %v1281 = vunpack.c.l.b16 %v1189
    %v1282 = vunpack.c.h.b16 %v1189
    %v1283 = vunpack.c.l.b16 %v1190
    %v1284 = vunpack.c.h.b16 %v1190
    %v1285 = vunpack.c.l.b16 %v1191
    %v1286 = vunpack.c.h.b16 %v1191
    %v1287 = vunpack.c.l.b16 %v1192
    %v1288 = vunpack.c.h.b16 %v1192
    %v1289 = vunpack.c.l.b16 %v1193
    %v1290 = vunpack.c.h.b16 %v1193
    %v1291 = vunpack.c.l.b16 %v1194
    %v1292 = vunpack.c.h.b16 %v1194
    %v1293 = vunpack.c.l.b16 %v1195
    %v1294 = vunpack.c.h.b16 %v1195
    %v1295 = vunpack.c.l.b16 %v1196
    %v1296 = vunpack.c.h.b16 %v1196
    %v1297 = vpack.c.b16 %v1237, %v1233
    %v1298 = vpack.c.b16 %v1238, %v1234
    %v1299 = vpack.c.b16 %v1239, %v1235
    %v1300 = vpack.c.b16 %v1240, %v1236
    %v1301 = vpack.c.b16 %v1245, %v1241
    %v1302 = vpack.c.b16 %v1246, %v1242
    %v1303 = vpack.c.b16 %v1247, %v1243
    %v1304 = vpack.c.b16 %v1248, %v1244
    %v1305 = vpack.c.b16 %v1253, %v1249
    %v1306 = vpack.c.b16 %v1254, %v1250
    %v1307 = vpack.c.b16 %v1255, %v1251
    %v1308 = vpack.c.b16 %v1256, %v1252
    %v1309 = vpack.c.b16 %v1261, %v1257
    %v1310 = vpack.c.b16 %v1262, %v1258
    %v1311 = vpack.c.b16 %v1263, %v1259
    %v1312 = vpack.c.b16 %v1264, %v1260
    %v1313 = vpack.c.b16 %v1269, %v1265
    %v1314 = vpack.c.b16 %v1270, %v1266
    %v1315 = vpack.c.b16 %v1271, %v1267
    %v1316 = vpack.c.b16 %v1272, %v1268
    %v1317 = vpack.c.b16 %v1277, %v1273
    %v1318 = vpack.c.b16 %v1278, %v1274
    %v1319 = vpack.c.b16 %v1279, %v1275
    %v1320 = vpack.c.b16 %v1280, %v1276
    %v1321 = vpack.c.b16 %v1285, %v1281
    %v1322 = vpack.c.b16 %v1286, %v1282
    %v1323 = vpack.c.b16 %v1287, %v1283
    %v1324 = vpack.c.b16 %v1288, %v1284
    %v1325 = vpack.c.b16 %v1293, %v1289
    %v1326 = vpack.c.b16 %v1294, %v1290
    %v1327 = vpack.c.b16 %v1295, %v1291
    %v1328 = vpack.c.b16 %v1296, %v1292
    %v1363 = vcombine.low %v1198, %v1200
    %v1365 = vunpack.c.l.s4 1966171168
    %v1366 = vunpack.c.0.s8 %v1365
    %v1367 = vlaneseq
    %v1368 = vshrl.u32 %v1367, 7
    %v1369 = vsub.s32 %v1366, %v1368
    %v1370 = vrot.slane %v1363, %v1369
    %v1371 = vcombine.high %v1370, %v1370
    %v1373 = vunpack.c.l.s4 1966171168
    %v1374 = vunpack.c.0.s8 %v1373
    %v1375 = vlaneseq
    %v1376 = vshrl.u32 %v1375, 7
    %v1377 = vsub.s32 %v1374, %v1376
    %v1378 = vrot.slane %v1370, %v1377
    %v1380 = vunpack.c.l.s4 1966171168
    %v1381 = vunpack.c.0.s8 %v1380
    %v1382 = vlaneseq
    %v1383 = vshrl.u32 %v1382, 7
    %v1384 = vsub.s32 %v1381, %v1383
    %v1385 = vrot.slane %v1371, %v1384
    %v1386 = vcombine.high %v1378, %v1378
    %v1387 = vcombine.high %v1385, %v1385
    %1392 = vmatprep.subr.bf16.mxu0 %v1326
    %1393 = vmatpush1.bf16.msra.mxu0 %v1325
    %1394 = vmatprep.subr.bf16.mxu0 %v1322
    %1395 = vmatpush1.bf16.msra.mxu0 %v1321
    %1396 = vmatprep.subr.bf16.mxu0 %v1318
    %1397 = vmatpush1.bf16.msra.mxu0 %v1317
    %1398 = vmatprep.subr.bf16.mxu0 %v1314
    %1399 = vmatpush1.bf16.msra.mxu0 %v1313
    %1400 = vmatprep.subr.bf16.mxu0 %v1310
    %1401 = vmatpush1.bf16.msra.mxu0 %v1309
    %1402 = vmatprep.subr.bf16.mxu0 %v1306
    %1403 = vmatpush1.bf16.msra.mxu0 %v1305
    %1404 = vmatprep.subr.bf16.mxu0 %v1302
    %1405 = vmatpush1.bf16.msra.mxu0 %v1301
    %1406 = vmatprep.subr.bf16.mxu0 %v1298
    %1407 = vmatpush1.bf16.msra.mxu0 %v1297
    %1408 = vmatprep.subr.bf16.mxu0 0
    %1409 = vmatpush2.bf16.msra.mxu0 0
    %1410 = vmatprep.subr.bf16.mxu0 0
    %1411 = vmatpush2.bf16.msra.mxu0 0
    %1412 = vmatprep.subr.bf16.mxu0 0
    %1413 = vmatpush2.bf16.msra.mxu0 0
    %1414 = vmatprep.subr.bf16.mxu0 0
    %1415 = vmatpush2.bf16.msra.mxu0 0
    %1416 = vmatprep.subr.bf16.mxu0 0
    %1417 = vmatpush2.bf16.msra.mxu0 0
    %1418 = vmatprep.subr.bf16.mxu0 0
    %1419 = vmatpush2.bf16.msra.mxu0 0
    %1420 = vmatprep.subr.bf16.mxu0 0
    %1421 = vmatpush2.bf16.msra.mxu0 0
    %1422 = vmatprep.subr.bf16.mxu0 0
    %1423 = vmatpush2.bf16.msra.mxu0 0
    %1424 = vmatprep.mubr.bf16.mxu0 0
    %1425 = vmatmul.mubr.bf16.gmra.mxu0 %v1164
    %v1426 = vpop.f32.mrf.mxu0
    %v1427 = vadd.f32 %v1378, %v1426
    %v1428 = vpop.f32.mrf.mxu0
    %v1429 = vadd.f32 %v1385, %v1428
    %v1430 = vpop.f32.mrf.mxu0
    %v1431 = vpop.f32.mrf.mxu0
    %1432 = vdwg.mxu0
    %1433 = vmatprep.subr.bf16.mxu0 %v1328
    %1434 = vmatpush1.bf16.msra.mxu0 %v1327
    %1435 = vmatprep.subr.bf16.mxu0 %v1324
    %1436 = vmatpush1.bf16.msra.mxu0 %v1323
    %1437 = vmatprep.subr.bf16.mxu0 %v1320
    %1438 = vmatpush1.bf16.msra.mxu0 %v1319
    %1439 = vmatprep.subr.bf16.mxu0 %v1316
    %1440 = vmatpush1.bf16.msra.mxu0 %v1315
    %1441 = vmatprep.subr.bf16.mxu0 %v1312
    %1442 = vmatpush1.bf16.msra.mxu0 %v1311
    %1443 = vmatprep.subr.bf16.mxu0 %v1308
    %1444 = vmatpush1.bf16.msra.mxu0 %v1307
    %1445 = vmatprep.subr.bf16.mxu0 %v1304
    %1446 = vmatpush1.bf16.msra.mxu0 %v1303
    %1447 = vmatprep.subr.bf16.mxu0 %v1300
    %1448 = vmatpush1.bf16.msra.mxu0 %v1299
    %1449 = vmatprep.subr.bf16.mxu0 0
    %1450 = vmatpush2.bf16.msra.mxu0 0
    %1451 = vmatprep.subr.bf16.mxu0 0
    %1452 = vmatpush2.bf16.msra.mxu0 0
    %1453 = vmatprep.subr.bf16.mxu0 0
    %1454 = vmatpush2.bf16.msra.mxu0 0
    %1455 = vmatprep.subr.bf16.mxu0 0
    %1456 = vmatpush2.bf16.msra.mxu0 0
    %1457 = vmatprep.subr.bf16.mxu0 0
    %1458 = vmatpush2.bf16.msra.mxu0 0
    %1459 = vmatprep.subr.bf16.mxu0 0
    %1460 = vmatpush2.bf16.msra.mxu0 0
    %1461 = vmatprep.subr.bf16.mxu0 0
    %1462 = vmatpush2.bf16.msra.mxu0 0
    %1463 = vmatprep.subr.bf16.mxu0 0
    %1464 = vmatpush2.bf16.msra.mxu0 0
    %1465 = vmatprep.mubr.bf16.mxu0 0
    %1466 = vmatmul.mubr.bf16.gmra.mxu0 %v1164
    %v1467 = vpop.f32.mrf.mxu0
    %v1468 = vadd.f32 %v1386, %v1467
    %v1469 = vpop.f32.mrf.mxu0
    %v1470 = vadd.f32 %v1387, %v1469
    %v1471 = vpop.f32.mrf.mxu0
    %v1472 = vpop.f32.mrf.mxu0
    %1473 = vdwg.mxu0
    %v1474 = vxor.u32 %v1427, 2147483648
    %v1475 = vmul.f32 %v1474, 1.442695
    %v1476 = vpow.pop %v1475
    %v1477 = vadd.f32 %v1476, 1.0
    %v1478 = vrcp.pop %v1477
    %v1479 = vmul.f32 1.0, %v1478
    %v1480 = vxor.u32 %v1429, 2147483648
    %v1481 = vmul.f32 %v1480, 1.442695
    %v1482 = vpow.pop %v1481
    %v1483 = vadd.f32 %v1482, 1.0
    %v1484 = vrcp.pop %v1483
    %v1485 = vmul.f32 1.0, %v1484
    %v1486 = vtanh.pop %v1468
    %v1487 = vxor.u32 %v1470, 2147483648
    %v1488 = vmul.f32 %v1487, 1.442695
    %v1489 = vpow.pop %v1488
    %v1490 = vadd.f32 %v1489, 1.0
    %v1491 = vrcp.pop %v1490
    %v1492 = vmul.f32 1.0, %v1491
    %v1493 = vld [vmem:[#allocation5] sm:$0x3]
    %v1494 = vmul.f32 %v1485, %v1493
    %v1495 = vmul.f32 %v1479, %v1486
    %v1496 = vadd.f32 %v1494, %v1495
    %v1497 = vtanh.pop %v1496
    %v1498 = vmul.f32 %v1492, %v1497
    %1499 = vst [vmem:[#allocation5] sm:$0x3] %v1496
    %1500 = vst [vmem:[#allocation4] sm:$0x3] %v1498
    %v1501 = vpack.c.bf16 %v1498, %v1498
    %v1504 = vunpack.c.l.s4 1966171168
    %v1505 = vunpack.c.0.s8 %v1504
    %v1506 = vlaneseq
    %v1507 = vshrl.u32 %v1506, 7
    %v1508 = vsub.s32 %v1505, %v1507
    %v1509 = vrot.slane %v1501, %v1508
    %v1511 = vunpack.c.l.s4 1966171168
    %v1512 = vunpack.c.0.s8 %v1511
    %v1513 = vlaneseq
    %v1514 = vshrl.u32 %v1513, 7
    %v1515 = vsub.s32 %v1512, %v1514
    %v1516 = vrot.slane %v1509, %v1515
    %v1517 = vunpack.i.l.s16 %v1516
    %v1518 = vunpack.i.h.s16 %v1516
    %v1519 = vpack.i.b16 %v1517, %v1517
    %v1520 = vpack.i.b16 %v1518, %v1518
    %v1522 = vunpack.c.l.s4 286326784
    %v1523 = vunpack.c.0.s8 %v1522
    %v1524 = vlaneseq
    %v1525 = vshrl.u32 %v1524, 7
    %v1526 = vsub.s32 %v1523, %v1525
    %v1527 = vrot.slane %v1519, %v1526
    %v1529 = vunpack.c.l.s4 286326784
    %v1530 = vunpack.c.0.s8 %v1529
    %v1531 = vlaneseq
    %v1532 = vshrl.u32 %v1531, 7
    %v1533 = vsub.s32 %v1530, %v1532
    %v1534 = vrot.slane %v1520, %v1533
    %vm1537 = vcmask 1041409
    %vm1538 = vsmask.f32 1280
    %vm1539 = vmand %vm1537, %vm1538
    %v1540 = vld [vmem:[#allocation2] sm:$0x2]
    %v1541 = vsel %vm1539, %v1527, %v1540
    %1542 = vst [vmem:[#allocation2] sm:$0x2] %v1541
    %v1543 = vld [vmem:[#allocation2 + $0x4] sm:$0x2]
    %v1544 = vsel %vm1539, %v1534, %v1543
    %1545 = vst [vmem:[#allocation2 + $0x4] sm:$0x2] %v1544
    %v1546 = vld [vmem:[#allocation4] sm:$0x3]
    %v1547 = vpack.c.bf16 %v1546, %v1546
    %v1548 = vld [vmem:[#allocation13] sm:$0xff]
    %v1549 = vld [vmem:[#allocation13 + $0x8] sm:$0xff]
    %v1550 = vld [vmem:[#allocation13 + $0x10] sm:$0xff]
    %v1551 = vld [vmem:[#allocation13 + $0x18] sm:$0xff]
    %v1552 = vld [vmem:[#allocation13 + $0x20] sm:$0xff]
    %v1553 = vld [vmem:[#allocation13 + $0x28] sm:$0xff]
    %v1554 = vld [vmem:[#allocation13 + $0x30] sm:$0xff]
    %v1555 = vld [vmem:[#allocation13 + $0x38] sm:$0xff]
    %v1556 = vld [vmem:[#allocation13 + $0x40] sm:$0xff]
    %v1557 = vld [vmem:[#allocation13 + $0x48] sm:$0xff]
    %v1558 = vld [vmem:[#allocation13 + $0x50] sm:$0xff]
    %v1559 = vld [vmem:[#allocation13 + $0x58] sm:$0xff]
    %v1560 = vld [vmem:[#allocation13 + $0x60] sm:$0xff]
    %v1561 = vld [vmem:[#allocation13 + $0x68] sm:$0xff]
    %v1562 = vld [vmem:[#allocation13 + $0x70] sm:$0xff]
    %v1563 = vld [vmem:[#allocation13 + $0x78] sm:$0xff]
    %v1564 = vld [vmem:[#allocation13 + $0x80] sm:$0xff]
    %v1565 = vld [vmem:[#allocation13 + $0x88] sm:$0xff]
    %v1566 = vld [vmem:[#allocation13 + $0x90] sm:$0xff]
    %v1567 = vld [vmem:[#allocation13 + $0x98] sm:$0xff]
    %v1568 = vld [vmem:[#allocation13 + $0xa0] sm:$0xff]
    %v1569 = vld [vmem:[#allocation13 + $0xa8] sm:$0xff]
    %v1570 = vld [vmem:[#allocation13 + $0xb0] sm:$0xff]
    %v1571 = vld [vmem:[#allocation13 + $0xb8] sm:$0xff]
    %v1572 = vld [vmem:[#allocation13 + $0xc0] sm:$0xff]
    %v1573 = vld [vmem:[#allocation13 + $0xc8] sm:$0xff]
    %v1574 = vld [vmem:[#allocation13 + $0xd0] sm:$0xff]
    %v1575 = vld [vmem:[#allocation13 + $0xd8] sm:$0xff]
    %v1576 = vld [vmem:[#allocation13 + $0xe0] sm:$0xff]
    %v1577 = vld [vmem:[#allocation13 + $0xe8] sm:$0xff]
    %v1578 = vld [vmem:[#allocation13 + $0xf0] sm:$0xff]
    %v1579 = vld [vmem:[#allocation13 + $0xf8] sm:$0xff]
    %s1580 = scalar_lea.vmem [#allocation3], 3
    %v1581 = vld [vmem:[%s1580] ss:$8 sm:$0xf]
    %s1582 = scalar_lea.vmem [#allocation3], 35
    %v1583 = vld [vmem:[%s1582] ss:$8 sm:$0xf]
    %v1616 = vunpack.c.l.b16 %v1548
    %v1617 = vunpack.c.h.b16 %v1548
    %v1618 = vunpack.c.l.b16 %v1549
    %v1619 = vunpack.c.h.b16 %v1549
    %v1620 = vunpack.c.l.b16 %v1550
    %v1621 = vunpack.c.h.b16 %v1550
    %v1622 = vunpack.c.l.b16 %v1551
    %v1623 = vunpack.c.h.b16 %v1551
    %v1624 = vunpack.c.l.b16 %v1552
    %v1625 = vunpack.c.h.b16 %v1552
    %v1626 = vunpack.c.l.b16 %v1553
    %v1627 = vunpack.c.h.b16 %v1553
    %v1628 = vunpack.c.l.b16 %v1554
    %v1629 = vunpack.c.h.b16 %v1554
    %v1630 = vunpack.c.l.b16 %v1555
    %v1631 = vunpack.c.h.b16 %v1555
    %v1632 = vunpack.c.l.b16 %v1556
    %v1633 = vunpack.c.h.b16 %v1556
    %v1634 = vunpack.c.l.b16 %v1557
    %v1635 = vunpack.c.h.b16 %v1557
    %v1636 = vunpack.c.l.b16 %v1558
    %v1637 = vunpack.c.h.b16 %v1558
    %v1638 = vunpack.c.l.b16 %v1559
    %v1639 = vunpack.c.h.b16 %v1559
    %v1640 = vunpack.c.l.b16 %v1560
    %v1641 = vunpack.c.h.b16 %v1560
    %v1642 = vunpack.c.l.b16 %v1561
    %v1643 = vunpack.c.h.b16 %v1561
    %v1644 = vunpack.c.l.b16 %v1562
    %v1645 = vunpack.c.h.b16 %v1562
    %v1646 = vunpack.c.l.b16 %v1563
    %v1647 = vunpack.c.h.b16 %v1563
    %v1648 = vunpack.c.l.b16 %v1564
    %v1649 = vunpack.c.h.b16 %v1564
    %v1650 = vunpack.c.l.b16 %v1565
    %v1651 = vunpack.c.h.b16 %v1565
    %v1652 = vunpack.c.l.b16 %v1566
    %v1653 = vunpack.c.h.b16 %v1566
    %v1654 = vunpack.c.l.b16 %v1567
    %v1655 = vunpack.c.h.b16 %v1567
    %v1656 = vunpack.c.l.b16 %v1568
    %v1657 = vunpack.c.h.b16 %v1568
    %v1658 = vunpack.c.l.b16 %v1569
    %v1659 = vunpack.c.h.b16 %v1569
    %v1660 = vunpack.c.l.b16 %v1570
    %v1661 = vunpack.c.h.b16 %v1570
    %v1662 = vunpack.c.l.b16 %v1571
    %v1663 = vunpack.c.h.b16 %v1571
    %v1664 = vunpack.c.l.b16 %v1572
    %v1665 = vunpack.c.h.b16 %v1572
    %v1666 = vunpack.c.l.b16 %v1573
    %v1667 = vunpack.c.h.b16 %v1573
    %v1668 = vunpack.c.l.b16 %v1574
    %v1669 = vunpack.c.h.b16 %v1574
    %v1670 = vunpack.c.l.b16 %v1575
    %v1671 = vunpack.c.h.b16 %v1575
    %v1672 = vunpack.c.l.b16 %v1576
    %v1673 = vunpack.c.h.b16 %v1576
    %v1674 = vunpack.c.l.b16 %v1577
    %v1675 = vunpack.c.h.b16 %v1577
    %v1676 = vunpack.c.l.b16 %v1578
    %v1677 = vunpack.c.h.b16 %v1578
    %v1678 = vunpack.c.l.b16 %v1579
    %v1679 = vunpack.c.h.b16 %v1579
    %v1680 = vpack.c.b16 %v1620, %v1616
    %v1681 = vpack.c.b16 %v1621, %v1617
    %v1682 = vpack.c.b16 %v1622, %v1618
    %v1683 = vpack.c.b16 %v1623, %v1619
    %v1684 = vpack.c.b16 %v1628, %v1624
    %v1685 = vpack.c.b16 %v1629, %v1625
    %v1686 = vpack.c.b16 %v1630, %v1626
    %v1687 = vpack.c.b16 %v1631, %v1627
    %v1688 = vpack.c.b16 %v1636, %v1632
    %v1689 = vpack.c.b16 %v1637, %v1633
    %v1690 = vpack.c.b16 %v1638, %v1634
    %v1691 = vpack.c.b16 %v1639, %v1635
    %v1692 = vpack.c.b16 %v1644, %v1640
    %v1693 = vpack.c.b16 %v1645, %v1641
    %v1694 = vpack.c.b16 %v1646, %v1642
    %v1695 = vpack.c.b16 %v1647, %v1643
    %v1696 = vpack.c.b16 %v1652, %v1648
    %v1697 = vpack.c.b16 %v1653, %v1649
    %v1698 = vpack.c.b16 %v1654, %v1650
    %v1699 = vpack.c.b16 %v1655, %v1651
    %v1700 = vpack.c.b16 %v1660, %v1656
    %v1701 = vpack.c.b16 %v1661, %v1657
    %v1702 = vpack.c.b16 %v1662, %v1658
    %v1703 = vpack.c.b16 %v1663, %v1659
    %v1704 = vpack.c.b16 %v1668, %v1664
    %v1705 = vpack.c.b16 %v1669, %v1665
    %v1706 = vpack.c.b16 %v1670, %v1666
    %v1707 = vpack.c.b16 %v1671, %v1667
    %v1708 = vpack.c.b16 %v1676, %v1672
    %v1709 = vpack.c.b16 %v1677, %v1673
    %v1710 = vpack.c.b16 %v1678, %v1674
    %v1711 = vpack.c.b16 %v1679, %v1675
    %v1746 = vcombine.low %v1581, %v1583
    %v1748 = vunpack.c.l.s4 1966171168
    %v1749 = vunpack.c.0.s8 %v1748
    %v1750 = vlaneseq
    %v1751 = vshrl.u32 %v1750, 7
    %v1752 = vsub.s32 %v1749, %v1751
    %v1753 = vrot.slane %v1746, %v1752
    %v1754 = vcombine.high %v1753, %v1753
    %v1756 = vunpack.c.l.s4 1966171168
    %v1757 = vunpack.c.0.s8 %v1756
    %v1758 = vlaneseq
    %v1759 = vshrl.u32 %v1758, 7
    %v1760 = vsub.s32 %v1757, %v1759
    %v1761 = vrot.slane %v1753, %v1760
    %v1763 = vunpack.c.l.s4 1966171168
    %v1764 = vunpack.c.0.s8 %v1763
    %v1765 = vlaneseq
    %v1766 = vshrl.u32 %v1765, 7
    %v1767 = vsub.s32 %v1764, %v1766
    %v1768 = vrot.slane %v1754, %v1767
    %v1769 = vcombine.high %v1761, %v1761
    %v1770 = vcombine.high %v1768, %v1768
    %1775 = vmatprep.subr.bf16.mxu0 %v1709
    %1776 = vmatpush1.bf16.msra.mxu0 %v1708
    %1777 = vmatprep.subr.bf16.mxu0 %v1705
    %1778 = vmatpush1.bf16.msra.mxu0 %v1704
    %1779 = vmatprep.subr.bf16.mxu0 %v1701
    %1780 = vmatpush1.bf16.msra.mxu0 %v1700
    %1781 = vmatprep.subr.bf16.mxu0 %v1697
    %1782 = vmatpush1.bf16.msra.mxu0 %v1696
    %1783 = vmatprep.subr.bf16.mxu0 %v1693
    %1784 = vmatpush1.bf16.msra.mxu0 %v1692
    %1785 = vmatprep.subr.bf16.mxu0 %v1689
    %1786 = vmatpush1.bf16.msra.mxu0 %v1688
    %1787 = vmatprep.subr.bf16.mxu0 %v1685
    %1788 = vmatpush1.bf16.msra.mxu0 %v1684
    %1789 = vmatprep.subr.bf16.mxu0 %v1681
    %1790 = vmatpush1.bf16.msra.mxu0 %v1680
    %1791 = vmatprep.subr.bf16.mxu0 0
    %1792 = vmatpush2.bf16.msra.mxu0 0
    %1793 = vmatprep.subr.bf16.mxu0 0
    %1794 = vmatpush2.bf16.msra.mxu0 0
    %1795 = vmatprep.subr.bf16.mxu0 0
    %1796 = vmatpush2.bf16.msra.mxu0 0
    %1797 = vmatprep.subr.bf16.mxu0 0
    %1798 = vmatpush2.bf16.msra.mxu0 0
    %1799 = vmatprep.subr.bf16.mxu0 0
    %1800 = vmatpush2.bf16.msra.mxu0 0
    %1801 = vmatprep.subr.bf16.mxu0 0
    %1802 = vmatpush2.bf16.msra.mxu0 0
    %1803 = vmatprep.subr.bf16.mxu0 0
    %1804 = vmatpush2.bf16.msra.mxu0 0
    %1805 = vmatprep.subr.bf16.mxu0 0
    %1806 = vmatpush2.bf16.msra.mxu0 0
    %1807 = vmatprep.mubr.bf16.mxu0 0
    %1808 = vmatmul.mubr.bf16.gmra.mxu0 %v1547
    %v1809 = vpop.f32.mrf.mxu0
    %v1810 = vadd.f32 %v1761, %v1809
    %v1811 = vpop.f32.mrf.mxu0
    %v1812 = vadd.f32 %v1768, %v1811
    %v1813 = vpop.f32.mrf.mxu0
    %v1814 = vpop.f32.mrf.mxu0
    %1815 = vdwg.mxu0
    %1816 = vmatprep.subr.bf16.mxu0 %v1711
    %1817 = vmatpush1.bf16.msra.mxu0 %v1710
    %1818 = vmatprep.subr.bf16.mxu0 %v1707
    %1819 = vmatpush1.bf16.msra.mxu0 %v1706
    %1820 = vmatprep.subr.bf16.mxu0 %v1703
    %1821 = vmatpush1.bf16.msra.mxu0 %v1702
    %1822 = vmatprep.subr.bf16.mxu0 %v1699
    %1823 = vmatpush1.bf16.msra.mxu0 %v1698
    %1824 = vmatprep.subr.bf16.mxu0 %v1695
    %1825 = vmatpush1.bf16.msra.mxu0 %v1694
    %1826 = vmatprep.subr.bf16.mxu0 %v1691
    %1827 = vmatpush1.bf16.msra.mxu0 %v1690
    %1828 = vmatprep.subr.bf16.mxu0 %v1687
    %1829 = vmatpush1.bf16.msra.mxu0 %v1686
    %1830 = vmatprep.subr.bf16.mxu0 %v1683
    %1831 = vmatpush1.bf16.msra.mxu0 %v1682
    %1832 = vmatprep.subr.bf16.mxu0 0
    %1833 = vmatpush2.bf16.msra.mxu0 0
    %1834 = vmatprep.subr.bf16.mxu0 0
    %1835 = vmatpush2.bf16.msra.mxu0 0
    %1836 = vmatprep.subr.bf16.mxu0 0
    %1837 = vmatpush2.bf16.msra.mxu0 0
    %1838 = vmatprep.subr.bf16.mxu0 0
    %1839 = vmatpush2.bf16.msra.mxu0 0
    %1840 = vmatprep.subr.bf16.mxu0 0
    %1841 = vmatpush2.bf16.msra.mxu0 0
    %1842 = vmatprep.subr.bf16.mxu0 0
    %1843 = vmatpush2.bf16.msra.mxu0 0
    %1844 = vmatprep.subr.bf16.mxu0 0
    %1845 = vmatpush2.bf16.msra.mxu0 0
    %1846 = vmatprep.subr.bf16.mxu0 0
    %1847 = vmatpush2.bf16.msra.mxu0 0
    %1848 = vmatprep.mubr.bf16.mxu0 0
    %1849 = vmatmul.mubr.bf16.gmra.mxu0 %v1547
    %v1850 = vpop.f32.mrf.mxu0
    %v1851 = vadd.f32 %v1769, %v1850
    %v1852 = vpop.f32.mrf.mxu0
    %v1853 = vadd.f32 %v1770, %v1852
    %v1854 = vpop.f32.mrf.mxu0
    %v1855 = vpop.f32.mrf.mxu0
    %1856 = vdwg.mxu0
    %v1857 = vxor.u32 %v1810, 2147483648
    %v1858 = vmul.f32 %v1857, 1.442695
    %v1859 = vpow.pop %v1858
    %v1860 = vadd.f32 %v1859, 1.0
    %v1861 = vrcp.pop %v1860
    %v1862 = vmul.f32 1.0, %v1861
    %v1863 = vxor.u32 %v1812, 2147483648
    %v1864 = vmul.f32 %v1863, 1.442695
    %v1865 = vpow.pop %v1864
    %v1866 = vadd.f32 %v1865, 1.0
    %v1867 = vrcp.pop %v1866
    %v1868 = vmul.f32 1.0, %v1867
    %v1869 = vtanh.pop %v1851
    %v1870 = vxor.u32 %v1853, 2147483648
    %v1871 = vmul.f32 %v1870, 1.442695
    %v1872 = vpow.pop %v1871
    %v1873 = vadd.f32 %v1872, 1.0
    %v1874 = vrcp.pop %v1873
    %v1875 = vmul.f32 1.0, %v1874
    %v1876 = vld [vmem:[#allocation5] sm:$0x3]
    %v1877 = vmul.f32 %v1868, %v1876
    %v1878 = vmul.f32 %v1862, %v1869
    %v1879 = vadd.f32 %v1877, %v1878
    %v1880 = vtanh.pop %v1879
    %v1881 = vmul.f32 %v1875, %v1880
    %1882 = vst [vmem:[#allocation5] sm:$0x3] %v1879
    %1883 = vst [vmem:[#allocation4] sm:$0x3] %v1881
    %v1884 = vpack.c.bf16 %v1881, %v1881
    %v1887 = vunpack.c.l.s4 1966171168
    %v1888 = vunpack.c.0.s8 %v1887
    %v1889 = vlaneseq
    %v1890 = vshrl.u32 %v1889, 7
    %v1891 = vsub.s32 %v1888, %v1890
    %v1892 = vrot.slane %v1884, %v1891
    %v1894 = vunpack.c.l.s4 1966171168
    %v1895 = vunpack.c.0.s8 %v1894
    %v1896 = vlaneseq
    %v1897 = vshrl.u32 %v1896, 7
    %v1898 = vsub.s32 %v1895, %v1897
    %v1899 = vrot.slane %v1892, %v1898
    %v1900 = vunpack.i.l.s16 %v1899
    %v1901 = vunpack.i.h.s16 %v1899
    %v1902 = vpack.i.b16 %v1900, %v1900
    %v1903 = vpack.i.b16 %v1901, %v1901
    %v1905 = vunpack.c.l.s4 286326784
    %v1906 = vunpack.c.0.s8 %v1905
    %v1907 = vlaneseq
    %v1908 = vshrl.u32 %v1907, 7
    %v1909 = vsub.s32 %v1906, %v1908
    %v1910 = vrot.slane %v1902, %v1909
    %v1912 = vunpack.c.l.s4 286326784
    %v1913 = vunpack.c.0.s8 %v1912
    %v1914 = vlaneseq
    %v1915 = vshrl.u32 %v1914, 7
    %v1916 = vsub.s32 %v1913, %v1915
    %v1917 = vrot.slane %v1903, %v1916
    %vm1920 = vsmask.f32 7942
    %vm1921 = vmand %vm1537, %vm1920
    %v1922 = vld [vmem:[#allocation2] sm:$0x2]
    %v1923 = vsel %vm1921, %v1910, %v1922
    %1924 = vst [vmem:[#allocation2] sm:$0x2] %v1923
    %v1925 = vld [vmem:[#allocation2 + $0x4] sm:$0x2]
    %v1926 = vsel %vm1921, %v1917, %v1925
    %1927 = vst [vmem:[#allocation2 + $0x4] sm:$0x2] %v1926
    %v1928 = vld [vmem:[#allocation4] sm:$0x3]
    %v1929 = vpack.c.bf16 %v1928, %v1928
    %v1930 = vld [vmem:[#allocation13] sm:$0xff]
    %v1931 = vld [vmem:[#allocation13 + $0x8] sm:$0xff]
    %v1932 = vld [vmem:[#allocation13 + $0x10] sm:$0xff]
    %v1933 = vld [vmem:[#allocation13 + $0x18] sm:$0xff]
    %v1934 = vld [vmem:[#allocation13 + $0x20] sm:$0xff]
    %v1935 = vld [vmem:[#allocation13 + $0x28] sm:$0xff]
    %v1936 = vld [vmem:[#allocation13 + $0x30] sm:$0xff]
    %v1937 = vld [vmem:[#allocation13 + $0x38] sm:$0xff]
    %v1938 = vld [vmem:[#allocation13 + $0x40] sm:$0xff]
    %v1939 = vld [vmem:[#allocation13 + $0x48] sm:$0xff]
    %v1940 = vld [vmem:[#allocation13 + $0x50] sm:$0xff]
    %v1941 = vld [vmem:[#allocation13 + $0x58] sm:$0xff]
    %v1942 = vld [vmem:[#allocation13 + $0x60] sm:$0xff]
    %v1943 = vld [vmem:[#allocation13 + $0x68] sm:$0xff]
    %v1944 = vld [vmem:[#allocation13 + $0x70] sm:$0xff]
    %v1945 = vld [vmem:[#allocation13 + $0x78] sm:$0xff]
    %v1946 = vld [vmem:[#allocation13 + $0x80] sm:$0xff]
    %v1947 = vld [vmem:[#allocation13 + $0x88] sm:$0xff]
    %v1948 = vld [vmem:[#allocation13 + $0x90] sm:$0xff]
    %v1949 = vld [vmem:[#allocation13 + $0x98] sm:$0xff]
    %v1950 = vld [vmem:[#allocation13 + $0xa0] sm:$0xff]
    %v1951 = vld [vmem:[#allocation13 + $0xa8] sm:$0xff]
    %v1952 = vld [vmem:[#allocation13 + $0xb0] sm:$0xff]
    %v1953 = vld [vmem:[#allocation13 + $0xb8] sm:$0xff]
    %v1954 = vld [vmem:[#allocation13 + $0xc0] sm:$0xff]
    %v1955 = vld [vmem:[#allocation13 + $0xc8] sm:$0xff]
    %v1956 = vld [vmem:[#allocation13 + $0xd0] sm:$0xff]
    %v1957 = vld [vmem:[#allocation13 + $0xd8] sm:$0xff]
    %v1958 = vld [vmem:[#allocation13 + $0xe0] sm:$0xff]
    %v1959 = vld [vmem:[#allocation13 + $0xe8] sm:$0xff]
    %v1960 = vld [vmem:[#allocation13 + $0xf0] sm:$0xff]
    %v1961 = vld [vmem:[#allocation13 + $0xf8] sm:$0xff]
    %s1962 = scalar_lea.vmem [#allocation3], 4
    %v1963 = vld [vmem:[%s1962] ss:$8 sm:$0xf]
    %s1964 = scalar_lea.vmem [#allocation3], 36
    %v1965 = vld [vmem:[%s1964] ss:$8 sm:$0xf]
    %v1998 = vunpack.c.l.b16 %v1930
    %v1999 = vunpack.c.h.b16 %v1930
    %v2000 = vunpack.c.l.b16 %v1931
    %v2001 = vunpack.c.h.b16 %v1931
    %v2002 = vunpack.c.l.b16 %v1932
    %v2003 = vunpack.c.h.b16 %v1932
    %v2004 = vunpack.c.l.b16 %v1933
    %v2005 = vunpack.c.h.b16 %v1933
    %v2006 = vunpack.c.l.b16 %v1934
    %v2007 = vunpack.c.h.b16 %v1934
    %v2008 = vunpack.c.l.b16 %v1935
    %v2009 = vunpack.c.h.b16 %v1935
    %v2010 = vunpack.c.l.b16 %v1936
    %v2011 = vunpack.c.h.b16 %v1936
    %v2012 = vunpack.c.l.b16 %v1937
    %v2013 = vunpack.c.h.b16 %v1937
    %v2014 = vunpack.c.l.b16 %v1938
    %v2015 = vunpack.c.h.b16 %v1938
    %v2016 = vunpack.c.l.b16 %v1939
    %v2017 = vunpack.c.h.b16 %v1939
    %v2018 = vunpack.c.l.b16 %v1940
    %v2019 = vunpack.c.h.b16 %v1940
    %v2020 = vunpack.c.l.b16 %v1941
    %v2021 = vunpack.c.h.b16 %v1941
    %v2022 = vunpack.c.l.b16 %v1942
    %v2023 = vunpack.c.h.b16 %v1942
    %v2024 = vunpack.c.l.b16 %v1943
    %v2025 = vunpack.c.h.b16 %v1943
    %v2026 = vunpack.c.l.b16 %v1944
    %v2027 = vunpack.c.h.b16 %v1944
    %v2028 = vunpack.c.l.b16 %v1945
    %v2029 = vunpack.c.h.b16 %v1945
    %v2030 = vunpack.c.l.b16 %v1946
    %v2031 = vunpack.c.h.b16 %v1946
    %v2032 = vunpack.c.l.b16 %v1947
    %v2033 = vunpack.c.h.b16 %v1947
    %v2034 = vunpack.c.l.b16 %v1948
    %v2035 = vunpack.c.h.b16 %v1948
    %v2036 = vunpack.c.l.b16 %v1949
    %v2037 = vunpack.c.h.b16 %v1949
    %v2038 = vunpack.c.l.b16 %v1950
    %v2039 = vunpack.c.h.b16 %v1950
    %v2040 = vunpack.c.l.b16 %v1951
    %v2041 = vunpack.c.h.b16 %v1951
    %v2042 = vunpack.c.l.b16 %v1952
    %v2043 = vunpack.c.h.b16 %v1952
    %v2044 = vunpack.c.l.b16 %v1953
    %v2045 = vunpack.c.h.b16 %v1953
    %v2046 = vunpack.c.l.b16 %v1954
    %v2047 = vunpack.c.h.b16 %v1954
    %v2048 = vunpack.c.l.b16 %v1955
    %v2049 = vunpack.c.h.b16 %v1955
    %v2050 = vunpack.c.l.b16 %v1956
    %v2051 = vunpack.c.h.b16 %v1956
    %v2052 = vunpack.c.l.b16 %v1957
    %v2053 = vunpack.c.h.b16 %v1957
    %v2054 = vunpack.c.l.b16 %v1958
    %v2055 = vunpack.c.h.b16 %v1958
    %v2056 = vunpack.c.l.b16 %v1959
    %v2057 = vunpack.c.h.b16 %v1959
    %v2058 = vunpack.c.l.b16 %v1960
    %v2059 = vunpack.c.h.b16 %v1960
    %v2060 = vunpack.c.l.b16 %v1961
    %v2061 = vunpack.c.h.b16 %v1961
    %v2062 = vpack.c.b16 %v2002, %v1998
    %v2063 = vpack.c.b16 %v2003, %v1999
    %v2064 = vpack.c.b16 %v2004, %v2000
    %v2065 = vpack.c.b16 %v2005, %v2001
    %v2066 = vpack.c.b16 %v2010, %v2006
    %v2067 = vpack.c.b16 %v2011, %v2007
    %v2068 = vpack.c.b16 %v2012, %v2008
    %v2069 = vpack.c.b16 %v2013, %v2009
    %v2070 = vpack.c.b16 %v2018, %v2014
    %v2071 = vpack.c.b16 %v2019, %v2015
    %v2072 = vpack.c.b16 %v2020, %v2016
    %v2073 = vpack.c.b16 %v2021, %v2017
    %v2074 = vpack.c.b16 %v2026, %v2022
    %v2075 = vpack.c.b16 %v2027, %v2023
    %v2076 = vpack.c.b16 %v2028, %v2024
    %v2077 = vpack.c.b16 %v2029, %v2025
    %v2078 = vpack.c.b16 %v2034, %v2030
    %v2079 = vpack.c.b16 %v2035, %v2031
    %v2080 = vpack.c.b16 %v2036, %v2032
    %v2081 = vpack.c.b16 %v2037, %v2033
    %v2082 = vpack.c.b16 %v2042, %v2038
    %v2083 = vpack.c.b16 %v2043, %v2039
    %v2084 = vpack.c.b16 %v2044, %v2040
    %v2085 = vpack.c.b16 %v2045, %v2041
    %v2086 = vpack.c.b16 %v2050, %v2046
    %v2087 = vpack.c.b16 %v2051, %v2047
    %v2088 = vpack.c.b16 %v2052, %v2048
    %v2089 = vpack.c.b16 %v2053, %v2049
    %v2090 = vpack.c.b16 %v2058, %v2054
    %v2091 = vpack.c.b16 %v2059, %v2055
    %v2092 = vpack.c.b16 %v2060, %v2056
    %v2093 = vpack.c.b16 %v2061, %v2057
    %v2128 = vcombine.low %v1963, %v1965
    %v2130 = vunpack.c.l.s4 1966171168
    %v2131 = vunpack.c.0.s8 %v2130
    %v2132 = vlaneseq
    %v2133 = vshrl.u32 %v2132, 7
    %v2134 = vsub.s32 %v2131, %v2133
    %v2135 = vrot.slane %v2128, %v2134
    %v2136 = vcombine.high %v2135, %v2135
    %v2138 = vunpack.c.l.s4 1966171168
    %v2139 = vunpack.c.0.s8 %v2138
    %v2140 = vlaneseq
    %v2141 = vshrl.u32 %v2140, 7
    %v2142 = vsub.s32 %v2139, %v2141
    %v2143 = vrot.slane %v2135, %v2142
    %v2145 = vunpack.c.l.s4 1966171168
    %v2146 = vunpack.c.0.s8 %v2145
    %v2147 = vlaneseq
    %v2148 = vshrl.u32 %v2147, 7
    %v2149 = vsub.s32 %v2146, %v2148
    %v2150 = vrot.slane %v2136, %v2149
    %v2151 = vcombine.high %v2143, %v2143
    %v2152 = vcombine.high %v2150, %v2150
    %2157 = vmatprep.subr.bf16.mxu0 %v2091
    %2158 = vmatpush1.bf16.msra.mxu0 %v2090
    %2159 = vmatprep.subr.bf16.mxu0 %v2087
    %2160 = vmatpush1.bf16.msra.mxu0 %v2086
    %2161 = vmatprep.subr.bf16.mxu0 %v2083
    %2162 = vmatpush1.bf16.msra.mxu0 %v2082
    %2163 = vmatprep.subr.bf16.mxu0 %v2079
    %2164 = vmatpush1.bf16.msra.mxu0 %v2078
    %2165 = vmatprep.subr.bf16.mxu0 %v2075
    %2166 = vmatpush1.bf16.msra.mxu0 %v2074
    %2167 = vmatprep.subr.bf16.mxu0 %v2071
    %2168 = vmatpush1.bf16.msra.mxu0 %v2070
    %2169 = vmatprep.subr.bf16.mxu0 %v2067
    %2170 = vmatpush1.bf16.msra.mxu0 %v2066
    %2171 = vmatprep.subr.bf16.mxu0 %v2063
    %2172 = vmatpush1.bf16.msra.mxu0 %v2062
    %2173 = vmatprep.subr.bf16.mxu0 0
    %2174 = vmatpush2.bf16.msra.mxu0 0
    %2175 = vmatprep.subr.bf16.mxu0 0
    %2176 = vmatpush2.bf16.msra.mxu0 0
    %2177 = vmatprep.subr.bf16.mxu0 0
    %2178 = vmatpush2.bf16.msra.mxu0 0
    %2179 = vmatprep.subr.bf16.mxu0 0
    %2180 = vmatpush2.bf16.msra.mxu0 0
    %2181 = vmatprep.subr.bf16.mxu0 0
    %2182 = vmatpush2.bf16.msra.mxu0 0
    %2183 = vmatprep.subr.bf16.mxu0 0
    %2184 = vmatpush2.bf16.msra.mxu0 0
    %2185 = vmatprep.subr.bf16.mxu0 0
    %2186 = vmatpush2.bf16.msra.mxu0 0
    %2187 = vmatprep.subr.bf16.mxu0 0
    %2188 = vmatpush2.bf16.msra.mxu0 0
    %2189 = vmatprep.mubr.bf16.mxu0 0
    %2190 = vmatmul.mubr.bf16.gmra.mxu0 %v1929
    %v2191 = vpop.f32.mrf.mxu0
    %v2192 = vadd.f32 %v2143, %v2191
    %v2193 = vpop.f32.mrf.mxu0
    %v2194 = vadd.f32 %v2150, %v2193
    %v2195 = vpop.f32.mrf.mxu0
    %v2196 = vpop.f32.mrf.mxu0
    %2197 = vdwg.mxu0
    %2198 = vmatprep.subr.bf16.mxu0 %v2093
    %2199 = vmatpush1.bf16.msra.mxu0 %v2092
    %2200 = vmatprep.subr.bf16.mxu0 %v2089
    %2201 = vmatpush1.bf16.msra.mxu0 %v2088
    %2202 = vmatprep.subr.bf16.mxu0 %v2085
    %2203 = vmatpush1.bf16.msra.mxu0 %v2084
    %2204 = vmatprep.subr.bf16.mxu0 %v2081
    %2205 = vmatpush1.bf16.msra.mxu0 %v2080
    %2206 = vmatprep.subr.bf16.mxu0 %v2077
    %2207 = vmatpush1.bf16.msra.mxu0 %v2076
    %2208 = vmatprep.subr.bf16.mxu0 %v2073
    %2209 = vmatpush1.bf16.msra.mxu0 %v2072
    %2210 = vmatprep.subr.bf16.mxu0 %v2069
    %2211 = vmatpush1.bf16.msra.mxu0 %v2068
    %2212 = vmatprep.subr.bf16.mxu0 %v2065
    %2213 = vmatpush1.bf16.msra.mxu0 %v2064
    %2214 = vmatprep.subr.bf16.mxu0 0
    %2215 = vmatpush2.bf16.msra.mxu0 0
    %2216 = vmatprep.subr.bf16.mxu0 0
    %2217 = vmatpush2.bf16.msra.mxu0 0
    %2218 = vmatprep.subr.bf16.mxu0 0
    %2219 = vmatpush2.bf16.msra.mxu0 0
    %2220 = vmatprep.subr.bf16.mxu0 0
    %2221 = vmatpush2.bf16.msra.mxu0 0
    %2222 = vmatprep.subr.bf16.mxu0 0
    %2223 = vmatpush2.bf16.msra.mxu0 0
    %2224 = vmatprep.subr.bf16.mxu0 0
    %2225 = vmatpush2.bf16.msra.mxu0 0
    %2226 = vmatprep.subr.bf16.mxu0 0
    %2227 = vmatpush2.bf16.msra.mxu0 0
    %2228 = vmatprep.subr.bf16.mxu0 0
    %2229 = vmatpush2.bf16.msra.mxu0 0
    %2230 = vmatprep.mubr.bf16.mxu0 0
    %2231 = vmatmul.mubr.bf16.gmra.mxu0 %v1929
    %v2232 = vpop.f32.mrf.mxu0
    %v2233 = vadd.f32 %v2151, %v2232
    %v2234 = vpop.f32.mrf.mxu0
    %v2235 = vadd.f32 %v2152, %v2234
    %v2236 = vpop.f32.mrf.mxu0
    %v2237 = vpop.f32.mrf.mxu0
    %2238 = vdwg.mxu0
    %v2239 = vxor.u32 %v2192, 2147483648
    %v2240 = vmul.f32 %v2239, 1.442695
    %v2241 = vpow.pop %v2240
    %v2242 = vadd.f32 %v2241, 1.0
    %v2243 = vrcp.pop %v2242
    %v2244 = vmul.f32 1.0, %v2243
    %v2245 = vxor.u32 %v2194, 2147483648
    %v2246 = vmul.f32 %v2245, 1.442695
    %v2247 = vpow.pop %v2246
    %v2248 = vadd.f32 %v2247, 1.0
    %v2249 = vrcp.pop %v2248
    %v2250 = vmul.f32 1.0, %v2249
    %v2251 = vtanh.pop %v2233
    %v2252 = vxor.u32 %v2235, 2147483648
    %v2253 = vmul.f32 %v2252, 1.442695
    %v2254 = vpow.pop %v2253
    %v2255 = vadd.f32 %v2254, 1.0
    %v2256 = vrcp.pop %v2255
    %v2257 = vmul.f32 1.0, %v2256
    %v2258 = vld [vmem:[#allocation5] sm:$0x3]
    %v2259 = vmul.f32 %v2250, %v2258
    %v2260 = vmul.f32 %v2244, %v2251
    %v2261 = vadd.f32 %v2259, %v2260
    %v2262 = vtanh.pop %v2261
    %v2263 = vmul.f32 %v2257, %v2262
    %2264 = vst [vmem:[#allocation5] sm:$0x3] %v2261
    %2265 = vst [vmem:[#allocation4] sm:$0x3] %v2263
    %v2266 = vpack.c.bf16 %v2263, %v2263
    %v2269 = vunpack.c.l.s4 1966171168
    %v2270 = vunpack.c.0.s8 %v2269
    %v2271 = vlaneseq
    %v2272 = vshrl.u32 %v2271, 7
    %v2273 = vsub.s32 %v2270, %v2272
    %v2274 = vrot.slane %v2266, %v2273
    %v2276 = vunpack.c.l.s4 1966171168
    %v2277 = vunpack.c.0.s8 %v2276
    %v2278 = vlaneseq
    %v2279 = vshrl.u32 %v2278, 7
    %v2280 = vsub.s32 %v2277, %v2279
    %v2281 = vrot.slane %v2274, %v2280
    %v2282 = vunpack.i.l.s16 %v2281
    %v2283 = vunpack.i.h.s16 %v2281
    %v2284 = vpack.i.b16 %v2282, %v2282
    %v2285 = vpack.i.b16 %v2283, %v2283
    %v2287 = vunpack.c.l.s4 286326784
    %v2288 = vunpack.c.0.s8 %v2287
    %v2289 = vlaneseq
    %v2290 = vshrl.u32 %v2289, 7
    %v2291 = vsub.s32 %v2288, %v2290
    %v2292 = vrot.slane %v2284, %v2291
    %v2294 = vunpack.c.l.s4 286326784
    %v2295 = vunpack.c.0.s8 %v2294
    %v2296 = vlaneseq
    %v2297 = vshrl.u32 %v2296, 7
    %v2298 = vsub.s32 %v2295, %v2297
    %v2299 = vrot.slane %v2285, %v2298
    %vm2302 = vcmask 1042434
    %vm2303 = vsmask.f32 2304
    %vm2304 = vmand %vm2302, %vm2303
    %v2305 = vld [vmem:[#allocation2] sm:$0x4]
    %v2306 = vsel %vm2304, %v2292, %v2305
    %2307 = vst [vmem:[#allocation2] sm:$0x4] %v2306
    %v2308 = vld [vmem:[#allocation2 + $0x4] sm:$0x4]
    %v2309 = vsel %vm2304, %v2299, %v2308
    %2310 = vst [vmem:[#allocation2 + $0x4] sm:$0x4] %v2309
    %v2311 = vld [vmem:[#allocation4] sm:$0x3]
    %v2312 = vpack.c.bf16 %v2311, %v2311
    %v2313 = vld [vmem:[#allocation13] sm:$0xff]
    %v2314 = vld [vmem:[#allocation13 + $0x8] sm:$0xff]
    %v2315 = vld [vmem:[#allocation13 + $0x10] sm:$0xff]
    %v2316 = vld [vmem:[#allocation13 + $0x18] sm:$0xff]
    %v2317 = vld [vmem:[#allocation13 + $0x20] sm:$0xff]
    %v2318 = vld [vmem:[#allocation13 + $0x28] sm:$0xff]
    %v2319 = vld [vmem:[#allocation13 + $0x30] sm:$0xff]
    %v2320 = vld [vmem:[#allocation13 + $0x38] sm:$0xff]
    %v2321 = vld [vmem:[#allocation13 + $0x40] sm:$0xff]
    %v2322 = vld [vmem:[#allocation13 + $0x48] sm:$0xff]
    %v2323 = vld [vmem:[#allocation13 + $0x50] sm:$0xff]
    %v2324 = vld [vmem:[#allocation13 + $0x58] sm:$0xff]
    %v2325 = vld [vmem:[#allocation13 + $0x60] sm:$0xff]
    %v2326 = vld [vmem:[#allocation13 + $0x68] sm:$0xff]
    %v2327 = vld [vmem:[#allocation13 + $0x70] sm:$0xff]
    %v2328 = vld [vmem:[#allocation13 + $0x78] sm:$0xff]
    %v2329 = vld [vmem:[#allocation13 + $0x80] sm:$0xff]
    %v2330 = vld [vmem:[#allocation13 + $0x88] sm:$0xff]
    %v2331 = vld [vmem:[#allocation13 + $0x90] sm:$0xff]
    %v2332 = vld [vmem:[#allocation13 + $0x98] sm:$0xff]
    %v2333 = vld [vmem:[#allocation13 + $0xa0] sm:$0xff]
    %v2334 = vld [vmem:[#allocation13 + $0xa8] sm:$0xff]
    %v2335 = vld [vmem:[#allocation13 + $0xb0] sm:$0xff]
    %v2336 = vld [vmem:[#allocation13 + $0xb8] sm:$0xff]
    %v2337 = vld [vmem:[#allocation13 + $0xc0] sm:$0xff]
    %v2338 = vld [vmem:[#allocation13 + $0xc8] sm:$0xff]
    %v2339 = vld [vmem:[#allocation13 + $0xd0] sm:$0xff]
    %v2340 = vld [vmem:[#allocation13 + $0xd8] sm:$0xff]
    %v2341 = vld [vmem:[#allocation13 + $0xe0] sm:$0xff]
    %v2342 = vld [vmem:[#allocation13 + $0xe8] sm:$0xff]
    %v2343 = vld [vmem:[#allocation13 + $0xf0] sm:$0xff]
    %v2344 = vld [vmem:[#allocation13 + $0xf8] sm:$0xff]
    %s2345 = scalar_lea.vmem [#allocation3], 5
    %v2346 = vld [vmem:[%s2345] ss:$8 sm:$0xf]
    %s2347 = scalar_lea.vmem [#allocation3], 37
    %v2348 = vld [vmem:[%s2347] ss:$8 sm:$0xf]
    %v2381 = vunpack.c.l.b16 %v2313
    %v2382 = vunpack.c.h.b16 %v2313
    %v2383 = vunpack.c.l.b16 %v2314
    %v2384 = vunpack.c.h.b16 %v2314
    %v2385 = vunpack.c.l.b16 %v2315
    %v2386 = vunpack.c.h.b16 %v2315
    %v2387 = vunpack.c.l.b16 %v2316
    %v2388 = vunpack.c.h.b16 %v2316
    %v2389 = vunpack.c.l.b16 %v2317
    %v2390 = vunpack.c.h.b16 %v2317
    %v2391 = vunpack.c.l.b16 %v2318
    %v2392 = vunpack.c.h.b16 %v2318
    %v2393 = vunpack.c.l.b16 %v2319
    %v2394 = vunpack.c.h.b16 %v2319
    %v2395 = vunpack.c.l.b16 %v2320
    %v2396 = vunpack.c.h.b16 %v2320
    %v2397 = vunpack.c.l.b16 %v2321
    %v2398 = vunpack.c.h.b16 %v2321
    %v2399 = vunpack.c.l.b16 %v2322
    %v2400 = vunpack.c.h.b16 %v2322
    %v2401 = vunpack.c.l.b16 %v2323
    %v2402 = vunpack.c.h.b16 %v2323
    %v2403 = vunpack.c.l.b16 %v2324
    %v2404 = vunpack.c.h.b16 %v2324
    %v2405 = vunpack.c.l.b16 %v2325
    %v2406 = vunpack.c.h.b16 %v2325
    %v2407 = vunpack.c.l.b16 %v2326
    %v2408 = vunpack.c.h.b16 %v2326
    %v2409 = vunpack.c.l.b16 %v2327
    %v2410 = vunpack.c.h.b16 %v2327
    %v2411 = vunpack.c.l.b16 %v2328
    %v2412 = vunpack.c.h.b16 %v2328
    %v2413 = vunpack.c.l.b16 %v2329
    %v2414 = vunpack.c.h.b16 %v2329
    %v2415 = vunpack.c.l.b16 %v2330
    %v2416 = vunpack.c.h.b16 %v2330
    %v2417 = vunpack.c.l.b16 %v2331
    %v2418 = vunpack.c.h.b16 %v2331
    %v2419 = vunpack.c.l.b16 %v2332
    %v2420 = vunpack.c.h.b16 %v2332
    %v2421 = vunpack.c.l.b16 %v2333
    %v2422 = vunpack.c.h.b16 %v2333
    %v2423 = vunpack.c.l.b16 %v2334
    %v2424 = vunpack.c.h.b16 %v2334
    %v2425 = vunpack.c.l.b16 %v2335
    %v2426 = vunpack.c.h.b16 %v2335
    %v2427 = vunpack.c.l.b16 %v2336
    %v2428 = vunpack.c.h.b16 %v2336
    %v2429 = vunpack.c.l.b16 %v2337
    %v2430 = vunpack.c.h.b16 %v2337
    %v2431 = vunpack.c.l.b16 %v2338
    %v2432 = vunpack.c.h.b16 %v2338
    %v2433 = vunpack.c.l.b16 %v2339
    %v2434 = vunpack.c.h.b16 %v2339
    %v2435 = vunpack.c.l.b16 %v2340
    %v2436 = vunpack.c.h.b16 %v2340
    %v2437 = vunpack.c.l.b16 %v2341
    %v2438 = vunpack.c.h.b16 %v2341
    %v2439 = vunpack.c.l.b16 %v2342
    %v2440 = vunpack.c.h.b16 %v2342
    %v2441 = vunpack.c.l.b16 %v2343
    %v2442 = vunpack.c.h.b16 %v2343
    %v2443 = vunpack.c.l.b16 %v2344
    %v2444 = vunpack.c.h.b16 %v2344
    %v2445 = vpack.c.b16 %v2385, %v2381
    %v2446 = vpack.c.b16 %v2386, %v2382
    %v2447 = vpack.c.b16 %v2387, %v2383
    %v2448 = vpack.c.b16 %v2388, %v2384
    %v2449 = vpack.c.b16 %v2393, %v2389
    %v2450 = vpack.c.b16 %v2394, %v2390
    %v2451 = vpack.c.b16 %v2395, %v2391
    %v2452 = vpack.c.b16 %v2396, %v2392
    %v2453 = vpack.c.b16 %v2401, %v2397
    %v2454 = vpack.c.b16 %v2402, %v2398
    %v2455 = vpack.c.b16 %v2403, %v2399
    %v2456 = vpack.c.b16 %v2404, %v2400
    %v2457 = vpack.c.b16 %v2409, %v2405
    %v2458 = vpack.c.b16 %v2410, %v2406
    %v2459 = vpack.c.b16 %v2411, %v2407
    %v2460 = vpack.c.b16 %v2412, %v2408
    %v2461 = vpack.c.b16 %v2417, %v2413
    %v2462 = vpack.c.b16 %v2418, %v2414
    %v2463 = vpack.c.b16 %v2419, %v2415
    %v2464 = vpack.c.b16 %v2420, %v2416
    %v2465 = vpack.c.b16 %v2425, %v2421
    %v2466 = vpack.c.b16 %v2426, %v2422
    %v2467 = vpack.c.b16 %v2427, %v2423
    %v2468 = vpack.c.b16 %v2428, %v2424
    %v2469 = vpack.c.b16 %v2433, %v2429
    %v2470 = vpack.c.b16 %v2434, %v2430
    %v2471 = vpack.c.b16 %v2435, %v2431
    %v2472 = vpack.c.b16 %v2436, %v2432
    %v2473 = vpack.c.b16 %v2441, %v2437
    %v2474 = vpack.c.b16 %v2442, %v2438
    %v2475 = vpack.c.b16 %v2443, %v2439
    %v2476 = vpack.c.b16 %v2444, %v2440
    %v2511 = vcombine.low %v2346, %v2348
    %v2513 = vunpack.c.l.s4 1966171168
    %v2514 = vunpack.c.0.s8 %v2513
    %v2515 = vlaneseq
    %v2516 = vshrl.u32 %v2515, 7
    %v2517 = vsub.s32 %v2514, %v2516
    %v2518 = vrot.slane %v2511, %v2517
    %v2519 = vcombine.high %v2518, %v2518
    %v2521 = vunpack.c.l.s4 1966171168
    %v2522 = vunpack.c.0.s8 %v2521
    %v2523 = vlaneseq
    %v2524 = vshrl.u32 %v2523, 7
    %v2525 = vsub.s32 %v2522, %v2524
    %v2526 = vrot.slane %v2518, %v2525
    %v2528 = vunpack.c.l.s4 1966171168
    %v2529 = vunpack.c.0.s8 %v2528
    %v2530 = vlaneseq
    %v2531 = vshrl.u32 %v2530, 7
    %v2532 = vsub.s32 %v2529, %v2531
    %v2533 = vrot.slane %v2519, %v2532
    %v2534 = vcombine.high %v2526, %v2526
    %v2535 = vcombine.high %v2533, %v2533
    %2540 = vmatprep.subr.bf16.mxu0 %v2474
    %2541 = vmatpush1.bf16.msra.mxu0 %v2473
    %2542 = vmatprep.subr.bf16.mxu0 %v2470
    %2543 = vmatpush1.bf16.msra.mxu0 %v2469
    %2544 = vmatprep.subr.bf16.mxu0 %v2466
    %2545 = vmatpush1.bf16.msra.mxu0 %v2465
    %2546 = vmatprep.subr.bf16.mxu0 %v2462
    %2547 = vmatpush1.bf16.msra.mxu0 %v2461
    %2548 = vmatprep.subr.bf16.mxu0 %v2458
    %2549 = vmatpush1.bf16.msra.mxu0 %v2457
    %2550 = vmatprep.subr.bf16.mxu0 %v2454
    %2551 = vmatpush1.bf16.msra.mxu0 %v2453
    %2552 = vmatprep.subr.bf16.mxu0 %v2450
    %2553 = vmatpush1.bf16.msra.mxu0 %v2449
    %2554 = vmatprep.subr.bf16.mxu0 %v2446
    %2555 = vmatpush1.bf16.msra.mxu0 %v2445
    %2556 = vmatprep.subr.bf16.mxu0 0
    %2557 = vmatpush2.bf16.msra.mxu0 0
    %2558 = vmatprep.subr.bf16.mxu0 0
    %2559 = vmatpush2.bf16.msra.mxu0 0
    %2560 = vmatprep.subr.bf16.mxu0 0
    %2561 = vmatpush2.bf16.msra.mxu0 0
    %2562 = vmatprep.subr.bf16.mxu0 0
    %2563 = vmatpush2.bf16.msra.mxu0 0
    %2564 = vmatprep.subr.bf16.mxu0 0
    %2565 = vmatpush2.bf16.msra.mxu0 0
    %2566 = vmatprep.subr.bf16.mxu0 0
    %2567 = vmatpush2.bf16.msra.mxu0 0
    %2568 = vmatprep.subr.bf16.mxu0 0
    %2569 = vmatpush2.bf16.msra.mxu0 0
    %2570 = vmatprep.subr.bf16.mxu0 0
    %2571 = vmatpush2.bf16.msra.mxu0 0
    %2572 = vmatprep.mubr.bf16.mxu0 0
    %2573 = vmatmul.mubr.bf16.gmra.mxu0 %v2312
    %v2574 = vpop.f32.mrf.mxu0
    %v2575 = vadd.f32 %v2526, %v2574
    %v2576 = vpop.f32.mrf.mxu0
    %v2577 = vadd.f32 %v2533, %v2576
    %v2578 = vpop.f32.mrf.mxu0
    %v2579 = vpop.f32.mrf.mxu0
    %2580 = vdwg.mxu0
    %2581 = vmatprep.subr.bf16.mxu0 %v2476
    %2582 = vmatpush1.bf16.msra.mxu0 %v2475
    %2583 = vmatprep.subr.bf16.mxu0 %v2472
    %2584 = vmatpush1.bf16.msra.mxu0 %v2471
    %2585 = vmatprep.subr.bf16.mxu0 %v2468
    %2586 = vmatpush1.bf16.msra.mxu0 %v2467
    %2587 = vmatprep.subr.bf16.mxu0 %v2464
    %2588 = vmatpush1.bf16.msra.mxu0 %v2463
    %2589 = vmatprep.subr.bf16.mxu0 %v2460
    %2590 = vmatpush1.bf16.msra.mxu0 %v2459
    %2591 = vmatprep.subr.bf16.mxu0 %v2456
    %2592 = vmatpush1.bf16.msra.mxu0 %v2455
    %2593 = vmatprep.subr.bf16.mxu0 %v2452
    %2594 = vmatpush1.bf16.msra.mxu0 %v2451
    %2595 = vmatprep.subr.bf16.mxu0 %v2448
    %2596 = vmatpush1.bf16.msra.mxu0 %v2447
    %2597 = vmatprep.subr.bf16.mxu0 0
    %2598 = vmatpush2.bf16.msra.mxu0 0
    %2599 = vmatprep.subr.bf16.mxu0 0
    %2600 = vmatpush2.bf16.msra.mxu0 0
    %2601 = vmatprep.subr.bf16.mxu0 0
    %2602 = vmatpush2.bf16.msra.mxu0 0
    %2603 = vmatprep.subr.bf16.mxu0 0
    %2604 = vmatpush2.bf16.msra.mxu0 0
    %2605 = vmatprep.subr.bf16.mxu0 0
    %2606 = vmatpush2.bf16.msra.mxu0 0
    %2607 = vmatprep.subr.bf16.mxu0 0
    %2608 = vmatpush2.bf16.msra.mxu0 0
    %2609 = vmatprep.subr.bf16.mxu0 0
    %2610 = vmatpush2.bf16.msra.mxu0 0
    %2611 = vmatprep.subr.bf16.mxu0 0
    %2612 = vmatpush2.bf16.msra.mxu0 0
    %2613 = vmatprep.mubr.bf16.mxu0 0
    %2614 = vmatmul.mubr.bf16.gmra.mxu0 %v2312
    %v2615 = vpop.f32.mrf.mxu0
    %v2616 = vadd.f32 %v2534, %v2615
    %v2617 = vpop.f32.mrf.mxu0
    %v2618 = vadd.f32 %v2535, %v2617
    %v2619 = vpop.f32.mrf.mxu0
    %v2620 = vpop.f32.mrf.mxu0
    %2621 = vdwg.mxu0
    %v2622 = vxor.u32 %v2575, 2147483648
    %v2623 = vmul.f32 %v2622, 1.442695
    %v2624 = vpow.pop %v2623
    %v2625 = vadd.f32 %v2624, 1.0
    %v2626 = vrcp.pop %v2625
    %v2627 = vmul.f32 1.0, %v2626
    %v2628 = vxor.u32 %v2577, 2147483648
    %v2629 = vmul.f32 %v2628, 1.442695
    %v2630 = vpow.pop %v2629
    %v2631 = vadd.f32 %v2630, 1.0
    %v2632 = vrcp.pop %v2631
    %v2633 = vmul.f32 1.0, %v2632
    %v2634 = vtanh.pop %v2616
    %v2635 = vxor.u32 %v2618, 2147483648
    %v2636 = vmul.f32 %v2635, 1.442695
    %v2637 = vpow.pop %v2636
    %v2638 = vadd.f32 %v2637, 1.0
    %v2639 = vrcp.pop %v2638
    %v2640 = vmul.f32 1.0, %v2639
    %v2641 = vld [vmem:[#allocation5] sm:$0x3]
    %v2642 = vmul.f32 %v2633, %v2641
    %v2643 = vmul.f32 %v2627, %v2634
    %v2644 = vadd.f32 %v2642, %v2643
    %v2645 = vtanh.pop %v2644
    %v2646 = vmul.f32 %v2640, %v2645
    %2647 = vst [vmem:[#allocation5] sm:$0x3] %v2644
    %2648 = vst [vmem:[#allocation4] sm:$0x3] %v2646
    %v2649 = vpack.c.bf16 %v2646, %v2646
    %v2652 = vunpack.c.l.s4 1966171168
    %v2653 = vunpack.c.0.s8 %v2652
    %v2654 = vlaneseq
    %v2655 = vshrl.u32 %v2654, 7
    %v2656 = vsub.s32 %v2653, %v2655
    %v2657 = vrot.slane %v2649, %v2656
    %v2659 = vunpack.c.l.s4 1966171168
    %v2660 = vunpack.c.0.s8 %v2659
    %v2661 = vlaneseq
    %v2662 = vshrl.u32 %v2661, 7
    %v2663 = vsub.s32 %v2660, %v2662
    %v2664 = vrot.slane %v2657, %v2663
    %v2665 = vunpack.i.l.s16 %v2664
    %v2666 = vunpack.i.h.s16 %v2664
    %v2667 = vpack.i.b16 %v2665, %v2665
    %v2668 = vpack.i.b16 %v2666, %v2666
    %v2670 = vunpack.c.l.s4 286326784
    %v2671 = vunpack.c.0.s8 %v2670
    %v2672 = vlaneseq
    %v2673 = vshrl.u32 %v2672, 7
    %v2674 = vsub.s32 %v2671, %v2673
    %v2675 = vrot.slane %v2667, %v2674
    %v2677 = vunpack.c.l.s4 286326784
    %v2678 = vunpack.c.0.s8 %v2677
    %v2679 = vlaneseq
    %v2680 = vshrl.u32 %v2679, 7
    %v2681 = vsub.s32 %v2678, %v2680
    %v2682 = vrot.slane %v2668, %v2681
    %vm2685 = vsmask.f32 7946
    %vm2686 = vmand %vm2302, %vm2685
    %v2687 = vld [vmem:[#allocation2] sm:$0x4]
    %v2688 = vsel %vm2686, %v2675, %v2687
    %2689 = vst [vmem:[#allocation2] sm:$0x4] %v2688
    %v2690 = vld [vmem:[#allocation2 + $0x4] sm:$0x4]
    %v2691 = vsel %vm2686, %v2682, %v2690
    %2692 = vst [vmem:[#allocation2 + $0x4] sm:$0x4] %v2691
    %v2693 = vld [vmem:[#allocation4] sm:$0x3]
    %v2694 = vpack.c.bf16 %v2693, %v2693
    %v2695 = vld [vmem:[#allocation13] sm:$0xff]
    %v2696 = vld [vmem:[#allocation13 + $0x8] sm:$0xff]
    %v2697 = vld [vmem:[#allocation13 + $0x10] sm:$0xff]
    %v2698 = vld [vmem:[#allocation13 + $0x18] sm:$0xff]
    %v2699 = vld [vmem:[#allocation13 + $0x20] sm:$0xff]
    %v2700 = vld [vmem:[#allocation13 + $0x28] sm:$0xff]
    %v2701 = vld [vmem:[#allocation13 + $0x30] sm:$0xff]
    %v2702 = vld [vmem:[#allocation13 + $0x38] sm:$0xff]
    %v2703 = vld [vmem:[#allocation13 + $0x40] sm:$0xff]
    %v2704 = vld [vmem:[#allocation13 + $0x48] sm:$0xff]
    %v2705 = vld [vmem:[#allocation13 + $0x50] sm:$0xff]
    %v2706 = vld [vmem:[#allocation13 + $0x58] sm:$0xff]
    %v2707 = vld [vmem:[#allocation13 + $0x60] sm:$0xff]
    %v2708 = vld [vmem:[#allocation13 + $0x68] sm:$0xff]
    %v2709 = vld [vmem:[#allocation13 + $0x70] sm:$0xff]
    %v2710 = vld [vmem:[#allocation13 + $0x78] sm:$0xff]
    %v2711 = vld [vmem:[#allocation13 + $0x80] sm:$0xff]
    %v2712 = vld [vmem:[#allocation13 + $0x88] sm:$0xff]
    %v2713 = vld [vmem:[#allocation13 + $0x90] sm:$0xff]
    %v2714 = vld [vmem:[#allocation13 + $0x98] sm:$0xff]
    %v2715 = vld [vmem:[#allocation13 + $0xa0] sm:$0xff]
    %v2716 = vld [vmem:[#allocation13 + $0xa8] sm:$0xff]
    %v2717 = vld [vmem:[#allocation13 + $0xb0] sm:$0xff]
    %v2718 = vld [vmem:[#allocation13 + $0xb8] sm:$0xff]
    %v2719 = vld [vmem:[#allocation13 + $0xc0] sm:$0xff]
    %v2720 = vld [vmem:[#allocation13 + $0xc8] sm:$0xff]
    %v2721 = vld [vmem:[#allocation13 + $0xd0] sm:$0xff]
    %v2722 = vld [vmem:[#allocation13 + $0xd8] sm:$0xff]
    %v2723 = vld [vmem:[#allocation13 + $0xe0] sm:$0xff]
    %v2724 = vld [vmem:[#allocation13 + $0xe8] sm:$0xff]
    %v2725 = vld [vmem:[#allocation13 + $0xf0] sm:$0xff]
    %v2726 = vld [vmem:[#allocation13 + $0xf8] sm:$0xff]
    %s2727 = scalar_lea.vmem [#allocation3], 6
    %v2728 = vld [vmem:[%s2727] ss:$8 sm:$0xf]
    %s2729 = scalar_lea.vmem [#allocation3], 38
    %v2730 = vld [vmem:[%s2729] ss:$8 sm:$0xf]
    %v2763 = vunpack.c.l.b16 %v2695
    %v2764 = vunpack.c.h.b16 %v2695
    %v2765 = vunpack.c.l.b16 %v2696
    %v2766 = vunpack.c.h.b16 %v2696
    %v2767 = vunpack.c.l.b16 %v2697
    %v2768 = vunpack.c.h.b16 %v2697
    %v2769 = vunpack.c.l.b16 %v2698
    %v2770 = vunpack.c.h.b16 %v2698
    %v2771 = vunpack.c.l.b16 %v2699
    %v2772 = vunpack.c.h.b16 %v2699
    %v2773 = vunpack.c.l.b16 %v2700
    %v2774 = vunpack.c.h.b16 %v2700
    %v2775 = vunpack.c.l.b16 %v2701
    %v2776 = vunpack.c.h.b16 %v2701
    %v2777 = vunpack.c.l.b16 %v2702
    %v2778 = vunpack.c.h.b16 %v2702
    %v2779 = vunpack.c.l.b16 %v2703
    %v2780 = vunpack.c.h.b16 %v2703
    %v2781 = vunpack.c.l.b16 %v2704
    %v2782 = vunpack.c.h.b16 %v2704
    %v2783 = vunpack.c.l.b16 %v2705
    %v2784 = vunpack.c.h.b16 %v2705
    %v2785 = vunpack.c.l.b16 %v2706
    %v2786 = vunpack.c.h.b16 %v2706
    %v2787 = vunpack.c.l.b16 %v2707
    %v2788 = vunpack.c.h.b16 %v2707
    %v2789 = vunpack.c.l.b16 %v2708
    %v2790 = vunpack.c.h.b16 %v2708
    %v2791 = vunpack.c.l.b16 %v2709
    %v2792 = vunpack.c.h.b16 %v2709
    %v2793 = vunpack.c.l.b16 %v2710
    %v2794 = vunpack.c.h.b16 %v2710
    %v2795 = vunpack.c.l.b16 %v2711
    %v2796 = vunpack.c.h.b16 %v2711
    %v2797 = vunpack.c.l.b16 %v2712
    %v2798 = vunpack.c.h.b16 %v2712
    %v2799 = vunpack.c.l.b16 %v2713
    %v2800 = vunpack.c.h.b16 %v2713
    %v2801 = vunpack.c.l.b16 %v2714
    %v2802 = vunpack.c.h.b16 %v2714
    %v2803 = vunpack.c.l.b16 %v2715
    %v2804 = vunpack.c.h.b16 %v2715
    %v2805 = vunpack.c.l.b16 %v2716
    %v2806 = vunpack.c.h.b16 %v2716
    %v2807 = vunpack.c.l.b16 %v2717
    %v2808 = vunpack.c.h.b16 %v2717
    %v2809 = vunpack.c.l.b16 %v2718
    %v2810 = vunpack.c.h.b16 %v2718
    %v2811 = vunpack.c.l.b16 %v2719
    %v2812 = vunpack.c.h.b16 %v2719
    %v2813 = vunpack.c.l.b16 %v2720
    %v2814 = vunpack.c.h.b16 %v2720
    %v2815 = vunpack.c.l.b16 %v2721
    %v2816 = vunpack.c.h.b16 %v2721
    %v2817 = vunpack.c.l.b16 %v2722
    %v2818 = vunpack.c.h.b16 %v2722
    %v2819 = vunpack.c.l.b16 %v2723
    %v2820 = vunpack.c.h.b16 %v2723
    %v2821 = vunpack.c.l.b16 %v2724
    %v2822 = vunpack.c.h.b16 %v2724
    %v2823 = vunpack.c.l.b16 %v2725
    %v2824 = vunpack.c.h.b16 %v2725
    %v2825 = vunpack.c.l.b16 %v2726
    %v2826 = vunpack.c.h.b16 %v2726
    %v2827 = vpack.c.b16 %v2767, %v2763
    %v2828 = vpack.c.b16 %v2768, %v2764
    %v2829 = vpack.c.b16 %v2769, %v2765
    %v2830 = vpack.c.b16 %v2770, %v2766
    %v2831 = vpack.c.b16 %v2775, %v2771
    %v2832 = vpack.c.b16 %v2776, %v2772
    %v2833 = vpack.c.b16 %v2777, %v2773
    %v2834 = vpack.c.b16 %v2778, %v2774
    %v2835 = vpack.c.b16 %v2783, %v2779
    %v2836 = vpack.c.b16 %v2784, %v2780
    %v2837 = vpack.c.b16 %v2785, %v2781
    %v2838 = vpack.c.b16 %v2786, %v2782
    %v2839 = vpack.c.b16 %v2791, %v2787
    %v2840 = vpack.c.b16 %v2792, %v2788
    %v2841 = vpack.c.b16 %v2793, %v2789
    %v2842 = vpack.c.b16 %v2794, %v2790
    %v2843 = vpack.c.b16 %v2799, %v2795
    %v2844 = vpack.c.b16 %v2800, %v2796
    %v2845 = vpack.c.b16 %v2801, %v2797
    %v2846 = vpack.c.b16 %v2802, %v2798
    %v2847 = vpack.c.b16 %v2807, %v2803
    %v2848 = vpack.c.b16 %v2808, %v2804
    %v2849 = vpack.c.b16 %v2809, %v2805
    %v2850 = vpack.c.b16 %v2810, %v2806
    %v2851 = vpack.c.b16 %v2815, %v2811
    %v2852 = vpack.c.b16 %v2816, %v2812
    %v2853 = vpack.c.b16 %v2817, %v2813
    %v2854 = vpack.c.b16 %v2818, %v2814
    %v2855 = vpack.c.b16 %v2823, %v2819
    %v2856 = vpack.c.b16 %v2824, %v2820
    %v2857 = vpack.c.b16 %v2825, %v2821
    %v2858 = vpack.c.b16 %v2826, %v2822
    %v2893 = vcombine.low %v2728, %v2730
    %v2895 = vunpack.c.l.s4 1966171168
    %v2896 = vunpack.c.0.s8 %v2895
    %v2897 = vlaneseq
    %v2898 = vshrl.u32 %v2897, 7
    %v2899 = vsub.s32 %v2896, %v2898
    %v2900 = vrot.slane %v2893, %v2899
    %v2901 = vcombine.high %v2900, %v2900
    %v2903 = vunpack.c.l.s4 1966171168
    %v2904 = vunpack.c.0.s8 %v2903
    %v2905 = vlaneseq
    %v2906 = vshrl.u32 %v2905, 7
    %v2907 = vsub.s32 %v2904, %v2906
    %v2908 = vrot.slane %v2900, %v2907
    %v2910 = vunpack.c.l.s4 1966171168
    %v2911 = vunpack.c.0.s8 %v2910
    %v2912 = vlaneseq
    %v2913 = vshrl.u32 %v2912, 7
    %v2914 = vsub.s32 %v2911, %v2913
    %v2915 = vrot.slane %v2901, %v2914
    %v2916 = vcombine.high %v2908, %v2908
    %v2917 = vcombine.high %v2915, %v2915
    %2922 = vmatprep.subr.bf16.mxu0 %v2856
    %2923 = vmatpush1.bf16.msra.mxu0 %v2855
    %2924 = vmatprep.subr.bf16.mxu0 %v2852
    %2925 = vmatpush1.bf16.msra.mxu0 %v2851
    %2926 = vmatprep.subr.bf16.mxu0 %v2848
    %2927 = vmatpush1.bf16.msra.mxu0 %v2847
    %2928 = vmatprep.subr.bf16.mxu0 %v2844
    %2929 = vmatpush1.bf16.msra.mxu0 %v2843
    %2930 = vmatprep.subr.bf16.mxu0 %v2840
    %2931 = vmatpush1.bf16.msra.mxu0 %v2839
    %2932 = vmatprep.subr.bf16.mxu0 %v2836
    %2933 = vmatpush1.bf16.msra.mxu0 %v2835
    %2934 = vmatprep.subr.bf16.mxu0 %v2832
    %2935 = vmatpush1.bf16.msra.mxu0 %v2831
    %2936 = vmatprep.subr.bf16.mxu0 %v2828
    %2937 = vmatpush1.bf16.msra.mxu0 %v2827
    %2938 = vmatprep.subr.bf16.mxu0 0
    %2939 = vmatpush2.bf16.msra.mxu0 0
    %2940 = vmatprep.subr.bf16.mxu0 0
    %2941 = vmatpush2.bf16.msra.mxu0 0
    %2942 = vmatprep.subr.bf16.mxu0 0
    %2943 = vmatpush2.bf16.msra.mxu0 0
    %2944 = vmatprep.subr.bf16.mxu0 0
    %2945 = vmatpush2.bf16.msra.mxu0 0
    %2946 = vmatprep.subr.bf16.mxu0 0
    %2947 = vmatpush2.bf16.msra.mxu0 0
    %2948 = vmatprep.subr.bf16.mxu0 0
    %2949 = vmatpush2.bf16.msra.mxu0 0
    %2950 = vmatprep.subr.bf16.mxu0 0
    %2951 = vmatpush2.bf16.msra.mxu0 0
    %2952 = vmatprep.subr.bf16.mxu0 0
    %2953 = vmatpush2.bf16.msra.mxu0 0
    %2954 = vmatprep.mubr.bf16.mxu0 0
    %2955 = vmatmul.mubr.bf16.gmra.mxu0 %v2694
    %v2956 = vpop.f32.mrf.mxu0
    %v2957 = vadd.f32 %v2908, %v2956
    %v2958 = vpop.f32.mrf.mxu0
    %v2959 = vadd.f32 %v2915, %v2958
    %v2960 = vpop.f32.mrf.mxu0
    %v2961 = vpop.f32.mrf.mxu0
    %2962 = vdwg.mxu0
    %2963 = vmatprep.subr.bf16.mxu0 %v2858
    %2964 = vmatpush1.bf16.msra.mxu0 %v2857
    %2965 = vmatprep.subr.bf16.mxu0 %v2854
    %2966 = vmatpush1.bf16.msra.mxu0 %v2853
    %2967 = vmatprep.subr.bf16.mxu0 %v2850
    %2968 = vmatpush1.bf16.msra.mxu0 %v2849
    %2969 = vmatprep.subr.bf16.mxu0 %v2846
    %2970 = vmatpush1.bf16.msra.mxu0 %v2845
    %2971 = vmatprep.subr.bf16.mxu0 %v2842
    %2972 = vmatpush1.bf16.msra.mxu0 %v2841
    %2973 = vmatprep.subr.bf16.mxu0 %v2838
    %2974 = vmatpush1.bf16.msra.mxu0 %v2837
    %2975 = vmatprep.subr.bf16.mxu0 %v2834
    %2976 = vmatpush1.bf16.msra.mxu0 %v2833
    %2977 = vmatprep.subr.bf16.mxu0 %v2830
    %2978 = vmatpush1.bf16.msra.mxu0 %v2829
    %2979 = vmatprep.subr.bf16.mxu0 0
    %2980 = vmatpush2.bf16.msra.mxu0 0
    %2981 = vmatprep.subr.bf16.mxu0 0
    %2982 = vmatpush2.bf16.msra.mxu0 0
    %2983 = vmatprep.subr.bf16.mxu0 0
    %2984 = vmatpush2.bf16.msra.mxu0 0
    %2985 = vmatprep.subr.bf16.mxu0 0
    %2986 = vmatpush2.bf16.msra.mxu0 0
    %2987 = vmatprep.subr.bf16.mxu0 0
    %2988 = vmatpush2.bf16.msra.mxu0 0
    %2989 = vmatprep.subr.bf16.mxu0 0
    %2990 = vmatpush2.bf16.msra.mxu0 0
    %2991 = vmatprep.subr.bf16.mxu0 0
    %2992 = vmatpush2.bf16.msra.mxu0 0
    %2993 = vmatprep.subr.bf16.mxu0 0
    %2994 = vmatpush2.bf16.msra.mxu0 0
    %2995 = vmatprep.mubr.bf16.mxu0 0
    %2996 = vmatmul.mubr.bf16.gmra.mxu0 %v2694
    %v2997 = vpop.f32.mrf.mxu0
    %v2998 = vadd.f32 %v2916, %v2997
    %v2999 = vpop.f32.mrf.mxu0
    %v3000 = vadd.f32 %v2917, %v2999
    %v3001 = vpop.f32.mrf.mxu0
    %v3002 = vpop.f32.mrf.mxu0
    %3003 = vdwg.mxu0
    %v3004 = vxor.u32 %v2957, 2147483648
    %v3005 = vmul.f32 %v3004, 1.442695
    %v3006 = vpow.pop %v3005
    %v3007 = vadd.f32 %v3006, 1.0
    %v3008 = vrcp.pop %v3007
    %v3009 = vmul.f32 1.0, %v3008
    %v3010 = vxor.u32 %v2959, 2147483648
    %v3011 = vmul.f32 %v3010, 1.442695
    %v3012 = vpow.pop %v3011
    %v3013 = vadd.f32 %v3012, 1.0
    %v3014 = vrcp.pop %v3013
    %v3015 = vmul.f32 1.0, %v3014
    %v3016 = vtanh.pop %v2998
    %v3017 = vxor.u32 %v3000, 2147483648
    %v3018 = vmul.f32 %v3017, 1.442695
    %v3019 = vpow.pop %v3018
    %v3020 = vadd.f32 %v3019, 1.0
    %v3021 = vrcp.pop %v3020
    %v3022 = vmul.f32 1.0, %v3021
    %v3023 = vld [vmem:[#allocation5] sm:$0x3]
    %v3024 = vmul.f32 %v3015, %v3023
    %v3025 = vmul.f32 %v3009, %v3016
    %v3026 = vadd.f32 %v3024, %v3025
    %v3027 = vtanh.pop %v3026
    %v3028 = vmul.f32 %v3022, %v3027
    %3029 = vst [vmem:[#allocation5] sm:$0x3] %v3026
    %3030 = vst [vmem:[#allocation4] sm:$0x3] %v3028
    %v3031 = vpack.c.bf16 %v3028, %v3028
    %v3034 = vunpack.c.l.s4 1966171168
    %v3035 = vunpack.c.0.s8 %v3034
    %v3036 = vlaneseq
    %v3037 = vshrl.u32 %v3036, 7
    %v3038 = vsub.s32 %v3035, %v3037
    %v3039 = vrot.slane %v3031, %v3038
    %v3041 = vunpack.c.l.s4 1966171168
    %v3042 = vunpack.c.0.s8 %v3041
    %v3043 = vlaneseq
    %v3044 = vshrl.u32 %v3043, 7
    %v3045 = vsub.s32 %v3042, %v3044
    %v3046 = vrot.slane %v3039, %v3045
    %v3047 = vunpack.i.l.s16 %v3046
    %v3048 = vunpack.i.h.s16 %v3046
    %v3049 = vpack.i.b16 %v3047, %v3047
    %v3050 = vpack.i.b16 %v3048, %v3048
    %v3052 = vunpack.c.l.s4 286326784
    %v3053 = vunpack.c.0.s8 %v3052
    %v3054 = vlaneseq
    %v3055 = vshrl.u32 %v3054, 7
    %v3056 = vsub.s32 %v3053, %v3055
    %v3057 = vrot.slane %v3049, %v3056
    %v3059 = vunpack.c.l.s4 286326784
    %v3060 = vunpack.c.0.s8 %v3059
    %v3061 = vlaneseq
    %v3062 = vshrl.u32 %v3061, 7
    %v3063 = vsub.s32 %v3060, %v3062
    %v3064 = vrot.slane %v3050, %v3063
    %vm3067 = vcmask 1043459
    %vm3068 = vsmask.f32 3328
    %vm3069 = vmand %vm3067, %vm3068
    %v3070 = vld [vmem:[#allocation2] sm:$0x8]
    %v3071 = vsel %vm3069, %v3057, %v3070
    %3072 = vst [vmem:[#allocation2] sm:$0x8] %v3071
    %v3073 = vld [vmem:[#allocation2 + $0x4] sm:$0x8]
    %v3074 = vsel %vm3069, %v3064, %v3073
    %3075 = vst [vmem:[#allocation2 + $0x4] sm:$0x8] %v3074
    %v3076 = vld [vmem:[#allocation4] sm:$0x3]
    %v3077 = vpack.c.bf16 %v3076, %v3076
    %v3078 = vld [vmem:[#allocation13] sm:$0xff]
    %v3079 = vld [vmem:[#allocation13 + $0x8] sm:$0xff]
    %v3080 = vld [vmem:[#allocation13 + $0x10] sm:$0xff]
    %v3081 = vld [vmem:[#allocation13 + $0x18] sm:$0xff]
    %v3082 = vld [vmem:[#allocation13 + $0x20] sm:$0xff]
    %v3083 = vld [vmem:[#allocation13 + $0x28] sm:$0xff]
    %v3084 = vld [vmem:[#allocation13 + $0x30] sm:$0xff]
    %v3085 = vld [vmem:[#allocation13 + $0x38] sm:$0xff]
    %v3086 = vld [vmem:[#allocation13 + $0x40] sm:$0xff]
    %v3087 = vld [vmem:[#allocation13 + $0x48] sm:$0xff]
    %v3088 = vld [vmem:[#allocation13 + $0x50] sm:$0xff]
    %v3089 = vld [vmem:[#allocation13 + $0x58] sm:$0xff]
    %v3090 = vld [vmem:[#allocation13 + $0x60] sm:$0xff]
    %v3091 = vld [vmem:[#allocation13 + $0x68] sm:$0xff]
    %v3092 = vld [vmem:[#allocation13 + $0x70] sm:$0xff]
    %v3093 = vld [vmem:[#allocation13 + $0x78] sm:$0xff]
    %v3094 = vld [vmem:[#allocation13 + $0x80] sm:$0xff]
    %v3095 = vld [vmem:[#allocation13 + $0x88] sm:$0xff]
    %v3096 = vld [vmem:[#allocation13 + $0x90] sm:$0xff]
    %v3097 = vld [vmem:[#allocation13 + $0x98] sm:$0xff]
    %v3098 = vld [vmem:[#allocation13 + $0xa0] sm:$0xff]
    %v3099 = vld [vmem:[#allocation13 + $0xa8] sm:$0xff]
    %v3100 = vld [vmem:[#allocation13 + $0xb0] sm:$0xff]
    %v3101 = vld [vmem:[#allocation13 + $0xb8] sm:$0xff]
    %v3102 = vld [vmem:[#allocation13 + $0xc0] sm:$0xff]
    %v3103 = vld [vmem:[#allocation13 + $0xc8] sm:$0xff]
    %v3104 = vld [vmem:[#allocation13 + $0xd0] sm:$0xff]
    %v3105 = vld [vmem:[#allocation13 + $0xd8] sm:$0xff]
    %v3106 = vld [vmem:[#allocation13 + $0xe0] sm:$0xff]
    %v3107 = vld [vmem:[#allocation13 + $0xe8] sm:$0xff]
    %v3108 = vld [vmem:[#allocation13 + $0xf0] sm:$0xff]
    %v3109 = vld [vmem:[#allocation13 + $0xf8] sm:$0xff]
    %s3110 = scalar_lea.vmem [#allocation3], 7
    %v3111 = vld [vmem:[%s3110] ss:$8 sm:$0xf]
    %s3112 = scalar_lea.vmem [#allocation3], 39
    %v3113 = vld [vmem:[%s3112] ss:$8 sm:$0xf]
    %v3146 = vunpack.c.l.b16 %v3078
    %v3147 = vunpack.c.h.b16 %v3078
    %v3148 = vunpack.c.l.b16 %v3079
    %v3149 = vunpack.c.h.b16 %v3079
    %v3150 = vunpack.c.l.b16 %v3080
    %v3151 = vunpack.c.h.b16 %v3080
    %v3152 = vunpack.c.l.b16 %v3081
    %v3153 = vunpack.c.h.b16 %v3081
    %v3154 = vunpack.c.l.b16 %v3082
    %v3155 = vunpack.c.h.b16 %v3082
    %v3156 = vunpack.c.l.b16 %v3083
    %v3157 = vunpack.c.h.b16 %v3083
    %v3158 = vunpack.c.l.b16 %v3084
    %v3159 = vunpack.c.h.b16 %v3084
    %v3160 = vunpack.c.l.b16 %v3085
    %v3161 = vunpack.c.h.b16 %v3085
    %v3162 = vunpack.c.l.b16 %v3086
    %v3163 = vunpack.c.h.b16 %v3086
    %v3164 = vunpack.c.l.b16 %v3087
    %v3165 = vunpack.c.h.b16 %v3087
    %v3166 = vunpack.c.l.b16 %v3088
    %v3167 = vunpack.c.h.b16 %v3088
    %v3168 = vunpack.c.l.b16 %v3089
    %v3169 = vunpack.c.h.b16 %v3089
    %v3170 = vunpack.c.l.b16 %v3090
    %v3171 = vunpack.c.h.b16 %v3090
    %v3172 = vunpack.c.l.b16 %v3091
    %v3173 = vunpack.c.h.b16 %v3091
    %v3174 = vunpack.c.l.b16 %v3092
    %v3175 = vunpack.c.h.b16 %v3092
    %v3176 = vunpack.c.l.b16 %v3093
    %v3177 = vunpack.c.h.b16 %v3093
    %v3178 = vunpack.c.l.b16 %v3094
    %v3179 = vunpack.c.h.b16 %v3094
    %v3180 = vunpack.c.l.b16 %v3095
    %v3181 = vunpack.c.h.b16 %v3095
    %v3182 = vunpack.c.l.b16 %v3096
    %v3183 = vunpack.c.h.b16 %v3096
    %v3184 = vunpack.c.l.b16 %v3097
    %v3185 = vunpack.c.h.b16 %v3097
    %v3186 = vunpack.c.l.b16 %v3098
    %v3187 = vunpack.c.h.b16 %v3098
    %v3188 = vunpack.c.l.b16 %v3099
    %v3189 = vunpack.c.h.b16 %v3099
    %v3190 = vunpack.c.l.b16 %v3100
    %v3191 = vunpack.c.h.b16 %v3100
    %v3192 = vunpack.c.l.b16 %v3101
    %v3193 = vunpack.c.h.b16 %v3101
    %v3194 = vunpack.c.l.b16 %v3102
    %v3195 = vunpack.c.h.b16 %v3102
    %v3196 = vunpack.c.l.b16 %v3103
    %v3197 = vunpack.c.h.b16 %v3103
    %v3198 = vunpack.c.l.b16 %v3104
    %v3199 = vunpack.c.h.b16 %v3104
    %v3200 = vunpack.c.l.b16 %v3105
    %v3201 = vunpack.c.h.b16 %v3105
    %v3202 = vunpack.c.l.b16 %v3106
    %v3203 = vunpack.c.h.b16 %v3106
    %v3204 = vunpack.c.l.b16 %v3107
    %v3205 = vunpack.c.h.b16 %v3107
    %v3206 = vunpack.c.l.b16 %v3108
    %v3207 = vunpack.c.h.b16 %v3108
    %v3208 = vunpack.c.l.b16 %v3109
    %v3209 = vunpack.c.h.b16 %v3109
    %v3210 = vpack.c.b16 %v3150, %v3146
    %v3211 = vpack.c.b16 %v3151, %v3147
    %v3212 = vpack.c.b16 %v3152, %v3148
    %v3213 = vpack.c.b16 %v3153, %v3149
    %v3214 = vpack.c.b16 %v3158, %v3154
    %v3215 = vpack.c.b16 %v3159, %v3155
    %v3216 = vpack.c.b16 %v3160, %v3156
    %v3217 = vpack.c.b16 %v3161, %v3157
    %v3218 = vpack.c.b16 %v3166, %v3162
    %v3219 = vpack.c.b16 %v3167, %v3163
    %v3220 = vpack.c.b16 %v3168, %v3164
    %v3221 = vpack.c.b16 %v3169, %v3165
    %v3222 = vpack.c.b16 %v3174, %v3170
    %v3223 = vpack.c.b16 %v3175, %v3171
    %v3224 = vpack.c.b16 %v3176, %v3172
    %v3225 = vpack.c.b16 %v3177, %v3173
    %v3226 = vpack.c.b16 %v3182, %v3178
    %v3227 = vpack.c.b16 %v3183, %v3179
    %v3228 = vpack.c.b16 %v3184, %v3180
    %v3229 = vpack.c.b16 %v3185, %v3181
    %v3230 = vpack.c.b16 %v3190, %v3186
    %v3231 = vpack.c.b16 %v3191, %v3187
    %v3232 = vpack.c.b16 %v3192, %v3188
    %v3233 = vpack.c.b16 %v3193, %v3189
    %v3234 = vpack.c.b16 %v3198, %v3194
    %v3235 = vpack.c.b16 %v3199, %v3195
    %v3236 = vpack.c.b16 %v3200, %v3196
    %v3237 = vpack.c.b16 %v3201, %v3197
    %v3238 = vpack.c.b16 %v3206, %v3202
    %v3239 = vpack.c.b16 %v3207, %v3203
    %v3240 = vpack.c.b16 %v3208, %v3204
    %v3241 = vpack.c.b16 %v3209, %v3205
    %v3276 = vcombine.low %v3111, %v3113
    %v3278 = vunpack.c.l.s4 1966171168
    %v3279 = vunpack.c.0.s8 %v3278
    %v3280 = vlaneseq
    %v3281 = vshrl.u32 %v3280, 7
    %v3282 = vsub.s32 %v3279, %v3281
    %v3283 = vrot.slane %v3276, %v3282
    %v3284 = vcombine.high %v3283, %v3283
    %v3286 = vunpack.c.l.s4 1966171168
    %v3287 = vunpack.c.0.s8 %v3286
    %v3288 = vlaneseq
    %v3289 = vshrl.u32 %v3288, 7
    %v3290 = vsub.s32 %v3287, %v3289
    %v3291 = vrot.slane %v3283, %v3290
    %v3293 = vunpack.c.l.s4 1966171168
    %v3294 = vunpack.c.0.s8 %v3293
    %v3295 = vlaneseq
    %v3296 = vshrl.u32 %v3295, 7
    %v3297 = vsub.s32 %v3294, %v3296
    %v3298 = vrot.slane %v3284, %v3297
    %v3299 = vcombine.high %v3291, %v3291
    %v3300 = vcombine.high %v3298, %v3298
    %3305 = vmatprep.subr.bf16.mxu0 %v3239
    %3306 = vmatpush1.bf16.msra.mxu0 %v3238
    %3307 = vmatprep.subr.bf16.mxu0 %v3235
    %3308 = vmatpush1.bf16.msra.mxu0 %v3234
    %3309 = vmatprep.subr.bf16.mxu0 %v3231
    %3310 = vmatpush1.bf16.msra.mxu0 %v3230
    %3311 = vmatprep.subr.bf16.mxu0 %v3227
    %3312 = vmatpush1.bf16.msra.mxu0 %v3226
    %3313 = vmatprep.subr.bf16.mxu0 %v3223
    %3314 = vmatpush1.bf16.msra.mxu0 %v3222
    %3315 = vmatprep.subr.bf16.mxu0 %v3219
    %3316 = vmatpush1.bf16.msra.mxu0 %v3218
    %3317 = vmatprep.subr.bf16.mxu0 %v3215
    %3318 = vmatpush1.bf16.msra.mxu0 %v3214
    %3319 = vmatprep.subr.bf16.mxu0 %v3211
    %3320 = vmatpush1.bf16.msra.mxu0 %v3210
    %3321 = vmatprep.subr.bf16.mxu0 0
    %3322 = vmatpush2.bf16.msra.mxu0 0
    %3323 = vmatprep.subr.bf16.mxu0 0
    %3324 = vmatpush2.bf16.msra.mxu0 0
    %3325 = vmatprep.subr.bf16.mxu0 0
    %3326 = vmatpush2.bf16.msra.mxu0 0
    %3327 = vmatprep.subr.bf16.mxu0 0
    %3328 = vmatpush2.bf16.msra.mxu0 0
    %3329 = vmatprep.subr.bf16.mxu0 0
    %3330 = vmatpush2.bf16.msra.mxu0 0
    %3331 = vmatprep.subr.bf16.mxu0 0
    %3332 = vmatpush2.bf16.msra.mxu0 0
    %3333 = vmatprep.subr.bf16.mxu0 0
    %3334 = vmatpush2.bf16.msra.mxu0 0
    %3335 = vmatprep.subr.bf16.mxu0 0
    %3336 = vmatpush2.bf16.msra.mxu0 0
    %3337 = vmatprep.mubr.bf16.mxu0 0
    %3338 = vmatmul.mubr.bf16.gmra.mxu0 %v3077
    %v3339 = vpop.f32.mrf.mxu0
    %v3340 = vadd.f32 %v3291, %v3339
    %v3341 = vpop.f32.mrf.mxu0
    %v3342 = vadd.f32 %v3298, %v3341
    %v3343 = vpop.f32.mrf.mxu0
    %v3344 = vpop.f32.mrf.mxu0
    %3345 = vdwg.mxu0
    %3346 = vmatprep.subr.bf16.mxu0 %v3241
    %3347 = vmatpush1.bf16.msra.mxu0 %v3240
    %3348 = vmatprep.subr.bf16.mxu0 %v3237
    %3349 = vmatpush1.bf16.msra.mxu0 %v3236
    %3350 = vmatprep.subr.bf16.mxu0 %v3233
    %3351 = vmatpush1.bf16.msra.mxu0 %v3232
    %3352 = vmatprep.subr.bf16.mxu0 %v3229
    %3353 = vmatpush1.bf16.msra.mxu0 %v3228
    %3354 = vmatprep.subr.bf16.mxu0 %v3225
    %3355 = vmatpush1.bf16.msra.mxu0 %v3224
    %3356 = vmatprep.subr.bf16.mxu0 %v3221
    %3357 = vmatpush1.bf16.msra.mxu0 %v3220
    %3358 = vmatprep.subr.bf16.mxu0 %v3217
    %3359 = vmatpush1.bf16.msra.mxu0 %v3216
    %3360 = vmatprep.subr.bf16.mxu0 %v3213
    %3361 = vmatpush1.bf16.msra.mxu0 %v3212
    %3362 = vmatprep.subr.bf16.mxu0 0
    %3363 = vmatpush2.bf16.msra.mxu0 0
    %3364 = vmatprep.subr.bf16.mxu0 0
    %3365 = vmatpush2.bf16.msra.mxu0 0
    %3366 = vmatprep.subr.bf16.mxu0 0
    %3367 = vmatpush2.bf16.msra.mxu0 0
    %3368 = vmatprep.subr.bf16.mxu0 0
    %3369 = vmatpush2.bf16.msra.mxu0 0
    %3370 = vmatprep.subr.bf16.mxu0 0
    %3371 = vmatpush2.bf16.msra.mxu0 0
    %3372 = vmatprep.subr.bf16.mxu0 0
    %3373 = vmatpush2.bf16.msra.mxu0 0
    %3374 = vmatprep.subr.bf16.mxu0 0
    %3375 = vmatpush2.bf16.msra.mxu0 0
    %3376 = vmatprep.subr.bf16.mxu0 0
    %3377 = vmatpush2.bf16.msra.mxu0 0
    %3378 = vmatprep.mubr.bf16.mxu0 0
    %3379 = vmatmul.mubr.bf16.gmra.mxu0 %v3077
    %v3380 = vpop.f32.mrf.mxu0
    %v3381 = vadd.f32 %v3299, %v3380
    %v3382 = vpop.f32.mrf.mxu0
    %v3383 = vadd.f32 %v3300, %v3382
    %v3384 = vpop.f32.mrf.mxu0
    %v3385 = vpop.f32.mrf.mxu0
    %3386 = vdwg.mxu0
    %v3387 = vxor.u32 %v3340, 2147483648
    %v3388 = vmul.f32 %v3387, 1.442695
    %v3389 = vpow.pop %v3388
    %v3390 = vadd.f32 %v3389, 1.0
    %v3391 = vrcp.pop %v3390
    %v3392 = vmul.f32 1.0, %v3391
    %v3393 = vxor.u32 %v3342, 2147483648
    %v3394 = vmul.f32 %v3393, 1.442695
    %v3395 = vpow.pop %v3394
    %v3396 = vadd.f32 %v3395, 1.0
    %v3397 = vrcp.pop %v3396
    %v3398 = vmul.f32 1.0, %v3397
    %v3399 = vtanh.pop %v3381
    %v3400 = vxor.u32 %v3383, 2147483648
    %v3401 = vmul.f32 %v3400, 1.442695
    %v3402 = vpow.pop %v3401
    %v3403 = vadd.f32 %v3402, 1.0
    %v3404 = vrcp.pop %v3403
    %v3405 = vmul.f32 1.0, %v3404
    %v3406 = vld [vmem:[#allocation5] sm:$0x3]
    %v3407 = vmul.f32 %v3398, %v3406
    %v3408 = vmul.f32 %v3392, %v3399
    %v3409 = vadd.f32 %v3407, %v3408
    %v3410 = vtanh.pop %v3409
    %v3411 = vmul.f32 %v3405, %v3410
    %3412 = vst [vmem:[#allocation5] sm:$0x3] %v3409
    %3413 = vst [vmem:[#allocation4] sm:$0x3] %v3411
    %v3414 = vpack.c.bf16 %v3411, %v3411
    %v3417 = vunpack.c.l.s4 1966171168
    %v3418 = vunpack.c.0.s8 %v3417
    %v3419 = vlaneseq
    %v3420 = vshrl.u32 %v3419, 7
    %v3421 = vsub.s32 %v3418, %v3420
    %v3422 = vrot.slane %v3414, %v3421
    %v3424 = vunpack.c.l.s4 1966171168
    %v3425 = vunpack.c.0.s8 %v3424
    %v3426 = vlaneseq
    %v3427 = vshrl.u32 %v3426, 7
    %v3428 = vsub.s32 %v3425, %v3427
    %v3429 = vrot.slane %v3422, %v3428
    %v3430 = vunpack.i.l.s16 %v3429
    %v3431 = vunpack.i.h.s16 %v3429
    %v3432 = vpack.i.b16 %v3430, %v3430
    %v3433 = vpack.i.b16 %v3431, %v3431
    %v3435 = vunpack.c.l.s4 286326784
    %v3436 = vunpack.c.0.s8 %v3435
    %v3437 = vlaneseq
    %v3438 = vshrl.u32 %v3437, 7
    %v3439 = vsub.s32 %v3436, %v3438
    %v3440 = vrot.slane %v3432, %v3439
    %v3442 = vunpack.c.l.s4 286326784
    %v3443 = vunpack.c.0.s8 %v3442
    %v3444 = vlaneseq
    %v3445 = vshrl.u32 %v3444, 7
    %v3446 = vsub.s32 %v3443, %v3445
    %v3447 = vrot.slane %v3433, %v3446
    %vm3450 = vsmask.f32 7950
    %vm3451 = vmand %vm3067, %vm3450
    %v3452 = vld [vmem:[#allocation2] sm:$0x8]
    %v3453 = vsel %vm3451, %v3440, %v3452
    %3454 = vst [vmem:[#allocation2] sm:$0x8] %v3453
    %v3455 = vld [vmem:[#allocation2 + $0x4] sm:$0x8]
    %v3456 = vsel %vm3451, %v3447, %v3455
    %3457 = vst [vmem:[#allocation2 + $0x4] sm:$0x8] %v3456
    %v3458 = vld [vmem:[#allocation2] sm:$0xf]
    %v3459 = vld [vmem:[#allocation14] sm:$0xff]
    %v3460 = vld [vmem:[#allocation14 + $0x8] sm:$0xff]
    %v3461 = vld [vmem:[#allocation14 + $0x10] sm:$0xff]
    %v3462 = vld [vmem:[#allocation14 + $0x18] sm:$0xff]
    %v3463 = vld [vmem:[#allocation14 + $0x20] sm:$0xff]
    %v3464 = vld [vmem:[#allocation14 + $0x28] sm:$0xff]
    %v3465 = vld [vmem:[#allocation14 + $0x30] sm:$0xff]
    %v3466 = vld [vmem:[#allocation14 + $0x38] sm:$0xff]
    %v3467 = vld [vmem:[#allocation14 + $0x40] sm:$0xff]
    %v3468 = vld [vmem:[#allocation14 + $0x48] sm:$0xff]
    %v3469 = vld [vmem:[#allocation14 + $0x50] sm:$0xff]
    %v3470 = vld [vmem:[#allocation14 + $0x58] sm:$0xff]
    %v3471 = vld [vmem:[#allocation14 + $0x60] sm:$0xff]
    %v3472 = vld [vmem:[#allocation14 + $0x68] sm:$0xff]
    %v3473 = vld [vmem:[#allocation14 + $0x70] sm:$0xff]
    %v3474 = vld [vmem:[#allocation14 + $0x78] sm:$0xff]
    %v3475 = vld [vmem:[#allocation14 + $0x80] sm:$0xff]
    %v3476 = vld [vmem:[#allocation14 + $0x88] sm:$0xff]
    %v3477 = vld [vmem:[#allocation14 + $0x90] sm:$0xff]
    %v3478 = vld [vmem:[#allocation14 + $0x98] sm:$0xff]
    %v3479 = vld [vmem:[#allocation14 + $0xa0] sm:$0xff]
    %v3480 = vld [vmem:[#allocation14 + $0xa8] sm:$0xff]
    %v3481 = vld [vmem:[#allocation14 + $0xb0] sm:$0xff]
    %v3482 = vld [vmem:[#allocation14 + $0xb8] sm:$0xff]
    %v3483 = vld [vmem:[#allocation14 + $0xc0] sm:$0xff]
    %v3484 = vld [vmem:[#allocation14 + $0xc8] sm:$0xff]
    %v3485 = vld [vmem:[#allocation14 + $0xd0] sm:$0xff]
    %v3486 = vld [vmem:[#allocation14 + $0xd8] sm:$0xff]
    %v3487 = vld [vmem:[#allocation14 + $0xe0] sm:$0xff]
    %v3488 = vld [vmem:[#allocation14 + $0xe8] sm:$0xff]
    %v3489 = vld [vmem:[#allocation14 + $0xf0] sm:$0xff]
    %v3490 = vld [vmem:[#allocation14 + $0xf8] sm:$0xff]
    %v3491 = vld [vmem:[%s6] sm:$0xf]
    %v3493 = vlaneseq
    %v3494 = vshrl.u32 %v3493, 7
    %v3495 = vsub.s32 0, %v3494
    %v3496 = vrot.slane %v3491, %v3495
    %v3497 = vlaneseq
    %v3498 = vshrl.u32 %v3497, 7
    %v3499 = vsub.s32 1, %v3498
    %v3500 = vrot.slane %v3491, %v3499
    %v3501 = vlaneseq
    %v3502 = vshrl.u32 %v3501, 7
    %v3503 = vsub.s32 2, %v3502
    %v3504 = vrot.slane %v3491, %v3503
    %v3505 = vlaneseq
    %v3506 = vshrl.u32 %v3505, 7
    %v3507 = vsub.s32 3, %v3506
    %v3508 = vrot.slane %v3491, %v3507
    %v3545 = vunpack.c.l.b16 %v3459
    %v3546 = vunpack.c.h.b16 %v3459
    %v3547 = vunpack.c.l.b16 %v3460
    %v3548 = vunpack.c.h.b16 %v3460
    %v3549 = vunpack.c.l.b16 %v3461
    %v3550 = vunpack.c.h.b16 %v3461
    %v3551 = vunpack.c.l.b16 %v3462
    %v3552 = vunpack.c.h.b16 %v3462
    %v3553 = vunpack.c.l.b16 %v3463
    %v3554 = vunpack.c.h.b16 %v3463
    %v3555 = vunpack.c.l.b16 %v3464
    %v3556 = vunpack.c.h.b16 %v3464
    %v3557 = vunpack.c.l.b16 %v3465
    %v3558 = vunpack.c.h.b16 %v3465
    %v3559 = vunpack.c.l.b16 %v3466
    %v3560 = vunpack.c.h.b16 %v3466
    %v3561 = vunpack.c.l.b16 %v3467
    %v3562 = vunpack.c.h.b16 %v3467
    %v3563 = vunpack.c.l.b16 %v3468
    %v3564 = vunpack.c.h.b16 %v3468
    %v3565 = vunpack.c.l.b16 %v3469
    %v3566 = vunpack.c.h.b16 %v3469
    %v3567 = vunpack.c.l.b16 %v3470
    %v3568 = vunpack.c.h.b16 %v3470
    %v3569 = vunpack.c.l.b16 %v3471
    %v3570 = vunpack.c.h.b16 %v3471
    %v3571 = vunpack.c.l.b16 %v3472
    %v3572 = vunpack.c.h.b16 %v3472
    %v3573 = vunpack.c.l.b16 %v3473
    %v3574 = vunpack.c.h.b16 %v3473
    %v3575 = vunpack.c.l.b16 %v3474
    %v3576 = vunpack.c.h.b16 %v3474
    %v3577 = vunpack.c.l.b16 %v3475
    %v3578 = vunpack.c.h.b16 %v3475
    %v3579 = vunpack.c.l.b16 %v3476
    %v3580 = vunpack.c.h.b16 %v3476
    %v3581 = vunpack.c.l.b16 %v3477
    %v3582 = vunpack.c.h.b16 %v3477
    %v3583 = vunpack.c.l.b16 %v3478
    %v3584 = vunpack.c.h.b16 %v3478
    %v3585 = vunpack.c.l.b16 %v3479
    %v3586 = vunpack.c.h.b16 %v3479
    %v3587 = vunpack.c.l.b16 %v3480
    %v3588 = vunpack.c.h.b16 %v3480
    %v3589 = vunpack.c.l.b16 %v3481
    %v3590 = vunpack.c.h.b16 %v3481
    %v3591 = vunpack.c.l.b16 %v3482
    %v3592 = vunpack.c.h.b16 %v3482
    %v3593 = vunpack.c.l.b16 %v3483
    %v3594 = vunpack.c.h.b16 %v3483
    %v3595 = vunpack.c.l.b16 %v3484
    %v3596 = vunpack.c.h.b16 %v3484
    %v3597 = vunpack.c.l.b16 %v3485
    %v3598 = vunpack.c.h.b16 %v3485
    %v3599 = vunpack.c.l.b16 %v3486
    %v3600 = vunpack.c.h.b16 %v3486
    %v3601 = vunpack.c.l.b16 %v3487
    %v3602 = vunpack.c.h.b16 %v3487
    %v3603 = vunpack.c.l.b16 %v3488
    %v3604 = vunpack.c.h.b16 %v3488
    %v3605 = vunpack.c.l.b16 %v3489
    %v3606 = vunpack.c.h.b16 %v3489
    %v3607 = vunpack.c.l.b16 %v3490
    %v3608 = vunpack.c.h.b16 %v3490
    %v3609 = vpack.c.b16 %v3549, %v3545
    %v3610 = vpack.c.b16 %v3550, %v3546
    %v3611 = vpack.c.b16 %v3551, %v3547
    %v3612 = vpack.c.b16 %v3552, %v3548
    %v3613 = vpack.c.b16 %v3557, %v3553
    %v3614 = vpack.c.b16 %v3558, %v3554
    %v3615 = vpack.c.b16 %v3559, %v3555
    %v3616 = vpack.c.b16 %v3560, %v3556
    %v3617 = vpack.c.b16 %v3565, %v3561
    %v3618 = vpack.c.b16 %v3566, %v3562
    %v3619 = vpack.c.b16 %v3567, %v3563
    %v3620 = vpack.c.b16 %v3568, %v3564
    %v3621 = vpack.c.b16 %v3573, %v3569
    %v3622 = vpack.c.b16 %v3574, %v3570
    %v3623 = vpack.c.b16 %v3575, %v3571
    %v3624 = vpack.c.b16 %v3576, %v3572
    %v3625 = vpack.c.b16 %v3581, %v3577
    %v3626 = vpack.c.b16 %v3582, %v3578
    %v3627 = vpack.c.b16 %v3583, %v3579
    %v3628 = vpack.c.b16 %v3584, %v3580
    %v3629 = vpack.c.b16 %v3589, %v3585
    %v3630 = vpack.c.b16 %v3590, %v3586
    %v3631 = vpack.c.b16 %v3591, %v3587
    %v3632 = vpack.c.b16 %v3592, %v3588
    %v3633 = vpack.c.b16 %v3597, %v3593
    %v3634 = vpack.c.b16 %v3598, %v3594
    %v3635 = vpack.c.b16 %v3599, %v3595
    %v3636 = vpack.c.b16 %v3600, %v3596
    %v3637 = vpack.c.b16 %v3605, %v3601
    %v3638 = vpack.c.b16 %v3606, %v3602
    %v3639 = vpack.c.b16 %v3607, %v3603
    %v3640 = vpack.c.b16 %v3608, %v3604
    %3673 = vmatprep.subr.bf16.mxu0 %v3638
    %3674 = vmatpush1.bf16.msra.mxu0 %v3637
    %3675 = vmatprep.subr.bf16.mxu0 %v3634
    %3676 = vmatpush1.bf16.msra.mxu0 %v3633
    %3677 = vmatprep.subr.bf16.mxu0 %v3630
    %3678 = vmatpush1.bf16.msra.mxu0 %v3629
    %3679 = vmatprep.subr.bf16.mxu0 %v3626
    %3680 = vmatpush1.bf16.msra.mxu0 %v3625
    %3681 = vmatprep.subr.bf16.mxu0 %v3622
    %3682 = vmatpush1.bf16.msra.mxu0 %v3621
    %3683 = vmatprep.subr.bf16.mxu0 %v3618
    %3684 = vmatpush1.bf16.msra.mxu0 %v3617
    %3685 = vmatprep.subr.bf16.mxu0 %v3614
    %3686 = vmatpush1.bf16.msra.mxu0 %v3613
    %3687 = vmatprep.subr.bf16.mxu0 %v3610
    %3688 = vmatpush1.bf16.msra.mxu0 %v3609
    %3689 = vmatprep.subr.bf16.mxu0 0
    %3690 = vmatpush2.bf16.msra.mxu0 0
    %3691 = vmatprep.subr.bf16.mxu0 0
    %3692 = vmatpush2.bf16.msra.mxu0 0
    %3693 = vmatprep.subr.bf16.mxu0 0
    %3694 = vmatpush2.bf16.msra.mxu0 0
    %3695 = vmatprep.subr.bf16.mxu0 0
    %3696 = vmatpush2.bf16.msra.mxu0 0
    %3697 = vmatprep.subr.bf16.mxu0 0
    %3698 = vmatpush2.bf16.msra.mxu0 0
    %3699 = vmatprep.subr.bf16.mxu0 0
    %3700 = vmatpush2.bf16.msra.mxu0 0
    %3701 = vmatprep.subr.bf16.mxu0 0
    %3702 = vmatpush2.bf16.msra.mxu0 0
    %3703 = vmatprep.subr.bf16.mxu0 0
    %3704 = vmatpush2.bf16.msra.mxu0 0
    %3705 = vmatprep.mubr.bf16.mxu0 0
    %3706 = vmatmul.mubr.bf16.gmra.mxu0 %v3458
    %v3707 = vpop.f32.mrf.mxu0
    %v3708 = vadd.f32 %v3496, %v3707
    %v3709 = vpop.f32.mrf.mxu0
    %v3710 = vadd.f32 %v3500, %v3709
    %v3711 = vpop.f32.mrf.mxu0
    %v3712 = vpop.f32.mrf.mxu0
    %3713 = vdwg.mxu0
    %3714 = vmatprep.subr.bf16.mxu0 %v3640
    %3715 = vmatpush1.bf16.msra.mxu0 %v3639
    %3716 = vmatprep.subr.bf16.mxu0 %v3636
    %3717 = vmatpush1.bf16.msra.mxu0 %v3635
    %3718 = vmatprep.subr.bf16.mxu0 %v3632
    %3719 = vmatpush1.bf16.msra.mxu0 %v3631
    %3720 = vmatprep.subr.bf16.mxu0 %v3628
    %3721 = vmatpush1.bf16.msra.mxu0 %v3627
    %3722 = vmatprep.subr.bf16.mxu0 %v3624
    %3723 = vmatpush1.bf16.msra.mxu0 %v3623
    %3724 = vmatprep.subr.bf16.mxu0 %v3620
    %3725 = vmatpush1.bf16.msra.mxu0 %v3619
    %3726 = vmatprep.subr.bf16.mxu0 %v3616
    %3727 = vmatpush1.bf16.msra.mxu0 %v3615
    %3728 = vmatprep.subr.bf16.mxu0 %v3612
    %3729 = vmatpush1.bf16.msra.mxu0 %v3611
    %3730 = vmatprep.subr.bf16.mxu0 0
    %3731 = vmatpush2.bf16.msra.mxu0 0
    %3732 = vmatprep.subr.bf16.mxu0 0
    %3733 = vmatpush2.bf16.msra.mxu0 0
    %3734 = vmatprep.subr.bf16.mxu0 0
    %3735 = vmatpush2.bf16.msra.mxu0 0
    %3736 = vmatprep.subr.bf16.mxu0 0
    %3737 = vmatpush2.bf16.msra.mxu0 0
    %3738 = vmatprep.subr.bf16.mxu0 0
    %3739 = vmatpush2.bf16.msra.mxu0 0
    %3740 = vmatprep.subr.bf16.mxu0 0
    %3741 = vmatpush2.bf16.msra.mxu0 0
    %3742 = vmatprep.subr.bf16.mxu0 0
    %3743 = vmatpush2.bf16.msra.mxu0 0
    %3744 = vmatprep.subr.bf16.mxu0 0
    %3745 = vmatpush2.bf16.msra.mxu0 0
    %3746 = vmatprep.mubr.bf16.mxu0 0
    %3747 = vmatmul.mubr.bf16.gmra.mxu0 %v3458
    %v3748 = vpop.f32.mrf.mxu0
    %v3749 = vadd.f32 %v3504, %v3748
    %v3750 = vpop.f32.mrf.mxu0
    %v3751 = vadd.f32 %v3508, %v3750
    %v3752 = vpop.f32.mrf.mxu0
    %v3753 = vpop.f32.mrf.mxu0
    %3754 = vdwg.mxu0
    %3755 = vst [vmem:[#allocation3] sm:$0xff] %v3708
    %3756 = vst [vmem:[#allocation3 + $0x8] sm:$0xff] %v3710
    %3757 = vst [vmem:[#allocation3 + $0x10] sm:$0xff] %v3749
    %3758 = vst [vmem:[#allocation3 + $0x18] sm:$0xff] %v3751
    %s3759 = scalar_lea.vmem [#allocation2], 4
    %v3760 = vld [vmem:[%s3759] sm:$0xf]
    %v3761 = vld [vmem:[#allocation14] sm:$0xff]
    %v3762 = vld [vmem:[#allocation14 + $0x8] sm:$0xff]
    %v3763 = vld [vmem:[#allocation14 + $0x10] sm:$0xff]
    %v3764 = vld [vmem:[#allocation14 + $0x18] sm:$0xff]
    %v3765 = vld [vmem:[#allocation14 + $0x20] sm:$0xff]
    %v3766 = vld [vmem:[#allocation14 + $0x28] sm:$0xff]
    %v3767 = vld [vmem:[#allocation14 + $0x30] sm:$0xff]
    %v3768 = vld [vmem:[#allocation14 + $0x38] sm:$0xff]
    %v3769 = vld [vmem:[#allocation14 + $0x40] sm:$0xff]
    %v3770 = vld [vmem:[#allocation14 + $0x48] sm:$0xff]
    %v3771 = vld [vmem:[#allocation14 + $0x50] sm:$0xff]
    %v3772 = vld [vmem:[#allocation14 + $0x58] sm:$0xff]
    %v3773 = vld [vmem:[#allocation14 + $0x60] sm:$0xff]
    %v3774 = vld [vmem:[#allocation14 + $0x68] sm:$0xff]
    %v3775 = vld [vmem:[#allocation14 + $0x70] sm:$0xff]
    %v3776 = vld [vmem:[#allocation14 + $0x78] sm:$0xff]
    %v3777 = vld [vmem:[#allocation14 + $0x80] sm:$0xff]
    %v3778 = vld [vmem:[#allocation14 + $0x88] sm:$0xff]
    %v3779 = vld [vmem:[#allocation14 + $0x90] sm:$0xff]
    %v3780 = vld [vmem:[#allocation14 + $0x98] sm:$0xff]
    %v3781 = vld [vmem:[#allocation14 + $0xa0] sm:$0xff]
    %v3782 = vld [vmem:[#allocation14 + $0xa8] sm:$0xff]
    %v3783 = vld [vmem:[#allocation14 + $0xb0] sm:$0xff]
    %v3784 = vld [vmem:[#allocation14 + $0xb8] sm:$0xff]
    %v3785 = vld [vmem:[#allocation14 + $0xc0] sm:$0xff]
    %v3786 = vld [vmem:[#allocation14 + $0xc8] sm:$0xff]
    %v3787 = vld [vmem:[#allocation14 + $0xd0] sm:$0xff]
    %v3788 = vld [vmem:[#allocation14 + $0xd8] sm:$0xff]
    %v3789 = vld [vmem:[#allocation14 + $0xe0] sm:$0xff]
    %v3790 = vld [vmem:[#allocation14 + $0xe8] sm:$0xff]
    %v3791 = vld [vmem:[#allocation14 + $0xf0] sm:$0xff]
    %v3792 = vld [vmem:[#allocation14 + $0xf8] sm:$0xff]
    %v3793 = vld [vmem:[%s6] sm:$0xf]
    %v3795 = vlaneseq
    %v3796 = vshrl.u32 %v3795, 7
    %v3797 = vsub.s32 0, %v3796
    %v3798 = vrot.slane %v3793, %v3797
    %v3799 = vlaneseq
    %v3800 = vshrl.u32 %v3799, 7
    %v3801 = vsub.s32 1, %v3800
    %v3802 = vrot.slane %v3793, %v3801
    %v3803 = vlaneseq
    %v3804 = vshrl.u32 %v3803, 7
    %v3805 = vsub.s32 2, %v3804
    %v3806 = vrot.slane %v3793, %v3805
    %v3807 = vlaneseq
    %v3808 = vshrl.u32 %v3807, 7
    %v3809 = vsub.s32 3, %v3808
    %v3810 = vrot.slane %v3793, %v3809
    %v3847 = vunpack.c.l.b16 %v3761
    %v3848 = vunpack.c.h.b16 %v3761
    %v3849 = vunpack.c.l.b16 %v3762
    %v3850 = vunpack.c.h.b16 %v3762
    %v3851 = vunpack.c.l.b16 %v3763
    %v3852 = vunpack.c.h.b16 %v3763
    %v3853 = vunpack.c.l.b16 %v3764
    %v3854 = vunpack.c.h.b16 %v3764
    %v3855 = vunpack.c.l.b16 %v3765
    %v3856 = vunpack.c.h.b16 %v3765
    %v3857 = vunpack.c.l.b16 %v3766
    %v3858 = vunpack.c.h.b16 %v3766
    %v3859 = vunpack.c.l.b16 %v3767
    %v3860 = vunpack.c.h.b16 %v3767
    %v3861 = vunpack.c.l.b16 %v3768
    %v3862 = vunpack.c.h.b16 %v3768
    %v3863 = vunpack.c.l.b16 %v3769
    %v3864 = vunpack.c.h.b16 %v3769
    %v3865 = vunpack.c.l.b16 %v3770
    %v3866 = vunpack.c.h.b16 %v3770
    %v3867 = vunpack.c.l.b16 %v3771
    %v3868 = vunpack.c.h.b16 %v3771
    %v3869 = vunpack.c.l.b16 %v3772
    %v3870 = vunpack.c.h.b16 %v3772
    %v3871 = vunpack.c.l.b16 %v3773
    %v3872 = vunpack.c.h.b16 %v3773
    %v3873 = vunpack.c.l.b16 %v3774
    %v3874 = vunpack.c.h.b16 %v3774
    %v3875 = vunpack.c.l.b16 %v3775
    %v3876 = vunpack.c.h.b16 %v3775
    %v3877 = vunpack.c.l.b16 %v3776
    %v3878 = vunpack.c.h.b16 %v3776
    %v3879 = vunpack.c.l.b16 %v3777
    %v3880 = vunpack.c.h.b16 %v3777
    %v3881 = vunpack.c.l.b16 %v3778
    %v3882 = vunpack.c.h.b16 %v3778
    %v3883 = vunpack.c.l.b16 %v3779
    %v3884 = vunpack.c.h.b16 %v3779
    %v3885 = vunpack.c.l.b16 %v3780
    %v3886 = vunpack.c.h.b16 %v3780
    %v3887 = vunpack.c.l.b16 %v3781
    %v3888 = vunpack.c.h.b16 %v3781
    %v3889 = vunpack.c.l.b16 %v3782
    %v3890 = vunpack.c.h.b16 %v3782
    %v3891 = vunpack.c.l.b16 %v3783
    %v3892 = vunpack.c.h.b16 %v3783
    %v3893 = vunpack.c.l.b16 %v3784
    %v3894 = vunpack.c.h.b16 %v3784
    %v3895 = vunpack.c.l.b16 %v3785
    %v3896 = vunpack.c.h.b16 %v3785
    %v3897 = vunpack.c.l.b16 %v3786
    %v3898 = vunpack.c.h.b16 %v3786
    %v3899 = vunpack.c.l.b16 %v3787
    %v3900 = vunpack.c.h.b16 %v3787
    %v3901 = vunpack.c.l.b16 %v3788
    %v3902 = vunpack.c.h.b16 %v3788
    %v3903 = vunpack.c.l.b16 %v3789
    %v3904 = vunpack.c.h.b16 %v3789
    %v3905 = vunpack.c.l.b16 %v3790
    %v3906 = vunpack.c.h.b16 %v3790
    %v3907 = vunpack.c.l.b16 %v3791
    %v3908 = vunpack.c.h.b16 %v3791
    %v3909 = vunpack.c.l.b16 %v3792
    %v3910 = vunpack.c.h.b16 %v3792
    %v3911 = vpack.c.b16 %v3851, %v3847
    %v3912 = vpack.c.b16 %v3852, %v3848
    %v3913 = vpack.c.b16 %v3853, %v3849
    %v3914 = vpack.c.b16 %v3854, %v3850
    %v3915 = vpack.c.b16 %v3859, %v3855
    %v3916 = vpack.c.b16 %v3860, %v3856
    %v3917 = vpack.c.b16 %v3861, %v3857
    %v3918 = vpack.c.b16 %v3862, %v3858
    %v3919 = vpack.c.b16 %v3867, %v3863
    %v3920 = vpack.c.b16 %v3868, %v3864
    %v3921 = vpack.c.b16 %v3869, %v3865
    %v3922 = vpack.c.b16 %v3870, %v3866
    %v3923 = vpack.c.b16 %v3875, %v3871
    %v3924 = vpack.c.b16 %v3876, %v3872
    %v3925 = vpack.c.b16 %v3877, %v3873
    %v3926 = vpack.c.b16 %v3878, %v3874
    %v3927 = vpack.c.b16 %v3883, %v3879
    %v3928 = vpack.c.b16 %v3884, %v3880
    %v3929 = vpack.c.b16 %v3885, %v3881
    %v3930 = vpack.c.b16 %v3886, %v3882
    %v3931 = vpack.c.b16 %v3891, %v3887
    %v3932 = vpack.c.b16 %v3892, %v3888
    %v3933 = vpack.c.b16 %v3893, %v3889
    %v3934 = vpack.c.b16 %v3894, %v3890
    %v3935 = vpack.c.b16 %v3899, %v3895
    %v3936 = vpack.c.b16 %v3900, %v3896
    %v3937 = vpack.c.b16 %v3901, %v3897
    %v3938 = vpack.c.b16 %v3902, %v3898
    %v3939 = vpack.c.b16 %v3907, %v3903
    %v3940 = vpack.c.b16 %v3908, %v3904
    %v3941 = vpack.c.b16 %v3909, %v3905
    %v3942 = vpack.c.b16 %v3910, %v3906
    %3975 = vmatprep.subr.bf16.mxu0 %v3940
    %3976 = vmatpush1.bf16.msra.mxu0 %v3939
    %3977 = vmatprep.subr.bf16.mxu0 %v3936
    %3978 = vmatpush1.bf16.msra.mxu0 %v3935
    %3979 = vmatprep.subr.bf16.mxu0 %v3932
    %3980 = vmatpush1.bf16.msra.mxu0 %v3931
    %3981 = vmatprep.subr.bf16.mxu0 %v3928
    %3982 = vmatpush1.bf16.msra.mxu0 %v3927
    %3983 = vmatprep.subr.bf16.mxu0 %v3924
    %3984 = vmatpush1.bf16.msra.mxu0 %v3923
    %3985 = vmatprep.subr.bf16.mxu0 %v3920
    %3986 = vmatpush1.bf16.msra.mxu0 %v3919
    %3987 = vmatprep.subr.bf16.mxu0 %v3916
    %3988 = vmatpush1.bf16.msra.mxu0 %v3915
    %3989 = vmatprep.subr.bf16.mxu0 %v3912
    %3990 = vmatpush1.bf16.msra.mxu0 %v3911
    %3991 = vmatprep.subr.bf16.mxu0 0
    %3992 = vmatpush2.bf16.msra.mxu0 0
    %3993 = vmatprep.subr.bf16.mxu0 0
    %3994 = vmatpush2.bf16.msra.mxu0 0
    %3995 = vmatprep.subr.bf16.mxu0 0
    %3996 = vmatpush2.bf16.msra.mxu0 0
    %3997 = vmatprep.subr.bf16.mxu0 0
    %3998 = vmatpush2.bf16.msra.mxu0 0
    %3999 = vmatprep.subr.bf16.mxu0 0
    %4000 = vmatpush2.bf16.msra.mxu0 0
    %4001 = vmatprep.subr.bf16.mxu0 0
    %4002 = vmatpush2.bf16.msra.mxu0 0
    %4003 = vmatprep.subr.bf16.mxu0 0
    %4004 = vmatpush2.bf16.msra.mxu0 0
    %4005 = vmatprep.subr.bf16.mxu0 0
    %4006 = vmatpush2.bf16.msra.mxu0 0
    %4007 = vmatprep.mubr.bf16.mxu0 0
    %4008 = vmatmul.mubr.bf16.gmra.mxu0 %v3760
    %v4009 = vpop.f32.mrf.mxu0
    %v4010 = vadd.f32 %v3798, %v4009
    %v4011 = vpop.f32.mrf.mxu0
    %v4012 = vadd.f32 %v3802, %v4011
    %v4013 = vpop.f32.mrf.mxu0
    %v4014 = vpop.f32.mrf.mxu0
    %4015 = vdwg.mxu0
    %4016 = vmatprep.subr.bf16.mxu0 %v3942
    %4017 = vmatpush1.bf16.msra.mxu0 %v3941
    %4018 = vmatprep.subr.bf16.mxu0 %v3938
    %4019 = vmatpush1.bf16.msra.mxu0 %v3937
    %4020 = vmatprep.subr.bf16.mxu0 %v3934
    %4021 = vmatpush1.bf16.msra.mxu0 %v3933
    %4022 = vmatprep.subr.bf16.mxu0 %v3930
    %4023 = vmatpush1.bf16.msra.mxu0 %v3929
    %4024 = vmatprep.subr.bf16.mxu0 %v3926
    %4025 = vmatpush1.bf16.msra.mxu0 %v3925
    %4026 = vmatprep.subr.bf16.mxu0 %v3922
    %4027 = vmatpush1.bf16.msra.mxu0 %v3921
    %4028 = vmatprep.subr.bf16.mxu0 %v3918
    %4029 = vmatpush1.bf16.msra.mxu0 %v3917
    %4030 = vmatprep.subr.bf16.mxu0 %v3914
    %4031 = vmatpush1.bf16.msra.mxu0 %v3913
    %4032 = vmatprep.subr.bf16.mxu0 0
    %4033 = vmatpush2.bf16.msra.mxu0 0
    %4034 = vmatprep.subr.bf16.mxu0 0
    %4035 = vmatpush2.bf16.msra.mxu0 0
    %4036 = vmatprep.subr.bf16.mxu0 0
    %4037 = vmatpush2.bf16.msra.mxu0 0
    %4038 = vmatprep.subr.bf16.mxu0 0
    %4039 = vmatpush2.bf16.msra.mxu0 0
    %4040 = vmatprep.subr.bf16.mxu0 0
    %4041 = vmatpush2.bf16.msra.mxu0 0
    %4042 = vmatprep.subr.bf16.mxu0 0
    %4043 = vmatpush2.bf16.msra.mxu0 0
    %4044 = vmatprep.subr.bf16.mxu0 0
    %4045 = vmatpush2.bf16.msra.mxu0 0
    %4046 = vmatprep.subr.bf16.mxu0 0
    %4047 = vmatpush2.bf16.msra.mxu0 0
    %4048 = vmatprep.mubr.bf16.mxu0 0
    %4049 = vmatmul.mubr.bf16.gmra.mxu0 %v3760
    %v4050 = vpop.f32.mrf.mxu0
    %v4051 = vadd.f32 %v3806, %v4050
    %v4052 = vpop.f32.mrf.mxu0
    %v4053 = vadd.f32 %v3810, %v4052
    %v4054 = vpop.f32.mrf.mxu0
    %v4055 = vpop.f32.mrf.mxu0
    %4056 = vdwg.mxu0
    %4057 = vst [vmem:[%s394] sm:$0xff] %v4010
    %4058 = vst [vmem:[%s394 + $0x8] sm:$0xff] %v4012
    %4059 = vst [vmem:[%s394 + $0x10] sm:$0xff] %v4051
    %4060 = vst [vmem:[%s394 + $0x18] sm:$0xff] %v4053
    %v4061 = vld [vmem:[#allocation6] sm:$0x3]
    %v4062 = vpack.c.bf16 %v4061, %v4061
    %v4063 = vld [vmem:[#allocation16] sm:$0xff]
    %v4064 = vld [vmem:[#allocation16 + $0x8] sm:$0xff]
    %v4065 = vld [vmem:[#allocation16 + $0x10] sm:$0xff]
    %v4066 = vld [vmem:[#allocation16 + $0x18] sm:$0xff]
    %v4067 = vld [vmem:[#allocation16 + $0x20] sm:$0xff]
    %v4068 = vld [vmem:[#allocation16 + $0x28] sm:$0xff]
    %v4069 = vld [vmem:[#allocation16 + $0x30] sm:$0xff]
    %v4070 = vld [vmem:[#allocation16 + $0x38] sm:$0xff]
    %v4071 = vld [vmem:[#allocation16 + $0x40] sm:$0xff]
    %v4072 = vld [vmem:[#allocation16 + $0x48] sm:$0xff]
    %v4073 = vld [vmem:[#allocation16 + $0x50] sm:$0xff]
    %v4074 = vld [vmem:[#allocation16 + $0x58] sm:$0xff]
    %v4075 = vld [vmem:[#allocation16 + $0x60] sm:$0xff]
    %v4076 = vld [vmem:[#allocation16 + $0x68] sm:$0xff]
    %v4077 = vld [vmem:[#allocation16 + $0x70] sm:$0xff]
    %v4078 = vld [vmem:[#allocation16 + $0x78] sm:$0xff]
    %v4079 = vld [vmem:[#allocation16 + $0x80] sm:$0xff]
    %v4080 = vld [vmem:[#allocation16 + $0x88] sm:$0xff]
    %v4081 = vld [vmem:[#allocation16 + $0x90] sm:$0xff]
    %v4082 = vld [vmem:[#allocation16 + $0x98] sm:$0xff]
    %v4083 = vld [vmem:[#allocation16 + $0xa0] sm:$0xff]
    %v4084 = vld [vmem:[#allocation16 + $0xa8] sm:$0xff]
    %v4085 = vld [vmem:[#allocation16 + $0xb0] sm:$0xff]
    %v4086 = vld [vmem:[#allocation16 + $0xb8] sm:$0xff]
    %v4087 = vld [vmem:[#allocation16 + $0xc0] sm:$0xff]
    %v4088 = vld [vmem:[#allocation16 + $0xc8] sm:$0xff]
    %v4089 = vld [vmem:[#allocation16 + $0xd0] sm:$0xff]
    %v4090 = vld [vmem:[#allocation16 + $0xd8] sm:$0xff]
    %v4091 = vld [vmem:[#allocation16 + $0xe0] sm:$0xff]
    %v4092 = vld [vmem:[#allocation16 + $0xe8] sm:$0xff]
    %v4093 = vld [vmem:[#allocation16 + $0xf0] sm:$0xff]
    %v4094 = vld [vmem:[#allocation16 + $0xf8] sm:$0xff]
    %v4095 = vld [vmem:[#allocation3] ss:$8 sm:$0xf]
    %v4096 = vld [vmem:[%s434] ss:$8 sm:$0xf]
    %v4129 = vunpack.c.l.b16 %v4063
    %v4130 = vunpack.c.h.b16 %v4063
    %v4131 = vunpack.c.l.b16 %v4064
    %v4132 = vunpack.c.h.b16 %v4064
    %v4133 = vunpack.c.l.b16 %v4065
    %v4134 = vunpack.c.h.b16 %v4065
    %v4135 = vunpack.c.l.b16 %v4066
    %v4136 = vunpack.c.h.b16 %v4066
    %v4137 = vunpack.c.l.b16 %v4067
    %v4138 = vunpack.c.h.b16 %v4067
    %v4139 = vunpack.c.l.b16 %v4068
    %v4140 = vunpack.c.h.b16 %v4068
    %v4141 = vunpack.c.l.b16 %v4069
    %v4142 = vunpack.c.h.b16 %v4069
    %v4143 = vunpack.c.l.b16 %v4070
    %v4144 = vunpack.c.h.b16 %v4070
    %v4145 = vunpack.c.l.b16 %v4071
    %v4146 = vunpack.c.h.b16 %v4071
    %v4147 = vunpack.c.l.b16 %v4072
    %v4148 = vunpack.c.h.b16 %v4072
    %v4149 = vunpack.c.l.b16 %v4073
    %v4150 = vunpack.c.h.b16 %v4073
    %v4151 = vunpack.c.l.b16 %v4074
    %v4152 = vunpack.c.h.b16 %v4074
    %v4153 = vunpack.c.l.b16 %v4075
    %v4154 = vunpack.c.h.b16 %v4075
    %v4155 = vunpack.c.l.b16 %v4076
    %v4156 = vunpack.c.h.b16 %v4076
    %v4157 = vunpack.c.l.b16 %v4077
    %v4158 = vunpack.c.h.b16 %v4077
    %v4159 = vunpack.c.l.b16 %v4078
    %v4160 = vunpack.c.h.b16 %v4078
    %v4161 = vunpack.c.l.b16 %v4079
    %v4162 = vunpack.c.h.b16 %v4079
    %v4163 = vunpack.c.l.b16 %v4080
    %v4164 = vunpack.c.h.b16 %v4080
    %v4165 = vunpack.c.l.b16 %v4081
    %v4166 = vunpack.c.h.b16 %v4081
    %v4167 = vunpack.c.l.b16 %v4082
    %v4168 = vunpack.c.h.b16 %v4082
    %v4169 = vunpack.c.l.b16 %v4083
    %v4170 = vunpack.c.h.b16 %v4083
    %v4171 = vunpack.c.l.b16 %v4084
    %v4172 = vunpack.c.h.b16 %v4084
    %v4173 = vunpack.c.l.b16 %v4085
    %v4174 = vunpack.c.h.b16 %v4085
    %v4175 = vunpack.c.l.b16 %v4086
    %v4176 = vunpack.c.h.b16 %v4086
    %v4177 = vunpack.c.l.b16 %v4087
    %v4178 = vunpack.c.h.b16 %v4087
    %v4179 = vunpack.c.l.b16 %v4088
    %v4180 = vunpack.c.h.b16 %v4088
    %v4181 = vunpack.c.l.b16 %v4089
    %v4182 = vunpack.c.h.b16 %v4089
    %v4183 = vunpack.c.l.b16 %v4090
    %v4184 = vunpack.c.h.b16 %v4090
    %v4185 = vunpack.c.l.b16 %v4091
    %v4186 = vunpack.c.h.b16 %v4091
    %v4187 = vunpack.c.l.b16 %v4092
    %v4188 = vunpack.c.h.b16 %v4092
    %v4189 = vunpack.c.l.b16 %v4093
    %v4190 = vunpack.c.h.b16 %v4093
    %v4191 = vunpack.c.l.b16 %v4094
    %v4192 = vunpack.c.h.b16 %v4094
    %v4193 = vpack.c.b16 %v4133, %v4129
    %v4194 = vpack.c.b16 %v4134, %v4130
    %v4195 = vpack.c.b16 %v4135, %v4131
    %v4196 = vpack.c.b16 %v4136, %v4132
    %v4197 = vpack.c.b16 %v4141, %v4137
    %v4198 = vpack.c.b16 %v4142, %v4138
    %v4199 = vpack.c.b16 %v4143, %v4139
    %v4200 = vpack.c.b16 %v4144, %v4140
    %v4201 = vpack.c.b16 %v4149, %v4145
    %v4202 = vpack.c.b16 %v4150, %v4146
    %v4203 = vpack.c.b16 %v4151, %v4147
    %v4204 = vpack.c.b16 %v4152, %v4148
    %v4205 = vpack.c.b16 %v4157, %v4153
    %v4206 = vpack.c.b16 %v4158, %v4154
    %v4207 = vpack.c.b16 %v4159, %v4155
    %v4208 = vpack.c.b16 %v4160, %v4156
    %v4209 = vpack.c.b16 %v4165, %v4161
    %v4210 = vpack.c.b16 %v4166, %v4162
    %v4211 = vpack.c.b16 %v4167, %v4163
    %v4212 = vpack.c.b16 %v4168, %v4164
    %v4213 = vpack.c.b16 %v4173, %v4169
    %v4214 = vpack.c.b16 %v4174, %v4170
    %v4215 = vpack.c.b16 %v4175, %v4171
    %v4216 = vpack.c.b16 %v4176, %v4172
    %v4217 = vpack.c.b16 %v4181, %v4177
    %v4218 = vpack.c.b16 %v4182, %v4178
    %v4219 = vpack.c.b16 %v4183, %v4179
    %v4220 = vpack.c.b16 %v4184, %v4180
    %v4221 = vpack.c.b16 %v4189, %v4185
    %v4222 = vpack.c.b16 %v4190, %v4186
    %v4223 = vpack.c.b16 %v4191, %v4187
    %v4224 = vpack.c.b16 %v4192, %v4188
    %v4259 = vcombine.low %v4095, %v4096
    %v4261 = vunpack.c.l.s4 1966171168
    %v4262 = vunpack.c.0.s8 %v4261
    %v4263 = vlaneseq
    %v4264 = vshrl.u32 %v4263, 7
    %v4265 = vsub.s32 %v4262, %v4264
    %v4266 = vrot.slane %v4259, %v4265
    %v4267 = vcombine.high %v4266, %v4266
    %v4269 = vunpack.c.l.s4 1966171168
    %v4270 = vunpack.c.0.s8 %v4269
    %v4271 = vlaneseq
    %v4272 = vshrl.u32 %v4271, 7
    %v4273 = vsub.s32 %v4270, %v4272
    %v4274 = vrot.slane %v4266, %v4273
    %v4276 = vunpack.c.l.s4 1966171168
    %v4277 = vunpack.c.0.s8 %v4276
    %v4278 = vlaneseq
    %v4279 = vshrl.u32 %v4278, 7
    %v4280 = vsub.s32 %v4277, %v4279
    %v4281 = vrot.slane %v4267, %v4280
    %v4282 = vcombine.high %v4274, %v4274
    %v4283 = vcombine.high %v4281, %v4281
    %4288 = vmatprep.subr.bf16.mxu0 %v4222
    %4289 = vmatpush1.bf16.msra.mxu0 %v4221
    %4290 = vmatprep.subr.bf16.mxu0 %v4218
    %4291 = vmatpush1.bf16.msra.mxu0 %v4217
    %4292 = vmatprep.subr.bf16.mxu0 %v4214
    %4293 = vmatpush1.bf16.msra.mxu0 %v4213
    %4294 = vmatprep.subr.bf16.mxu0 %v4210
    %4295 = vmatpush1.bf16.msra.mxu0 %v4209
    %4296 = vmatprep.subr.bf16.mxu0 %v4206
    %4297 = vmatpush1.bf16.msra.mxu0 %v4205
    %4298 = vmatprep.subr.bf16.mxu0 %v4202
    %4299 = vmatpush1.bf16.msra.mxu0 %v4201
    %4300 = vmatprep.subr.bf16.mxu0 %v4198
    %4301 = vmatpush1.bf16.msra.mxu0 %v4197
    %4302 = vmatprep.subr.bf16.mxu0 %v4194
    %4303 = vmatpush1.bf16.msra.mxu0 %v4193
    %4304 = vmatprep.subr.bf16.mxu0 0
    %4305 = vmatpush2.bf16.msra.mxu0 0
    %4306 = vmatprep.subr.bf16.mxu0 0
    %4307 = vmatpush2.bf16.msra.mxu0 0
    %4308 = vmatprep.subr.bf16.mxu0 0
    %4309 = vmatpush2.bf16.msra.mxu0 0
    %4310 = vmatprep.subr.bf16.mxu0 0
    %4311 = vmatpush2.bf16.msra.mxu0 0
    %4312 = vmatprep.subr.bf16.mxu0 0
    %4313 = vmatpush2.bf16.msra.mxu0 0
    %4314 = vmatprep.subr.bf16.mxu0 0
    %4315 = vmatpush2.bf16.msra.mxu0 0
    %4316 = vmatprep.subr.bf16.mxu0 0
    %4317 = vmatpush2.bf16.msra.mxu0 0
    %4318 = vmatprep.subr.bf16.mxu0 0
    %4319 = vmatpush2.bf16.msra.mxu0 0
    %4320 = vmatprep.mubr.bf16.mxu0 0
    %4321 = vmatmul.mubr.bf16.gmra.mxu0 %v4062
    %v4322 = vpop.f32.mrf.mxu0
    %v4323 = vadd.f32 %v4274, %v4322
    %v4324 = vpop.f32.mrf.mxu0
    %v4325 = vadd.f32 %v4281, %v4324
    %v4326 = vpop.f32.mrf.mxu0
    %v4327 = vpop.f32.mrf.mxu0
    %4328 = vdwg.mxu0
    %4329 = vmatprep.subr.bf16.mxu0 %v4224
    %4330 = vmatpush1.bf16.msra.mxu0 %v4223
    %4331 = vmatprep.subr.bf16.mxu0 %v4220
    %4332 = vmatpush1.bf16.msra.mxu0 %v4219
    %4333 = vmatprep.subr.bf16.mxu0 %v4216
    %4334 = vmatpush1.bf16.msra.mxu0 %v4215
    %4335 = vmatprep.subr.bf16.mxu0 %v4212
    %4336 = vmatpush1.bf16.msra.mxu0 %v4211
    %4337 = vmatprep.subr.bf16.mxu0 %v4208
    %4338 = vmatpush1.bf16.msra.mxu0 %v4207
    %4339 = vmatprep.subr.bf16.mxu0 %v4204
    %4340 = vmatpush1.bf16.msra.mxu0 %v4203
    %4341 = vmatprep.subr.bf16.mxu0 %v4200
    %4342 = vmatpush1.bf16.msra.mxu0 %v4199
    %4343 = vmatprep.subr.bf16.mxu0 %v4196
    %4344 = vmatpush1.bf16.msra.mxu0 %v4195
    %4345 = vmatprep.subr.bf16.mxu0 0
    %4346 = vmatpush2.bf16.msra.mxu0 0
    %4347 = vmatprep.subr.bf16.mxu0 0
    %4348 = vmatpush2.bf16.msra.mxu0 0
    %4349 = vmatprep.subr.bf16.mxu0 0
    %4350 = vmatpush2.bf16.msra.mxu0 0
    %4351 = vmatprep.subr.bf16.mxu0 0
    %4352 = vmatpush2.bf16.msra.mxu0 0
    %4353 = vmatprep.subr.bf16.mxu0 0
    %4354 = vmatpush2.bf16.msra.mxu0 0
    %4355 = vmatprep.subr.bf16.mxu0 0
    %4356 = vmatpush2.bf16.msra.mxu0 0
    %4357 = vmatprep.subr.bf16.mxu0 0
    %4358 = vmatpush2.bf16.msra.mxu0 0
    %4359 = vmatprep.subr.bf16.mxu0 0
    %4360 = vmatpush2.bf16.msra.mxu0 0
    %4361 = vmatprep.mubr.bf16.mxu0 0
    %4362 = vmatmul.mubr.bf16.gmra.mxu0 %v4062
    %v4363 = vpop.f32.mrf.mxu0
    %v4364 = vadd.f32 %v4282, %v4363
    %v4365 = vpop.f32.mrf.mxu0
    %v4366 = vadd.f32 %v4283, %v4365
    %v4367 = vpop.f32.mrf.mxu0
    %v4368 = vpop.f32.mrf.mxu0
    %4369 = vdwg.mxu0
    %v4370 = vxor.u32 %v4323, 2147483648
    %v4371 = vmul.f32 %v4370, 1.442695
    %v4372 = vpow.pop %v4371
    %v4373 = vadd.f32 %v4372, 1.0
    %v4374 = vrcp.pop %v4373
    %v4375 = vmul.f32 1.0, %v4374
    %v4376 = vxor.u32 %v4325, 2147483648
    %v4377 = vmul.f32 %v4376, 1.442695
    %v4378 = vpow.pop %v4377
    %v4379 = vadd.f32 %v4378, 1.0
    %v4380 = vrcp.pop %v4379
    %v4381 = vmul.f32 1.0, %v4380
    %v4382 = vtanh.pop %v4364
    %v4383 = vxor.u32 %v4366, 2147483648
    %v4384 = vmul.f32 %v4383, 1.442695
    %v4385 = vpow.pop %v4384
    %v4386 = vadd.f32 %v4385, 1.0
    %v4387 = vrcp.pop %v4386
    %v4388 = vmul.f32 1.0, %v4387
    %v4389 = vld [vmem:[#allocation7] sm:$0x3]
    %v4390 = vmul.f32 %v4381, %v4389
    %v4391 = vmul.f32 %v4375, %v4382
    %v4392 = vadd.f32 %v4390, %v4391
    %v4393 = vtanh.pop %v4392
    %v4394 = vmul.f32 %v4388, %v4393
    %4395 = vst [vmem:[#allocation7] sm:$0x3] %v4392
    %4396 = vst [vmem:[#allocation6] sm:$0x3] %v4394
    %v4397 = vld [vmem:[#allocation6] sm:$0x3]
    %v4398 = vpack.c.bf16 %v4397, %v4397
    %v4399 = vld [vmem:[#allocation16] sm:$0xff]
    %v4400 = vld [vmem:[#allocation16 + $0x8] sm:$0xff]
    %v4401 = vld [vmem:[#allocation16 + $0x10] sm:$0xff]
    %v4402 = vld [vmem:[#allocation16 + $0x18] sm:$0xff]
    %v4403 = vld [vmem:[#allocation16 + $0x20] sm:$0xff]
    %v4404 = vld [vmem:[#allocation16 + $0x28] sm:$0xff]
    %v4405 = vld [vmem:[#allocation16 + $0x30] sm:$0xff]
    %v4406 = vld [vmem:[#allocation16 + $0x38] sm:$0xff]
    %v4407 = vld [vmem:[#allocation16 + $0x40] sm:$0xff]
    %v4408 = vld [vmem:[#allocation16 + $0x48] sm:$0xff]
    %v4409 = vld [vmem:[#allocation16 + $0x50] sm:$0xff]
    %v4410 = vld [vmem:[#allocation16 + $0x58] sm:$0xff]
    %v4411 = vld [vmem:[#allocation16 + $0x60] sm:$0xff]
    %v4412 = vld [vmem:[#allocation16 + $0x68] sm:$0xff]
    %v4413 = vld [vmem:[#allocation16 + $0x70] sm:$0xff]
    %v4414 = vld [vmem:[#allocation16 + $0x78] sm:$0xff]
    %v4415 = vld [vmem:[#allocation16 + $0x80] sm:$0xff]
    %v4416 = vld [vmem:[#allocation16 + $0x88] sm:$0xff]
    %v4417 = vld [vmem:[#allocation16 + $0x90] sm:$0xff]
    %v4418 = vld [vmem:[#allocation16 + $0x98] sm:$0xff]
    %v4419 = vld [vmem:[#allocation16 + $0xa0] sm:$0xff]
    %v4420 = vld [vmem:[#allocation16 + $0xa8] sm:$0xff]
    %v4421 = vld [vmem:[#allocation16 + $0xb0] sm:$0xff]
    %v4422 = vld [vmem:[#allocation16 + $0xb8] sm:$0xff]
    %v4423 = vld [vmem:[#allocation16 + $0xc0] sm:$0xff]
    %v4424 = vld [vmem:[#allocation16 + $0xc8] sm:$0xff]
    %v4425 = vld [vmem:[#allocation16 + $0xd0] sm:$0xff]
    %v4426 = vld [vmem:[#allocation16 + $0xd8] sm:$0xff]
    %v4427 = vld [vmem:[#allocation16 + $0xe0] sm:$0xff]
    %v4428 = vld [vmem:[#allocation16 + $0xe8] sm:$0xff]
    %v4429 = vld [vmem:[#allocation16 + $0xf0] sm:$0xff]
    %v4430 = vld [vmem:[#allocation16 + $0xf8] sm:$0xff]
    %v4431 = vld [vmem:[%s815] ss:$8 sm:$0xf]
    %v4432 = vld [vmem:[%s817] ss:$8 sm:$0xf]
    %v4465 = vunpack.c.l.b16 %v4399
    %v4466 = vunpack.c.h.b16 %v4399
    %v4467 = vunpack.c.l.b16 %v4400
    %v4468 = vunpack.c.h.b16 %v4400
    %v4469 = vunpack.c.l.b16 %v4401
    %v4470 = vunpack.c.h.b16 %v4401
    %v4471 = vunpack.c.l.b16 %v4402
    %v4472 = vunpack.c.h.b16 %v4402
    %v4473 = vunpack.c.l.b16 %v4403
    %v4474 = vunpack.c.h.b16 %v4403
    %v4475 = vunpack.c.l.b16 %v4404
    %v4476 = vunpack.c.h.b16 %v4404
    %v4477 = vunpack.c.l.b16 %v4405
    %v4478 = vunpack.c.h.b16 %v4405
    %v4479 = vunpack.c.l.b16 %v4406
    %v4480 = vunpack.c.h.b16 %v4406
    %v4481 = vunpack.c.l.b16 %v4407
    %v4482 = vunpack.c.h.b16 %v4407
    %v4483 = vunpack.c.l.b16 %v4408
    %v4484 = vunpack.c.h.b16 %v4408
    %v4485 = vunpack.c.l.b16 %v4409
    %v4486 = vunpack.c.h.b16 %v4409
    %v4487 = vunpack.c.l.b16 %v4410
    %v4488 = vunpack.c.h.b16 %v4410
    %v4489 = vunpack.c.l.b16 %v4411
    %v4490 = vunpack.c.h.b16 %v4411
    %v4491 = vunpack.c.l.b16 %v4412
    %v4492 = vunpack.c.h.b16 %v4412
    %v4493 = vunpack.c.l.b16 %v4413
    %v4494 = vunpack.c.h.b16 %v4413
    %v4495 = vunpack.c.l.b16 %v4414
    %v4496 = vunpack.c.h.b16 %v4414
    %v4497 = vunpack.c.l.b16 %v4415
    %v4498 = vunpack.c.h.b16 %v4415
    %v4499 = vunpack.c.l.b16 %v4416
    %v4500 = vunpack.c.h.b16 %v4416
    %v4501 = vunpack.c.l.b16 %v4417
    %v4502 = vunpack.c.h.b16 %v4417
    %v4503 = vunpack.c.l.b16 %v4418
    %v4504 = vunpack.c.h.b16 %v4418
    %v4505 = vunpack.c.l.b16 %v4419
    %v4506 = vunpack.c.h.b16 %v4419
    %v4507 = vunpack.c.l.b16 %v4420
    %v4508 = vunpack.c.h.b16 %v4420
    %v4509 = vunpack.c.l.b16 %v4421
    %v4510 = vunpack.c.h.b16 %v4421
    %v4511 = vunpack.c.l.b16 %v4422
    %v4512 = vunpack.c.h.b16 %v4422
    %v4513 = vunpack.c.l.b16 %v4423
    %v4514 = vunpack.c.h.b16 %v4423
    %v4515 = vunpack.c.l.b16 %v4424
    %v4516 = vunpack.c.h.b16 %v4424
    %v4517 = vunpack.c.l.b16 %v4425
    %v4518 = vunpack.c.h.b16 %v4425
    %v4519 = vunpack.c.l.b16 %v4426
    %v4520 = vunpack.c.h.b16 %v4426
    %v4521 = vunpack.c.l.b16 %v4427
    %v4522 = vunpack.c.h.b16 %v4427
    %v4523 = vunpack.c.l.b16 %v4428
    %v4524 = vunpack.c.h.b16 %v4428
    %v4525 = vunpack.c.l.b16 %v4429
    %v4526 = vunpack.c.h.b16 %v4429
    %v4527 = vunpack.c.l.b16 %v4430
    %v4528 = vunpack.c.h.b16 %v4430
    %v4529 = vpack.c.b16 %v4469, %v4465
    %v4530 = vpack.c.b16 %v4470, %v4466
    %v4531 = vpack.c.b16 %v4471, %v4467
    %v4532 = vpack.c.b16 %v4472, %v4468
    %v4533 = vpack.c.b16 %v4477, %v4473
    %v4534 = vpack.c.b16 %v4478, %v4474
    %v4535 = vpack.c.b16 %v4479, %v4475
    %v4536 = vpack.c.b16 %v4480, %v4476
    %v4537 = vpack.c.b16 %v4485, %v4481
    %v4538 = vpack.c.b16 %v4486, %v4482
    %v4539 = vpack.c.b16 %v4487, %v4483
    %v4540 = vpack.c.b16 %v4488, %v4484
    %v4541 = vpack.c.b16 %v4493, %v4489
    %v4542 = vpack.c.b16 %v4494, %v4490
    %v4543 = vpack.c.b16 %v4495, %v4491
    %v4544 = vpack.c.b16 %v4496, %v4492
    %v4545 = vpack.c.b16 %v4501, %v4497
    %v4546 = vpack.c.b16 %v4502, %v4498
    %v4547 = vpack.c.b16 %v4503, %v4499
    %v4548 = vpack.c.b16 %v4504, %v4500
    %v4549 = vpack.c.b16 %v4509, %v4505
    %v4550 = vpack.c.b16 %v4510, %v4506
    %v4551 = vpack.c.b16 %v4511, %v4507
    %v4552 = vpack.c.b16 %v4512, %v4508
    %v4553 = vpack.c.b16 %v4517, %v4513
    %v4554 = vpack.c.b16 %v4518, %v4514
    %v4555 = vpack.c.b16 %v4519, %v4515
    %v4556 = vpack.c.b16 %v4520, %v4516
    %v4557 = vpack.c.b16 %v4525, %v4521
    %v4558 = vpack.c.b16 %v4526, %v4522
    %v4559 = vpack.c.b16 %v4527, %v4523
    %v4560 = vpack.c.b16 %v4528, %v4524
    %v4595 = vcombine.low %v4431, %v4432
    %v4597 = vunpack.c.l.s4 1966171168
    %v4598 = vunpack.c.0.s8 %v4597
    %v4599 = vlaneseq
    %v4600 = vshrl.u32 %v4599, 7
    %v4601 = vsub.s32 %v4598, %v4600
    %v4602 = vrot.slane %v4595, %v4601
    %v4603 = vcombine.high %v4602, %v4602
    %v4605 = vunpack.c.l.s4 1966171168
    %v4606 = vunpack.c.0.s8 %v4605
    %v4607 = vlaneseq
    %v4608 = vshrl.u32 %v4607, 7
    %v4609 = vsub.s32 %v4606, %v4608
    %v4610 = vrot.slane %v4602, %v4609
    %v4612 = vunpack.c.l.s4 1966171168
    %v4613 = vunpack.c.0.s8 %v4612
    %v4614 = vlaneseq
    %v4615 = vshrl.u32 %v4614, 7
    %v4616 = vsub.s32 %v4613, %v4615
    %v4617 = vrot.slane %v4603, %v4616
    %v4618 = vcombine.high %v4610, %v4610
    %v4619 = vcombine.high %v4617, %v4617
    %4624 = vmatprep.subr.bf16.mxu0 %v4558
    %4625 = vmatpush1.bf16.msra.mxu0 %v4557
    %4626 = vmatprep.subr.bf16.mxu0 %v4554
    %4627 = vmatpush1.bf16.msra.mxu0 %v4553
    %4628 = vmatprep.subr.bf16.mxu0 %v4550
    %4629 = vmatpush1.bf16.msra.mxu0 %v4549
    %4630 = vmatprep.subr.bf16.mxu0 %v4546
    %4631 = vmatpush1.bf16.msra.mxu0 %v4545
    %4632 = vmatprep.subr.bf16.mxu0 %v4542
    %4633 = vmatpush1.bf16.msra.mxu0 %v4541
    %4634 = vmatprep.subr.bf16.mxu0 %v4538
    %4635 = vmatpush1.bf16.msra.mxu0 %v4537
    %4636 = vmatprep.subr.bf16.mxu0 %v4534
    %4637 = vmatpush1.bf16.msra.mxu0 %v4533
    %4638 = vmatprep.subr.bf16.mxu0 %v4530
    %4639 = vmatpush1.bf16.msra.mxu0 %v4529
    %4640 = vmatprep.subr.bf16.mxu0 0
    %4641 = vmatpush2.bf16.msra.mxu0 0
    %4642 = vmatprep.subr.bf16.mxu0 0
    %4643 = vmatpush2.bf16.msra.mxu0 0
    %4644 = vmatprep.subr.bf16.mxu0 0
    %4645 = vmatpush2.bf16.msra.mxu0 0
    %4646 = vmatprep.subr.bf16.mxu0 0
    %4647 = vmatpush2.bf16.msra.mxu0 0
    %4648 = vmatprep.subr.bf16.mxu0 0
    %4649 = vmatpush2.bf16.msra.mxu0 0
    %4650 = vmatprep.subr.bf16.mxu0 0
    %4651 = vmatpush2.bf16.msra.mxu0 0
    %4652 = vmatprep.subr.bf16.mxu0 0
    %4653 = vmatpush2.bf16.msra.mxu0 0
    %4654 = vmatprep.subr.bf16.mxu0 0
    %4655 = vmatpush2.bf16.msra.mxu0 0
    %4656 = vmatprep.mubr.bf16.mxu0 0
    %4657 = vmatmul.mubr.bf16.gmra.mxu0 %v4398
    %v4658 = vpop.f32.mrf.mxu0
    %v4659 = vadd.f32 %v4610, %v4658
    %v4660 = vpop.f32.mrf.mxu0
    %v4661 = vadd.f32 %v4617, %v4660
    %v4662 = vpop.f32.mrf.mxu0
    %v4663 = vpop.f32.mrf.mxu0
    %4664 = vdwg.mxu0
    %4665 = vmatprep.subr.bf16.mxu0 %v4560
    %4666 = vmatpush1.bf16.msra.mxu0 %v4559
    %4667 = vmatprep.subr.bf16.mxu0 %v4556
    %4668 = vmatpush1.bf16.msra.mxu0 %v4555
    %4669 = vmatprep.subr.bf16.mxu0 %v4552
    %4670 = vmatpush1.bf16.msra.mxu0 %v4551
    %4671 = vmatprep.subr.bf16.mxu0 %v4548
    %4672 = vmatpush1.bf16.msra.mxu0 %v4547
    %4673 = vmatprep.subr.bf16.mxu0 %v4544
    %4674 = vmatpush1.bf16.msra.mxu0 %v4543
    %4675 = vmatprep.subr.bf16.mxu0 %v4540
    %4676 = vmatpush1.bf16.msra.mxu0 %v4539
    %4677 = vmatprep.subr.bf16.mxu0 %v4536
    %4678 = vmatpush1.bf16.msra.mxu0 %v4535
    %4679 = vmatprep.subr.bf16.mxu0 %v4532
    %4680 = vmatpush1.bf16.msra.mxu0 %v4531
    %4681 = vmatprep.subr.bf16.mxu0 0
    %4682 = vmatpush2.bf16.msra.mxu0 0
    %4683 = vmatprep.subr.bf16.mxu0 0
    %4684 = vmatpush2.bf16.msra.mxu0 0
    %4685 = vmatprep.subr.bf16.mxu0 0
    %4686 = vmatpush2.bf16.msra.mxu0 0
    %4687 = vmatprep.subr.bf16.mxu0 0
    %4688 = vmatpush2.bf16.msra.mxu0 0
    %4689 = vmatprep.subr.bf16.mxu0 0
    %4690 = vmatpush2.bf16.msra.mxu0 0
    %4691 = vmatprep.subr.bf16.mxu0 0
    %4692 = vmatpush2.bf16.msra.mxu0 0
    %4693 = vmatprep.subr.bf16.mxu0 0
    %4694 = vmatpush2.bf16.msra.mxu0 0
    %4695 = vmatprep.subr.bf16.mxu0 0
    %4696 = vmatpush2.bf16.msra.mxu0 0
    %4697 = vmatprep.mubr.bf16.mxu0 0
    %4698 = vmatmul.mubr.bf16.gmra.mxu0 %v4398
    %v4699 = vpop.f32.mrf.mxu0
    %v4700 = vadd.f32 %v4618, %v4699
    %v4701 = vpop.f32.mrf.mxu0
    %v4702 = vadd.f32 %v4619, %v4701
    %v4703 = vpop.f32.mrf.mxu0
    %v4704 = vpop.f32.mrf.mxu0
    %4705 = vdwg.mxu0
    %v4706 = vxor.u32 %v4659, 2147483648
    %v4707 = vmul.f32 %v4706, 1.442695
    %v4708 = vpow.pop %v4707
    %v4709 = vadd.f32 %v4708, 1.0
    %v4710 = vrcp.pop %v4709
    %v4711 = vmul.f32 1.0, %v4710
    %v4712 = vxor.u32 %v4661, 2147483648
    %v4713 = vmul.f32 %v4712, 1.442695
    %v4714 = vpow.pop %v4713
    %v4715 = vadd.f32 %v4714, 1.0
    %v4716 = vrcp.pop %v4715
    %v4717 = vmul.f32 1.0, %v4716
    %v4718 = vtanh.pop %v4700
    %v4719 = vxor.u32 %v4702, 2147483648
    %v4720 = vmul.f32 %v4719, 1.442695
    %v4721 = vpow.pop %v4720
    %v4722 = vadd.f32 %v4721, 1.0
    %v4723 = vrcp.pop %v4722
    %v4724 = vmul.f32 1.0, %v4723
    %v4725 = vld [vmem:[#allocation7] sm:$0x3]
    %v4726 = vmul.f32 %v4717, %v4725
    %v4727 = vmul.f32 %v4711, %v4718
    %v4728 = vadd.f32 %v4726, %v4727
    %v4729 = vtanh.pop %v4728
    %v4730 = vmul.f32 %v4724, %v4729
    %4731 = vst [vmem:[#allocation7] sm:$0x3] %v4728
    %4732 = vst [vmem:[#allocation6] sm:$0x3] %v4730
    %v4733 = vld [vmem:[#allocation6] sm:$0x3]
    %v4734 = vpack.c.bf16 %v4733, %v4733
    %v4735 = vld [vmem:[#allocation16] sm:$0xff]
    %v4736 = vld [vmem:[#allocation16 + $0x8] sm:$0xff]
    %v4737 = vld [vmem:[#allocation16 + $0x10] sm:$0xff]
    %v4738 = vld [vmem:[#allocation16 + $0x18] sm:$0xff]
    %v4739 = vld [vmem:[#allocation16 + $0x20] sm:$0xff]
    %v4740 = vld [vmem:[#allocation16 + $0x28] sm:$0xff]
    %v4741 = vld [vmem:[#allocation16 + $0x30] sm:$0xff]
    %v4742 = vld [vmem:[#allocation16 + $0x38] sm:$0xff]
    %v4743 = vld [vmem:[#allocation16 + $0x40] sm:$0xff]
    %v4744 = vld [vmem:[#allocation16 + $0x48] sm:$0xff]
    %v4745 = vld [vmem:[#allocation16 + $0x50] sm:$0xff]
    %v4746 = vld [vmem:[#allocation16 + $0x58] sm:$0xff]
    %v4747 = vld [vmem:[#allocation16 + $0x60] sm:$0xff]
    %v4748 = vld [vmem:[#allocation16 + $0x68] sm:$0xff]
    %v4749 = vld [vmem:[#allocation16 + $0x70] sm:$0xff]
    %v4750 = vld [vmem:[#allocation16 + $0x78] sm:$0xff]
    %v4751 = vld [vmem:[#allocation16 + $0x80] sm:$0xff]
    %v4752 = vld [vmem:[#allocation16 + $0x88] sm:$0xff]
    %v4753 = vld [vmem:[#allocation16 + $0x90] sm:$0xff]
    %v4754 = vld [vmem:[#allocation16 + $0x98] sm:$0xff]
    %v4755 = vld [vmem:[#allocation16 + $0xa0] sm:$0xff]
    %v4756 = vld [vmem:[#allocation16 + $0xa8] sm:$0xff]
    %v4757 = vld [vmem:[#allocation16 + $0xb0] sm:$0xff]
    %v4758 = vld [vmem:[#allocation16 + $0xb8] sm:$0xff]
    %v4759 = vld [vmem:[#allocation16 + $0xc0] sm:$0xff]
    %v4760 = vld [vmem:[#allocation16 + $0xc8] sm:$0xff]
    %v4761 = vld [vmem:[#allocation16 + $0xd0] sm:$0xff]
    %v4762 = vld [vmem:[#allocation16 + $0xd8] sm:$0xff]
    %v4763 = vld [vmem:[#allocation16 + $0xe0] sm:$0xff]
    %v4764 = vld [vmem:[#allocation16 + $0xe8] sm:$0xff]
    %v4765 = vld [vmem:[#allocation16 + $0xf0] sm:$0xff]
    %v4766 = vld [vmem:[#allocation16 + $0xf8] sm:$0xff]
    %v4767 = vld [vmem:[%s1197] ss:$8 sm:$0xf]
    %v4768 = vld [vmem:[%s1199] ss:$8 sm:$0xf]
    %v4801 = vunpack.c.l.b16 %v4735
    %v4802 = vunpack.c.h.b16 %v4735
    %v4803 = vunpack.c.l.b16 %v4736
    %v4804 = vunpack.c.h.b16 %v4736
    %v4805 = vunpack.c.l.b16 %v4737
    %v4806 = vunpack.c.h.b16 %v4737
    %v4807 = vunpack.c.l.b16 %v4738
    %v4808 = vunpack.c.h.b16 %v4738
    %v4809 = vunpack.c.l.b16 %v4739
    %v4810 = vunpack.c.h.b16 %v4739
    %v4811 = vunpack.c.l.b16 %v4740
    %v4812 = vunpack.c.h.b16 %v4740
    %v4813 = vunpack.c.l.b16 %v4741
    %v4814 = vunpack.c.h.b16 %v4741
    %v4815 = vunpack.c.l.b16 %v4742
    %v4816 = vunpack.c.h.b16 %v4742
    %v4817 = vunpack.c.l.b16 %v4743
    %v4818 = vunpack.c.h.b16 %v4743
    %v4819 = vunpack.c.l.b16 %v4744
    %v4820 = vunpack.c.h.b16 %v4744
    %v4821 = vunpack.c.l.b16 %v4745
    %v4822 = vunpack.c.h.b16 %v4745
    %v4823 = vunpack.c.l.b16 %v4746
    %v4824 = vunpack.c.h.b16 %v4746
    %v4825 = vunpack.c.l.b16 %v4747
    %v4826 = vunpack.c.h.b16 %v4747
    %v4827 = vunpack.c.l.b16 %v4748
    %v4828 = vunpack.c.h.b16 %v4748
    %v4829 = vunpack.c.l.b16 %v4749
    %v4830 = vunpack.c.h.b16 %v4749
    %v4831 = vunpack.c.l.b16 %v4750
    %v4832 = vunpack.c.h.b16 %v4750
    %v4833 = vunpack.c.l.b16 %v4751
    %v4834 = vunpack.c.h.b16 %v4751
    %v4835 = vunpack.c.l.b16 %v4752
    %v4836 = vunpack.c.h.b16 %v4752
    %v4837 = vunpack.c.l.b16 %v4753
    %v4838 = vunpack.c.h.b16 %v4753
    %v4839 = vunpack.c.l.b16 %v4754
    %v4840 = vunpack.c.h.b16 %v4754
    %v4841 = vunpack.c.l.b16 %v4755
    %v4842 = vunpack.c.h.b16 %v4755
    %v4843 = vunpack.c.l.b16 %v4756
    %v4844 = vunpack.c.h.b16 %v4756
    %v4845 = vunpack.c.l.b16 %v4757
    %v4846 = vunpack.c.h.b16 %v4757
    %v4847 = vunpack.c.l.b16 %v4758
    %v4848 = vunpack.c.h.b16 %v4758
    %v4849 = vunpack.c.l.b16 %v4759
    %v4850 = vunpack.c.h.b16 %v4759
    %v4851 = vunpack.c.l.b16 %v4760
    %v4852 = vunpack.c.h.b16 %v4760
    %v4853 = vunpack.c.l.b16 %v4761
    %v4854 = vunpack.c.h.b16 %v4761
    %v4855 = vunpack.c.l.b16 %v4762
    %v4856 = vunpack.c.h.b16 %v4762
    %v4857 = vunpack.c.l.b16 %v4763
    %v4858 = vunpack.c.h.b16 %v4763
    %v4859 = vunpack.c.l.b16 %v4764
    %v4860 = vunpack.c.h.b16 %v4764
    %v4861 = vunpack.c.l.b16 %v4765
    %v4862 = vunpack.c.h.b16 %v4765
    %v4863 = vunpack.c.l.b16 %v4766
    %v4864 = vunpack.c.h.b16 %v4766
    %v4865 = vpack.c.b16 %v4805, %v4801
    %v4866 = vpack.c.b16 %v4806, %v4802
    %v4867 = vpack.c.b16 %v4807, %v4803
    %v4868 = vpack.c.b16 %v4808, %v4804
    %v4869 = vpack.c.b16 %v4813, %v4809
    %v4870 = vpack.c.b16 %v4814, %v4810
    %v4871 = vpack.c.b16 %v4815, %v4811
    %v4872 = vpack.c.b16 %v4816, %v4812
    %v4873 = vpack.c.b16 %v4821, %v4817
    %v4874 = vpack.c.b16 %v4822, %v4818
    %v4875 = vpack.c.b16 %v4823, %v4819
    %v4876 = vpack.c.b16 %v4824, %v4820
    %v4877 = vpack.c.b16 %v4829, %v4825
    %v4878 = vpack.c.b16 %v4830, %v4826
    %v4879 = vpack.c.b16 %v4831, %v4827
    %v4880 = vpack.c.b16 %v4832, %v4828
    %v4881 = vpack.c.b16 %v4837, %v4833
    %v4882 = vpack.c.b16 %v4838, %v4834
    %v4883 = vpack.c.b16 %v4839, %v4835
    %v4884 = vpack.c.b16 %v4840, %v4836
    %v4885 = vpack.c.b16 %v4845, %v4841
    %v4886 = vpack.c.b16 %v4846, %v4842
    %v4887 = vpack.c.b16 %v4847, %v4843
    %v4888 = vpack.c.b16 %v4848, %v4844
    %v4889 = vpack.c.b16 %v4853, %v4849
    %v4890 = vpack.c.b16 %v4854, %v4850
    %v4891 = vpack.c.b16 %v4855, %v4851
    %v4892 = vpack.c.b16 %v4856, %v4852
    %v4893 = vpack.c.b16 %v4861, %v4857
    %v4894 = vpack.c.b16 %v4862, %v4858
    %v4895 = vpack.c.b16 %v4863, %v4859
    %v4896 = vpack.c.b16 %v4864, %v4860
    %v4931 = vcombine.low %v4767, %v4768
    %v4933 = vunpack.c.l.s4 1966171168
    %v4934 = vunpack.c.0.s8 %v4933
    %v4935 = vlaneseq
    %v4936 = vshrl.u32 %v4935, 7
    %v4937 = vsub.s32 %v4934, %v4936
    %v4938 = vrot.slane %v4931, %v4937
    %v4939 = vcombine.high %v4938, %v4938
    %v4941 = vunpack.c.l.s4 1966171168
    %v4942 = vunpack.c.0.s8 %v4941
    %v4943 = vlaneseq
    %v4944 = vshrl.u32 %v4943, 7
    %v4945 = vsub.s32 %v4942, %v4944
    %v4946 = vrot.slane %v4938, %v4945
    %v4948 = vunpack.c.l.s4 1966171168
    %v4949 = vunpack.c.0.s8 %v4948
    %v4950 = vlaneseq
    %v4951 = vshrl.u32 %v4950, 7
    %v4952 = vsub.s32 %v4949, %v4951
    %v4953 = vrot.slane %v4939, %v4952
    %v4954 = vcombine.high %v4946, %v4946
    %v4955 = vcombine.high %v4953, %v4953
    %4960 = vmatprep.subr.bf16.mxu0 %v4894
    %4961 = vmatpush1.bf16.msra.mxu0 %v4893
    %4962 = vmatprep.subr.bf16.mxu0 %v4890
    %4963 = vmatpush1.bf16.msra.mxu0 %v4889
    %4964 = vmatprep.subr.bf16.mxu0 %v4886
    %4965 = vmatpush1.bf16.msra.mxu0 %v4885
    %4966 = vmatprep.subr.bf16.mxu0 %v4882
    %4967 = vmatpush1.bf16.msra.mxu0 %v4881
    %4968 = vmatprep.subr.bf16.mxu0 %v4878
    %4969 = vmatpush1.bf16.msra.mxu0 %v4877
    %4970 = vmatprep.subr.bf16.mxu0 %v4874
    %4971 = vmatpush1.bf16.msra.mxu0 %v4873
    %4972 = vmatprep.subr.bf16.mxu0 %v4870
    %4973 = vmatpush1.bf16.msra.mxu0 %v4869
    %4974 = vmatprep.subr.bf16.mxu0 %v4866
    %4975 = vmatpush1.bf16.msra.mxu0 %v4865
    %4976 = vmatprep.subr.bf16.mxu0 0
    %4977 = vmatpush2.bf16.msra.mxu0 0
    %4978 = vmatprep.subr.bf16.mxu0 0
    %4979 = vmatpush2.bf16.msra.mxu0 0
    %4980 = vmatprep.subr.bf16.mxu0 0
    %4981 = vmatpush2.bf16.msra.mxu0 0
    %4982 = vmatprep.subr.bf16.mxu0 0
    %4983 = vmatpush2.bf16.msra.mxu0 0
    %4984 = vmatprep.subr.bf16.mxu0 0
    %4985 = vmatpush2.bf16.msra.mxu0 0
    %4986 = vmatprep.subr.bf16.mxu0 0
    %4987 = vmatpush2.bf16.msra.mxu0 0
    %4988 = vmatprep.subr.bf16.mxu0 0
    %4989 = vmatpush2.bf16.msra.mxu0 0
    %4990 = vmatprep.subr.bf16.mxu0 0
    %4991 = vmatpush2.bf16.msra.mxu0 0
    %4992 = vmatprep.mubr.bf16.mxu0 0
    %4993 = vmatmul.mubr.bf16.gmra.mxu0 %v4734
    %v4994 = vpop.f32.mrf.mxu0
    %v4995 = vadd.f32 %v4946, %v4994
    %v4996 = vpop.f32.mrf.mxu0
    %v4997 = vadd.f32 %v4953, %v4996
    %v4998 = vpop.f32.mrf.mxu0
    %v4999 = vpop.f32.mrf.mxu0
    %5000 = vdwg.mxu0
    %5001 = vmatprep.subr.bf16.mxu0 %v4896
    %5002 = vmatpush1.bf16.msra.mxu0 %v4895
    %5003 = vmatprep.subr.bf16.mxu0 %v4892
    %5004 = vmatpush1.bf16.msra.mxu0 %v4891
    %5005 = vmatprep.subr.bf16.mxu0 %v4888
    %5006 = vmatpush1.bf16.msra.mxu0 %v4887
    %5007 = vmatprep.subr.bf16.mxu0 %v4884
    %5008 = vmatpush1.bf16.msra.mxu0 %v4883
    %5009 = vmatprep.subr.bf16.mxu0 %v4880
    %5010 = vmatpush1.bf16.msra.mxu0 %v4879
    %5011 = vmatprep.subr.bf16.mxu0 %v4876
    %5012 = vmatpush1.bf16.msra.mxu0 %v4875
    %5013 = vmatprep.subr.bf16.mxu0 %v4872
    %5014 = vmatpush1.bf16.msra.mxu0 %v4871
    %5015 = vmatprep.subr.bf16.mxu0 %v4868
    %5016 = vmatpush1.bf16.msra.mxu0 %v4867
    %5017 = vmatprep.subr.bf16.mxu0 0
    %5018 = vmatpush2.bf16.msra.mxu0 0
    %5019 = vmatprep.subr.bf16.mxu0 0
    %5020 = vmatpush2.bf16.msra.mxu0 0
    %5021 = vmatprep.subr.bf16.mxu0 0
    %5022 = vmatpush2.bf16.msra.mxu0 0
    %5023 = vmatprep.subr.bf16.mxu0 0
    %5024 = vmatpush2.bf16.msra.mxu0 0
    %5025 = vmatprep.subr.bf16.mxu0 0
    %5026 = vmatpush2.bf16.msra.mxu0 0
    %5027 = vmatprep.subr.bf16.mxu0 0
    %5028 = vmatpush2.bf16.msra.mxu0 0
    %5029 = vmatprep.subr.bf16.mxu0 0
    %5030 = vmatpush2.bf16.msra.mxu0 0
    %5031 = vmatprep.subr.bf16.mxu0 0
    %5032 = vmatpush2.bf16.msra.mxu0 0
    %5033 = vmatprep.mubr.bf16.mxu0 0
    %5034 = vmatmul.mubr.bf16.gmra.mxu0 %v4734
    %v5035 = vpop.f32.mrf.mxu0
    %v5036 = vadd.f32 %v4954, %v5035
    %v5037 = vpop.f32.mrf.mxu0
    %v5038 = vadd.f32 %v4955, %v5037
    %v5039 = vpop.f32.mrf.mxu0
    %v5040 = vpop.f32.mrf.mxu0
    %5041 = vdwg.mxu0
    %v5042 = vxor.u32 %v4995, 2147483648
    %v5043 = vmul.f32 %v5042, 1.442695
    %v5044 = vpow.pop %v5043
    %v5045 = vadd.f32 %v5044, 1.0
    %v5046 = vrcp.pop %v5045
    %v5047 = vmul.f32 1.0, %v5046
    %v5048 = vxor.u32 %v4997, 2147483648
    %v5049 = vmul.f32 %v5048, 1.442695
    %v5050 = vpow.pop %v5049
    %v5051 = vadd.f32 %v5050, 1.0
    %v5052 = vrcp.pop %v5051
    %v5053 = vmul.f32 1.0, %v5052
    %v5054 = vtanh.pop %v5036
    %v5055 = vxor.u32 %v5038, 2147483648
    %v5056 = vmul.f32 %v5055, 1.442695
    %v5057 = vpow.pop %v5056
    %v5058 = vadd.f32 %v5057, 1.0
    %v5059 = vrcp.pop %v5058
    %v5060 = vmul.f32 1.0, %v5059
    %v5061 = vld [vmem:[#allocation7] sm:$0x3]
    %v5062 = vmul.f32 %v5053, %v5061
    %v5063 = vmul.f32 %v5047, %v5054
    %v5064 = vadd.f32 %v5062, %v5063
    %v5065 = vtanh.pop %v5064
    %v5066 = vmul.f32 %v5060, %v5065
    %5067 = vst [vmem:[#allocation7] sm:$0x3] %v5064
    %5068 = vst [vmem:[#allocation6] sm:$0x3] %v5066
    %v5069 = vld [vmem:[#allocation6] sm:$0x3]
    %v5070 = vpack.c.bf16 %v5069, %v5069
    %v5071 = vld [vmem:[#allocation16] sm:$0xff]
    %v5072 = vld [vmem:[#allocation16 + $0x8] sm:$0xff]
    %v5073 = vld [vmem:[#allocation16 + $0x10] sm:$0xff]
    %v5074 = vld [vmem:[#allocation16 + $0x18] sm:$0xff]
    %v5075 = vld [vmem:[#allocation16 + $0x20] sm:$0xff]
    %v5076 = vld [vmem:[#allocation16 + $0x28] sm:$0xff]
    %v5077 = vld [vmem:[#allocation16 + $0x30] sm:$0xff]
    %v5078 = vld [vmem:[#allocation16 + $0x38] sm:$0xff]
    %v5079 = vld [vmem:[#allocation16 + $0x40] sm:$0xff]
    %v5080 = vld [vmem:[#allocation16 + $0x48] sm:$0xff]
    %v5081 = vld [vmem:[#allocation16 + $0x50] sm:$0xff]
    %v5082 = vld [vmem:[#allocation16 + $0x58] sm:$0xff]
    %v5083 = vld [vmem:[#allocation16 + $0x60] sm:$0xff]
    %v5084 = vld [vmem:[#allocation16 + $0x68] sm:$0xff]
    %v5085 = vld [vmem:[#allocation16 + $0x70] sm:$0xff]
    %v5086 = vld [vmem:[#allocation16 + $0x78] sm:$0xff]
    %v5087 = vld [vmem:[#allocation16 + $0x80] sm:$0xff]
    %v5088 = vld [vmem:[#allocation16 + $0x88] sm:$0xff]
    %v5089 = vld [vmem:[#allocation16 + $0x90] sm:$0xff]
    %v5090 = vld [vmem:[#allocation16 + $0x98] sm:$0xff]
    %v5091 = vld [vmem:[#allocation16 + $0xa0] sm:$0xff]
    %v5092 = vld [vmem:[#allocation16 + $0xa8] sm:$0xff]
    %v5093 = vld [vmem:[#allocation16 + $0xb0] sm:$0xff]
    %v5094 = vld [vmem:[#allocation16 + $0xb8] sm:$0xff]
    %v5095 = vld [vmem:[#allocation16 + $0xc0] sm:$0xff]
    %v5096 = vld [vmem:[#allocation16 + $0xc8] sm:$0xff]
    %v5097 = vld [vmem:[#allocation16 + $0xd0] sm:$0xff]
    %v5098 = vld [vmem:[#allocation16 + $0xd8] sm:$0xff]
    %v5099 = vld [vmem:[#allocation16 + $0xe0] sm:$0xff]
    %v5100 = vld [vmem:[#allocation16 + $0xe8] sm:$0xff]
    %v5101 = vld [vmem:[#allocation16 + $0xf0] sm:$0xff]
    %v5102 = vld [vmem:[#allocation16 + $0xf8] sm:$0xff]
    %v5103 = vld [vmem:[%s1580] ss:$8 sm:$0xf]
    %v5104 = vld [vmem:[%s1582] ss:$8 sm:$0xf]
    %v5137 = vunpack.c.l.b16 %v5071
    %v5138 = vunpack.c.h.b16 %v5071
    %v5139 = vunpack.c.l.b16 %v5072
    %v5140 = vunpack.c.h.b16 %v5072
    %v5141 = vunpack.c.l.b16 %v5073
    %v5142 = vunpack.c.h.b16 %v5073
    %v5143 = vunpack.c.l.b16 %v5074
    %v5144 = vunpack.c.h.b16 %v5074
    %v5145 = vunpack.c.l.b16 %v5075
    %v5146 = vunpack.c.h.b16 %v5075
    %v5147 = vunpack.c.l.b16 %v5076
    %v5148 = vunpack.c.h.b16 %v5076
    %v5149 = vunpack.c.l.b16 %v5077
    %v5150 = vunpack.c.h.b16 %v5077
    %v5151 = vunpack.c.l.b16 %v5078
    %v5152 = vunpack.c.h.b16 %v5078
    %v5153 = vunpack.c.l.b16 %v5079
    %v5154 = vunpack.c.h.b16 %v5079
    %v5155 = vunpack.c.l.b16 %v5080
    %v5156 = vunpack.c.h.b16 %v5080
    %v5157 = vunpack.c.l.b16 %v5081
    %v5158 = vunpack.c.h.b16 %v5081
    %v5159 = vunpack.c.l.b16 %v5082
    %v5160 = vunpack.c.h.b16 %v5082
    %v5161 = vunpack.c.l.b16 %v5083
    %v5162 = vunpack.c.h.b16 %v5083
    %v5163 = vunpack.c.l.b16 %v5084
    %v5164 = vunpack.c.h.b16 %v5084
    %v5165 = vunpack.c.l.b16 %v5085
    %v5166 = vunpack.c.h.b16 %v5085
    %v5167 = vunpack.c.l.b16 %v5086
    %v5168 = vunpack.c.h.b16 %v5086
    %v5169 = vunpack.c.l.b16 %v5087
    %v5170 = vunpack.c.h.b16 %v5087
    %v5171 = vunpack.c.l.b16 %v5088
    %v5172 = vunpack.c.h.b16 %v5088
    %v5173 = vunpack.c.l.b16 %v5089
    %v5174 = vunpack.c.h.b16 %v5089
    %v5175 = vunpack.c.l.b16 %v5090
    %v5176 = vunpack.c.h.b16 %v5090
    %v5177 = vunpack.c.l.b16 %v5091
    %v5178 = vunpack.c.h.b16 %v5091
    %v5179 = vunpack.c.l.b16 %v5092
    %v5180 = vunpack.c.h.b16 %v5092
    %v5181 = vunpack.c.l.b16 %v5093
    %v5182 = vunpack.c.h.b16 %v5093
    %v5183 = vunpack.c.l.b16 %v5094
    %v5184 = vunpack.c.h.b16 %v5094
    %v5185 = vunpack.c.l.b16 %v5095
    %v5186 = vunpack.c.h.b16 %v5095
    %v5187 = vunpack.c.l.b16 %v5096
    %v5188 = vunpack.c.h.b16 %v5096
    %v5189 = vunpack.c.l.b16 %v5097
    %v5190 = vunpack.c.h.b16 %v5097
    %v5191 = vunpack.c.l.b16 %v5098
    %v5192 = vunpack.c.h.b16 %v5098
    %v5193 = vunpack.c.l.b16 %v5099
    %v5194 = vunpack.c.h.b16 %v5099
    %v5195 = vunpack.c.l.b16 %v5100
    %v5196 = vunpack.c.h.b16 %v5100
    %v5197 = vunpack.c.l.b16 %v5101
    %v5198 = vunpack.c.h.b16 %v5101
    %v5199 = vunpack.c.l.b16 %v5102
    %v5200 = vunpack.c.h.b16 %v5102
    %v5201 = vpack.c.b16 %v5141, %v5137
    %v5202 = vpack.c.b16 %v5142, %v5138
    %v5203 = vpack.c.b16 %v5143, %v5139
    %v5204 = vpack.c.b16 %v5144, %v5140
    %v5205 = vpack.c.b16 %v5149, %v5145
    %v5206 = vpack.c.b16 %v5150, %v5146
    %v5207 = vpack.c.b16 %v5151, %v5147
    %v5208 = vpack.c.b16 %v5152, %v5148
    %v5209 = vpack.c.b16 %v5157, %v5153
    %v5210 = vpack.c.b16 %v5158, %v5154
    %v5211 = vpack.c.b16 %v5159, %v5155
    %v5212 = vpack.c.b16 %v5160, %v5156
    %v5213 = vpack.c.b16 %v5165, %v5161
    %v5214 = vpack.c.b16 %v5166, %v5162
    %v5215 = vpack.c.b16 %v5167, %v5163
    %v5216 = vpack.c.b16 %v5168, %v5164
    %v5217 = vpack.c.b16 %v5173, %v5169
    %v5218 = vpack.c.b16 %v5174, %v5170
    %v5219 = vpack.c.b16 %v5175, %v5171
    %v5220 = vpack.c.b16 %v5176, %v5172
    %v5221 = vpack.c.b16 %v5181, %v5177
    %v5222 = vpack.c.b16 %v5182, %v5178
    %v5223 = vpack.c.b16 %v5183, %v5179
    %v5224 = vpack.c.b16 %v5184, %v5180
    %v5225 = vpack.c.b16 %v5189, %v5185
    %v5226 = vpack.c.b16 %v5190, %v5186
    %v5227 = vpack.c.b16 %v5191, %v5187
    %v5228 = vpack.c.b16 %v5192, %v5188
    %v5229 = vpack.c.b16 %v5197, %v5193
    %v5230 = vpack.c.b16 %v5198, %v5194
    %v5231 = vpack.c.b16 %v5199, %v5195
    %v5232 = vpack.c.b16 %v5200, %v5196
    %v5267 = vcombine.low %v5103, %v5104
    %v5269 = vunpack.c.l.s4 1966171168
    %v5270 = vunpack.c.0.s8 %v5269
    %v5271 = vlaneseq
    %v5272 = vshrl.u32 %v5271, 7
    %v5273 = vsub.s32 %v5270, %v5272
    %v5274 = vrot.slane %v5267, %v5273
    %v5275 = vcombine.high %v5274, %v5274
    %v5277 = vunpack.c.l.s4 1966171168
    %v5278 = vunpack.c.0.s8 %v5277
    %v5279 = vlaneseq
    %v5280 = vshrl.u32 %v5279, 7
    %v5281 = vsub.s32 %v5278, %v5280
    %v5282 = vrot.slane %v5274, %v5281
    %v5284 = vunpack.c.l.s4 1966171168
    %v5285 = vunpack.c.0.s8 %v5284
    %v5286 = vlaneseq
    %v5287 = vshrl.u32 %v5286, 7
    %v5288 = vsub.s32 %v5285, %v5287
    %v5289 = vrot.slane %v5275, %v5288
    %v5290 = vcombine.high %v5282, %v5282
    %v5291 = vcombine.high %v5289, %v5289
    %5296 = vmatprep.subr.bf16.mxu0 %v5230
    %5297 = vmatpush1.bf16.msra.mxu0 %v5229
    %5298 = vmatprep.subr.bf16.mxu0 %v5226
    %5299 = vmatpush1.bf16.msra.mxu0 %v5225
    %5300 = vmatprep.subr.bf16.mxu0 %v5222
    %5301 = vmatpush1.bf16.msra.mxu0 %v5221
    %5302 = vmatprep.subr.bf16.mxu0 %v5218
    %5303 = vmatpush1.bf16.msra.mxu0 %v5217
    %5304 = vmatprep.subr.bf16.mxu0 %v5214
    %5305 = vmatpush1.bf16.msra.mxu0 %v5213
    %5306 = vmatprep.subr.bf16.mxu0 %v5210
    %5307 = vmatpush1.bf16.msra.mxu0 %v5209
    %5308 = vmatprep.subr.bf16.mxu0 %v5206
    %5309 = vmatpush1.bf16.msra.mxu0 %v5205
    %5310 = vmatprep.subr.bf16.mxu0 %v5202
    %5311 = vmatpush1.bf16.msra.mxu0 %v5201
    %5312 = vmatprep.subr.bf16.mxu0 0
    %5313 = vmatpush2.bf16.msra.mxu0 0
    %5314 = vmatprep.subr.bf16.mxu0 0
    %5315 = vmatpush2.bf16.msra.mxu0 0
    %5316 = vmatprep.subr.bf16.mxu0 0
    %5317 = vmatpush2.bf16.msra.mxu0 0
    %5318 = vmatprep.subr.bf16.mxu0 0
    %5319 = vmatpush2.bf16.msra.mxu0 0
    %5320 = vmatprep.subr.bf16.mxu0 0
    %5321 = vmatpush2.bf16.msra.mxu0 0
    %5322 = vmatprep.subr.bf16.mxu0 0
    %5323 = vmatpush2.bf16.msra.mxu0 0
    %5324 = vmatprep.subr.bf16.mxu0 0
    %5325 = vmatpush2.bf16.msra.mxu0 0
    %5326 = vmatprep.subr.bf16.mxu0 0
    %5327 = vmatpush2.bf16.msra.mxu0 0
    %5328 = vmatprep.mubr.bf16.mxu0 0
    %5329 = vmatmul.mubr.bf16.gmra.mxu0 %v5070
    %v5330 = vpop.f32.mrf.mxu0
    %v5331 = vadd.f32 %v5282, %v5330
    %v5332 = vpop.f32.mrf.mxu0
    %v5333 = vadd.f32 %v5289, %v5332
    %v5334 = vpop.f32.mrf.mxu0
    %v5335 = vpop.f32.mrf.mxu0
    %5336 = vdwg.mxu0
    %5337 = vmatprep.subr.bf16.mxu0 %v5232
    %5338 = vmatpush1.bf16.msra.mxu0 %v5231
    %5339 = vmatprep.subr.bf16.mxu0 %v5228
    %5340 = vmatpush1.bf16.msra.mxu0 %v5227
    %5341 = vmatprep.subr.bf16.mxu0 %v5224
    %5342 = vmatpush1.bf16.msra.mxu0 %v5223
    %5343 = vmatprep.subr.bf16.mxu0 %v5220
    %5344 = vmatpush1.bf16.msra.mxu0 %v5219
    %5345 = vmatprep.subr.bf16.mxu0 %v5216
    %5346 = vmatpush1.bf16.msra.mxu0 %v5215
    %5347 = vmatprep.subr.bf16.mxu0 %v5212
    %5348 = vmatpush1.bf16.msra.mxu0 %v5211
    %5349 = vmatprep.subr.bf16.mxu0 %v5208
    %5350 = vmatpush1.bf16.msra.mxu0 %v5207
    %5351 = vmatprep.subr.bf16.mxu0 %v5204
    %5352 = vmatpush1.bf16.msra.mxu0 %v5203
    %5353 = vmatprep.subr.bf16.mxu0 0
    %5354 = vmatpush2.bf16.msra.mxu0 0
    %5355 = vmatprep.subr.bf16.mxu0 0
    %5356 = vmatpush2.bf16.msra.mxu0 0
    %5357 = vmatprep.subr.bf16.mxu0 0
    %5358 = vmatpush2.bf16.msra.mxu0 0
    %5359 = vmatprep.subr.bf16.mxu0 0
    %5360 = vmatpush2.bf16.msra.mxu0 0
    %5361 = vmatprep.subr.bf16.mxu0 0
    %5362 = vmatpush2.bf16.msra.mxu0 0
    %5363 = vmatprep.subr.bf16.mxu0 0
    %5364 = vmatpush2.bf16.msra.mxu0 0
    %5365 = vmatprep.subr.bf16.mxu0 0
    %5366 = vmatpush2.bf16.msra.mxu0 0
    %5367 = vmatprep.subr.bf16.mxu0 0
    %5368 = vmatpush2.bf16.msra.mxu0 0
    %5369 = vmatprep.mubr.bf16.mxu0 0
    %5370 = vmatmul.mubr.bf16.gmra.mxu0 %v5070
    %v5371 = vpop.f32.mrf.mxu0
    %v5372 = vadd.f32 %v5290, %v5371
    %v5373 = vpop.f32.mrf.mxu0
    %v5374 = vadd.f32 %v5291, %v5373
    %v5375 = vpop.f32.mrf.mxu0
    %v5376 = vpop.f32.mrf.mxu0
    %5377 = vdwg.mxu0
    %v5378 = vxor.u32 %v5331, 2147483648
    %v5379 = vmul.f32 %v5378, 1.442695
    %v5380 = vpow.pop %v5379
    %v5381 = vadd.f32 %v5380, 1.0
    %v5382 = vrcp.pop %v5381
    %v5383 = vmul.f32 1.0, %v5382
    %v5384 = vxor.u32 %v5333, 2147483648
    %v5385 = vmul.f32 %v5384, 1.442695
    %v5386 = vpow.pop %v5385
    %v5387 = vadd.f32 %v5386, 1.0
    %v5388 = vrcp.pop %v5387
    %v5389 = vmul.f32 1.0, %v5388
    %v5390 = vtanh.pop %v5372
    %v5391 = vxor.u32 %v5374, 2147483648
    %v5392 = vmul.f32 %v5391, 1.442695
    %v5393 = vpow.pop %v5392
    %v5394 = vadd.f32 %v5393, 1.0
    %v5395 = vrcp.pop %v5394
    %v5396 = vmul.f32 1.0, %v5395
    %v5397 = vld [vmem:[#allocation7] sm:$0x3]
    %v5398 = vmul.f32 %v5389, %v5397
    %v5399 = vmul.f32 %v5383, %v5390
    %v5400 = vadd.f32 %v5398, %v5399
    %v5401 = vtanh.pop %v5400
    %v5402 = vmul.f32 %v5396, %v5401
    %5403 = vst [vmem:[#allocation7] sm:$0x3] %v5400
    %5404 = vst [vmem:[#allocation6] sm:$0x3] %v5402
    %v5405 = vld [vmem:[#allocation6] sm:$0x3]
    %v5406 = vpack.c.bf16 %v5405, %v5405
    %v5407 = vld [vmem:[#allocation16] sm:$0xff]
    %v5408 = vld [vmem:[#allocation16 + $0x8] sm:$0xff]
    %v5409 = vld [vmem:[#allocation16 + $0x10] sm:$0xff]
    %v5410 = vld [vmem:[#allocation16 + $0x18] sm:$0xff]
    %v5411 = vld [vmem:[#allocation16 + $0x20] sm:$0xff]
    %v5412 = vld [vmem:[#allocation16 + $0x28] sm:$0xff]
    %v5413 = vld [vmem:[#allocation16 + $0x30] sm:$0xff]
    %v5414 = vld [vmem:[#allocation16 + $0x38] sm:$0xff]
    %v5415 = vld [vmem:[#allocation16 + $0x40] sm:$0xff]
    %v5416 = vld [vmem:[#allocation16 + $0x48] sm:$0xff]
    %v5417 = vld [vmem:[#allocation16 + $0x50] sm:$0xff]
    %v5418 = vld [vmem:[#allocation16 + $0x58] sm:$0xff]
    %v5419 = vld [vmem:[#allocation16 + $0x60] sm:$0xff]
    %v5420 = vld [vmem:[#allocation16 + $0x68] sm:$0xff]
    %v5421 = vld [vmem:[#allocation16 + $0x70] sm:$0xff]
    %v5422 = vld [vmem:[#allocation16 + $0x78] sm:$0xff]
    %v5423 = vld [vmem:[#allocation16 + $0x80] sm:$0xff]
    %v5424 = vld [vmem:[#allocation16 + $0x88] sm:$0xff]
    %v5425 = vld [vmem:[#allocation16 + $0x90] sm:$0xff]
    %v5426 = vld [vmem:[#allocation16 + $0x98] sm:$0xff]
    %v5427 = vld [vmem:[#allocation16 + $0xa0] sm:$0xff]
    %v5428 = vld [vmem:[#allocation16 + $0xa8] sm:$0xff]
    %v5429 = vld [vmem:[#allocation16 + $0xb0] sm:$0xff]
    %v5430 = vld [vmem:[#allocation16 + $0xb8] sm:$0xff]
    %v5431 = vld [vmem:[#allocation16 + $0xc0] sm:$0xff]
    %v5432 = vld [vmem:[#allocation16 + $0xc8] sm:$0xff]
    %v5433 = vld [vmem:[#allocation16 + $0xd0] sm:$0xff]
    %v5434 = vld [vmem:[#allocation16 + $0xd8] sm:$0xff]
    %v5435 = vld [vmem:[#allocation16 + $0xe0] sm:$0xff]
    %v5436 = vld [vmem:[#allocation16 + $0xe8] sm:$0xff]
    %v5437 = vld [vmem:[#allocation16 + $0xf0] sm:$0xff]
    %v5438 = vld [vmem:[#allocation16 + $0xf8] sm:$0xff]
    %v5439 = vld [vmem:[%s1962] ss:$8 sm:$0xf]
    %v5440 = vld [vmem:[%s1964] ss:$8 sm:$0xf]
    %v5473 = vunpack.c.l.b16 %v5407
    %v5474 = vunpack.c.h.b16 %v5407
    %v5475 = vunpack.c.l.b16 %v5408
    %v5476 = vunpack.c.h.b16 %v5408
    %v5477 = vunpack.c.l.b16 %v5409
    %v5478 = vunpack.c.h.b16 %v5409
    %v5479 = vunpack.c.l.b16 %v5410
    %v5480 = vunpack.c.h.b16 %v5410
    %v5481 = vunpack.c.l.b16 %v5411
    %v5482 = vunpack.c.h.b16 %v5411
    %v5483 = vunpack.c.l.b16 %v5412
    %v5484 = vunpack.c.h.b16 %v5412
    %v5485 = vunpack.c.l.b16 %v5413
    %v5486 = vunpack.c.h.b16 %v5413
    %v5487 = vunpack.c.l.b16 %v5414
    %v5488 = vunpack.c.h.b16 %v5414
    %v5489 = vunpack.c.l.b16 %v5415
    %v5490 = vunpack.c.h.b16 %v5415
    %v5491 = vunpack.c.l.b16 %v5416
    %v5492 = vunpack.c.h.b16 %v5416
    %v5493 = vunpack.c.l.b16 %v5417
    %v5494 = vunpack.c.h.b16 %v5417
    %v5495 = vunpack.c.l.b16 %v5418
    %v5496 = vunpack.c.h.b16 %v5418
    %v5497 = vunpack.c.l.b16 %v5419
    %v5498 = vunpack.c.h.b16 %v5419
    %v5499 = vunpack.c.l.b16 %v5420
    %v5500 = vunpack.c.h.b16 %v5420
    %v5501 = vunpack.c.l.b16 %v5421
    %v5502 = vunpack.c.h.b16 %v5421
    %v5503 = vunpack.c.l.b16 %v5422
    %v5504 = vunpack.c.h.b16 %v5422
    %v5505 = vunpack.c.l.b16 %v5423
    %v5506 = vunpack.c.h.b16 %v5423
    %v5507 = vunpack.c.l.b16 %v5424
    %v5508 = vunpack.c.h.b16 %v5424
    %v5509 = vunpack.c.l.b16 %v5425
    %v5510 = vunpack.c.h.b16 %v5425
    %v5511 = vunpack.c.l.b16 %v5426
    %v5512 = vunpack.c.h.b16 %v5426
    %v5513 = vunpack.c.l.b16 %v5427
    %v5514 = vunpack.c.h.b16 %v5427
    %v5515 = vunpack.c.l.b16 %v5428
    %v5516 = vunpack.c.h.b16 %v5428
    %v5517 = vunpack.c.l.b16 %v5429
    %v5518 = vunpack.c.h.b16 %v5429
    %v5519 = vunpack.c.l.b16 %v5430
    %v5520 = vunpack.c.h.b16 %v5430
    %v5521 = vunpack.c.l.b16 %v5431
    %v5522 = vunpack.c.h.b16 %v5431
    %v5523 = vunpack.c.l.b16 %v5432
    %v5524 = vunpack.c.h.b16 %v5432
    %v5525 = vunpack.c.l.b16 %v5433
    %v5526 = vunpack.c.h.b16 %v5433
    %v5527 = vunpack.c.l.b16 %v5434
    %v5528 = vunpack.c.h.b16 %v5434
    %v5529 = vunpack.c.l.b16 %v5435
    %v5530 = vunpack.c.h.b16 %v5435
    %v5531 = vunpack.c.l.b16 %v5436
    %v5532 = vunpack.c.h.b16 %v5436
    %v5533 = vunpack.c.l.b16 %v5437
    %v5534 = vunpack.c.h.b16 %v5437
    %v5535 = vunpack.c.l.b16 %v5438
    %v5536 = vunpack.c.h.b16 %v5438
    %v5537 = vpack.c.b16 %v5477, %v5473
    %v5538 = vpack.c.b16 %v5478, %v5474
    %v5539 = vpack.c.b16 %v5479, %v5475
    %v5540 = vpack.c.b16 %v5480, %v5476
    %v5541 = vpack.c.b16 %v5485, %v5481
    %v5542 = vpack.c.b16 %v5486, %v5482
    %v5543 = vpack.c.b16 %v5487, %v5483
    %v5544 = vpack.c.b16 %v5488, %v5484
    %v5545 = vpack.c.b16 %v5493, %v5489
    %v5546 = vpack.c.b16 %v5494, %v5490
    %v5547 = vpack.c.b16 %v5495, %v5491
    %v5548 = vpack.c.b16 %v5496, %v5492
    %v5549 = vpack.c.b16 %v5501, %v5497
    %v5550 = vpack.c.b16 %v5502, %v5498
    %v5551 = vpack.c.b16 %v5503, %v5499
    %v5552 = vpack.c.b16 %v5504, %v5500
    %v5553 = vpack.c.b16 %v5509, %v5505
    %v5554 = vpack.c.b16 %v5510, %v5506
    %v5555 = vpack.c.b16 %v5511, %v5507
    %v5556 = vpack.c.b16 %v5512, %v5508
    %v5557 = vpack.c.b16 %v5517, %v5513
    %v5558 = vpack.c.b16 %v5518, %v5514
    %v5559 = vpack.c.b16 %v5519, %v5515
    %v5560 = vpack.c.b16 %v5520, %v5516
    %v5561 = vpack.c.b16 %v5525, %v5521
    %v5562 = vpack.c.b16 %v5526, %v5522
    %v5563 = vpack.c.b16 %v5527, %v5523
    %v5564 = vpack.c.b16 %v5528, %v5524
    %v5565 = vpack.c.b16 %v5533, %v5529
    %v5566 = vpack.c.b16 %v5534, %v5530
    %v5567 = vpack.c.b16 %v5535, %v5531
    %v5568 = vpack.c.b16 %v5536, %v5532
    %v5603 = vcombine.low %v5439, %v5440
    %v5605 = vunpack.c.l.s4 1966171168
    %v5606 = vunpack.c.0.s8 %v5605
    %v5607 = vlaneseq
    %v5608 = vshrl.u32 %v5607, 7
    %v5609 = vsub.s32 %v5606, %v5608
    %v5610 = vrot.slane %v5603, %v5609
    %v5611 = vcombine.high %v5610, %v5610
    %v5613 = vunpack.c.l.s4 1966171168
    %v5614 = vunpack.c.0.s8 %v5613
    %v5615 = vlaneseq
    %v5616 = vshrl.u32 %v5615, 7
    %v5617 = vsub.s32 %v5614, %v5616
    %v5618 = vrot.slane %v5610, %v5617
    %v5620 = vunpack.c.l.s4 1966171168
    %v5621 = vunpack.c.0.s8 %v5620
    %v5622 = vlaneseq
    %v5623 = vshrl.u32 %v5622, 7
    %v5624 = vsub.s32 %v5621, %v5623
    %v5625 = vrot.slane %v5611, %v5624
    %v5626 = vcombine.high %v5618, %v5618
    %v5627 = vcombine.high %v5625, %v5625
    %5632 = vmatprep.subr.bf16.mxu0 %v5566
    %5633 = vmatpush1.bf16.msra.mxu0 %v5565
    %5634 = vmatprep.subr.bf16.mxu0 %v5562
    %5635 = vmatpush1.bf16.msra.mxu0 %v5561
    %5636 = vmatprep.subr.bf16.mxu0 %v5558
    %5637 = vmatpush1.bf16.msra.mxu0 %v5557
    %5638 = vmatprep.subr.bf16.mxu0 %v5554
    %5639 = vmatpush1.bf16.msra.mxu0 %v5553
    %5640 = vmatprep.subr.bf16.mxu0 %v5550
    %5641 = vmatpush1.bf16.msra.mxu0 %v5549
    %5642 = vmatprep.subr.bf16.mxu0 %v5546
    %5643 = vmatpush1.bf16.msra.mxu0 %v5545
    %5644 = vmatprep.subr.bf16.mxu0 %v5542
    %5645 = vmatpush1.bf16.msra.mxu0 %v5541
    %5646 = vmatprep.subr.bf16.mxu0 %v5538
    %5647 = vmatpush1.bf16.msra.mxu0 %v5537
    %5648 = vmatprep.subr.bf16.mxu0 0
    %5649 = vmatpush2.bf16.msra.mxu0 0
    %5650 = vmatprep.subr.bf16.mxu0 0
    %5651 = vmatpush2.bf16.msra.mxu0 0
    %5652 = vmatprep.subr.bf16.mxu0 0
    %5653 = vmatpush2.bf16.msra.mxu0 0
    %5654 = vmatprep.subr.bf16.mxu0 0
    %5655 = vmatpush2.bf16.msra.mxu0 0
    %5656 = vmatprep.subr.bf16.mxu0 0
    %5657 = vmatpush2.bf16.msra.mxu0 0
    %5658 = vmatprep.subr.bf16.mxu0 0
    %5659 = vmatpush2.bf16.msra.mxu0 0
    %5660 = vmatprep.subr.bf16.mxu0 0
    %5661 = vmatpush2.bf16.msra.mxu0 0
    %5662 = vmatprep.subr.bf16.mxu0 0
    %5663 = vmatpush2.bf16.msra.mxu0 0
    %5664 = vmatprep.mubr.bf16.mxu0 0
    %5665 = vmatmul.mubr.bf16.gmra.mxu0 %v5406
    %v5666 = vpop.f32.mrf.mxu0
    %v5667 = vadd.f32 %v5618, %v5666
    %v5668 = vpop.f32.mrf.mxu0
    %v5669 = vadd.f32 %v5625, %v5668
    %v5670 = vpop.f32.mrf.mxu0
    %v5671 = vpop.f32.mrf.mxu0
    %5672 = vdwg.mxu0
    %5673 = vmatprep.subr.bf16.mxu0 %v5568
    %5674 = vmatpush1.bf16.msra.mxu0 %v5567
    %5675 = vmatprep.subr.bf16.mxu0 %v5564
    %5676 = vmatpush1.bf16.msra.mxu0 %v5563
    %5677 = vmatprep.subr.bf16.mxu0 %v5560
    %5678 = vmatpush1.bf16.msra.mxu0 %v5559
    %5679 = vmatprep.subr.bf16.mxu0 %v5556
    %5680 = vmatpush1.bf16.msra.mxu0 %v5555
    %5681 = vmatprep.subr.bf16.mxu0 %v5552
    %5682 = vmatpush1.bf16.msra.mxu0 %v5551
    %5683 = vmatprep.subr.bf16.mxu0 %v5548
    %5684 = vmatpush1.bf16.msra.mxu0 %v5547
    %5685 = vmatprep.subr.bf16.mxu0 %v5544
    %5686 = vmatpush1.bf16.msra.mxu0 %v5543
    %5687 = vmatprep.subr.bf16.mxu0 %v5540
    %5688 = vmatpush1.bf16.msra.mxu0 %v5539
    %5689 = vmatprep.subr.bf16.mxu0 0
    %5690 = vmatpush2.bf16.msra.mxu0 0
    %5691 = vmatprep.subr.bf16.mxu0 0
    %5692 = vmatpush2.bf16.msra.mxu0 0
    %5693 = vmatprep.subr.bf16.mxu0 0
    %5694 = vmatpush2.bf16.msra.mxu0 0
    %5695 = vmatprep.subr.bf16.mxu0 0
    %5696 = vmatpush2.bf16.msra.mxu0 0
    %5697 = vmatprep.subr.bf16.mxu0 0
    %5698 = vmatpush2.bf16.msra.mxu0 0
    %5699 = vmatprep.subr.bf16.mxu0 0
    %5700 = vmatpush2.bf16.msra.mxu0 0
    %5701 = vmatprep.subr.bf16.mxu0 0
    %5702 = vmatpush2.bf16.msra.mxu0 0
    %5703 = vmatprep.subr.bf16.mxu0 0
    %5704 = vmatpush2.bf16.msra.mxu0 0
    %5705 = vmatprep.mubr.bf16.mxu0 0
    %5706 = vmatmul.mubr.bf16.gmra.mxu0 %v5406
    %v5707 = vpop.f32.mrf.mxu0
    %v5708 = vadd.f32 %v5626, %v5707
    %v5709 = vpop.f32.mrf.mxu0
    %v5710 = vadd.f32 %v5627, %v5709
    %v5711 = vpop.f32.mrf.mxu0
    %v5712 = vpop.f32.mrf.mxu0
    %5713 = vdwg.mxu0
    %v5714 = vxor.u32 %v5667, 2147483648
    %v5715 = vmul.f32 %v5714, 1.442695
    %v5716 = vpow.pop %v5715
    %v5717 = vadd.f32 %v5716, 1.0
    %v5718 = vrcp.pop %v5717
    %v5719 = vmul.f32 1.0, %v5718
    %v5720 = vxor.u32 %v5669, 2147483648
    %v5721 = vmul.f32 %v5720, 1.442695
    %v5722 = vpow.pop %v5721
    %v5723 = vadd.f32 %v5722, 1.0
    %v5724 = vrcp.pop %v5723
    %v5725 = vmul.f32 1.0, %v5724
    %v5726 = vtanh.pop %v5708
    %v5727 = vxor.u32 %v5710, 2147483648
    %v5728 = vmul.f32 %v5727, 1.442695
    %v5729 = vpow.pop %v5728
    %v5730 = vadd.f32 %v5729, 1.0
    %v5731 = vrcp.pop %v5730
    %v5732 = vmul.f32 1.0, %v5731
    %v5733 = vld [vmem:[#allocation7] sm:$0x3]
    %v5734 = vmul.f32 %v5725, %v5733
    %v5735 = vmul.f32 %v5719, %v5726
    %v5736 = vadd.f32 %v5734, %v5735
    %v5737 = vtanh.pop %v5736
    %v5738 = vmul.f32 %v5732, %v5737
    %5739 = vst [vmem:[#allocation7] sm:$0x3] %v5736
    %5740 = vst [vmem:[#allocation6] sm:$0x3] %v5738
    %v5741 = vld [vmem:[#allocation6] sm:$0x3]
    %v5742 = vpack.c.bf16 %v5741, %v5741
    %v5743 = vld [vmem:[#allocation16] sm:$0xff]
    %v5744 = vld [vmem:[#allocation16 + $0x8] sm:$0xff]
    %v5745 = vld [vmem:[#allocation16 + $0x10] sm:$0xff]
    %v5746 = vld [vmem:[#allocation16 + $0x18] sm:$0xff]
    %v5747 = vld [vmem:[#allocation16 + $0x20] sm:$0xff]
    %v5748 = vld [vmem:[#allocation16 + $0x28] sm:$0xff]
    %v5749 = vld [vmem:[#allocation16 + $0x30] sm:$0xff]
    %v5750 = vld [vmem:[#allocation16 + $0x38] sm:$0xff]
    %v5751 = vld [vmem:[#allocation16 + $0x40] sm:$0xff]
    %v5752 = vld [vmem:[#allocation16 + $0x48] sm:$0xff]
    %v5753 = vld [vmem:[#allocation16 + $0x50] sm:$0xff]
    %v5754 = vld [vmem:[#allocation16 + $0x58] sm:$0xff]
    %v5755 = vld [vmem:[#allocation16 + $0x60] sm:$0xff]
    %v5756 = vld [vmem:[#allocation16 + $0x68] sm:$0xff]
    %v5757 = vld [vmem:[#allocation16 + $0x70] sm:$0xff]
    %v5758 = vld [vmem:[#allocation16 + $0x78] sm:$0xff]
    %v5759 = vld [vmem:[#allocation16 + $0x80] sm:$0xff]
    %v5760 = vld [vmem:[#allocation16 + $0x88] sm:$0xff]
    %v5761 = vld [vmem:[#allocation16 + $0x90] sm:$0xff]
    %v5762 = vld [vmem:[#allocation16 + $0x98] sm:$0xff]
    %v5763 = vld [vmem:[#allocation16 + $0xa0] sm:$0xff]
    %v5764 = vld [vmem:[#allocation16 + $0xa8] sm:$0xff]
    %v5765 = vld [vmem:[#allocation16 + $0xb0] sm:$0xff]
    %v5766 = vld [vmem:[#allocation16 + $0xb8] sm:$0xff]
    %v5767 = vld [vmem:[#allocation16 + $0xc0] sm:$0xff]
    %v5768 = vld [vmem:[#allocation16 + $0xc8] sm:$0xff]
    %v5769 = vld [vmem:[#allocation16 + $0xd0] sm:$0xff]
    %v5770 = vld [vmem:[#allocation16 + $0xd8] sm:$0xff]
    %v5771 = vld [vmem:[#allocation16 + $0xe0] sm:$0xff]
    %v5772 = vld [vmem:[#allocation16 + $0xe8] sm:$0xff]
    %v5773 = vld [vmem:[#allocation16 + $0xf0] sm:$0xff]
    %v5774 = vld [vmem:[#allocation16 + $0xf8] sm:$0xff]
    %v5775 = vld [vmem:[%s2345] ss:$8 sm:$0xf]
    %v5776 = vld [vmem:[%s2347] ss:$8 sm:$0xf]
    %v5809 = vunpack.c.l.b16 %v5743
    %v5810 = vunpack.c.h.b16 %v5743
    %v5811 = vunpack.c.l.b16 %v5744
    %v5812 = vunpack.c.h.b16 %v5744
    %v5813 = vunpack.c.l.b16 %v5745
    %v5814 = vunpack.c.h.b16 %v5745
    %v5815 = vunpack.c.l.b16 %v5746
    %v5816 = vunpack.c.h.b16 %v5746
    %v5817 = vunpack.c.l.b16 %v5747
    %v5818 = vunpack.c.h.b16 %v5747
    %v5819 = vunpack.c.l.b16 %v5748
    %v5820 = vunpack.c.h.b16 %v5748
    %v5821 = vunpack.c.l.b16 %v5749
    %v5822 = vunpack.c.h.b16 %v5749
    %v5823 = vunpack.c.l.b16 %v5750
    %v5824 = vunpack.c.h.b16 %v5750
    %v5825 = vunpack.c.l.b16 %v5751
    %v5826 = vunpack.c.h.b16 %v5751
    %v5827 = vunpack.c.l.b16 %v5752
    %v5828 = vunpack.c.h.b16 %v5752
    %v5829 = vunpack.c.l.b16 %v5753
    %v5830 = vunpack.c.h.b16 %v5753
    %v5831 = vunpack.c.l.b16 %v5754
    %v5832 = vunpack.c.h.b16 %v5754
    %v5833 = vunpack.c.l.b16 %v5755
    %v5834 = vunpack.c.h.b16 %v5755
    %v5835 = vunpack.c.l.b16 %v5756
    %v5836 = vunpack.c.h.b16 %v5756
    %v5837 = vunpack.c.l.b16 %v5757
    %v5838 = vunpack.c.h.b16 %v5757
    %v5839 = vunpack.c.l.b16 %v5758
    %v5840 = vunpack.c.h.b16 %v5758
    %v5841 = vunpack.c.l.b16 %v5759
    %v5842 = vunpack.c.h.b16 %v5759
    %v5843 = vunpack.c.l.b16 %v5760
    %v5844 = vunpack.c.h.b16 %v5760
    %v5845 = vunpack.c.l.b16 %v5761
    %v5846 = vunpack.c.h.b16 %v5761
    %v5847 = vunpack.c.l.b16 %v5762
    %v5848 = vunpack.c.h.b16 %v5762
    %v5849 = vunpack.c.l.b16 %v5763
    %v5850 = vunpack.c.h.b16 %v5763
    %v5851 = vunpack.c.l.b16 %v5764
    %v5852 = vunpack.c.h.b16 %v5764
    %v5853 = vunpack.c.l.b16 %v5765
    %v5854 = vunpack.c.h.b16 %v5765
    %v5855 = vunpack.c.l.b16 %v5766
    %v5856 = vunpack.c.h.b16 %v5766
    %v5857 = vunpack.c.l.b16 %v5767
    %v5858 = vunpack.c.h.b16 %v5767
    %v5859 = vunpack.c.l.b16 %v5768
    %v5860 = vunpack.c.h.b16 %v5768
    %v5861 = vunpack.c.l.b16 %v5769
    %v5862 = vunpack.c.h.b16 %v5769
    %v5863 = vunpack.c.l.b16 %v5770
    %v5864 = vunpack.c.h.b16 %v5770
    %v5865 = vunpack.c.l.b16 %v5771
    %v5866 = vunpack.c.h.b16 %v5771
    %v5867 = vunpack.c.l.b16 %v5772
    %v5868 = vunpack.c.h.b16 %v5772
    %v5869 = vunpack.c.l.b16 %v5773
    %v5870 = vunpack.c.h.b16 %v5773
    %v5871 = vunpack.c.l.b16 %v5774
    %v5872 = vunpack.c.h.b16 %v5774
    %v5873 = vpack.c.b16 %v5813, %v5809
    %v5874 = vpack.c.b16 %v5814, %v5810
    %v5875 = vpack.c.b16 %v5815, %v5811
    %v5876 = vpack.c.b16 %v5816, %v5812
    %v5877 = vpack.c.b16 %v5821, %v5817
    %v5878 = vpack.c.b16 %v5822, %v5818
    %v5879 = vpack.c.b16 %v5823, %v5819
    %v5880 = vpack.c.b16 %v5824, %v5820
    %v5881 = vpack.c.b16 %v5829, %v5825
    %v5882 = vpack.c.b16 %v5830, %v5826
    %v5883 = vpack.c.b16 %v5831, %v5827
    %v5884 = vpack.c.b16 %v5832, %v5828
    %v5885 = vpack.c.b16 %v5837, %v5833
    %v5886 = vpack.c.b16 %v5838, %v5834
    %v5887 = vpack.c.b16 %v5839, %v5835
    %v5888 = vpack.c.b16 %v5840, %v5836
    %v5889 = vpack.c.b16 %v5845, %v5841
    %v5890 = vpack.c.b16 %v5846, %v5842
    %v5891 = vpack.c.b16 %v5847, %v5843
    %v5892 = vpack.c.b16 %v5848, %v5844
    %v5893 = vpack.c.b16 %v5853, %v5849
    %v5894 = vpack.c.b16 %v5854, %v5850
    %v5895 = vpack.c.b16 %v5855, %v5851
    %v5896 = vpack.c.b16 %v5856, %v5852
    %v5897 = vpack.c.b16 %v5861, %v5857
    %v5898 = vpack.c.b16 %v5862, %v5858
    %v5899 = vpack.c.b16 %v5863, %v5859
    %v5900 = vpack.c.b16 %v5864, %v5860
    %v5901 = vpack.c.b16 %v5869, %v5865
    %v5902 = vpack.c.b16 %v5870, %v5866
    %v5903 = vpack.c.b16 %v5871, %v5867
    %v5904 = vpack.c.b16 %v5872, %v5868
    %v5939 = vcombine.low %v5775, %v5776
    %v5941 = vunpack.c.l.s4 1966171168
    %v5942 = vunpack.c.0.s8 %v5941
    %v5943 = vlaneseq
    %v5944 = vshrl.u32 %v5943, 7
    %v5945 = vsub.s32 %v5942, %v5944
    %v5946 = vrot.slane %v5939, %v5945
    %v5947 = vcombine.high %v5946, %v5946
    %v5949 = vunpack.c.l.s4 1966171168
    %v5950 = vunpack.c.0.s8 %v5949
    %v5951 = vlaneseq
    %v5952 = vshrl.u32 %v5951, 7
    %v5953 = vsub.s32 %v5950, %v5952
    %v5954 = vrot.slane %v5946, %v5953
    %v5956 = vunpack.c.l.s4 1966171168
    %v5957 = vunpack.c.0.s8 %v5956
    %v5958 = vlaneseq
    %v5959 = vshrl.u32 %v5958, 7
    %v5960 = vsub.s32 %v5957, %v5959
    %v5961 = vrot.slane %v5947, %v5960
    %v5962 = vcombine.high %v5954, %v5954
    %v5963 = vcombine.high %v5961, %v5961
    %5968 = vmatprep.subr.bf16.mxu0 %v5902
    %5969 = vmatpush1.bf16.msra.mxu0 %v5901
    %5970 = vmatprep.subr.bf16.mxu0 %v5898
    %5971 = vmatpush1.bf16.msra.mxu0 %v5897
    %5972 = vmatprep.subr.bf16.mxu0 %v5894
    %5973 = vmatpush1.bf16.msra.mxu0 %v5893
    %5974 = vmatprep.subr.bf16.mxu0 %v5890
    %5975 = vmatpush1.bf16.msra.mxu0 %v5889
    %5976 = vmatprep.subr.bf16.mxu0 %v5886
    %5977 = vmatpush1.bf16.msra.mxu0 %v5885
    %5978 = vmatprep.subr.bf16.mxu0 %v5882
    %5979 = vmatpush1.bf16.msra.mxu0 %v5881
    %5980 = vmatprep.subr.bf16.mxu0 %v5878
    %5981 = vmatpush1.bf16.msra.mxu0 %v5877
    %5982 = vmatprep.subr.bf16.mxu0 %v5874
    %5983 = vmatpush1.bf16.msra.mxu0 %v5873
    %5984 = vmatprep.subr.bf16.mxu0 0
    %5985 = vmatpush2.bf16.msra.mxu0 0
    %5986 = vmatprep.subr.bf16.mxu0 0
    %5987 = vmatpush2.bf16.msra.mxu0 0
    %5988 = vmatprep.subr.bf16.mxu0 0
    %5989 = vmatpush2.bf16.msra.mxu0 0
    %5990 = vmatprep.subr.bf16.mxu0 0
    %5991 = vmatpush2.bf16.msra.mxu0 0
    %5992 = vmatprep.subr.bf16.mxu0 0
    %5993 = vmatpush2.bf16.msra.mxu0 0
    %5994 = vmatprep.subr.bf16.mxu0 0
    %5995 = vmatpush2.bf16.msra.mxu0 0
    %5996 = vmatprep.subr.bf16.mxu0 0
    %5997 = vmatpush2.bf16.msra.mxu0 0
    %5998 = vmatprep.subr.bf16.mxu0 0
    %5999 = vmatpush2.bf16.msra.mxu0 0
    %6000 = vmatprep.mubr.bf16.mxu0 0
    %6001 = vmatmul.mubr.bf16.gmra.mxu0 %v5742
    %v6002 = vpop.f32.mrf.mxu0
    %v6003 = vadd.f32 %v5954, %v6002
    %v6004 = vpop.f32.mrf.mxu0
    %v6005 = vadd.f32 %v5961, %v6004
    %v6006 = vpop.f32.mrf.mxu0
    %v6007 = vpop.f32.mrf.mxu0
    %6008 = vdwg.mxu0
    %6009 = vmatprep.subr.bf16.mxu0 %v5904
    %6010 = vmatpush1.bf16.msra.mxu0 %v5903
    %6011 = vmatprep.subr.bf16.mxu0 %v5900
    %6012 = vmatpush1.bf16.msra.mxu0 %v5899
    %6013 = vmatprep.subr.bf16.mxu0 %v5896
    %6014 = vmatpush1.bf16.msra.mxu0 %v5895
    %6015 = vmatprep.subr.bf16.mxu0 %v5892
    %6016 = vmatpush1.bf16.msra.mxu0 %v5891
    %6017 = vmatprep.subr.bf16.mxu0 %v5888
    %6018 = vmatpush1.bf16.msra.mxu0 %v5887
    %6019 = vmatprep.subr.bf16.mxu0 %v5884
    %6020 = vmatpush1.bf16.msra.mxu0 %v5883
    %6021 = vmatprep.subr.bf16.mxu0 %v5880
    %6022 = vmatpush1.bf16.msra.mxu0 %v5879
    %6023 = vmatprep.subr.bf16.mxu0 %v5876
    %6024 = vmatpush1.bf16.msra.mxu0 %v5875
    %6025 = vmatprep.subr.bf16.mxu0 0
    %6026 = vmatpush2.bf16.msra.mxu0 0
    %6027 = vmatprep.subr.bf16.mxu0 0
    %6028 = vmatpush2.bf16.msra.mxu0 0
    %6029 = vmatprep.subr.bf16.mxu0 0
    %6030 = vmatpush2.bf16.msra.mxu0 0
    %6031 = vmatprep.subr.bf16.mxu0 0
    %6032 = vmatpush2.bf16.msra.mxu0 0
    %6033 = vmatprep.subr.bf16.mxu0 0
    %6034 = vmatpush2.bf16.msra.mxu0 0
    %6035 = vmatprep.subr.bf16.mxu0 0
    %6036 = vmatpush2.bf16.msra.mxu0 0
    %6037 = vmatprep.subr.bf16.mxu0 0
    %6038 = vmatpush2.bf16.msra.mxu0 0
    %6039 = vmatprep.subr.bf16.mxu0 0
    %6040 = vmatpush2.bf16.msra.mxu0 0
    %6041 = vmatprep.mubr.bf16.mxu0 0
    %6042 = vmatmul.mubr.bf16.gmra.mxu0 %v5742
    %v6043 = vpop.f32.mrf.mxu0
    %v6044 = vadd.f32 %v5962, %v6043
    %v6045 = vpop.f32.mrf.mxu0
    %v6046 = vadd.f32 %v5963, %v6045
    %v6047 = vpop.f32.mrf.mxu0
    %v6048 = vpop.f32.mrf.mxu0
    %6049 = vdwg.mxu0
    %v6050 = vxor.u32 %v6003, 2147483648
    %v6051 = vmul.f32 %v6050, 1.442695
    %v6052 = vpow.pop %v6051
    %v6053 = vadd.f32 %v6052, 1.0
    %v6054 = vrcp.pop %v6053
    %v6055 = vmul.f32 1.0, %v6054
    %v6056 = vxor.u32 %v6005, 2147483648
    %v6057 = vmul.f32 %v6056, 1.442695
    %v6058 = vpow.pop %v6057
    %v6059 = vadd.f32 %v6058, 1.0
    %v6060 = vrcp.pop %v6059
    %v6061 = vmul.f32 1.0, %v6060
    %v6062 = vtanh.pop %v6044
    %v6063 = vxor.u32 %v6046, 2147483648
    %v6064 = vmul.f32 %v6063, 1.442695
    %v6065 = vpow.pop %v6064
    %v6066 = vadd.f32 %v6065, 1.0
    %v6067 = vrcp.pop %v6066
    %v6068 = vmul.f32 1.0, %v6067
    %v6069 = vld [vmem:[#allocation7] sm:$0x3]
    %v6070 = vmul.f32 %v6061, %v6069
    %v6071 = vmul.f32 %v6055, %v6062
    %v6072 = vadd.f32 %v6070, %v6071
    %v6073 = vtanh.pop %v6072
    %v6074 = vmul.f32 %v6068, %v6073
    %6075 = vst [vmem:[#allocation7] sm:$0x3] %v6072
    %6076 = vst [vmem:[#allocation6] sm:$0x3] %v6074
    %v6077 = vld [vmem:[#allocation6] sm:$0x3]
    %v6078 = vpack.c.bf16 %v6077, %v6077
    %v6079 = vld [vmem:[#allocation16] sm:$0xff]
    %v6080 = vld [vmem:[#allocation16 + $0x8] sm:$0xff]
    %v6081 = vld [vmem:[#allocation16 + $0x10] sm:$0xff]
    %v6082 = vld [vmem:[#allocation16 + $0x18] sm:$0xff]
    %v6083 = vld [vmem:[#allocation16 + $0x20] sm:$0xff]
    %v6084 = vld [vmem:[#allocation16 + $0x28] sm:$0xff]
    %v6085 = vld [vmem:[#allocation16 + $0x30] sm:$0xff]
    %v6086 = vld [vmem:[#allocation16 + $0x38] sm:$0xff]
    %v6087 = vld [vmem:[#allocation16 + $0x40] sm:$0xff]
    %v6088 = vld [vmem:[#allocation16 + $0x48] sm:$0xff]
    %v6089 = vld [vmem:[#allocation16 + $0x50] sm:$0xff]
    %v6090 = vld [vmem:[#allocation16 + $0x58] sm:$0xff]
    %v6091 = vld [vmem:[#allocation16 + $0x60] sm:$0xff]
    %v6092 = vld [vmem:[#allocation16 + $0x68] sm:$0xff]
    %v6093 = vld [vmem:[#allocation16 + $0x70] sm:$0xff]
    %v6094 = vld [vmem:[#allocation16 + $0x78] sm:$0xff]
    %v6095 = vld [vmem:[#allocation16 + $0x80] sm:$0xff]
    %v6096 = vld [vmem:[#allocation16 + $0x88] sm:$0xff]
    %v6097 = vld [vmem:[#allocation16 + $0x90] sm:$0xff]
    %v6098 = vld [vmem:[#allocation16 + $0x98] sm:$0xff]
    %v6099 = vld [vmem:[#allocation16 + $0xa0] sm:$0xff]
    %v6100 = vld [vmem:[#allocation16 + $0xa8] sm:$0xff]
    %v6101 = vld [vmem:[#allocation16 + $0xb0] sm:$0xff]
    %v6102 = vld [vmem:[#allocation16 + $0xb8] sm:$0xff]
    %v6103 = vld [vmem:[#allocation16 + $0xc0] sm:$0xff]
    %v6104 = vld [vmem:[#allocation16 + $0xc8] sm:$0xff]
    %v6105 = vld [vmem:[#allocation16 + $0xd0] sm:$0xff]
    %v6106 = vld [vmem:[#allocation16 + $0xd8] sm:$0xff]
    %v6107 = vld [vmem:[#allocation16 + $0xe0] sm:$0xff]
    %v6108 = vld [vmem:[#allocation16 + $0xe8] sm:$0xff]
    %v6109 = vld [vmem:[#allocation16 + $0xf0] sm:$0xff]
    %v6110 = vld [vmem:[#allocation16 + $0xf8] sm:$0xff]
    %v6111 = vld [vmem:[%s2727] ss:$8 sm:$0xf]
    %v6112 = vld [vmem:[%s2729] ss:$8 sm:$0xf]
    %v6145 = vunpack.c.l.b16 %v6079
    %v6146 = vunpack.c.h.b16 %v6079
    %v6147 = vunpack.c.l.b16 %v6080
    %v6148 = vunpack.c.h.b16 %v6080
    %v6149 = vunpack.c.l.b16 %v6081
    %v6150 = vunpack.c.h.b16 %v6081
    %v6151 = vunpack.c.l.b16 %v6082
    %v6152 = vunpack.c.h.b16 %v6082
    %v6153 = vunpack.c.l.b16 %v6083
    %v6154 = vunpack.c.h.b16 %v6083
    %v6155 = vunpack.c.l.b16 %v6084
    %v6156 = vunpack.c.h.b16 %v6084
    %v6157 = vunpack.c.l.b16 %v6085
    %v6158 = vunpack.c.h.b16 %v6085
    %v6159 = vunpack.c.l.b16 %v6086
    %v6160 = vunpack.c.h.b16 %v6086
    %v6161 = vunpack.c.l.b16 %v6087
    %v6162 = vunpack.c.h.b16 %v6087
    %v6163 = vunpack.c.l.b16 %v6088
    %v6164 = vunpack.c.h.b16 %v6088
    %v6165 = vunpack.c.l.b16 %v6089
    %v6166 = vunpack.c.h.b16 %v6089
    %v6167 = vunpack.c.l.b16 %v6090
    %v6168 = vunpack.c.h.b16 %v6090
    %v6169 = vunpack.c.l.b16 %v6091
    %v6170 = vunpack.c.h.b16 %v6091
    %v6171 = vunpack.c.l.b16 %v6092
    %v6172 = vunpack.c.h.b16 %v6092
    %v6173 = vunpack.c.l.b16 %v6093
    %v6174 = vunpack.c.h.b16 %v6093
    %v6175 = vunpack.c.l.b16 %v6094
    %v6176 = vunpack.c.h.b16 %v6094
    %v6177 = vunpack.c.l.b16 %v6095
    %v6178 = vunpack.c.h.b16 %v6095
    %v6179 = vunpack.c.l.b16 %v6096
    %v6180 = vunpack.c.h.b16 %v6096
    %v6181 = vunpack.c.l.b16 %v6097
    %v6182 = vunpack.c.h.b16 %v6097
    %v6183 = vunpack.c.l.b16 %v6098
    %v6184 = vunpack.c.h.b16 %v6098
    %v6185 = vunpack.c.l.b16 %v6099
    %v6186 = vunpack.c.h.b16 %v6099
    %v6187 = vunpack.c.l.b16 %v6100
    %v6188 = vunpack.c.h.b16 %v6100
    %v6189 = vunpack.c.l.b16 %v6101
    %v6190 = vunpack.c.h.b16 %v6101
    %v6191 = vunpack.c.l.b16 %v6102
    %v6192 = vunpack.c.h.b16 %v6102
    %v6193 = vunpack.c.l.b16 %v6103
    %v6194 = vunpack.c.h.b16 %v6103
    %v6195 = vunpack.c.l.b16 %v6104
    %v6196 = vunpack.c.h.b16 %v6104
    %v6197 = vunpack.c.l.b16 %v6105
    %v6198 = vunpack.c.h.b16 %v6105
    %v6199 = vunpack.c.l.b16 %v6106
    %v6200 = vunpack.c.h.b16 %v6106
    %v6201 = vunpack.c.l.b16 %v6107
    %v6202 = vunpack.c.h.b16 %v6107
    %v6203 = vunpack.c.l.b16 %v6108
    %v6204 = vunpack.c.h.b16 %v6108
    %v6205 = vunpack.c.l.b16 %v6109
    %v6206 = vunpack.c.h.b16 %v6109
    %v6207 = vunpack.c.l.b16 %v6110
    %v6208 = vunpack.c.h.b16 %v6110
    %v6209 = vpack.c.b16 %v6149, %v6145
    %v6210 = vpack.c.b16 %v6150, %v6146
    %v6211 = vpack.c.b16 %v6151, %v6147
    %v6212 = vpack.c.b16 %v6152, %v6148
    %v6213 = vpack.c.b16 %v6157, %v6153
    %v6214 = vpack.c.b16 %v6158, %v6154
    %v6215 = vpack.c.b16 %v6159, %v6155
    %v6216 = vpack.c.b16 %v6160, %v6156
    %v6217 = vpack.c.b16 %v6165, %v6161
    %v6218 = vpack.c.b16 %v6166, %v6162
    %v6219 = vpack.c.b16 %v6167, %v6163
    %v6220 = vpack.c.b16 %v6168, %v6164
    %v6221 = vpack.c.b16 %v6173, %v6169
    %v6222 = vpack.c.b16 %v6174, %v6170
    %v6223 = vpack.c.b16 %v6175, %v6171
    %v6224 = vpack.c.b16 %v6176, %v6172
    %v6225 = vpack.c.b16 %v6181, %v6177
    %v6226 = vpack.c.b16 %v6182, %v6178
    %v6227 = vpack.c.b16 %v6183, %v6179
    %v6228 = vpack.c.b16 %v6184, %v6180
    %v6229 = vpack.c.b16 %v6189, %v6185
    %v6230 = vpack.c.b16 %v6190, %v6186
    %v6231 = vpack.c.b16 %v6191, %v6187
    %v6232 = vpack.c.b16 %v6192, %v6188
    %v6233 = vpack.c.b16 %v6197, %v6193
    %v6234 = vpack.c.b16 %v6198, %v6194
    %v6235 = vpack.c.b16 %v6199, %v6195
    %v6236 = vpack.c.b16 %v6200, %v6196
    %v6237 = vpack.c.b16 %v6205, %v6201
    %v6238 = vpack.c.b16 %v6206, %v6202
    %v6239 = vpack.c.b16 %v6207, %v6203
    %v6240 = vpack.c.b16 %v6208, %v6204
    %v6275 = vcombine.low %v6111, %v6112
    %v6277 = vunpack.c.l.s4 1966171168
    %v6278 = vunpack.c.0.s8 %v6277
    %v6279 = vlaneseq
    %v6280 = vshrl.u32 %v6279, 7
    %v6281 = vsub.s32 %v6278, %v6280
    %v6282 = vrot.slane %v6275, %v6281
    %v6283 = vcombine.high %v6282, %v6282
    %v6285 = vunpack.c.l.s4 1966171168
    %v6286 = vunpack.c.0.s8 %v6285
    %v6287 = vlaneseq
    %v6288 = vshrl.u32 %v6287, 7
    %v6289 = vsub.s32 %v6286, %v6288
    %v6290 = vrot.slane %v6282, %v6289
    %v6292 = vunpack.c.l.s4 1966171168
    %v6293 = vunpack.c.0.s8 %v6292
    %v6294 = vlaneseq
    %v6295 = vshrl.u32 %v6294, 7
    %v6296 = vsub.s32 %v6293, %v6295
    %v6297 = vrot.slane %v6283, %v6296
    %v6298 = vcombine.high %v6290, %v6290
    %v6299 = vcombine.high %v6297, %v6297
    %6304 = vmatprep.subr.bf16.mxu0 %v6238
    %6305 = vmatpush1.bf16.msra.mxu0 %v6237
    %6306 = vmatprep.subr.bf16.mxu0 %v6234
    %6307 = vmatpush1.bf16.msra.mxu0 %v6233
    %6308 = vmatprep.subr.bf16.mxu0 %v6230
    %6309 = vmatpush1.bf16.msra.mxu0 %v6229
    %6310 = vmatprep.subr.bf16.mxu0 %v6226
    %6311 = vmatpush1.bf16.msra.mxu0 %v6225
    %6312 = vmatprep.subr.bf16.mxu0 %v6222
    %6313 = vmatpush1.bf16.msra.mxu0 %v6221
    %6314 = vmatprep.subr.bf16.mxu0 %v6218
    %6315 = vmatpush1.bf16.msra.mxu0 %v6217
    %6316 = vmatprep.subr.bf16.mxu0 %v6214
    %6317 = vmatpush1.bf16.msra.mxu0 %v6213
    %6318 = vmatprep.subr.bf16.mxu0 %v6210
    %6319 = vmatpush1.bf16.msra.mxu0 %v6209
    %6320 = vmatprep.subr.bf16.mxu0 0
    %6321 = vmatpush2.bf16.msra.mxu0 0
    %6322 = vmatprep.subr.bf16.mxu0 0
    %6323 = vmatpush2.bf16.msra.mxu0 0
    %6324 = vmatprep.subr.bf16.mxu0 0
    %6325 = vmatpush2.bf16.msra.mxu0 0
    %6326 = vmatprep.subr.bf16.mxu0 0
    %6327 = vmatpush2.bf16.msra.mxu0 0
    %6328 = vmatprep.subr.bf16.mxu0 0
    %6329 = vmatpush2.bf16.msra.mxu0 0
    %6330 = vmatprep.subr.bf16.mxu0 0
    %6331 = vmatpush2.bf16.msra.mxu0 0
    %6332 = vmatprep.subr.bf16.mxu0 0
    %6333 = vmatpush2.bf16.msra.mxu0 0
    %6334 = vmatprep.subr.bf16.mxu0 0
    %6335 = vmatpush2.bf16.msra.mxu0 0
    %6336 = vmatprep.mubr.bf16.mxu0 0
    %6337 = vmatmul.mubr.bf16.gmra.mxu0 %v6078
    %v6338 = vpop.f32.mrf.mxu0
    %v6339 = vadd.f32 %v6290, %v6338
    %v6340 = vpop.f32.mrf.mxu0
    %v6341 = vadd.f32 %v6297, %v6340
    %v6342 = vpop.f32.mrf.mxu0
    %v6343 = vpop.f32.mrf.mxu0
    %6344 = vdwg.mxu0
    %6345 = vmatprep.subr.bf16.mxu0 %v6240
    %6346 = vmatpush1.bf16.msra.mxu0 %v6239
    %6347 = vmatprep.subr.bf16.mxu0 %v6236
    %6348 = vmatpush1.bf16.msra.mxu0 %v6235
    %6349 = vmatprep.subr.bf16.mxu0 %v6232
    %6350 = vmatpush1.bf16.msra.mxu0 %v6231
    %6351 = vmatprep.subr.bf16.mxu0 %v6228
    %6352 = vmatpush1.bf16.msra.mxu0 %v6227
    %6353 = vmatprep.subr.bf16.mxu0 %v6224
    %6354 = vmatpush1.bf16.msra.mxu0 %v6223
    %6355 = vmatprep.subr.bf16.mxu0 %v6220
    %6356 = vmatpush1.bf16.msra.mxu0 %v6219
    %6357 = vmatprep.subr.bf16.mxu0 %v6216
    %6358 = vmatpush1.bf16.msra.mxu0 %v6215
    %6359 = vmatprep.subr.bf16.mxu0 %v6212
    %6360 = vmatpush1.bf16.msra.mxu0 %v6211
    %6361 = vmatprep.subr.bf16.mxu0 0
    %6362 = vmatpush2.bf16.msra.mxu0 0
    %6363 = vmatprep.subr.bf16.mxu0 0
    %6364 = vmatpush2.bf16.msra.mxu0 0
    %6365 = vmatprep.subr.bf16.mxu0 0
    %6366 = vmatpush2.bf16.msra.mxu0 0
    %6367 = vmatprep.subr.bf16.mxu0 0
    %6368 = vmatpush2.bf16.msra.mxu0 0
    %6369 = vmatprep.subr.bf16.mxu0 0
    %6370 = vmatpush2.bf16.msra.mxu0 0
    %6371 = vmatprep.subr.bf16.mxu0 0
    %6372 = vmatpush2.bf16.msra.mxu0 0
    %6373 = vmatprep.subr.bf16.mxu0 0
    %6374 = vmatpush2.bf16.msra.mxu0 0
    %6375 = vmatprep.subr.bf16.mxu0 0
    %6376 = vmatpush2.bf16.msra.mxu0 0
    %6377 = vmatprep.mubr.bf16.mxu0 0
    %6378 = vmatmul.mubr.bf16.gmra.mxu0 %v6078
    %v6379 = vpop.f32.mrf.mxu0
    %v6380 = vadd.f32 %v6298, %v6379
    %v6381 = vpop.f32.mrf.mxu0
    %v6382 = vadd.f32 %v6299, %v6381
    %v6383 = vpop.f32.mrf.mxu0
    %v6384 = vpop.f32.mrf.mxu0
    %6385 = vdwg.mxu0
    %v6386 = vxor.u32 %v6339, 2147483648
    %v6387 = vmul.f32 %v6386, 1.442695
    %v6388 = vpow.pop %v6387
    %v6389 = vadd.f32 %v6388, 1.0
    %v6390 = vrcp.pop %v6389
    %v6391 = vmul.f32 1.0, %v6390
    %v6392 = vxor.u32 %v6341, 2147483648
    %v6393 = vmul.f32 %v6392, 1.442695
    %v6394 = vpow.pop %v6393
    %v6395 = vadd.f32 %v6394, 1.0
    %v6396 = vrcp.pop %v6395
    %v6397 = vmul.f32 1.0, %v6396
    %v6398 = vtanh.pop %v6380
    %v6399 = vxor.u32 %v6382, 2147483648
    %v6400 = vmul.f32 %v6399, 1.442695
    %v6401 = vpow.pop %v6400
    %v6402 = vadd.f32 %v6401, 1.0
    %v6403 = vrcp.pop %v6402
    %v6404 = vmul.f32 1.0, %v6403
    %v6405 = vld [vmem:[#allocation7] sm:$0x3]
    %v6406 = vmul.f32 %v6397, %v6405
    %v6407 = vmul.f32 %v6391, %v6398
    %v6408 = vadd.f32 %v6406, %v6407
    %v6409 = vtanh.pop %v6408
    %v6410 = vmul.f32 %v6404, %v6409
    %6411 = vst [vmem:[#allocation7] sm:$0x3] %v6408
    %6412 = vst [vmem:[#allocation6] sm:$0x3] %v6410
    %v6413 = vld [vmem:[#allocation6] sm:$0x3]
    %v6414 = vpack.c.bf16 %v6413, %v6413
    %v6415 = vld [vmem:[#allocation16] sm:$0xff]
    %v6416 = vld [vmem:[#allocation16 + $0x8] sm:$0xff]
    %v6417 = vld [vmem:[#allocation16 + $0x10] sm:$0xff]
    %v6418 = vld [vmem:[#allocation16 + $0x18] sm:$0xff]
    %v6419 = vld [vmem:[#allocation16 + $0x20] sm:$0xff]
    %v6420 = vld [vmem:[#allocation16 + $0x28] sm:$0xff]
    %v6421 = vld [vmem:[#allocation16 + $0x30] sm:$0xff]
    %v6422 = vld [vmem:[#allocation16 + $0x38] sm:$0xff]
    %v6423 = vld [vmem:[#allocation16 + $0x40] sm:$0xff]
    %v6424 = vld [vmem:[#allocation16 + $0x48] sm:$0xff]
    %v6425 = vld [vmem:[#allocation16 + $0x50] sm:$0xff]
    %v6426 = vld [vmem:[#allocation16 + $0x58] sm:$0xff]
    %v6427 = vld [vmem:[#allocation16 + $0x60] sm:$0xff]
    %v6428 = vld [vmem:[#allocation16 + $0x68] sm:$0xff]
    %v6429 = vld [vmem:[#allocation16 + $0x70] sm:$0xff]
    %v6430 = vld [vmem:[#allocation16 + $0x78] sm:$0xff]
    %v6431 = vld [vmem:[#allocation16 + $0x80] sm:$0xff]
    %v6432 = vld [vmem:[#allocation16 + $0x88] sm:$0xff]
    %v6433 = vld [vmem:[#allocation16 + $0x90] sm:$0xff]
    %v6434 = vld [vmem:[#allocation16 + $0x98] sm:$0xff]
    %v6435 = vld [vmem:[#allocation16 + $0xa0] sm:$0xff]
    %v6436 = vld [vmem:[#allocation16 + $0xa8] sm:$0xff]
    %v6437 = vld [vmem:[#allocation16 + $0xb0] sm:$0xff]
    %v6438 = vld [vmem:[#allocation16 + $0xb8] sm:$0xff]
    %v6439 = vld [vmem:[#allocation16 + $0xc0] sm:$0xff]
    %v6440 = vld [vmem:[#allocation16 + $0xc8] sm:$0xff]
    %v6441 = vld [vmem:[#allocation16 + $0xd0] sm:$0xff]
    %v6442 = vld [vmem:[#allocation16 + $0xd8] sm:$0xff]
    %v6443 = vld [vmem:[#allocation16 + $0xe0] sm:$0xff]
    %v6444 = vld [vmem:[#allocation16 + $0xe8] sm:$0xff]
    %v6445 = vld [vmem:[#allocation16 + $0xf0] sm:$0xff]
    %v6446 = vld [vmem:[#allocation16 + $0xf8] sm:$0xff]
    %v6447 = vld [vmem:[%s3110] ss:$8 sm:$0xf]
    %v6448 = vld [vmem:[%s3112] ss:$8 sm:$0xf]
    %v6481 = vunpack.c.l.b16 %v6415
    %v6482 = vunpack.c.h.b16 %v6415
    %v6483 = vunpack.c.l.b16 %v6416
    %v6484 = vunpack.c.h.b16 %v6416
    %v6485 = vunpack.c.l.b16 %v6417
    %v6486 = vunpack.c.h.b16 %v6417
    %v6487 = vunpack.c.l.b16 %v6418
    %v6488 = vunpack.c.h.b16 %v6418
    %v6489 = vunpack.c.l.b16 %v6419
    %v6490 = vunpack.c.h.b16 %v6419
    %v6491 = vunpack.c.l.b16 %v6420
    %v6492 = vunpack.c.h.b16 %v6420
    %v6493 = vunpack.c.l.b16 %v6421
    %v6494 = vunpack.c.h.b16 %v6421
    %v6495 = vunpack.c.l.b16 %v6422
    %v6496 = vunpack.c.h.b16 %v6422
    %v6497 = vunpack.c.l.b16 %v6423
    %v6498 = vunpack.c.h.b16 %v6423
    %v6499 = vunpack.c.l.b16 %v6424
    %v6500 = vunpack.c.h.b16 %v6424
    %v6501 = vunpack.c.l.b16 %v6425
    %v6502 = vunpack.c.h.b16 %v6425
    %v6503 = vunpack.c.l.b16 %v6426
    %v6504 = vunpack.c.h.b16 %v6426
    %v6505 = vunpack.c.l.b16 %v6427
    %v6506 = vunpack.c.h.b16 %v6427
    %v6507 = vunpack.c.l.b16 %v6428
    %v6508 = vunpack.c.h.b16 %v6428
    %v6509 = vunpack.c.l.b16 %v6429
    %v6510 = vunpack.c.h.b16 %v6429
    %v6511 = vunpack.c.l.b16 %v6430
    %v6512 = vunpack.c.h.b16 %v6430
    %v6513 = vunpack.c.l.b16 %v6431
    %v6514 = vunpack.c.h.b16 %v6431
    %v6515 = vunpack.c.l.b16 %v6432
    %v6516 = vunpack.c.h.b16 %v6432
    %v6517 = vunpack.c.l.b16 %v6433
    %v6518 = vunpack.c.h.b16 %v6433
    %v6519 = vunpack.c.l.b16 %v6434
    %v6520 = vunpack.c.h.b16 %v6434
    %v6521 = vunpack.c.l.b16 %v6435
    %v6522 = vunpack.c.h.b16 %v6435
    %v6523 = vunpack.c.l.b16 %v6436
    %v6524 = vunpack.c.h.b16 %v6436
    %v6525 = vunpack.c.l.b16 %v6437
    %v6526 = vunpack.c.h.b16 %v6437
    %v6527 = vunpack.c.l.b16 %v6438
    %v6528 = vunpack.c.h.b16 %v6438
    %v6529 = vunpack.c.l.b16 %v6439
    %v6530 = vunpack.c.h.b16 %v6439
    %v6531 = vunpack.c.l.b16 %v6440
    %v6532 = vunpack.c.h.b16 %v6440
    %v6533 = vunpack.c.l.b16 %v6441
    %v6534 = vunpack.c.h.b16 %v6441
    %v6535 = vunpack.c.l.b16 %v6442
    %v6536 = vunpack.c.h.b16 %v6442
    %v6537 = vunpack.c.l.b16 %v6443
    %v6538 = vunpack.c.h.b16 %v6443
    %v6539 = vunpack.c.l.b16 %v6444
    %v6540 = vunpack.c.h.b16 %v6444
    %v6541 = vunpack.c.l.b16 %v6445
    %v6542 = vunpack.c.h.b16 %v6445
    %v6543 = vunpack.c.l.b16 %v6446
    %v6544 = vunpack.c.h.b16 %v6446
    %v6545 = vpack.c.b16 %v6485, %v6481
    %v6546 = vpack.c.b16 %v6486, %v6482
    %v6547 = vpack.c.b16 %v6487, %v6483
    %v6548 = vpack.c.b16 %v6488, %v6484
    %v6549 = vpack.c.b16 %v6493, %v6489
    %v6550 = vpack.c.b16 %v6494, %v6490
    %v6551 = vpack.c.b16 %v6495, %v6491
    %v6552 = vpack.c.b16 %v6496, %v6492
    %v6553 = vpack.c.b16 %v6501, %v6497
    %v6554 = vpack.c.b16 %v6502, %v6498
    %v6555 = vpack.c.b16 %v6503, %v6499
    %v6556 = vpack.c.b16 %v6504, %v6500
    %v6557 = vpack.c.b16 %v6509, %v6505
    %v6558 = vpack.c.b16 %v6510, %v6506
    %v6559 = vpack.c.b16 %v6511, %v6507
    %v6560 = vpack.c.b16 %v6512, %v6508
    %v6561 = vpack.c.b16 %v6517, %v6513
    %v6562 = vpack.c.b16 %v6518, %v6514
    %v6563 = vpack.c.b16 %v6519, %v6515
    %v6564 = vpack.c.b16 %v6520, %v6516
    %v6565 = vpack.c.b16 %v6525, %v6521
    %v6566 = vpack.c.b16 %v6526, %v6522
    %v6567 = vpack.c.b16 %v6527, %v6523
    %v6568 = vpack.c.b16 %v6528, %v6524
    %v6569 = vpack.c.b16 %v6533, %v6529
    %v6570 = vpack.c.b16 %v6534, %v6530
    %v6571 = vpack.c.b16 %v6535, %v6531
    %v6572 = vpack.c.b16 %v6536, %v6532
    %v6573 = vpack.c.b16 %v6541, %v6537
    %v6574 = vpack.c.b16 %v6542, %v6538
    %v6575 = vpack.c.b16 %v6543, %v6539
    %v6576 = vpack.c.b16 %v6544, %v6540
    %v6611 = vcombine.low %v6447, %v6448
    %v6613 = vunpack.c.l.s4 1966171168
    %v6614 = vunpack.c.0.s8 %v6613
    %v6615 = vlaneseq
    %v6616 = vshrl.u32 %v6615, 7
    %v6617 = vsub.s32 %v6614, %v6616
    %v6618 = vrot.slane %v6611, %v6617
    %v6619 = vcombine.high %v6618, %v6618
    %v6621 = vunpack.c.l.s4 1966171168
    %v6622 = vunpack.c.0.s8 %v6621
    %v6623 = vlaneseq
    %v6624 = vshrl.u32 %v6623, 7
    %v6625 = vsub.s32 %v6622, %v6624
    %v6626 = vrot.slane %v6618, %v6625
    %v6628 = vunpack.c.l.s4 1966171168
    %v6629 = vunpack.c.0.s8 %v6628
    %v6630 = vlaneseq
    %v6631 = vshrl.u32 %v6630, 7
    %v6632 = vsub.s32 %v6629, %v6631
    %v6633 = vrot.slane %v6619, %v6632
    %v6634 = vcombine.high %v6626, %v6626
    %v6635 = vcombine.high %v6633, %v6633
    %6640 = vmatprep.subr.bf16.mxu0 %v6574
    %6641 = vmatpush1.bf16.msra.mxu0 %v6573
    %6642 = vmatprep.subr.bf16.mxu0 %v6570
    %6643 = vmatpush1.bf16.msra.mxu0 %v6569
    %6644 = vmatprep.subr.bf16.mxu0 %v6566
    %6645 = vmatpush1.bf16.msra.mxu0 %v6565
    %6646 = vmatprep.subr.bf16.mxu0 %v6562
    %6647 = vmatpush1.bf16.msra.mxu0 %v6561
    %6648 = vmatprep.subr.bf16.mxu0 %v6558
    %6649 = vmatpush1.bf16.msra.mxu0 %v6557
    %6650 = vmatprep.subr.bf16.mxu0 %v6554
    %6651 = vmatpush1.bf16.msra.mxu0 %v6553
    %6652 = vmatprep.subr.bf16.mxu0 %v6550
    %6653 = vmatpush1.bf16.msra.mxu0 %v6549
    %6654 = vmatprep.subr.bf16.mxu0 %v6546
    %6655 = vmatpush1.bf16.msra.mxu0 %v6545
    %6656 = vmatprep.subr.bf16.mxu0 0
    %6657 = vmatpush2.bf16.msra.mxu0 0
    %6658 = vmatprep.subr.bf16.mxu0 0
    %6659 = vmatpush2.bf16.msra.mxu0 0
    %6660 = vmatprep.subr.bf16.mxu0 0
    %6661 = vmatpush2.bf16.msra.mxu0 0
    %6662 = vmatprep.subr.bf16.mxu0 0
    %6663 = vmatpush2.bf16.msra.mxu0 0
    %6664 = vmatprep.subr.bf16.mxu0 0
    %6665 = vmatpush2.bf16.msra.mxu0 0
    %6666 = vmatprep.subr.bf16.mxu0 0
    %6667 = vmatpush2.bf16.msra.mxu0 0
    %6668 = vmatprep.subr.bf16.mxu0 0
    %6669 = vmatpush2.bf16.msra.mxu0 0
    %6670 = vmatprep.subr.bf16.mxu0 0
    %6671 = vmatpush2.bf16.msra.mxu0 0
    %6672 = vmatprep.mubr.bf16.mxu0 0
    %6673 = vmatmul.mubr.bf16.gmra.mxu0 %v6414
    %v6674 = vpop.f32.mrf.mxu0
    %v6675 = vadd.f32 %v6626, %v6674
    %v6676 = vpop.f32.mrf.mxu0
    %v6677 = vadd.f32 %v6633, %v6676
    %v6678 = vpop.f32.mrf.mxu0
    %v6679 = vpop.f32.mrf.mxu0
    %6680 = vdwg.mxu0
    %6681 = vmatprep.subr.bf16.mxu0 %v6576
    %6682 = vmatpush1.bf16.msra.mxu0 %v6575
    %6683 = vmatprep.subr.bf16.mxu0 %v6572
    %6684 = vmatpush1.bf16.msra.mxu0 %v6571
    %6685 = vmatprep.subr.bf16.mxu0 %v6568
    %6686 = vmatpush1.bf16.msra.mxu0 %v6567
    %6687 = vmatprep.subr.bf16.mxu0 %v6564
    %6688 = vmatpush1.bf16.msra.mxu0 %v6563
    %6689 = vmatprep.subr.bf16.mxu0 %v6560
    %6690 = vmatpush1.bf16.msra.mxu0 %v6559
    %6691 = vmatprep.subr.bf16.mxu0 %v6556
    %6692 = vmatpush1.bf16.msra.mxu0 %v6555
    %6693 = vmatprep.subr.bf16.mxu0 %v6552
    %6694 = vmatpush1.bf16.msra.mxu0 %v6551
    %6695 = vmatprep.subr.bf16.mxu0 %v6548
    %6696 = vmatpush1.bf16.msra.mxu0 %v6547
    %6697 = vmatprep.subr.bf16.mxu0 0
    %6698 = vmatpush2.bf16.msra.mxu0 0
    %6699 = vmatprep.subr.bf16.mxu0 0
    %6700 = vmatpush2.bf16.msra.mxu0 0
    %6701 = vmatprep.subr.bf16.mxu0 0
    %6702 = vmatpush2.bf16.msra.mxu0 0
    %6703 = vmatprep.subr.bf16.mxu0 0
    %6704 = vmatpush2.bf16.msra.mxu0 0
    %6705 = vmatprep.subr.bf16.mxu0 0
    %6706 = vmatpush2.bf16.msra.mxu0 0
    %6707 = vmatprep.subr.bf16.mxu0 0
    %6708 = vmatpush2.bf16.msra.mxu0 0
    %6709 = vmatprep.subr.bf16.mxu0 0
    %6710 = vmatpush2.bf16.msra.mxu0 0
    %6711 = vmatprep.subr.bf16.mxu0 0
    %6712 = vmatpush2.bf16.msra.mxu0 0
    %6713 = vmatprep.mubr.bf16.mxu0 0
    %6714 = vmatmul.mubr.bf16.gmra.mxu0 %v6414
    %v6715 = vpop.f32.mrf.mxu0
    %v6716 = vadd.f32 %v6634, %v6715
    %v6717 = vpop.f32.mrf.mxu0
    %v6718 = vadd.f32 %v6635, %v6717
    %v6719 = vpop.f32.mrf.mxu0
    %v6720 = vpop.f32.mrf.mxu0
    %6721 = vdwg.mxu0
    %v6722 = vxor.u32 %v6675, 2147483648
    %v6723 = vmul.f32 %v6722, 1.442695
    %v6724 = vpow.pop %v6723
    %v6725 = vadd.f32 %v6724, 1.0
    %v6726 = vrcp.pop %v6725
    %v6727 = vmul.f32 1.0, %v6726
    %v6728 = vxor.u32 %v6677, 2147483648
    %v6729 = vmul.f32 %v6728, 1.442695
    %v6730 = vpow.pop %v6729
    %v6731 = vadd.f32 %v6730, 1.0
    %v6732 = vrcp.pop %v6731
    %v6733 = vmul.f32 1.0, %v6732
    %v6734 = vtanh.pop %v6716
    %v6735 = vxor.u32 %v6718, 2147483648
    %v6736 = vmul.f32 %v6735, 1.442695
    %v6737 = vpow.pop %v6736
    %v6738 = vadd.f32 %v6737, 1.0
    %v6739 = vrcp.pop %v6738
    %v6740 = vmul.f32 1.0, %v6739
    %v6741 = vld [vmem:[#allocation7] sm:$0x3]
    %v6742 = vmul.f32 %v6733, %v6741
    %v6743 = vmul.f32 %v6727, %v6734
    %v6744 = vadd.f32 %v6742, %v6743
    %v6745 = vtanh.pop %v6744
    %v6746 = vmul.f32 %v6740, %v6745
    %6747 = vst [vmem:[#allocation7] sm:$0x3] %v6744
    %6748 = vst [vmem:[#allocation6] sm:$0x3] %v6746
    // Predicated region
    $region66: #{tpu_custom_call.1} parent=1 // pred_check
      %p6749 = pneg %p116
    $region67: #{tpu_custom_call.1} parent=1 // pred_check_branch
      %6751 = sbr.rel (%p6749) target = $region69
    $region68: #{tpu_custom_call.1} parent=1 // pred_region
      %v6752 = vld [vmem:[#allocation6] sm:$0x3]
      %v6753 = vpack.c.bf16 %v6752, %v6752
      %v6754 = vld [vmem:[#allocation17] sm:$0xf]
      %v6755 = vld [vmem:[#allocation17 + $0x4] sm:$0xf]
      %v6756 = vld [vmem:[#allocation17 + $0x8] sm:$0xf]
      %v6757 = vld [vmem:[#allocation17 + $0xc] sm:$0xf]
      %v6758 = vld [vmem:[#allocation17 + $0x10] sm:$0xf]
      %v6759 = vld [vmem:[#allocation17 + $0x14] sm:$0xf]
      %v6760 = vld [vmem:[#allocation17 + $0x18] sm:$0xf]
      %v6761 = vld [vmem:[#allocation17 + $0x1c] sm:$0xf]
      %v6762 = vld [vmem:[#allocation17 + $0x20] sm:$0xf]
      %v6763 = vld [vmem:[#allocation17 + $0x24] sm:$0xf]
      %v6764 = vld [vmem:[#allocation17 + $0x28] sm:$0xf]
      %v6765 = vld [vmem:[#allocation17 + $0x2c] sm:$0xf]
      %v6766 = vld [vmem:[#allocation17 + $0x30] sm:$0xf]
      %v6767 = vld [vmem:[#allocation17 + $0x34] sm:$0xf]
      %v6768 = vld [vmem:[#allocation17 + $0x38] sm:$0xf]
      %v6769 = vld [vmem:[#allocation17 + $0x3c] sm:$0xf]
      %v6770 = vld [vmem:[%s8] sm:$0x1]
      %v6772 = vlaneseq
      %v6773 = vshrl.u32 %v6772, 7
      %v6774 = vsub.s32 0, %v6773
      %v6775 = vrot.slane %v6770, %v6774
      %v6793 = vunpack.c.l.b16 %v6754
      %v6794 = vunpack.c.l.b16 %v6755
      %v6795 = vunpack.c.l.b16 %v6756
      %v6796 = vunpack.c.l.b16 %v6757
      %v6797 = vunpack.c.l.b16 %v6758
      %v6798 = vunpack.c.l.b16 %v6759
      %v6799 = vunpack.c.l.b16 %v6760
      %v6800 = vunpack.c.l.b16 %v6761
      %v6801 = vunpack.c.l.b16 %v6762
      %v6802 = vunpack.c.l.b16 %v6763
      %v6803 = vunpack.c.l.b16 %v6764
      %v6804 = vunpack.c.l.b16 %v6765
      %v6805 = vunpack.c.l.b16 %v6766
      %v6806 = vunpack.c.l.b16 %v6767
      %v6807 = vunpack.c.l.b16 %v6768
      %v6808 = vunpack.c.l.b16 %v6769
      %v6809 = vpack.c.b16 %v6794, %v6793
      %v6810 = vpack.c.b16 %v6796, %v6795
      %v6811 = vpack.c.b16 %v6798, %v6797
      %v6812 = vpack.c.b16 %v6800, %v6799
      %v6813 = vpack.c.b16 %v6802, %v6801
      %v6814 = vpack.c.b16 %v6804, %v6803
      %v6815 = vpack.c.b16 %v6806, %v6805
      %v6816 = vpack.c.b16 %v6808, %v6807
      %6825 = vmatprep.subr.bf16.mxu0 0
      %6826 = vmatpush1.bf16.msra.mxu0 %v6816
      %6827 = vmatprep.subr.bf16.mxu0 0
      %6828 = vmatpush1.bf16.msra.mxu0 %v6815
      %6829 = vmatprep.subr.bf16.mxu0 0
      %6830 = vmatpush1.bf16.msra.mxu0 %v6814
      %6831 = vmatprep.subr.bf16.mxu0 0
      %6832 = vmatpush1.bf16.msra.mxu0 %v6813
      %6833 = vmatprep.subr.bf16.mxu0 0
      %6834 = vmatpush1.bf16.msra.mxu0 %v6812
      %6835 = vmatprep.subr.bf16.mxu0 0
      %6836 = vmatpush1.bf16.msra.mxu0 %v6811
      %6837 = vmatprep.subr.bf16.mxu0 0
      %6838 = vmatpush1.bf16.msra.mxu0 %v6810
      %6839 = vmatprep.subr.bf16.mxu0 0
      %6840 = vmatpush1.bf16.msra.mxu0 %v6809
      %6841 = vmatprep.subr.bf16.mxu0 0
      %6842 = vmatpush2.bf16.msra.mxu0 0
      %6843 = vmatprep.subr.bf16.mxu0 0
      %6844 = vmatpush2.bf16.msra.mxu0 0
      %6845 = vmatprep.subr.bf16.mxu0 0
      %6846 = vmatpush2.bf16.msra.mxu0 0
      %6847 = vmatprep.subr.bf16.mxu0 0
      %6848 = vmatpush2.bf16.msra.mxu0 0
      %6849 = vmatprep.subr.bf16.mxu0 0
      %6850 = vmatpush2.bf16.msra.mxu0 0
      %6851 = vmatprep.subr.bf16.mxu0 0
      %6852 = vmatpush2.bf16.msra.mxu0 0
      %6853 = vmatprep.subr.bf16.mxu0 0
      %6854 = vmatpush2.bf16.msra.mxu0 0
      %6855 = vmatprep.subr.bf16.mxu0 0
      %6856 = vmatpush2.bf16.msra.mxu0 0
      %6857 = vmatprep.mubr.bf16.mxu0 0
      %6858 = vmatmul.mubr.bf16.gmra.mxu0 %v6753
      %v6859 = vpop.f32.mrf.mxu0
      %v6860 = vadd.f32 %v6775, %v6859
      %v6861 = vpop.f32.mrf.mxu0
      %v6862 = vpop.f32.mrf.mxu0
      %v6863 = vpop.f32.mrf.mxu0
      %6864 = vdwg.mxu0
      %6865 = vst [vmem:[#allocation19] sm:$0x3] %v6860
    $region69: #{tpu_custom_call.1} parent=1 // pred_fallthru
      _
    // Predicated region
    $region70: #{tpu_custom_call.1} parent=1 // pred_check
      _
    $region71: #{tpu_custom_call.1} parent=1 // pred_check_branch
      %6867 = sbr.rel (0) target = $region73
    $region72: #{tpu_custom_call.1} parent=1 // pred_region
      %s6869 = ssub.s32 32, 32
      %6870 = vsyncadd [#allocation10], %s6869
      %s6872 = sshll.u32 [#allocation19], 4
      %s6873 = int_to_ptr.vmem [resolvable:$true] %s6872
      %6875 = dma.vmem_to_hbm [thread:$0]  %s6873, 32, %s9, [#allocation10]
    $region73: #{tpu_custom_call.1} parent=1 // pred_fallthru
      _
    // Predicated region
    $region74: #{tpu_custom_call.1} parent=1 // pred_check
      _
    $region75: #{tpu_custom_call.1} parent=1 // pred_check_branch
      %6877 = sbr.rel (0) target = $region77
    $region76: #{tpu_custom_call.1} parent=1 // pred_region
      %6878 = dma.done [#allocation10], 32
    $region77: #{tpu_custom_call.1} parent=1 // pred_fallthru
      _
    %6879 = vsyncpa [#allocation9], 1
    %6880 = vsyncpa [#allocation12], 1
    %6881 = vsyncpa [#allocation15], 1
    %6882 = vsyncpa [#allocation18], 1
    %6883 = vsyncpa [#allocation10], 1

</llo_original>
